<compile_context>
chip_gen: v7x
topology: tpu7x:2x2x1
jax: 0.10.0
libtpu: 0.0.40
codegen_flags: <defaults>
</compile_context>

<pallas_src>
import functools

import jax
import jax.numpy as jnp
import numpy as np
from jax.experimental import pallas as pl
from jax.experimental.pallas import tpu as pltpu


# ----------------------------------------------------------------------------
# Helpers
# ----------------------------------------------------------------------------
def _round_up(x, m):
    return ((x + m - 1) // m) * m


def _choose_tile(dim, base, max_tile):
    """Return (padded_dim, tile) with tile | padded_dim and tile % base == 0."""
    p = _round_up(dim, base)
    if p <= max_tile:
        return p, p
    p = _round_up(dim, max_tile)
    return p, max_tile


# ----------------------------------------------------------------------------
# Pallas kernel 1: tiled matmul + bias (+ fused LeakyReLU)
# ----------------------------------------------------------------------------
def _matmul_bias_kernel(a_ref, b_ref, bias_ref, o_ref, acc_ref, *, leaky):
    @pl.when(pl.program_id(2) == 0)
    def _():
        acc_ref[...] = jnp.zeros_like(acc_ref)

    acc_ref[...] += jnp.dot(a_ref[...], b_ref[...],
                            preferred_element_type=jnp.float32)

    @pl.when(pl.program_id(2) == pl.num_programs(2) - 1)
    def _():
        y = acc_ref[...] + bias_ref[...]
        if leaky:
            y = jnp.where(y > 0, y, 0.2 * y)  # LeakyReLU(0.2)
        o_ref[...] = y.astype(o_ref.dtype)


def matmul_bias_pallas(a, b, bias, leaky):
    M, K = a.shape
    K2, N = b.shape
    assert K == K2
    # v7x-safe tile budget: (2 inputs x 2 bufs x tile + acc) << 32 MiB scoped VMEM.
    Mp, tm = _choose_tile(M, 8, 512)
    Kp, tk = _choose_tile(K, 128, 256)
    Np, tn = _choose_tile(N, 128, 256)

    a_p = jnp.pad(a.astype(jnp.float32), ((0, Mp - M), (0, Kp - K)))
    b_p = jnp.pad(b.astype(jnp.float32), ((0, Kp - K), (0, Np - N)))
    bias_p = jnp.pad(bias.astype(jnp.float32).reshape(1, N),
                     ((0, 0), (0, Np - N)))

    grid = (Mp // tm, Np // tn, Kp // tk)
    out = pl.pallas_call(
        functools.partial(_matmul_bias_kernel, leaky=leaky),
        grid_spec=pltpu.PrefetchScalarGridSpec(
            num_scalar_prefetch=0,
            grid=grid,
            in_specs=[
                pl.BlockSpec((tm, tk), lambda i, j, k: (i, k)),
                pl.BlockSpec((tk, tn), lambda i, j, k: (k, j)),
                pl.BlockSpec((1, tn), lambda i, j, k: (0, j)),
            ],
            out_specs=pl.BlockSpec((tm, tn), lambda i, j, k: (i, j)),
            scratch_shapes=[pltpu.VMEM((tm, tn), jnp.float32)],
        ),
        out_shape=jax.ShapeDtypeStruct((Mp, Np), jnp.float32),
        compiler_params=pltpu.CompilerParams(
            dimension_semantics=("parallel", "parallel", "arbitrary")),
    )(a_p, b_p, bias_p)
    return out[:M, :N]


# ----------------------------------------------------------------------------
# Pallas kernels 2+3: tiled BatchNorm (batch stats) + LeakyReLU
# ----------------------------------------------------------------------------
def _bn_stats_kernel(x_ref, sum_ref, ssq_ref):
    @pl.when(pl.program_id(0) == 0)
    def _():
        sum_ref[...] = jnp.zeros_like(sum_ref)
        ssq_ref[...] = jnp.zeros_like(ssq_ref)

    x = x_ref[...]
    sum_ref[...] += jnp.sum(x, axis=0, keepdims=True)
    ssq_ref[...] += jnp.sum(x * x, axis=0, keepdims=True)


def _bn_norm_lrelu_kernel(x_ref, sum_ref, ssq_ref, g_ref, b_ref, o_ref, *,
                          count, eps):
    inv_n = 1.0 / count
    mean = sum_ref[...] * inv_n
    var = jnp.maximum(ssq_ref[...] * inv_n - mean * mean, 0.0)
    scale = jax.lax.rsqrt(var + eps) * g_ref[...]
    shift = b_ref[...] - mean * scale
    y = x_ref[...] * scale + shift
    o_ref[...] = jnp.where(y > 0, y, 0.2 * y)


def bn_lrelu_pallas(x_flat, gamma, beta, eps=1e-5):
    # BatchNorm2d training-mode statistics (biased variance over N*H*W).
    M, C = x_flat.shape
    Cp = _round_up(C, 128)          # lane-dense channel dim
    Mp, tm = _choose_tile(M, 8, 512)

    xp = jnp.pad(x_flat.astype(jnp.float32), ((0, Mp - M), (0, Cp - C)))
    g = jnp.pad(gamma.astype(jnp.float32), (0, Cp - C)).reshape(1, Cp)
    b = jnp.pad(beta.astype(jnp.float32), (0, Cp - C)).reshape(1, Cp)
    grid = (Mp // tm,)

    # Pass 1: per-channel sum / sum-of-squares (padded rows are zero -> no bias).
    vec_spec = pl.BlockSpec((1, Cp), lambda i: (0, 0))
    x_spec = pl.BlockSpec((tm, Cp), lambda i: (i, 0))
    s_shape = jax.ShapeDtypeStruct((1, Cp), jnp.float32)
    sums, ssqs = pl.pallas_call(
        _bn_stats_kernel,
        grid=grid,
        in_specs=[x_spec],
        out_specs=(vec_spec, vec_spec),
        out_shape=(s_shape, s_shape),
        compiler_params=pltpu.CompilerParams(
            dimension_semantics=("arbitrary",)),
    )(xp)

    # Pass 2: normalize + LeakyReLU, tiled over rows.
    out = pl.pallas_call(
        functools.partial(_bn_norm_lrelu_kernel, count=M, eps=eps),
        grid=grid,
        in_specs=[x_spec, vec_spec, vec_spec, vec_spec, vec_spec],
        out_specs=x_spec,
        out_shape=jax.ShapeDtypeStruct((Mp, Cp), jnp.float32),
        compiler_params=pltpu.CompilerParams(
            dimension_semantics=("parallel",)),
    )(xp, sums, ssqs, g, b)
    return out[:M, :C]


# ----------------------------------------------------------------------------
# Pallas kernel 4: AvgPool2d(3, stride=2, pad=1, count_include_pad=False)
# ----------------------------------------------------------------------------
def _avgpool_kernel(*refs):
    o_ref = refs[-1]
    r_ref = refs[-2]
    taps = refs[:-2]
    s = taps[0][...]
    for t in taps[1:]:
        s = s + t[...]
    o_ref[...] = s * r_ref[...]


def avgpool_3x3_s2_pallas(x_nhwc):
    N, H, W, C = x_nhwc.shape
    OH = (H + 2 - 3) // 2 + 1
    OW = (W + 2 - 3) // 2 + 1
    xp = jnp.pad(x_nhwc.astype(jnp.float32), ((0, 0), (1, 1), (1, 1), (0, 0)))

    L = OH * OW * C
    Lp, tl = _choose_tile(L, 128, 512)
    Nr = _round_up(N, 8)

    taps = []
    for i in range(3):
        for j in range(3):
            v = xp[:, i:i + 2 * OH - 1:2, j:j + 2 * OW - 1:2, :].reshape(N, L)
            taps.append(jnp.pad(v, ((0, Nr - N), (0, Lp - L))))

    # count_include_pad=False -> reciprocal valid-window size, constant per
    # (oh, ow) position (border-dependent only); precomputed at trace time.
    rr = np.arange(OH)[:, None] * 2 - 1 + np.arange(3)[None, :]
    cc = np.arange(OW)[:, None] * 2 - 1 + np.arange(3)[None, :]
    nr = ((rr >= 0) & (rr < H)).sum(1).astype(np.float32)
    nc = ((cc >= 0) & (cc < W)).sum(1).astype(np.float32)
    recip = (1.0 / (nr[:, None] * nc[None, :]))[:, :, None]
    recip = np.broadcast_to(recip, (OH, OW, C)).reshape(1, L)
    recip = np.pad(recip, ((0, 0), (0, Lp - L)))
    recip = jnp.asarray(recip, jnp.float32)

    grid = (Lp // tl,)
    tap_spec = pl.BlockSpec((Nr, tl), lambda i: (0, i))
    out = pl.pallas_call(
        _avgpool_kernel,
        grid=grid,
        in_specs=[tap_spec] * 9 + [pl.BlockSpec((1, tl), lambda i: (0, i))],
        out_specs=tap_spec,
        out_shape=jax.ShapeDtypeStruct((Nr, Lp), jnp.float32),
        compiler_params=pltpu.CompilerParams(
            dimension_semantics=("parallel",)),
    )(*taps, recip)
    return out[:N, :L].reshape(N, OH, OW, C)


# ----------------------------------------------------------------------------
# Conv layer glue (im2col indexing only; fused by jit)
# ----------------------------------------------------------------------------
def _im2col(x_nhwc, kh, kw, stride, pad):
    N, H, W, C = x_nhwc.shape
    xp = jnp.pad(x_nhwc, ((0, 0), (pad, pad), (pad, pad), (0, 0)))
    OH = (H + 2 * pad - kh) // stride + 1
    OW = (W + 2 * pad - kw) // stride + 1
    patches = []
    for i in range(kh):
        for j in range(kw):
            patches.append(
                xp[:, i:i + stride * (OH - 1) + 1:stride,
                      j:j + stride * (OW - 1) + 1:stride, :])
    p = jnp.stack(patches, axis=3)  # (N, OH, OW, kh*kw, C)
    return p.reshape(N * OH * OW, kh * kw * C), OH, OW


def conv2d_pallas(x_nhwc, w_oihw, bias, stride, pad, leaky):
    # w_oihw: PyTorch layout (Cout, Cin, KH, KW)
    N = x_nhwc.shape[0]
    Cout, Cin, KH, KW = w_oihw.shape
    patches, OH, OW = _im2col(x_nhwc, KH, KW, stride, pad)
    w_mat = jnp.transpose(w_oihw, (2, 3, 1, 0)).reshape(KH * KW * Cin, Cout)
    out = matmul_bias_pallas(patches, w_mat, bias, leaky)
    return out.reshape(N, OH, OW, Cout)


# ----------------------------------------------------------------------------
# Parameter construction (deterministic, PyTorch-like default init)
# ----------------------------------------------------------------------------
def _init_conv(key, cin, cout, kh=4, kw=4, use_bias=True):
    k1, k2 = jax.random.split(key)
    fan_in = cin * kh * kw
    bound = 1.0 / np.sqrt(fan_in)
    w = jax.random.uniform(k1, (cout, cin, kh, kw), jnp.float32, -bound, bound)
    if use_bias:
        b = jax.random.uniform(k2, (cout,), jnp.float32, -bound, bound)
    else:
        b = jnp.zeros((cout,), jnp.float32)
    return w, b


def build_nlayer_discriminator(key, input_nc, ndf, n_layers, n_out_channels):
    # norm_layer = BatchNorm2d  -> use_bias = False for the inner convs
    use_bias = False
    keys = jax.random.split(key, n_layers + 2)
    layers = []
    # layer 0: conv(input_nc -> ndf, stride 2) + LeakyReLU
    w, b = _init_conv(keys[0], input_nc, ndf, use_bias=True)
    layers.append(dict(w=w, b=b, stride=2, bn=False, act=True))
    nf_mult = 1
    for n in range(1, n_layers):
        nf_prev, nf_mult = nf_mult, min(2 ** n, 8)
        w, b = _init_conv(keys[n], ndf * nf_prev, ndf * nf_mult, use_bias=use_bias)
        layers.append(dict(w=w, b=b, stride=2, bn=True, act=True,
                           gamma=jnp.ones((ndf * nf_mult,), jnp.float32),
                           beta=jnp.zeros((ndf * nf_mult,), jnp.float32)))
    nf_prev, nf_mult = nf_mult, min(2 ** n_layers, 8)
    w, b = _init_conv(keys[n_layers], ndf * nf_prev, ndf * nf_mult, use_bias=use_bias)
    layers.append(dict(w=w, b=b, stride=1, bn=True, act=True,
                       gamma=jnp.ones((ndf * nf_mult,), jnp.float32),
                       beta=jnp.zeros((ndf * nf_mult,), jnp.float32)))
    # final: conv(-> n_out_channels, stride 1), no sigmoid (use_sigmoid=False)
    w, b = _init_conv(keys[n_layers + 1], ndf * nf_mult, n_out_channels, use_bias=True)
    layers.append(dict(w=w, b=b, stride=1, bn=False, act=False))
    return layers


# ----------------------------------------------------------------------------
# Forward passes
# ----------------------------------------------------------------------------
def nlayer_disc_forward(layers, x_nhwc):
    x = x_nhwc
    for layer in layers:
        # Fuse LeakyReLU into the conv kernel only when there is no norm layer.
        fuse_act = layer["act"] and not layer["bn"]
        x = conv2d_pallas(x, layer["w"], layer["b"], layer["stride"], pad=2,
                          leaky=fuse_act)
        if layer["bn"]:
            N, OH, OW, C = x.shape
            x = bn_lrelu_pallas(x.reshape(N * OH * OW, C),
                                layer["gamma"], layer["beta"]).reshape(N, OH, OW, C)
    return x


def multiscale_discriminator_forward(all_scale_params, x_nchw):
    # getIntermFeat=False: each scale returns [final_tensor]; coarse-to-fine
    # order follows the PyTorch module (layer{num_D-1} first, on the original
    # resolution, then progressively downsampled inputs).
    num_D = len(all_scale_params)
    x = jnp.transpose(x_nchw, (0, 2, 3, 1))  # NCHW -> NHWC
    result = []
    x_ds = x
    for i in range(num_D):
        params = all_scale_params[num_D - 1 - i]
        out_nhwc = nlayer_disc_forward(params, x_ds)
        result.append([jnp.transpose(out_nhwc, (0, 3, 1, 2))])  # back to NCHW
        if i != num_D - 1:
            x_ds = avgpool_3x3_s2_pallas(x_ds)
    return result


# ----------------------------------------------------------------------------
# Main
# ----------------------------------------------------------------------------
if __name__ == "__main__":
    input_nc = 4
    ndf = 8
    n_layers = 3
    num_D = 2
    n_out_channels = 1
    batch, spatial = 2, 16

    root = jax.random.PRNGKey(0)
    kx, kp = jax.random.split(root)
    x = jax.random.normal(kx, (batch, input_nc, spatial, spatial), jnp.float32)

    scale_keys = jax.random.split(kp, num_D)
    all_scale_params = [
        build_nlayer_discriminator(scale_keys[i], input_nc, ndf, n_layers,
                                   n_out_channels)
        for i in range(num_D)
    ]

    # Jit the whole multiscale forward (params closed over as constants) so all
    # pallas_calls and the im2col / pad / reshape glue fuse into one executable.
    forward = jax.jit(functools.partial(multiscale_discriminator_forward,
                                        all_scale_params))
    result = forward(x)
    for scale_out in result:
        for t in scale_out:
            jax.block_until_ready(t)
    print("KERNEL_OK")
</pallas_src>

<mosaic_0001>
module attributes {stable_mosaic.version = 11 : i64} {
  func.func @_matmul_bias_kernel(%arg0: i32, %arg1: i32, %arg2: i32, %arg3: memref<168x128xf32, #tpu.memory_space<vmem>>, %arg4: memref<128x128xf32, #tpu.memory_space<vmem>>, %arg5: memref<1x128xf32, #tpu.memory_space<vmem>>, %arg6: memref<168x128xf32, #tpu.memory_space<vmem>>, %arg7: memref<168x128xf32, #tpu.memory_space<vmem>>) attributes {dimension_semantics = [#tpu.dimension_semantics<parallel>, #tpu.dimension_semantics<parallel>, #tpu.dimension_semantics<arbitrary>], iteration_bounds = array<i64: 1, 1, 1>, scalar_prefetch = 0 : i64, scratch_operands = 1 : i64, tpu.core_type = #tpu.core_type<tc>, window_params = [{transform_indices = @transform_0, window_bounds = array<i64: 168, 128>}, {transform_indices = @transform_1, window_bounds = array<i64: 128, 128>}, {transform_indices = @transform_2, window_bounds = array<i64: 1, 128>}, {transform_indices = @transform_3, window_bounds = array<i64: 168, 128>}]} {
    %c0_i32 = arith.constant 0 : i32
    %0 = arith.cmpi eq, %arg2, %c0_i32 : i32
    %1 = arith.extui %0 : i1 to i32
    %c0_i32_0 = arith.constant 0 : i32
    %2 = arith.cmpi ne, %1, %c0_i32_0 : i32
    scf.if %2 {
      %cst_10 = arith.constant 0.000000e+00 : f32
      %12 = vector.broadcast %cst_10 : f32 to vector<168x128xf32>
      %c0_11 = arith.constant 0 : index
      %c0_12 = arith.constant 0 : index
      %13 = vector.load %arg7[%c0_11, %c0_12] : memref<168x128xf32, #tpu.memory_space<vmem>>, vector<168x128xf32>
      tpu.vector_store %arg7[%c0_11, %c0_12], %12 {strides = array<i32>} : memref<168x128xf32, #tpu.memory_space<vmem>>, vector<168x128xf32>,
    } else {
    }
    %c0 = arith.constant 0 : index
    %c0_1 = arith.constant 0 : index
    %3 = vector.load %arg7[%c0, %c0_1] : memref<168x128xf32, #tpu.memory_space<vmem>>, vector<168x128xf32>
    %c0_2 = arith.constant 0 : index
    %c0_3 = arith.constant 0 : index
    %4 = vector.load %arg3[%c0_2, %c0_3] : memref<168x128xf32, #tpu.memory_space<vmem>>, vector<168x128xf32>
    %c0_4 = arith.constant 0 : index
    %c0_5 = arith.constant 0 : index
    %5 = vector.load %arg4[%c0_4, %c0_5] : memref<128x128xf32, #tpu.memory_space<vmem>>, vector<128x128xf32>
    %cst = arith.constant dense<0.000000e+00> : vector<168x128xf32>
    %6 = tpu.matmul %4, %5, %cst {dimension_numbers = #tpu.dot_dimension_numbers<[1], [0], [0], [1], [0, 0, 1, 1], [], []>} : vector<168x128xf32>, vector<128x128xf32>, vector<168x128xf32> -> vector<168x128xf32>
    %7 = arith.addf %3, %6 : vector<168x128xf32>
    %c0_6 = arith.constant 0 : index
    %c0_7 = arith.constant 0 : index
    %8 = vector.load %arg7[%c0_6, %c0_7] : memref<168x128xf32, #tpu.memory_space<vmem>>, vector<168x128xf32>
    tpu.vector_store %arg7[%c0_6, %c0_7], %7 {strides = array<i32>} : memref<168x128xf32, #tpu.memory_space<vmem>>, vector<168x128xf32>,
    %c0_i32_8 = arith.constant 0 : i32
    %9 = arith.cmpi eq, %arg2, %c0_i32_8 : i32
    %10 = arith.extui %9 : i1 to i32
    %c0_i32_9 = arith.constant 0 : i32
    %11 = arith.cmpi ne, %10, %c0_i32_9 : i32
    scf.if %11 {
      %c0_10 = arith.constant 0 : index
      %c0_11 = arith.constant 0 : index
      %12 = vector.load %arg7[%c0_10, %c0_11] : memref<168x128xf32, #tpu.memory_space<vmem>>, vector<168x128xf32>
      %c0_12 = arith.constant 0 : index
      %c0_13 = arith.constant 0 : index
      %13 = vector.load %arg5[%c0_12, %c0_13] : memref<1x128xf32, #tpu.memory_space<vmem>>, vector<1x128xf32>
      %14 = vector.broadcast %13 : vector<1x128xf32> to vector<168x128xf32>
      %15 = arith.addf %12, %14 : vector<168x128xf32>
      %cst_14 = arith.constant 0.000000e+00 : f32
      %16 = vector.broadcast %cst_14 : f32 to vector<168x128xf32>
      %17 = arith.cmpf ogt, %15, %16 : vector<168x128xf32>
      %cst_15 = arith.constant 2.000000e-01 : f32
      %18 = vector.broadcast %cst_15 : f32 to vector<168x128xf32>
      %19 = arith.mulf %18, %15 : vector<168x128xf32>
      %20 = arith.select %17, %15, %19 : vector<168x128xi1>, vector<168x128xf32>
      %c0_16 = arith.constant 0 : index
      %c0_17 = arith.constant 0 : index
      %21 = vector.load %arg6[%c0_16, %c0_17] : memref<168x128xf32, #tpu.memory_space<vmem>>, vector<168x128xf32>
      tpu.vector_store %arg6[%c0_16, %c0_17], %20 {strides = array<i32>} : memref<168x128xf32, #tpu.memory_space<vmem>>, vector<168x128xf32>,
    } else {
    }
    return
  }
  func.func @transform_0(%arg0: i32, %arg1: i32, %arg2: i32) -> (i32, i32) {
    %c0_i32 = arith.constant 0 : i32
    return %arg0, %arg2 : i32, i32
  }
  func.func @transform_1(%arg0: i32, %arg1: i32, %arg2: i32) -> (i32, i32) {
    %c0_i32 = arith.constant 0 : i32
    return %arg2, %arg1 : i32, i32
  }
  func.func @transform_2(%arg0: i32, %arg1: i32, %arg2: i32) -> (i32, i32) {
    %c0_i32 = arith.constant 0 : i32
    %c0_i32_0 = arith.constant 0 : i32
    return %c0_i32, %arg1 : i32, i32
  }
  func.func @transform_3(%arg0: i32, %arg1: i32, %arg2: i32) -> (i32, i32) {
    %c0_i32 = arith.constant 0 : i32
    return %arg0, %arg1 : i32, i32
  }
}

module attributes {stable_mosaic.version = 11 : i64} {
  func.func @_bn_stats_kernel(%arg0: i32, %arg1: memref<56x128xf32, #tpu.memory_space<vmem>>, %arg2: memref<1x128xf32, #tpu.memory_space<vmem>>, %arg3: memref<1x128xf32, #tpu.memory_space<vmem>>) attributes {dimension_semantics = [#tpu.dimension_semantics<arbitrary>], iteration_bounds = array<i64: 1>, scalar_prefetch = 0 : i64, scratch_operands = 0 : i64, tpu.core_type = #tpu.core_type<tc>, window_params = [{transform_indices = @transform_0, window_bounds = array<i64: 56, 128>}, {pipeline_mode = #tpu.pipeline_mode<synchronous>, transform_indices = @transform_1, window_bounds = array<i64: 1, 128>}, {pipeline_mode = #tpu.pipeline_mode<synchronous>, transform_indices = @transform_2, window_bounds = array<i64: 1, 128>}]} {
    %c0_i32 = arith.constant 0 : i32
    %0 = arith.cmpi eq, %arg0, %c0_i32 : i32
    %1 = arith.extui %0 : i1 to i32
    %c0_i32_0 = arith.constant 0 : i32
    %2 = arith.cmpi ne, %1, %c0_i32_0 : i32
    scf.if %2 {
      %cst_11 = arith.constant 0.000000e+00 : f32
      %15 = vector.broadcast %cst_11 : f32 to vector<1x128xf32>
      %c0_12 = arith.constant 0 : index
      %c0_13 = arith.constant 0 : index
      %16 = vector.load %arg2[%c0_12, %c0_13] : memref<1x128xf32, #tpu.memory_space<vmem>>, vector<1x128xf32>
      tpu.vector_store %arg2[%c0_12, %c0_13], %15 {strides = array<i32>} : memref<1x128xf32, #tpu.memory_space<vmem>>, vector<1x128xf32>,
      %cst_14 = arith.constant 0.000000e+00 : f32
      %17 = vector.broadcast %cst_14 : f32 to vector<1x128xf32>
      %c0_15 = arith.constant 0 : index
      %c0_16 = arith.constant 0 : index
      %18 = vector.load %arg3[%c0_15, %c0_16] : memref<1x128xf32, #tpu.memory_space<vmem>>, vector<1x128xf32>
      tpu.vector_store %arg3[%c0_15, %c0_16], %17 {strides = array<i32>} : memref<1x128xf32, #tpu.memory_space<vmem>>, vector<1x128xf32>,
    } else {
    }
    %c0 = arith.constant 0 : index
    %c0_1 = arith.constant 0 : index
    %3 = vector.load %arg1[%c0, %c0_1] : memref<56x128xf32, #tpu.memory_space<vmem>>, vector<56x128xf32>
    %c0_2 = arith.constant 0 : index
    %c0_3 = arith.constant 0 : index
    %4 = vector.load %arg2[%c0_2, %c0_3] : memref<1x128xf32, #tpu.memory_space<vmem>>, vector<1x128xf32>
    %cst = arith.constant dense<0.000000e+00> : vector<128xf32>
    %5 = vector.multi_reduction <add>, %3, %cst [0] : vector<56x128xf32> to vector<128xf32>
    %6 = vector.shape_cast %5 : vector<128xf32> to vector<1x128xf32>
    %7 = arith.addf %4, %6 : vector<1x128xf32>
    %c0_4 = arith.constant 0 : index
    %c0_5 = arith.constant 0 : index
    %8 = vector.load %arg2[%c0_4, %c0_5] : memref<1x128xf32, #tpu.memory_space<vmem>>, vector<1x128xf32>
    tpu.vector_store %arg2[%c0_4, %c0_5], %7 {strides = array<i32>} : memref<1x128xf32, #tpu.memory_space<vmem>>, vector<1x128xf32>,
    %c0_6 = arith.constant 0 : index
    %c0_7 = arith.constant 0 : index
    %9 = vector.load %arg3[%c0_6, %c0_7] : memref<1x128xf32, #tpu.memory_space<vmem>>, vector<1x128xf32>
    %10 = arith.mulf %3, %3 : vector<56x128xf32>
    %cst_8 = arith.constant dense<0.000000e+00> : vector<128xf32>
    %11 = vector.multi_reduction <add>, %10, %cst_8 [0] : vector<56x128xf32> to vector<128xf32>
    %12 = vector.shape_cast %11 : vector<128xf32> to vector<1x128xf32>
    %13 = arith.addf %9, %12 : vector<1x128xf32>
    %c0_9 = arith.constant 0 : index
    %c0_10 = arith.constant 0 : index
    %14 = vector.load %arg3[%c0_9, %c0_10] : memref<1x128xf32, #tpu.memory_space<vmem>>, vector<1x128xf32>
    tpu.vector_store %arg3[%c0_9, %c0_10], %13 {strides = array<i32>} : memref<1x128xf32, #tpu.memory_space<vmem>>, vector<1x128xf32>,
    return
  }
  func.func @transform_0(%arg0: i32) -> (i32, i32) {
    %c0_i32 = arith.constant 0 : i32
    %c0_i32_0 = arith.constant 0 : i32
    return %arg0, %c0_i32 : i32, i32
  }
  func.func @transform_1(%arg0: i32) -> (i32, i32) {
    %c0_i32 = arith.constant 0 : i32
    %c0_i32_0 = arith.constant 0 : i32
    %c0_i32_1 = arith.constant 0 : i32
    return %c0_i32, %c0_i32_0 : i32, i32
  }
  func.func @transform_2(%arg0: i32) -> (i32, i32) {
    %c0_i32 = arith.constant 0 : i32
    %c0_i32_0 = arith.constant 0 : i32
    %c0_i32_1 = arith.constant 0 : i32
    return %c0_i32, %c0_i32_0 : i32, i32
  }
}

module attributes {stable_mosaic.version = 11 : i64} {
  func.func @_matmul_bias_kernel(%arg0: i32, %arg1: i32, %arg2: i32, %arg3: memref<56x128xf32, #tpu.memory_space<vmem>>, %arg4: memref<128x128xf32, #tpu.memory_space<vmem>>, %arg5: memref<1x128xf32, #tpu.memory_space<vmem>>, %arg6: memref<56x128xf32, #tpu.memory_space<vmem>>, %arg7: memref<56x128xf32, #tpu.memory_space<vmem>>) attributes {dimension_semantics = [#tpu.dimension_semantics<parallel>, #tpu.dimension_semantics<parallel>, #tpu.dimension_semantics<arbitrary>], iteration_bounds = array<i64: 1, 1, 1>, scalar_prefetch = 0 : i64, scratch_operands = 1 : i64, tpu.core_type = #tpu.core_type<tc>, window_params = [{transform_indices = @transform_0, window_bounds = array<i64: 56, 128>}, {transform_indices = @transform_1, window_bounds = array<i64: 128, 128>}, {transform_indices = @transform_2, window_bounds = array<i64: 1, 128>}, {transform_indices = @transform_3, window_bounds = array<i64: 56, 128>}]} {
    %c0_i32 = arith.constant 0 : i32
    %0 = arith.cmpi eq, %arg2, %c0_i32 : i32
    %1 = arith.extui %0 : i1 to i32
    %c0_i32_0 = arith.constant 0 : i32
    %2 = arith.cmpi ne, %1, %c0_i32_0 : i32
    scf.if %2 {
      %cst_10 = arith.constant 0.000000e+00 : f32
      %12 = vector.broadcast %cst_10 : f32 to vector<56x128xf32>
      %c0_11 = arith.constant 0 : index
      %c0_12 = arith.constant 0 : index
      %13 = vector.load %arg7[%c0_11, %c0_12] : memref<56x128xf32, #tpu.memory_space<vmem>>, vector<56x128xf32>
      tpu.vector_store %arg7[%c0_11, %c0_12], %12 {strides = array<i32>} : memref<56x128xf32, #tpu.memory_space<vmem>>, vector<56x128xf32>,
    } else {
    }
    %c0 = arith.constant 0 : index
    %c0_1 = arith.constant 0 : index
    %3 = vector.load %arg7[%c0, %c0_1] : memref<56x128xf32, #tpu.memory_space<vmem>>, vector<56x128xf32>
    %c0_2 = arith.constant 0 : index
    %c0_3 = arith.constant 0 : index
    %4 = vector.load %arg3[%c0_2, %c0_3] : memref<56x128xf32, #tpu.memory_space<vmem>>, vector<56x128xf32>
    %c0_4 = arith.constant 0 : index
    %c0_5 = arith.constant 0 : index
    %5 = vector.load %arg4[%c0_4, %c0_5] : memref<128x128xf32, #tpu.memory_space<vmem>>, vector<128x128xf32>
    %cst = arith.constant dense<0.000000e+00> : vector<56x128xf32>
    %6 = tpu.matmul %4, %5, %cst {dimension_numbers = #tpu.dot_dimension_numbers<[1], [0], [0], [1], [0, 0, 1, 1], [], []>} : vector<56x128xf32>, vector<128x128xf32>, vector<56x128xf32> -> vector<56x128xf32>
    %7 = arith.addf %3, %6 : vector<56x128xf32>
    %c0_6 = arith.constant 0 : index
    %c0_7 = arith.constant 0 : index
    %8 = vector.load %arg7[%c0_6, %c0_7] : memref<56x128xf32, #tpu.memory_space<vmem>>, vector<56x128xf32>
    tpu.vector_store %arg7[%c0_6, %c0_7], %7 {strides = array<i32>} : memref<56x128xf32, #tpu.memory_space<vmem>>, vector<56x128xf32>,
    %c0_i32_8 = arith.constant 0 : i32
    %9 = arith.cmpi eq, %arg2, %c0_i32_8 : i32
    %10 = arith.extui %9 : i1 to i32
    %c0_i32_9 = arith.constant 0 : i32
    %11 = arith.cmpi ne, %10, %c0_i32_9 : i32
    scf.if %11 {
      %c0_10 = arith.constant 0 : index
      %c0_11 = arith.constant 0 : index
      %12 = vector.load %arg7[%c0_10, %c0_11] : memref<56x128xf32, #tpu.memory_space<vmem>>, vector<56x128xf32>
      %c0_12 = arith.constant 0 : index
      %c0_13 = arith.constant 0 : index
      %13 = vector.load %arg5[%c0_12, %c0_13] : memref<1x128xf32, #tpu.memory_space<vmem>>, vector<1x128xf32>
      %14 = vector.broadcast %13 : vector<1x128xf32> to vector<56x128xf32>
      %15 = arith.addf %12, %14 : vector<56x128xf32>
      %c0_14 = arith.constant 0 : index
      %c0_15 = arith.constant 0 : index
      %16 = vector.load %arg6[%c0_14, %c0_15] : memref<56x128xf32, #tpu.memory_space<vmem>>, vector<56x128xf32>
      tpu.vector_store %arg6[%c0_14, %c0_15], %15 {strides = array<i32>} : memref<56x128xf32, #tpu.memory_space<vmem>>, vector<56x128xf32>,
    } else {
    }
    return
  }
  func.func @transform_0(%arg0: i32, %arg1: i32, %arg2: i32) -> (i32, i32) {
    %c0_i32 = arith.constant 0 : i32
    return %arg0, %arg2 : i32, i32
  }
  func.func @transform_1(%arg0: i32, %arg1: i32, %arg2: i32) -> (i32, i32) {
    %c0_i32 = arith.constant 0 : i32
    return %arg2, %arg1 : i32, i32
  }
  func.func @transform_2(%arg0: i32, %arg1: i32, %arg2: i32) -> (i32, i32) {
    %c0_i32 = arith.constant 0 : i32
    %c0_i32_0 = arith.constant 0 : i32
    return %c0_i32, %arg1 : i32, i32
  }
  func.func @transform_3(%arg0: i32, %arg1: i32, %arg2: i32) -> (i32, i32) {
    %c0_i32 = arith.constant 0 : i32
    return %arg0, %arg1 : i32, i32
  }
}

module attributes {stable_mosaic.version = 11 : i64} {
  func.func @_bn_norm_lrelu_kernel(%arg0: i32, %arg1: memref<56x128xf32, #tpu.memory_space<vmem>>, %arg2: memref<1x128xf32, #tpu.memory_space<vmem>>, %arg3: memref<1x128xf32, #tpu.memory_space<vmem>>, %arg4: memref<1x128xf32, #tpu.memory_space<vmem>>, %arg5: memref<1x128xf32, #tpu.memory_space<vmem>>, %arg6: memref<56x128xf32, #tpu.memory_space<vmem>>) attributes {dimension_semantics = [#tpu.dimension_semantics<parallel>], iteration_bounds = array<i64: 1>, scalar_prefetch = 0 : i64, scratch_operands = 0 : i64, tpu.core_type = #tpu.core_type<tc>, window_params = [{transform_indices = @transform_0, window_bounds = array<i64: 56, 128>}, {pipeline_mode = #tpu.pipeline_mode<synchronous>, transform_indices = @transform_1, window_bounds = array<i64: 1, 128>}, {pipeline_mode = #tpu.pipeline_mode<synchronous>, transform_indices = @transform_2, window_bounds = array<i64: 1, 128>}, {pipeline_mode = #tpu.pipeline_mode<synchronous>, transform_indices = @transform_3, window_bounds = array<i64: 1, 128>}, {pipeline_mode = #tpu.pipeline_mode<synchronous>, transform_indices = @transform_4, window_bounds = array<i64: 1, 128>}, {transform_indices = @transform_5, window_bounds = array<i64: 56, 128>}]} {
    %c0 = arith.constant 0 : index
    %c0_0 = arith.constant 0 : index
    %0 = vector.load %arg2[%c0, %c0_0] : memref<1x128xf32, #tpu.memory_space<vmem>>, vector<1x128xf32>
    %cst = arith.constant 2.000000e-02 : f32
    %1 = vector.broadcast %cst : f32 to vector<1x128xf32>
    %2 = arith.mulf %0, %1 : vector<1x128xf32>
    %c0_1 = arith.constant 0 : index
    %c0_2 = arith.constant 0 : index
    %3 = vector.load %arg3[%c0_1, %c0_2] : memref<1x128xf32, #tpu.memory_space<vmem>>, vector<1x128xf32>
    %cst_3 = arith.constant 2.000000e-02 : f32
    %4 = vector.broadcast %cst_3 : f32 to vector<1x128xf32>
    %5 = arith.mulf %3, %4 : vector<1x128xf32>
    %6 = arith.mulf %2, %2 : vector<1x128xf32>
    %7 = arith.subf %5, %6 : vector<1x128xf32>
    %cst_4 = arith.constant 0.000000e+00 : f32
    %8 = vector.broadcast %cst_4 : f32 to vector<1x128xf32>
    %9 = arith.maximumf %7, %8 : vector<1x128xf32>
    %cst_5 = arith.constant 9.99999974E-6 : f32
    %10 = vector.broadcast %cst_5 : f32 to vector<1x128xf32>
    %11 = arith.addf %9, %10 : vector<1x128xf32>
    %12 = math.rsqrt %11 : vector<1x128xf32>
    %c0_6 = arith.constant 0 : index
    %c0_7 = arith.constant 0 : index
    %13 = vector.load %arg4[%c0_6, %c0_7] : memref<1x128xf32, #tpu.memory_space<vmem>>, vector<1x128xf32>
    %14 = arith.mulf %12, %13 : vector<1x128xf32>
    %c0_8 = arith.constant 0 : index
    %c0_9 = arith.constant 0 : index
    %15 = vector.load %arg5[%c0_8, %c0_9] : memref<1x128xf32, #tpu.memory_space<vmem>>, vector<1x128xf32>
    %16 = arith.mulf %2, %14 : vector<1x128xf32>
    %17 = arith.subf %15, %16 : vector<1x128xf32>
    %c0_10 = arith.constant 0 : index
    %c0_11 = arith.constant 0 : index
    %18 = vector.load %arg1[%c0_10, %c0_11] : memref<56x128xf32, #tpu.memory_space<vmem>>, vector<56x128xf32>
    %19 = vector.broadcast %14 : vector<1x128xf32> to vector<56x128xf32>
    %20 = arith.mulf %18, %19 : vector<56x128xf32>
    %21 = vector.broadcast %17 : vector<1x128xf32> to vector<56x128xf32>
    %22 = arith.addf %20, %21 : vector<56x128xf32>
    %cst_12 = arith.constant 0.000000e+00 : f32
    %23 = vector.broadcast %cst_12 : f32 to vector<56x128xf32>
    %24 = arith.cmpf ogt, %22, %23 : vector<56x128xf32>
    %cst_13 = arith.constant 2.000000e-01 : f32
    %25 = vector.broadcast %cst_13 : f32 to vector<56x128xf32>
    %26 = arith.mulf %25, %22 : vector<56x128xf32>
    %27 = arith.select %24, %22, %26 : vector<56x128xi1>, vector<56x128xf32>
    %c0_14 = arith.constant 0 : index
    %c0_15 = arith.constant 0 : index
    %28 = vector.load %arg6[%c0_14, %c0_15] : memref<56x128xf32, #tpu.memory_space<vmem>>, vector<56x128xf32>
    tpu.vector_store %arg6[%c0_14, %c0_15], %27 {strides = array<i32>} : memref<56x128xf32, #tpu.memory_space<vmem>>, vector<56x128xf32>,
    return
  }
  func.func @transform_0(%arg0: i32) -> (i32, i32) {
    %c0_i32 = arith.constant 0 : i32
    %c0_i32_0 = arith.constant 0 : i32
    return %arg0, %c0_i32 : i32, i32
  }
  func.func @transform_1(%arg0: i32) -> (i32, i32) {
    %c0_i32 = arith.constant 0 : i32
    %c0_i32_0 = arith.constant 0 : i32
    %c0_i32_1 = arith.constant 0 : i32
    return %c0_i32, %c0_i32_0 : i32, i32
  }
  func.func @transform_2(%arg0: i32) -> (i32, i32) {
    %c0_i32 = arith.constant 0 : i32
    %c0_i32_0 = arith.constant 0 : i32
    %c0_i32_1 = arith.constant 0 : i32
    return %c0_i32, %c0_i32_0 : i32, i32
  }
  func.func @transform_3(%arg0: i32) -> (i32, i32) {
    %c0_i32 = arith.constant 0 : i32
    %c0_i32_0 = arith.constant 0 : i32
    %c0_i32_1 = arith.constant 0 : i32
    return %c0_i32, %c0_i32_0 : i32, i32
  }
  func.func @transform_4(%arg0: i32) -> (i32, i32) {
    %c0_i32 = arith.constant 0 : i32
    %c0_i32_0 = arith.constant 0 : i32
    %c0_i32_1 = arith.constant 0 : i32
    return %c0_i32, %c0_i32_0 : i32, i32
  }
  func.func @transform_5(%arg0: i32) -> (i32, i32) {
    %c0_i32 = arith.constant 0 : i32
    %c0_i32_0 = arith.constant 0 : i32
    return %arg0, %c0_i32 : i32, i32
  }
}

module attributes {stable_mosaic.version = 11 : i64} {
  func.func @_matmul_bias_kernel(%arg0: i32, %arg1: i32, %arg2: i32, %arg3: memref<24x256xf32, #tpu.memory_space<vmem>>, %arg4: memref<256x128xf32, #tpu.memory_space<vmem>>, %arg5: memref<1x128xf32, #tpu.memory_space<vmem>>, %arg6: memref<24x128xf32, #tpu.memory_space<vmem>>, %arg7: memref<24x128xf32, #tpu.memory_space<vmem>>) attributes {dimension_semantics = [#tpu.dimension_semantics<parallel>, #tpu.dimension_semantics<parallel>, #tpu.dimension_semantics<arbitrary>], iteration_bounds = array<i64: 1, 1, 1>, scalar_prefetch = 0 : i64, scratch_operands = 1 : i64, tpu.core_type = #tpu.core_type<tc>, window_params = [{transform_indices = @transform_0, window_bounds = array<i64: 24, 256>}, {transform_indices = @transform_1, window_bounds = array<i64: 256, 128>}, {transform_indices = @transform_2, window_bounds = array<i64: 1, 128>}, {transform_indices = @transform_3, window_bounds = array<i64: 24, 128>}]} {
    %c0_i32 = arith.constant 0 : i32
    %0 = arith.cmpi eq, %arg2, %c0_i32 : i32
    %1 = arith.extui %0 : i1 to i32
    %c0_i32_0 = arith.constant 0 : i32
    %2 = arith.cmpi ne, %1, %c0_i32_0 : i32
    scf.if %2 {
      %cst_10 = arith.constant 0.000000e+00 : f32
      %12 = vector.broadcast %cst_10 : f32 to vector<24x128xf32>
      %c0_11 = arith.constant 0 : index
      %c0_12 = arith.constant 0 : index
      %13 = vector.load %arg7[%c0_11, %c0_12] : memref<24x128xf32, #tpu.memory_space<vmem>>, vector<24x128xf32>
      tpu.vector_store %arg7[%c0_11, %c0_12], %12 {strides = array<i32>} : memref<24x128xf32, #tpu.memory_space<vmem>>, vector<24x128xf32>,
    } else {
    }
    %c0 = arith.constant 0 : index
    %c0_1 = arith.constant 0 : index
    %3 = vector.load %arg7[%c0, %c0_1] : memref<24x128xf32, #tpu.memory_space<vmem>>, vector<24x128xf32>
    %c0_2 = arith.constant 0 : index
    %c0_3 = arith.constant 0 : index
    %4 = vector.load %arg3[%c0_2, %c0_3] : memref<24x256xf32, #tpu.memory_space<vmem>>, vector<24x256xf32>
    %c0_4 = arith.constant 0 : index
    %c0_5 = arith.constant 0 : index
    %5 = vector.load %arg4[%c0_4, %c0_5] : memref<256x128xf32, #tpu.memory_space<vmem>>, vector<256x128xf32>
    %cst = arith.constant dense<0.000000e+00> : vector<24x128xf32>
    %6 = tpu.matmul %4, %5, %cst {dimension_numbers = #tpu.dot_dimension_numbers<[1], [0], [0], [1], [0, 0, 1, 1], [], []>} : vector<24x256xf32>, vector<256x128xf32>, vector<24x128xf32> -> vector<24x128xf32>
    %7 = arith.addf %3, %6 : vector<24x128xf32>
    %c0_6 = arith.constant 0 : index
    %c0_7 = arith.constant 0 : index
    %8 = vector.load %arg7[%c0_6, %c0_7] : memref<24x128xf32, #tpu.memory_space<vmem>>, vector<24x128xf32>
    tpu.vector_store %arg7[%c0_6, %c0_7], %7 {strides = array<i32>} : memref<24x128xf32, #tpu.memory_space<vmem>>, vector<24x128xf32>,
    %c0_i32_8 = arith.constant 0 : i32
    %9 = arith.cmpi eq, %arg2, %c0_i32_8 : i32
    %10 = arith.extui %9 : i1 to i32
    %c0_i32_9 = arith.constant 0 : i32
    %11 = arith.cmpi ne, %10, %c0_i32_9 : i32
    scf.if %11 {
      %c0_10 = arith.constant 0 : index
      %c0_11 = arith.constant 0 : index
      %12 = vector.load %arg7[%c0_10, %c0_11] : memref<24x128xf32, #tpu.memory_space<vmem>>, vector<24x128xf32>
      %c0_12 = arith.constant 0 : index
      %c0_13 = arith.constant 0 : index
      %13 = vector.load %arg5[%c0_12, %c0_13] : memref<1x128xf32, #tpu.memory_space<vmem>>, vector<1x128xf32>
      %14 = vector.broadcast %13 : vector<1x128xf32> to vector<24x128xf32>
      %15 = arith.addf %12, %14 : vector<24x128xf32>
      %c0_14 = arith.constant 0 : index
      %c0_15 = arith.constant 0 : index
      %16 = vector.load %arg6[%c0_14, %c0_15] : memref<24x128xf32, #tpu.memory_space<vmem>>, vector<24x128xf32>
      tpu.vector_store %arg6[%c0_14, %c0_15], %15 {strides = array<i32>} : memref<24x128xf32, #tpu.memory_space<vmem>>, vector<24x128xf32>,
    } else {
    }
    return
  }
  func.func @transform_0(%arg0: i32, %arg1: i32, %arg2: i32) -> (i32, i32) {
    %c0_i32 = arith.constant 0 : i32
    return %arg0, %arg2 : i32, i32
  }
  func.func @transform_1(%arg0: i32, %arg1: i32, %arg2: i32) -> (i32, i32) {
    %c0_i32 = arith.constant 0 : i32
    return %arg2, %arg1 : i32, i32
  }
  func.func @transform_2(%arg0: i32, %arg1: i32, %arg2: i32) -> (i32, i32) {
    %c0_i32 = arith.constant 0 : i32
    %c0_i32_0 = arith.constant 0 : i32
    return %c0_i32, %arg1 : i32, i32
  }
  func.func @transform_3(%arg0: i32, %arg1: i32, %arg2: i32) -> (i32, i32) {
    %c0_i32 = arith.constant 0 : i32
    return %arg0, %arg1 : i32, i32
  }
}

module attributes {stable_mosaic.version = 11 : i64} {
  func.func @_bn_stats_kernel(%arg0: i32, %arg1: memref<24x128xf32, #tpu.memory_space<vmem>>, %arg2: memref<1x128xf32, #tpu.memory_space<vmem>>, %arg3: memref<1x128xf32, #tpu.memory_space<vmem>>) attributes {dimension_semantics = [#tpu.dimension_semantics<arbitrary>], iteration_bounds = array<i64: 1>, scalar_prefetch = 0 : i64, scratch_operands = 0 : i64, tpu.core_type = #tpu.core_type<tc>, window_params = [{transform_indices = @transform_0, window_bounds = array<i64: 24, 128>}, {pipeline_mode = #tpu.pipeline_mode<synchronous>, transform_indices = @transform_1, window_bounds = array<i64: 1, 128>}, {pipeline_mode = #tpu.pipeline_mode<synchronous>, transform_indices = @transform_2, window_bounds = array<i64: 1, 128>}]} {
    %c0_i32 = arith.constant 0 : i32
    %0 = arith.cmpi eq, %arg0, %c0_i32 : i32
    %1 = arith.extui %0 : i1 to i32
    %c0_i32_0 = arith.constant 0 : i32
    %2 = arith.cmpi ne, %1, %c0_i32_0 : i32
    scf.if %2 {
      %cst_11 = arith.constant 0.000000e+00 : f32
      %15 = vector.broadcast %cst_11 : f32 to vector<1x128xf32>
      %c0_12 = arith.constant 0 : index
      %c0_13 = arith.constant 0 : index
      %16 = vector.load %arg2[%c0_12, %c0_13] : memref<1x128xf32, #tpu.memory_space<vmem>>, vector<1x128xf32>
      tpu.vector_store %arg2[%c0_12, %c0_13], %15 {strides = array<i32>} : memref<1x128xf32, #tpu.memory_space<vmem>>, vector<1x128xf32>,
      %cst_14 = arith.constant 0.000000e+00 : f32
      %17 = vector.broadcast %cst_14 : f32 to vector<1x128xf32>
      %c0_15 = arith.constant 0 : index
      %c0_16 = arith.constant 0 : index
      %18 = vector.load %arg3[%c0_15, %c0_16] : memref<1x128xf32, #tpu.memory_space<vmem>>, vector<1x128xf32>
      tpu.vector_store %arg3[%c0_15, %c0_16], %17 {strides = array<i32>} : memref<1x128xf32, #tpu.memory_space<vmem>>, vector<1x128xf32>,
    } else {
    }
    %c0 = arith.constant 0 : index
    %c0_1 = arith.constant 0 : index
    %3 = vector.load %arg1[%c0, %c0_1] : memref<24x128xf32, #tpu.memory_space<vmem>>, vector<24x128xf32>
    %c0_2 = arith.constant 0 : index
    %c0_3 = arith.constant 0 : index
    %4 = vector.load %arg2[%c0_2, %c0_3] : memref<1x128xf32, #tpu.memory_space<vmem>>, vector<1x128xf32>
    %cst = arith.constant dense<0.000000e+00> : vector<128xf32>
    %5 = vector.multi_reduction <add>, %3, %cst [0] : vector<24x128xf32> to vector<128xf32>
    %6 = vector.shape_cast %5 : vector<128xf32> to vector<1x128xf32>
    %7 = arith.addf %4, %6 : vector<1x128xf32>
    %c0_4 = arith.constant 0 : index
    %c0_5 = arith.constant 0 : index
    %8 = vector.load %arg2[%c0_4, %c0_5] : memref<1x128xf32, #tpu.memory_space<vmem>>, vector<1x128xf32>
    tpu.vector_store %arg2[%c0_4, %c0_5], %7 {strides = array<i32>} : memref<1x128xf32, #tpu.memory_space<vmem>>, vector<1x128xf32>,
    %c0_6 = arith.constant 0 : index
    %c0_7 = arith.constant 0 : index
    %9 = vector.load %arg3[%c0_6, %c0_7] : memref<1x128xf32, #tpu.memory_space<vmem>>, vector<1x128xf32>
    %10 = arith.mulf %3, %3 : vector<24x128xf32>
    %cst_8 = arith.constant dense<0.000000e+00> : vector<128xf32>
    %11 = vector.multi_reduction <add>, %10, %cst_8 [0] : vector<24x128xf32> to vector<128xf32>
    %12 = vector.shape_cast %11 : vector<128xf32> to vector<1x128xf32>
    %13 = arith.addf %9, %12 : vector<1x128xf32>
    %c0_9 = arith.constant 0 : index
    %c0_10 = arith.constant 0 : index
    %14 = vector.load %arg3[%c0_9, %c0_10] : memref<1x128xf32, #tpu.memory_space<vmem>>, vector<1x128xf32>
    tpu.vector_store %arg3[%c0_9, %c0_10], %13 {strides = array<i32>} : memref<1x128xf32, #tpu.memory_space<vmem>>, vector<1x128xf32>,
    return
  }
  func.func @transform_0(%arg0: i32) -> (i32, i32) {
    %c0_i32 = arith.constant 0 : i32
    %c0_i32_0 = arith.constant 0 : i32
    return %arg0, %c0_i32 : i32, i32
  }
  func.func @transform_1(%arg0: i32) -> (i32, i32) {
    %c0_i32 = arith.constant 0 : i32
    %c0_i32_0 = arith.constant 0 : i32
    %c0_i32_1 = arith.constant 0 : i32
    return %c0_i32, %c0_i32_0 : i32, i32
  }
  func.func @transform_2(%arg0: i32) -> (i32, i32) {
    %c0_i32 = arith.constant 0 : i32
    %c0_i32_0 = arith.constant 0 : i32
    %c0_i32_1 = arith.constant 0 : i32
    return %c0_i32, %c0_i32_0 : i32, i32
  }
}

module attributes {stable_mosaic.version = 11 : i64} {
  func.func @_bn_norm_lrelu_kernel(%arg0: i32, %arg1: memref<24x128xf32, #tpu.memory_space<vmem>>, %arg2: memref<1x128xf32, #tpu.memory_space<vmem>>, %arg3: memref<1x128xf32, #tpu.memory_space<vmem>>, %arg4: memref<1x128xf32, #tpu.memory_space<vmem>>, %arg5: memref<1x128xf32, #tpu.memory_space<vmem>>, %arg6: memref<24x128xf32, #tpu.memory_space<vmem>>) attributes {dimension_semantics = [#tpu.dimension_semantics<parallel>], iteration_bounds = array<i64: 1>, scalar_prefetch = 0 : i64, scratch_operands = 0 : i64, tpu.core_type = #tpu.core_type<tc>, window_params = [{transform_indices = @transform_0, window_bounds = array<i64: 24, 128>}, {pipeline_mode = #tpu.pipeline_mode<synchronous>, transform_indices = @transform_1, window_bounds = array<i64: 1, 128>}, {pipeline_mode = #tpu.pipeline_mode<synchronous>, transform_indices = @transform_2, window_bounds = array<i64: 1, 128>}, {pipeline_mode = #tpu.pipeline_mode<synchronous>, transform_indices = @transform_3, window_bounds = array<i64: 1, 128>}, {pipeline_mode = #tpu.pipeline_mode<synchronous>, transform_indices = @transform_4, window_bounds = array<i64: 1, 128>}, {transform_indices = @transform_5, window_bounds = array<i64: 24, 128>}]} {
    %c0 = arith.constant 0 : index
    %c0_0 = arith.constant 0 : index
    %0 = vector.load %arg2[%c0, %c0_0] : memref<1x128xf32, #tpu.memory_space<vmem>>, vector<1x128xf32>
    %cst = arith.constant 0.055555556 : f32
    %1 = vector.broadcast %cst : f32 to vector<1x128xf32>
    %2 = arith.mulf %0, %1 : vector<1x128xf32>
    %c0_1 = arith.constant 0 : index
    %c0_2 = arith.constant 0 : index
    %3 = vector.load %arg3[%c0_1, %c0_2] : memref<1x128xf32, #tpu.memory_space<vmem>>, vector<1x128xf32>
    %cst_3 = arith.constant 0.055555556 : f32
    %4 = vector.broadcast %cst_3 : f32 to vector<1x128xf32>
    %5 = arith.mulf %3, %4 : vector<1x128xf32>
    %6 = arith.mulf %2, %2 : vector<1x128xf32>
    %7 = arith.subf %5, %6 : vector<1x128xf32>
    %cst_4 = arith.constant 0.000000e+00 : f32
    %8 = vector.broadcast %cst_4 : f32 to vector<1x128xf32>
    %9 = arith.maximumf %7, %8 : vector<1x128xf32>
    %cst_5 = arith.constant 9.99999974E-6 : f32
    %10 = vector.broadcast %cst_5 : f32 to vector<1x128xf32>
    %11 = arith.addf %9, %10 : vector<1x128xf32>
    %12 = math.rsqrt %11 : vector<1x128xf32>
    %c0_6 = arith.constant 0 : index
    %c0_7 = arith.constant 0 : index
    %13 = vector.load %arg4[%c0_6, %c0_7] : memref<1x128xf32, #tpu.memory_space<vmem>>, vector<1x128xf32>
    %14 = arith.mulf %12, %13 : vector<1x128xf32>
    %c0_8 = arith.constant 0 : index
    %c0_9 = arith.constant 0 : index
    %15 = vector.load %arg5[%c0_8, %c0_9] : memref<1x128xf32, #tpu.memory_space<vmem>>, vector<1x128xf32>
    %16 = arith.mulf %2, %14 : vector<1x128xf32>
    %17 = arith.subf %15, %16 : vector<1x128xf32>
    %c0_10 = arith.constant 0 : index
    %c0_11 = arith.constant 0 : index
    %18 = vector.load %arg1[%c0_10, %c0_11] : memref<24x128xf32, #tpu.memory_space<vmem>>, vector<24x128xf32>
    %19 = vector.broadcast %14 : vector<1x128xf32> to vector<24x128xf32>
    %20 = arith.mulf %18, %19 : vector<24x128xf32>
    %21 = vector.broadcast %17 : vector<1x128xf32> to vector<24x128xf32>
    %22 = arith.addf %20, %21 : vector<24x128xf32>
    %cst_12 = arith.constant 0.000000e+00 : f32
    %23 = vector.broadcast %cst_12 : f32 to vector<24x128xf32>
    %24 = arith.cmpf ogt, %22, %23 : vector<24x128xf32>
    %cst_13 = arith.constant 2.000000e-01 : f32
    %25 = vector.broadcast %cst_13 : f32 to vector<24x128xf32>
    %26 = arith.mulf %25, %22 : vector<24x128xf32>
    %27 = arith.select %24, %22, %26 : vector<24x128xi1>, vector<24x128xf32>
    %c0_14 = arith.constant 0 : index
    %c0_15 = arith.constant 0 : index
    %28 = vector.load %arg6[%c0_14, %c0_15] : memref<24x128xf32, #tpu.memory_space<vmem>>, vector<24x128xf32>
    tpu.vector_store %arg6[%c0_14, %c0_15], %27 {strides = array<i32>} : memref<24x128xf32, #tpu.memory_space<vmem>>, vector<24x128xf32>,
    return
  }
  func.func @transform_0(%arg0: i32) -> (i32, i32) {
    %c0_i32 = arith.constant 0 : i32
    %c0_i32_0 = arith.constant 0 : i32
    return %arg0, %c0_i32 : i32, i32
  }
  func.func @transform_1(%arg0: i32) -> (i32, i32) {
    %c0_i32 = arith.constant 0 : i32
    %c0_i32_0 = arith.constant 0 : i32
    %c0_i32_1 = arith.constant 0 : i32
    return %c0_i32, %c0_i32_0 : i32, i32
  }
  func.func @transform_2(%arg0: i32) -> (i32, i32) {
    %c0_i32 = arith.constant 0 : i32
    %c0_i32_0 = arith.constant 0 : i32
    %c0_i32_1 = arith.constant 0 : i32
    return %c0_i32, %c0_i32_0 : i32, i32
  }
  func.func @transform_3(%arg0: i32) -> (i32, i32) {
    %c0_i32 = arith.constant 0 : i32
    %c0_i32_0 = arith.constant 0 : i32
    %c0_i32_1 = arith.constant 0 : i32
    return %c0_i32, %c0_i32_0 : i32, i32
  }
  func.func @transform_4(%arg0: i32) -> (i32, i32) {
    %c0_i32 = arith.constant 0 : i32
    %c0_i32_0 = arith.constant 0 : i32
    %c0_i32_1 = arith.constant 0 : i32
    return %c0_i32, %c0_i32_0 : i32, i32
  }
  func.func @transform_5(%arg0: i32) -> (i32, i32) {
    %c0_i32 = arith.constant 0 : i32
    %c0_i32_0 = arith.constant 0 : i32
    return %arg0, %c0_i32 : i32, i32
  }
}

module attributes {stable_mosaic.version = 11 : i64} {
  func.func @_matmul_bias_kernel(%arg0: i32, %arg1: i32, %arg2: i32, %arg3: memref<32x256xf32, #tpu.memory_space<vmem>>, %arg4: memref<256x128xf32, #tpu.memory_space<vmem>>, %arg5: memref<1x128xf32, #tpu.memory_space<vmem>>, %arg6: memref<32x128xf32, #tpu.memory_space<vmem>>, %arg7: memref<32x128xf32, #tpu.memory_space<vmem>>) attributes {dimension_semantics = [#tpu.dimension_semantics<parallel>, #tpu.dimension_semantics<parallel>, #tpu.dimension_semantics<arbitrary>], iteration_bounds = array<i64: 1, 1, 2>, scalar_prefetch = 0 : i64, scratch_operands = 1 : i64, tpu.core_type = #tpu.core_type<tc>, window_params = [{transform_indices = @transform_0, window_bounds = array<i64: 32, 256>}, {transform_indices = @transform_1, window_bounds = array<i64: 256, 128>}, {transform_indices = @transform_2, window_bounds = array<i64: 1, 128>}, {transform_indices = @transform_3, window_bounds = array<i64: 32, 128>}]} {
    %c0_i32 = arith.constant 0 : i32
    %0 = arith.cmpi eq, %arg2, %c0_i32 : i32
    %1 = arith.extui %0 : i1 to i32
    %c0_i32_0 = arith.constant 0 : i32
    %2 = arith.cmpi ne, %1, %c0_i32_0 : i32
    scf.if %2 {
      %cst_9 = arith.constant 0.000000e+00 : f32
      %12 = vector.broadcast %cst_9 : f32 to vector<32x128xf32>
      %c0_10 = arith.constant 0 : index
      %c0_11 = arith.constant 0 : index
      %13 = vector.load %arg7[%c0_10, %c0_11] : memref<32x128xf32, #tpu.memory_space<vmem>>, vector<32x128xf32>
      tpu.vector_store %arg7[%c0_10, %c0_11], %12 {strides = array<i32>} : memref<32x128xf32, #tpu.memory_space<vmem>>, vector<32x128xf32>,
    } else {
    }
    %c0 = arith.constant 0 : index
    %c0_1 = arith.constant 0 : index
    %3 = vector.load %arg7[%c0, %c0_1] : memref<32x128xf32, #tpu.memory_space<vmem>>, vector<32x128xf32>
    %c0_2 = arith.constant 0 : index
    %c0_3 = arith.constant 0 : index
    %4 = vector.load %arg3[%c0_2, %c0_3] : memref<32x256xf32, #tpu.memory_space<vmem>>, vector<32x256xf32>
    %c0_4 = arith.constant 0 : index
    %c0_5 = arith.constant 0 : index
    %5 = vector.load %arg4[%c0_4, %c0_5] : memref<256x128xf32, #tpu.memory_space<vmem>>, vector<256x128xf32>
    %cst = arith.constant dense<0.000000e+00> : vector<32x128xf32>
    %6 = tpu.matmul %4, %5, %cst {dimension_numbers = #tpu.dot_dimension_numbers<[1], [0], [0], [1], [0, 0, 1, 1], [], []>} : vector<32x256xf32>, vector<256x128xf32>, vector<32x128xf32> -> vector<32x128xf32>
    %7 = arith.addf %3, %6 : vector<32x128xf32>
    %c0_6 = arith.constant 0 : index
    %c0_7 = arith.constant 0 : index
    %8 = vector.load %arg7[%c0_6, %c0_7] : memref<32x128xf32, #tpu.memory_space<vmem>>, vector<32x128xf32>
    tpu.vector_store %arg7[%c0_6, %c0_7], %7 {strides = array<i32>} : memref<32x128xf32, #tpu.memory_space<vmem>>, vector<32x128xf32>,
    %c1_i32 = arith.constant 1 : i32
    %9 = arith.cmpi eq, %arg2, %c1_i32 : i32
    %10 = arith.extui %9 : i1 to i32
    %c0_i32_8 = arith.constant 0 : i32
    %11 = arith.cmpi ne, %10, %c0_i32_8 : i32
    scf.if %11 {
      %c0_9 = arith.constant 0 : index
      %c0_10 = arith.constant 0 : index
      %12 = vector.load %arg7[%c0_9, %c0_10] : memref<32x128xf32, #tpu.memory_space<vmem>>, vector<32x128xf32>
      %c0_11 = arith.constant 0 : index
      %c0_12 = arith.constant 0 : index
      %13 = vector.load %arg5[%c0_11, %c0_12] : memref<1x128xf32, #tpu.memory_space<vmem>>, vector<1x128xf32>
      %14 = vector.broadcast %13 : vector<1x128xf32> to vector<32x128xf32>
      %15 = arith.addf %12, %14 : vector<32x128xf32>
      %c0_13 = arith.constant 0 : index
      %c0_14 = arith.constant 0 : index
      %16 = vector.load %arg6[%c0_13, %c0_14] : memref<32x128xf32, #tpu.memory_space<vmem>>, vector<32x128xf32>
      tpu.vector_store %arg6[%c0_13, %c0_14], %15 {strides = array<i32>} : memref<32x128xf32, #tpu.memory_space<vmem>>, vector<32x128xf32>,
    } else {
    }
    return
  }
  func.func @transform_0(%arg0: i32, %arg1: i32, %arg2: i32) -> (i32, i32) {
    %c0_i32 = arith.constant 0 : i32
    return %arg0, %arg2 : i32, i32
  }
  func.func @transform_1(%arg0: i32, %arg1: i32, %arg2: i32) -> (i32, i32) {
    %c0_i32 = arith.constant 0 : i32
    return %arg2, %arg1 : i32, i32
  }
  func.func @transform_2(%arg0: i32, %arg1: i32, %arg2: i32) -> (i32, i32) {
    %c0_i32 = arith.constant 0 : i32
    %c0_i32_0 = arith.constant 0 : i32
    return %c0_i32, %arg1 : i32, i32
  }
  func.func @transform_3(%arg0: i32, %arg1: i32, %arg2: i32) -> (i32, i32) {
    %c0_i32 = arith.constant 0 : i32
    return %arg0, %arg1 : i32, i32
  }
}

module attributes {stable_mosaic.version = 11 : i64} {
  func.func @_bn_stats_kernel(%arg0: i32, %arg1: memref<32x128xf32, #tpu.memory_space<vmem>>, %arg2: memref<1x128xf32, #tpu.memory_space<vmem>>, %arg3: memref<1x128xf32, #tpu.memory_space<vmem>>) attributes {dimension_semantics = [#tpu.dimension_semantics<arbitrary>], iteration_bounds = array<i64: 1>, scalar_prefetch = 0 : i64, scratch_operands = 0 : i64, tpu.core_type = #tpu.core_type<tc>, window_params = [{transform_indices = @transform_0, window_bounds = array<i64: 32, 128>}, {pipeline_mode = #tpu.pipeline_mode<synchronous>, transform_indices = @transform_1, window_bounds = array<i64: 1, 128>}, {pipeline_mode = #tpu.pipeline_mode<synchronous>, transform_indices = @transform_2, window_bounds = array<i64: 1, 128>}]} {
    %c0_i32 = arith.constant 0 : i32
    %0 = arith.cmpi eq, %arg0, %c0_i32 : i32
    %1 = arith.extui %0 : i1 to i32
    %c0_i32_0 = arith.constant 0 : i32
    %2 = arith.cmpi ne, %1, %c0_i32_0 : i32
    scf.if %2 {
      %cst_11 = arith.constant 0.000000e+00 : f32
      %15 = vector.broadcast %cst_11 : f32 to vector<1x128xf32>
      %c0_12 = arith.constant 0 : index
      %c0_13 = arith.constant 0 : index
      %16 = vector.load %arg2[%c0_12, %c0_13] : memref<1x128xf32, #tpu.memory_space<vmem>>, vector<1x128xf32>
      tpu.vector_store %arg2[%c0_12, %c0_13], %15 {strides = array<i32>} : memref<1x128xf32, #tpu.memory_space<vmem>>, vector<1x128xf32>,
      %cst_14 = arith.constant 0.000000e+00 : f32
      %17 = vector.broadcast %cst_14 : f32 to vector<1x128xf32>
      %c0_15 = arith.constant 0 : index
      %c0_16 = arith.constant 0 : index
      %18 = vector.load %arg3[%c0_15, %c0_16] : memref<1x128xf32, #tpu.memory_space<vmem>>, vector<1x128xf32>
      tpu.vector_store %arg3[%c0_15, %c0_16], %17 {strides = array<i32>} : memref<1x128xf32, #tpu.memory_space<vmem>>, vector<1x128xf32>,
    } else {
    }
    %c0 = arith.constant 0 : index
    %c0_1 = arith.constant 0 : index
    %3 = vector.load %arg1[%c0, %c0_1] : memref<32x128xf32, #tpu.memory_space<vmem>>, vector<32x128xf32>
    %c0_2 = arith.constant 0 : index
    %c0_3 = arith.constant 0 : index
    %4 = vector.load %arg2[%c0_2, %c0_3] : memref<1x128xf32, #tpu.memory_space<vmem>>, vector<1x128xf32>
    %cst = arith.constant dense<0.000000e+00> : vector<128xf32>
    %5 = vector.multi_reduction <add>, %3, %cst [0] : vector<32x128xf32> to vector<128xf32>
    %6 = vector.shape_cast %5 : vector<128xf32> to vector<1x128xf32>
    %7 = arith.addf %4, %6 : vector<1x128xf32>
    %c0_4 = arith.constant 0 : index
    %c0_5 = arith.constant 0 : index
    %8 = vector.load %arg2[%c0_4, %c0_5] : memref<1x128xf32, #tpu.memory_space<vmem>>, vector<1x128xf32>
    tpu.vector_store %arg2[%c0_4, %c0_5], %7 {strides = array<i32>} : memref<1x128xf32, #tpu.memory_space<vmem>>, vector<1x128xf32>,
    %c0_6 = arith.constant 0 : index
    %c0_7 = arith.constant 0 : index
    %9 = vector.load %arg3[%c0_6, %c0_7] : memref<1x128xf32, #tpu.memory_space<vmem>>, vector<1x128xf32>
    %10 = arith.mulf %3, %3 : vector<32x128xf32>
    %cst_8 = arith.constant dense<0.000000e+00> : vector<128xf32>
    %11 = vector.multi_reduction <add>, %10, %cst_8 [0] : vector<32x128xf32> to vector<128xf32>
    %12 = vector.shape_cast %11 : vector<128xf32> to vector<1x128xf32>
    %13 = arith.addf %9, %12 : vector<1x128xf32>
    %c0_9 = arith.constant 0 : index
    %c0_10 = arith.constant 0 : index
    %14 = vector.load %arg3[%c0_9, %c0_10] : memref<1x128xf32, #tpu.memory_space<vmem>>, vector<1x128xf32>
    tpu.vector_store %arg3[%c0_9, %c0_10], %13 {strides = array<i32>} : memref<1x128xf32, #tpu.memory_space<vmem>>, vector<1x128xf32>,
    return
  }
  func.func @transform_0(%arg0: i32) -> (i32, i32) {
    %c0_i32 = arith.constant 0 : i32
    %c0_i32_0 = arith.constant 0 : i32
    return %arg0, %c0_i32 : i32, i32
  }
  func.func @transform_1(%arg0: i32) -> (i32, i32) {
    %c0_i32 = arith.constant 0 : i32
    %c0_i32_0 = arith.constant 0 : i32
    %c0_i32_1 = arith.constant 0 : i32
    return %c0_i32, %c0_i32_0 : i32, i32
  }
  func.func @transform_2(%arg0: i32) -> (i32, i32) {
    %c0_i32 = arith.constant 0 : i32
    %c0_i32_0 = arith.constant 0 : i32
    %c0_i32_1 = arith.constant 0 : i32
    return %c0_i32, %c0_i32_0 : i32, i32
  }
}

module attributes {stable_mosaic.version = 11 : i64} {
  func.func @_bn_norm_lrelu_kernel(%arg0: i32, %arg1: memref<32x128xf32, #tpu.memory_space<vmem>>, %arg2: memref<1x128xf32, #tpu.memory_space<vmem>>, %arg3: memref<1x128xf32, #tpu.memory_space<vmem>>, %arg4: memref<1x128xf32, #tpu.memory_space<vmem>>, %arg5: memref<1x128xf32, #tpu.memory_space<vmem>>, %arg6: memref<32x128xf32, #tpu.memory_space<vmem>>) attributes {dimension_semantics = [#tpu.dimension_semantics<parallel>], iteration_bounds = array<i64: 1>, scalar_prefetch = 0 : i64, scratch_operands = 0 : i64, tpu.core_type = #tpu.core_type<tc>, window_params = [{transform_indices = @transform_0, window_bounds = array<i64: 32, 128>}, {pipeline_mode = #tpu.pipeline_mode<synchronous>, transform_indices = @transform_1, window_bounds = array<i64: 1, 128>}, {pipeline_mode = #tpu.pipeline_mode<synchronous>, transform_indices = @transform_2, window_bounds = array<i64: 1, 128>}, {pipeline_mode = #tpu.pipeline_mode<synchronous>, transform_indices = @transform_3, window_bounds = array<i64: 1, 128>}, {pipeline_mode = #tpu.pipeline_mode<synchronous>, transform_indices = @transform_4, window_bounds = array<i64: 1, 128>}, {transform_indices = @transform_5, window_bounds = array<i64: 32, 128>}]} {
    %c0 = arith.constant 0 : index
    %c0_0 = arith.constant 0 : index
    %0 = vector.load %arg2[%c0, %c0_0] : memref<1x128xf32, #tpu.memory_space<vmem>>, vector<1x128xf32>
    %cst = arith.constant 3.125000e-02 : f32
    %1 = vector.broadcast %cst : f32 to vector<1x128xf32>
    %2 = arith.mulf %0, %1 : vector<1x128xf32>
    %c0_1 = arith.constant 0 : index
    %c0_2 = arith.constant 0 : index
    %3 = vector.load %arg3[%c0_1, %c0_2] : memref<1x128xf32, #tpu.memory_space<vmem>>, vector<1x128xf32>
    %cst_3 = arith.constant 3.125000e-02 : f32
    %4 = vector.broadcast %cst_3 : f32 to vector<1x128xf32>
    %5 = arith.mulf %3, %4 : vector<1x128xf32>
    %6 = arith.mulf %2, %2 : vector<1x128xf32>
    %7 = arith.subf %5, %6 : vector<1x128xf32>
    %cst_4 = arith.constant 0.000000e+00 : f32
    %8 = vector.broadcast %cst_4 : f32 to vector<1x128xf32>
    %9 = arith.maximumf %7, %8 : vector<1x128xf32>
    %cst_5 = arith.constant 9.99999974E-6 : f32
    %10 = vector.broadcast %cst_5 : f32 to vector<1x128xf32>
    %11 = arith.addf %9, %10 : vector<1x128xf32>
    %12 = math.rsqrt %11 : vector<1x128xf32>
    %c0_6 = arith.constant 0 : index
    %c0_7 = arith.constant 0 : index
    %13 = vector.load %arg4[%c0_6, %c0_7] : memref<1x128xf32, #tpu.memory_space<vmem>>, vector<1x128xf32>
    %14 = arith.mulf %12, %13 : vector<1x128xf32>
    %c0_8 = arith.constant 0 : index
    %c0_9 = arith.constant 0 : index
    %15 = vector.load %arg5[%c0_8, %c0_9] : memref<1x128xf32, #tpu.memory_space<vmem>>, vector<1x128xf32>
    %16 = arith.mulf %2, %14 : vector<1x128xf32>
    %17 = arith.subf %15, %16 : vector<1x128xf32>
    %c0_10 = arith.constant 0 : index
    %c0_11 = arith.constant 0 : index
    %18 = vector.load %arg1[%c0_10, %c0_11] : memref<32x128xf32, #tpu.memory_space<vmem>>, vector<32x128xf32>
    %19 = vector.broadcast %14 : vector<1x128xf32> to vector<32x128xf32>
    %20 = arith.mulf %18, %19 : vector<32x128xf32>
    %21 = vector.broadcast %17 : vector<1x128xf32> to vector<32x128xf32>
    %22 = arith.addf %20, %21 : vector<32x128xf32>
    %cst_12 = arith.constant 0.000000e+00 : f32
    %23 = vector.broadcast %cst_12 : f32 to vector<32x128xf32>
    %24 = arith.cmpf ogt, %22, %23 : vector<32x128xf32>
    %cst_13 = arith.constant 2.000000e-01 : f32
    %25 = vector.broadcast %cst_13 : f32 to vector<32x128xf32>
    %26 = arith.mulf %25, %22 : vector<32x128xf32>
    %27 = arith.select %24, %22, %26 : vector<32x128xi1>, vector<32x128xf32>
    %c0_14 = arith.constant 0 : index
    %c0_15 = arith.constant 0 : index
    %28 = vector.load %arg6[%c0_14, %c0_15] : memref<32x128xf32, #tpu.memory_space<vmem>>, vector<32x128xf32>
    tpu.vector_store %arg6[%c0_14, %c0_15], %27 {strides = array<i32>} : memref<32x128xf32, #tpu.memory_space<vmem>>, vector<32x128xf32>,
    return
  }
  func.func @transform_0(%arg0: i32) -> (i32, i32) {
    %c0_i32 = arith.constant 0 : i32
    %c0_i32_0 = arith.constant 0 : i32
    return %arg0, %c0_i32 : i32, i32
  }
  func.func @transform_1(%arg0: i32) -> (i32, i32) {
    %c0_i32 = arith.constant 0 : i32
    %c0_i32_0 = arith.constant 0 : i32
    %c0_i32_1 = arith.constant 0 : i32
    return %c0_i32, %c0_i32_0 : i32, i32
  }
  func.func @transform_2(%arg0: i32) -> (i32, i32) {
    %c0_i32 = arith.constant 0 : i32
    %c0_i32_0 = arith.constant 0 : i32
    %c0_i32_1 = arith.constant 0 : i32
    return %c0_i32, %c0_i32_0 : i32, i32
  }
  func.func @transform_3(%arg0: i32) -> (i32, i32) {
    %c0_i32 = arith.constant 0 : i32
    %c0_i32_0 = arith.constant 0 : i32
    %c0_i32_1 = arith.constant 0 : i32
    return %c0_i32, %c0_i32_0 : i32, i32
  }
  func.func @transform_4(%arg0: i32) -> (i32, i32) {
    %c0_i32 = arith.constant 0 : i32
    %c0_i32_0 = arith.constant 0 : i32
    %c0_i32_1 = arith.constant 0 : i32
    return %c0_i32, %c0_i32_0 : i32, i32
  }
  func.func @transform_5(%arg0: i32) -> (i32, i32) {
    %c0_i32 = arith.constant 0 : i32
    %c0_i32_0 = arith.constant 0 : i32
    return %arg0, %c0_i32 : i32, i32
  }
}

module attributes {stable_mosaic.version = 11 : i64} {
  func.func @_matmul_bias_kernel(%arg0: i32, %arg1: i32, %arg2: i32, %arg3: memref<56x256xf32, #tpu.memory_space<vmem>>, %arg4: memref<256x128xf32, #tpu.memory_space<vmem>>, %arg5: memref<1x128xf32, #tpu.memory_space<vmem>>, %arg6: memref<56x128xf32, #tpu.memory_space<vmem>>, %arg7: memref<56x128xf32, #tpu.memory_space<vmem>>) attributes {dimension_semantics = [#tpu.dimension_semantics<parallel>, #tpu.dimension_semantics<parallel>, #tpu.dimension_semantics<arbitrary>], iteration_bounds = array<i64: 1, 1, 4>, scalar_prefetch = 0 : i64, scratch_operands = 1 : i64, tpu.core_type = #tpu.core_type<tc>, window_params = [{transform_indices = @transform_0, window_bounds = array<i64: 56, 256>}, {transform_indices = @transform_1, window_bounds = array<i64: 256, 128>}, {transform_indices = @transform_2, window_bounds = array<i64: 1, 128>}, {transform_indices = @transform_3, window_bounds = array<i64: 56, 128>}]} {
    %c0_i32 = arith.constant 0 : i32
    %0 = arith.cmpi eq, %arg2, %c0_i32 : i32
    %1 = arith.extui %0 : i1 to i32
    %c0_i32_0 = arith.constant 0 : i32
    %2 = arith.cmpi ne, %1, %c0_i32_0 : i32
    scf.if %2 {
      %cst_9 = arith.constant 0.000000e+00 : f32
      %12 = vector.broadcast %cst_9 : f32 to vector<56x128xf32>
      %c0_10 = arith.constant 0 : index
      %c0_11 = arith.constant 0 : index
      %13 = vector.load %arg7[%c0_10, %c0_11] : memref<56x128xf32, #tpu.memory_space<vmem>>, vector<56x128xf32>
      tpu.vector_store %arg7[%c0_10, %c0_11], %12 {strides = array<i32>} : memref<56x128xf32, #tpu.memory_space<vmem>>, vector<56x128xf32>,
    } else {
    }
    %c0 = arith.constant 0 : index
    %c0_1 = arith.constant 0 : index
    %3 = vector.load %arg7[%c0, %c0_1] : memref<56x128xf32, #tpu.memory_space<vmem>>, vector<56x128xf32>
    %c0_2 = arith.constant 0 : index
    %c0_3 = arith.constant 0 : index
    %4 = vector.load %arg3[%c0_2, %c0_3] : memref<56x256xf32, #tpu.memory_space<vmem>>, vector<56x256xf32>
    %c0_4 = arith.constant 0 : index
    %c0_5 = arith.constant 0 : index
    %5 = vector.load %arg4[%c0_4, %c0_5] : memref<256x128xf32, #tpu.memory_space<vmem>>, vector<256x128xf32>
    %cst = arith.constant dense<0.000000e+00> : vector<56x128xf32>
    %6 = tpu.matmul %4, %5, %cst {dimension_numbers = #tpu.dot_dimension_numbers<[1], [0], [0], [1], [0, 0, 1, 1], [], []>} : vector<56x256xf32>, vector<256x128xf32>, vector<56x128xf32> -> vector<56x128xf32>
    %7 = arith.addf %3, %6 : vector<56x128xf32>
    %c0_6 = arith.constant 0 : index
    %c0_7 = arith.constant 0 : index
    %8 = vector.load %arg7[%c0_6, %c0_7] : memref<56x128xf32, #tpu.memory_space<vmem>>, vector<56x128xf32>
    tpu.vector_store %arg7[%c0_6, %c0_7], %7 {strides = array<i32>} : memref<56x128xf32, #tpu.memory_space<vmem>>, vector<56x128xf32>,
    %c3_i32 = arith.constant 3 : i32
    %9 = arith.cmpi eq, %arg2, %c3_i32 : i32
    %10 = arith.extui %9 : i1 to i32
    %c0_i32_8 = arith.constant 0 : i32
    %11 = arith.cmpi ne, %10, %c0_i32_8 : i32
    scf.if %11 {
      %c0_9 = arith.constant 0 : index
      %c0_10 = arith.constant 0 : index
      %12 = vector.load %arg7[%c0_9, %c0_10] : memref<56x128xf32, #tpu.memory_space<vmem>>, vector<56x128xf32>
      %c0_11 = arith.constant 0 : index
      %c0_12 = arith.constant 0 : index
      %13 = vector.load %arg5[%c0_11, %c0_12] : memref<1x128xf32, #tpu.memory_space<vmem>>, vector<1x128xf32>
      %14 = vector.broadcast %13 : vector<1x128xf32> to vector<56x128xf32>
      %15 = arith.addf %12, %14 : vector<56x128xf32>
      %c0_13 = arith.constant 0 : index
      %c0_14 = arith.constant 0 : index
      %16 = vector.load %arg6[%c0_13, %c0_14] : memref<56x128xf32, #tpu.memory_space<vmem>>, vector<56x128xf32>
      tpu.vector_store %arg6[%c0_13, %c0_14], %15 {strides = array<i32>} : memref<56x128xf32, #tpu.memory_space<vmem>>, vector<56x128xf32>,
    } else {
    }
    return
  }
  func.func @transform_0(%arg0: i32, %arg1: i32, %arg2: i32) -> (i32, i32) {
    %c0_i32 = arith.constant 0 : i32
    return %arg0, %arg2 : i32, i32
  }
  func.func @transform_1(%arg0: i32, %arg1: i32, %arg2: i32) -> (i32, i32) {
    %c0_i32 = arith.constant 0 : i32
    return %arg2, %arg1 : i32, i32
  }
  func.func @transform_2(%arg0: i32, %arg1: i32, %arg2: i32) -> (i32, i32) {
    %c0_i32 = arith.constant 0 : i32
    %c0_i32_0 = arith.constant 0 : i32
    return %c0_i32, %arg1 : i32, i32
  }
  func.func @transform_3(%arg0: i32, %arg1: i32, %arg2: i32) -> (i32, i32) {
    %c0_i32 = arith.constant 0 : i32
    return %arg0, %arg1 : i32, i32
  }
}

module attributes {stable_mosaic.version = 11 : i64} {
  func.func @_avgpool_kernel(%arg0: i32, %arg1: memref<8x256xf32, #tpu.memory_space<vmem>>, %arg2: memref<8x256xf32, #tpu.memory_space<vmem>>, %arg3: memref<8x256xf32, #tpu.memory_space<vmem>>, %arg4: memref<8x256xf32, #tpu.memory_space<vmem>>, %arg5: memref<8x256xf32, #tpu.memory_space<vmem>>, %arg6: memref<8x256xf32, #tpu.memory_space<vmem>>, %arg7: memref<8x256xf32, #tpu.memory_space<vmem>>, %arg8: memref<8x256xf32, #tpu.memory_space<vmem>>, %arg9: memref<8x256xf32, #tpu.memory_space<vmem>>, %arg10: memref<1x256xf32, #tpu.memory_space<vmem>>, %arg11: memref<8x256xf32, #tpu.memory_space<vmem>>) attributes {dimension_semantics = [#tpu.dimension_semantics<parallel>], iteration_bounds = array<i64: 1>, scalar_prefetch = 0 : i64, scratch_operands = 0 : i64, tpu.core_type = #tpu.core_type<tc>, window_params = [{transform_indices = @transform_0, window_bounds = array<i64: 8, 256>}, {transform_indices = @transform_1, window_bounds = array<i64: 8, 256>}, {transform_indices = @transform_2, window_bounds = array<i64: 8, 256>}, {transform_indices = @transform_3, window_bounds = array<i64: 8, 256>}, {transform_indices = @transform_4, window_bounds = array<i64: 8, 256>}, {transform_indices = @transform_5, window_bounds = array<i64: 8, 256>}, {transform_indices = @transform_6, window_bounds = array<i64: 8, 256>}, {transform_indices = @transform_7, window_bounds = array<i64: 8, 256>}, {transform_indices = @transform_8, window_bounds = array<i64: 8, 256>}, {transform_indices = @transform_9, window_bounds = array<i64: 1, 256>}, {transform_indices = @transform_10, window_bounds = array<i64: 8, 256>}]} {
    %c0 = arith.constant 0 : index
    %c0_0 = arith.constant 0 : index
    %0 = vector.load %arg1[%c0, %c0_0] : memref<8x256xf32, #tpu.memory_space<vmem>>, vector<8x256xf32>
    %c0_1 = arith.constant 0 : index
    %c0_2 = arith.constant 0 : index
    %1 = vector.load %arg2[%c0_1, %c0_2] : memref<8x256xf32, #tpu.memory_space<vmem>>, vector<8x256xf32>
    %2 = arith.addf %0, %1 : vector<8x256xf32>
    %c0_3 = arith.constant 0 : index
    %c0_4 = arith.constant 0 : index
    %3 = vector.load %arg3[%c0_3, %c0_4] : memref<8x256xf32, #tpu.memory_space<vmem>>, vector<8x256xf32>
    %4 = arith.addf %2, %3 : vector<8x256xf32>
    %c0_5 = arith.constant 0 : index
    %c0_6 = arith.constant 0 : index
    %5 = vector.load %arg4[%c0_5, %c0_6] : memref<8x256xf32, #tpu.memory_space<vmem>>, vector<8x256xf32>
    %6 = arith.addf %4, %5 : vector<8x256xf32>
    %c0_7 = arith.constant 0 : index
    %c0_8 = arith.constant 0 : index
    %7 = vector.load %arg5[%c0_7, %c0_8] : memref<8x256xf32, #tpu.memory_space<vmem>>, vector<8x256xf32>
    %8 = arith.addf %6, %7 : vector<8x256xf32>
    %c0_9 = arith.constant 0 : index
    %c0_10 = arith.constant 0 : index
    %9 = vector.load %arg6[%c0_9, %c0_10] : memref<8x256xf32, #tpu.memory_space<vmem>>, vector<8x256xf32>
    %10 = arith.addf %8, %9 : vector<8x256xf32>
    %c0_11 = arith.constant 0 : index
    %c0_12 = arith.constant 0 : index
    %11 = vector.load %arg7[%c0_11, %c0_12] : memref<8x256xf32, #tpu.memory_space<vmem>>, vector<8x256xf32>
    %12 = arith.addf %10, %11 : vector<8x256xf32>
    %c0_13 = arith.constant 0 : index
    %c0_14 = arith.constant 0 : index
    %13 = vector.load %arg8[%c0_13, %c0_14] : memref<8x256xf32, #tpu.memory_space<vmem>>, vector<8x256xf32>
    %14 = arith.addf %12, %13 : vector<8x256xf32>
    %c0_15 = arith.constant 0 : index
    %c0_16 = arith.constant 0 : index
    %15 = vector.load %arg9[%c0_15, %c0_16] : memref<8x256xf32, #tpu.memory_space<vmem>>, vector<8x256xf32>
    %16 = arith.addf %14, %15 : vector<8x256xf32>
    %c0_17 = arith.constant 0 : index
    %c0_18 = arith.constant 0 : index
    %17 = vector.load %arg10[%c0_17, %c0_18] : memref<1x256xf32, #tpu.memory_space<vmem>>, vector<1x256xf32>
    %18 = vector.broadcast %17 : vector<1x256xf32> to vector<8x256xf32>
    %19 = arith.mulf %16, %18 : vector<8x256xf32>
    %c0_19 = arith.constant 0 : index
    %c0_20 = arith.constant 0 : index
    %20 = vector.load %arg11[%c0_19, %c0_20] : memref<8x256xf32, #tpu.memory_space<vmem>>, vector<8x256xf32>
    tpu.vector_store %arg11[%c0_19, %c0_20], %19 {strides = array<i32>} : memref<8x256xf32, #tpu.memory_space<vmem>>, vector<8x256xf32>,
    return
  }
  func.func @transform_0(%arg0: i32) -> (i32, i32) {
    %c0_i32 = arith.constant 0 : i32
    %c0_i32_0 = arith.constant 0 : i32
    return %c0_i32, %arg0 : i32, i32
  }
  func.func @transform_1(%arg0: i32) -> (i32, i32) {
    %c0_i32 = arith.constant 0 : i32
    %c0_i32_0 = arith.constant 0 : i32
    return %c0_i32, %arg0 : i32, i32
  }
  func.func @transform_2(%arg0: i32) -> (i32, i32) {
    %c0_i32 = arith.constant 0 : i32
    %c0_i32_0 = arith.constant 0 : i32
    return %c0_i32, %arg0 : i32, i32
  }
  func.func @transform_3(%arg0: i32) -> (i32, i32) {
    %c0_i32 = arith.constant 0 : i32
    %c0_i32_0 = arith.constant 0 : i32
    return %c0_i32, %arg0 : i32, i32
  }
  func.func @transform_4(%arg0: i32) -> (i32, i32) {
    %c0_i32 = arith.constant 0 : i32
    %c0_i32_0 = arith.constant 0 : i32
    return %c0_i32, %arg0 : i32, i32
  }
  func.func @transform_5(%arg0: i32) -> (i32, i32) {
    %c0_i32 = arith.constant 0 : i32
    %c0_i32_0 = arith.constant 0 : i32
    return %c0_i32, %arg0 : i32, i32
  }
  func.func @transform_6(%arg0: i32) -> (i32, i32) {
    %c0_i32 = arith.constant 0 : i32
    %c0_i32_0 = arith.constant 0 : i32
    return %c0_i32, %arg0 : i32, i32
  }
  func.func @transform_7(%arg0: i32) -> (i32, i32) {
    %c0_i32 = arith.constant 0 : i32
    %c0_i32_0 = arith.constant 0 : i32
    return %c0_i32, %arg0 : i32, i32
  }
  func.func @transform_8(%arg0: i32) -> (i32, i32) {
    %c0_i32 = arith.constant 0 : i32
    %c0_i32_0 = arith.constant 0 : i32
    return %c0_i32, %arg0 : i32, i32
  }
  func.func @transform_9(%arg0: i32) -> (i32, i32) {
    %c0_i32 = arith.constant 0 : i32
    %c0_i32_0 = arith.constant 0 : i32
    return %c0_i32, %arg0 : i32, i32
  }
  func.func @transform_10(%arg0: i32) -> (i32, i32) {
    %c0_i32 = arith.constant 0 : i32
    %c0_i32_0 = arith.constant 0 : i32
    return %c0_i32, %arg0 : i32, i32
  }
}

module attributes {stable_mosaic.version = 11 : i64} {
  func.func @_matmul_bias_kernel(%arg0: i32, %arg1: i32, %arg2: i32, %arg3: memref<56x128xf32, #tpu.memory_space<vmem>>, %arg4: memref<128x128xf32, #tpu.memory_space<vmem>>, %arg5: memref<1x128xf32, #tpu.memory_space<vmem>>, %arg6: memref<56x128xf32, #tpu.memory_space<vmem>>, %arg7: memref<56x128xf32, #tpu.memory_space<vmem>>) attributes {dimension_semantics = [#tpu.dimension_semantics<parallel>, #tpu.dimension_semantics<parallel>, #tpu.dimension_semantics<arbitrary>], iteration_bounds = array<i64: 1, 1, 1>, scalar_prefetch = 0 : i64, scratch_operands = 1 : i64, tpu.core_type = #tpu.core_type<tc>, window_params = [{transform_indices = @transform_0, window_bounds = array<i64: 56, 128>}, {transform_indices = @transform_1, window_bounds = array<i64: 128, 128>}, {transform_indices = @transform_2, window_bounds = array<i64: 1, 128>}, {transform_indices = @transform_3, window_bounds = array<i64: 56, 128>}]} {
    %c0_i32 = arith.constant 0 : i32
    %0 = arith.cmpi eq, %arg2, %c0_i32 : i32
    %1 = arith.extui %0 : i1 to i32
    %c0_i32_0 = arith.constant 0 : i32
    %2 = arith.cmpi ne, %1, %c0_i32_0 : i32
    scf.if %2 {
      %cst_10 = arith.constant 0.000000e+00 : f32
      %12 = vector.broadcast %cst_10 : f32 to vector<56x128xf32>
      %c0_11 = arith.constant 0 : index
      %c0_12 = arith.constant 0 : index
      %13 = vector.load %arg7[%c0_11, %c0_12] : memref<56x128xf32, #tpu.memory_space<vmem>>, vector<56x128xf32>
      tpu.vector_store %arg7[%c0_11, %c0_12], %12 {strides = array<i32>} : memref<56x128xf32, #tpu.memory_space<vmem>>, vector<56x128xf32>,
    } else {
    }
    %c0 = arith.constant 0 : index
    %c0_1 = arith.constant 0 : index
    %3 = vector.load %arg7[%c0, %c0_1] : memref<56x128xf32, #tpu.memory_space<vmem>>, vector<56x128xf32>
    %c0_2 = arith.constant 0 : index
    %c0_3 = arith.constant 0 : index
    %4 = vector.load %arg3[%c0_2, %c0_3] : memref<56x128xf32, #tpu.memory_space<vmem>>, vector<56x128xf32>
    %c0_4 = arith.constant 0 : index
    %c0_5 = arith.constant 0 : index
    %5 = vector.load %arg4[%c0_4, %c0_5] : memref<128x128xf32, #tpu.memory_space<vmem>>, vector<128x128xf32>
    %cst = arith.constant dense<0.000000e+00> : vector<56x128xf32>
    %6 = tpu.matmul %4, %5, %cst {dimension_numbers = #tpu.dot_dimension_numbers<[1], [0], [0], [1], [0, 0, 1, 1], [], []>} : vector<56x128xf32>, vector<128x128xf32>, vector<56x128xf32> -> vector<56x128xf32>
    %7 = arith.addf %3, %6 : vector<56x128xf32>
    %c0_6 = arith.constant 0 : index
    %c0_7 = arith.constant 0 : index
    %8 = vector.load %arg7[%c0_6, %c0_7] : memref<56x128xf32, #tpu.memory_space<vmem>>, vector<56x128xf32>
    tpu.vector_store %arg7[%c0_6, %c0_7], %7 {strides = array<i32>} : memref<56x128xf32, #tpu.memory_space<vmem>>, vector<56x128xf32>,
    %c0_i32_8 = arith.constant 0 : i32
    %9 = arith.cmpi eq, %arg2, %c0_i32_8 : i32
    %10 = arith.extui %9 : i1 to i32
    %c0_i32_9 = arith.constant 0 : i32
    %11 = arith.cmpi ne, %10, %c0_i32_9 : i32
    scf.if %11 {
      %c0_10 = arith.constant 0 : index
      %c0_11 = arith.constant 0 : index
      %12 = vector.load %arg7[%c0_10, %c0_11] : memref<56x128xf32, #tpu.memory_space<vmem>>, vector<56x128xf32>
      %c0_12 = arith.constant 0 : index
      %c0_13 = arith.constant 0 : index
      %13 = vector.load %arg5[%c0_12, %c0_13] : memref<1x128xf32, #tpu.memory_space<vmem>>, vector<1x128xf32>
      %14 = vector.broadcast %13 : vector<1x128xf32> to vector<56x128xf32>
      %15 = arith.addf %12, %14 : vector<56x128xf32>
      %cst_14 = arith.constant 0.000000e+00 : f32
      %16 = vector.broadcast %cst_14 : f32 to vector<56x128xf32>
      %17 = arith.cmpf ogt, %15, %16 : vector<56x128xf32>
      %cst_15 = arith.constant 2.000000e-01 : f32
      %18 = vector.broadcast %cst_15 : f32 to vector<56x128xf32>
      %19 = arith.mulf %18, %15 : vector<56x128xf32>
      %20 = arith.select %17, %15, %19 : vector<56x128xi1>, vector<56x128xf32>
      %c0_16 = arith.constant 0 : index
      %c0_17 = arith.constant 0 : index
      %21 = vector.load %arg6[%c0_16, %c0_17] : memref<56x128xf32, #tpu.memory_space<vmem>>, vector<56x128xf32>
      tpu.vector_store %arg6[%c0_16, %c0_17], %20 {strides = array<i32>} : memref<56x128xf32, #tpu.memory_space<vmem>>, vector<56x128xf32>,
    } else {
    }
    return
  }
  func.func @transform_0(%arg0: i32, %arg1: i32, %arg2: i32) -> (i32, i32) {
    %c0_i32 = arith.constant 0 : i32
    return %arg0, %arg2 : i32, i32
  }
  func.func @transform_1(%arg0: i32, %arg1: i32, %arg2: i32) -> (i32, i32) {
    %c0_i32 = arith.constant 0 : i32
    return %arg2, %arg1 : i32, i32
  }
  func.func @transform_2(%arg0: i32, %arg1: i32, %arg2: i32) -> (i32, i32) {
    %c0_i32 = arith.constant 0 : i32
    %c0_i32_0 = arith.constant 0 : i32
    return %c0_i32, %arg1 : i32, i32
  }
  func.func @transform_3(%arg0: i32, %arg1: i32, %arg2: i32) -> (i32, i32) {
    %c0_i32 = arith.constant 0 : i32
    return %arg0, %arg1 : i32, i32
  }
}

module attributes {stable_mosaic.version = 11 : i64} {
  func.func @_matmul_bias_kernel(%arg0: i32, %arg1: i32, %arg2: i32, %arg3: memref<24x128xf32, #tpu.memory_space<vmem>>, %arg4: memref<128x128xf32, #tpu.memory_space<vmem>>, %arg5: memref<1x128xf32, #tpu.memory_space<vmem>>, %arg6: memref<24x128xf32, #tpu.memory_space<vmem>>, %arg7: memref<24x128xf32, #tpu.memory_space<vmem>>) attributes {dimension_semantics = [#tpu.dimension_semantics<parallel>, #tpu.dimension_semantics<parallel>, #tpu.dimension_semantics<arbitrary>], iteration_bounds = array<i64: 1, 1, 1>, scalar_prefetch = 0 : i64, scratch_operands = 1 : i64, tpu.core_type = #tpu.core_type<tc>, window_params = [{transform_indices = @transform_0, window_bounds = array<i64: 24, 128>}, {transform_indices = @transform_1, window_bounds = array<i64: 128, 128>}, {transform_indices = @transform_2, window_bounds = array<i64: 1, 128>}, {transform_indices = @transform_3, window_bounds = array<i64: 24, 128>}]} {
    %c0_i32 = arith.constant 0 : i32
    %0 = arith.cmpi eq, %arg2, %c0_i32 : i32
    %1 = arith.extui %0 : i1 to i32
    %c0_i32_0 = arith.constant 0 : i32
    %2 = arith.cmpi ne, %1, %c0_i32_0 : i32
    scf.if %2 {
      %cst_10 = arith.constant 0.000000e+00 : f32
      %12 = vector.broadcast %cst_10 : f32 to vector<24x128xf32>
      %c0_11 = arith.constant 0 : index
      %c0_12 = arith.constant 0 : index
      %13 = vector.load %arg7[%c0_11, %c0_12] : memref<24x128xf32, #tpu.memory_space<vmem>>, vector<24x128xf32>
      tpu.vector_store %arg7[%c0_11, %c0_12], %12 {strides = array<i32>} : memref<24x128xf32, #tpu.memory_space<vmem>>, vector<24x128xf32>,
    } else {
    }
    %c0 = arith.constant 0 : index
    %c0_1 = arith.constant 0 : index
    %3 = vector.load %arg7[%c0, %c0_1] : memref<24x128xf32, #tpu.memory_space<vmem>>, vector<24x128xf32>
    %c0_2 = arith.constant 0 : index
    %c0_3 = arith.constant 0 : index
    %4 = vector.load %arg3[%c0_2, %c0_3] : memref<24x128xf32, #tpu.memory_space<vmem>>, vector<24x128xf32>
    %c0_4 = arith.constant 0 : index
    %c0_5 = arith.constant 0 : index
    %5 = vector.load %arg4[%c0_4, %c0_5] : memref<128x128xf32, #tpu.memory_space<vmem>>, vector<128x128xf32>
    %cst = arith.constant dense<0.000000e+00> : vector<24x128xf32>
    %6 = tpu.matmul %4, %5, %cst {dimension_numbers = #tpu.dot_dimension_numbers<[1], [0], [0], [1], [0, 0, 1, 1], [], []>} : vector<24x128xf32>, vector<128x128xf32>, vector<24x128xf32> -> vector<24x128xf32>
    %7 = arith.addf %3, %6 : vector<24x128xf32>
    %c0_6 = arith.constant 0 : index
    %c0_7 = arith.constant 0 : index
    %8 = vector.load %arg7[%c0_6, %c0_7] : memref<24x128xf32, #tpu.memory_space<vmem>>, vector<24x128xf32>
    tpu.vector_store %arg7[%c0_6, %c0_7], %7 {strides = array<i32>} : memref<24x128xf32, #tpu.memory_space<vmem>>, vector<24x128xf32>,
    %c0_i32_8 = arith.constant 0 : i32
    %9 = arith.cmpi eq, %arg2, %c0_i32_8 : i32
    %10 = arith.extui %9 : i1 to i32
    %c0_i32_9 = arith.constant 0 : i32
    %11 = arith.cmpi ne, %10, %c0_i32_9 : i32
    scf.if %11 {
      %c0_10 = arith.constant 0 : index
      %c0_11 = arith.constant 0 : index
      %12 = vector.load %arg7[%c0_10, %c0_11] : memref<24x128xf32, #tpu.memory_space<vmem>>, vector<24x128xf32>
      %c0_12 = arith.constant 0 : index
      %c0_13 = arith.constant 0 : index
      %13 = vector.load %arg5[%c0_12, %c0_13] : memref<1x128xf32, #tpu.memory_space<vmem>>, vector<1x128xf32>
      %14 = vector.broadcast %13 : vector<1x128xf32> to vector<24x128xf32>
      %15 = arith.addf %12, %14 : vector<24x128xf32>
      %c0_14 = arith.constant 0 : index
      %c0_15 = arith.constant 0 : index
      %16 = vector.load %arg6[%c0_14, %c0_15] : memref<24x128xf32, #tpu.memory_space<vmem>>, vector<24x128xf32>
      tpu.vector_store %arg6[%c0_14, %c0_15], %15 {strides = array<i32>} : memref<24x128xf32, #tpu.memory_space<vmem>>, vector<24x128xf32>,
    } else {
    }
    return
  }
  func.func @transform_0(%arg0: i32, %arg1: i32, %arg2: i32) -> (i32, i32) {
    %c0_i32 = arith.constant 0 : i32
    return %arg0, %arg2 : i32, i32
  }
  func.func @transform_1(%arg0: i32, %arg1: i32, %arg2: i32) -> (i32, i32) {
    %c0_i32 = arith.constant 0 : i32
    return %arg2, %arg1 : i32, i32
  }
  func.func @transform_2(%arg0: i32, %arg1: i32, %arg2: i32) -> (i32, i32) {
    %c0_i32 = arith.constant 0 : i32
    %c0_i32_0 = arith.constant 0 : i32
    return %c0_i32, %arg1 : i32, i32
  }
  func.func @transform_3(%arg0: i32, %arg1: i32, %arg2: i32) -> (i32, i32) {
    %c0_i32 = arith.constant 0 : i32
    return %arg0, %arg1 : i32, i32
  }
}

module attributes {stable_mosaic.version = 11 : i64} {
  func.func @_bn_stats_kernel(%arg0: i32, %arg1: memref<8x128xf32, #tpu.memory_space<vmem>>, %arg2: memref<1x128xf32, #tpu.memory_space<vmem>>, %arg3: memref<1x128xf32, #tpu.memory_space<vmem>>) attributes {dimension_semantics = [#tpu.dimension_semantics<arbitrary>], iteration_bounds = array<i64: 1>, scalar_prefetch = 0 : i64, scratch_operands = 0 : i64, tpu.core_type = #tpu.core_type<tc>, window_params = [{transform_indices = @transform_0, window_bounds = array<i64: 8, 128>}, {pipeline_mode = #tpu.pipeline_mode<synchronous>, transform_indices = @transform_1, window_bounds = array<i64: 1, 128>}, {pipeline_mode = #tpu.pipeline_mode<synchronous>, transform_indices = @transform_2, window_bounds = array<i64: 1, 128>}]} {
    %c0_i32 = arith.constant 0 : i32
    %0 = arith.cmpi eq, %arg0, %c0_i32 : i32
    %1 = arith.extui %0 : i1 to i32
    %c0_i32_0 = arith.constant 0 : i32
    %2 = arith.cmpi ne, %1, %c0_i32_0 : i32
    scf.if %2 {
      %cst_11 = arith.constant 0.000000e+00 : f32
      %15 = vector.broadcast %cst_11 : f32 to vector<1x128xf32>
      %c0_12 = arith.constant 0 : index
      %c0_13 = arith.constant 0 : index
      %16 = vector.load %arg2[%c0_12, %c0_13] : memref<1x128xf32, #tpu.memory_space<vmem>>, vector<1x128xf32>
      tpu.vector_store %arg2[%c0_12, %c0_13], %15 {strides = array<i32>} : memref<1x128xf32, #tpu.memory_space<vmem>>, vector<1x128xf32>,
      %cst_14 = arith.constant 0.000000e+00 : f32
      %17 = vector.broadcast %cst_14 : f32 to vector<1x128xf32>
      %c0_15 = arith.constant 0 : index
      %c0_16 = arith.constant 0 : index
      %18 = vector.load %arg3[%c0_15, %c0_16] : memref<1x128xf32, #tpu.memory_space<vmem>>, vector<1x128xf32>
      tpu.vector_store %arg3[%c0_15, %c0_16], %17 {strides = array<i32>} : memref<1x128xf32, #tpu.memory_space<vmem>>, vector<1x128xf32>,
    } else {
    }
    %c0 = arith.constant 0 : index
    %c0_1 = arith.constant 0 : index
    %3 = vector.load %arg1[%c0, %c0_1] : memref<8x128xf32, #tpu.memory_space<vmem>>, vector<8x128xf32>
    %c0_2 = arith.constant 0 : index
    %c0_3 = arith.constant 0 : index
    %4 = vector.load %arg2[%c0_2, %c0_3] : memref<1x128xf32, #tpu.memory_space<vmem>>, vector<1x128xf32>
    %cst = arith.constant dense<0.000000e+00> : vector<128xf32>
    %5 = vector.multi_reduction <add>, %3, %cst [0] : vector<8x128xf32> to vector<128xf32>
    %6 = vector.shape_cast %5 : vector<128xf32> to vector<1x128xf32>
    %7 = arith.addf %4, %6 : vector<1x128xf32>
    %c0_4 = arith.constant 0 : index
    %c0_5 = arith.constant 0 : index
    %8 = vector.load %arg2[%c0_4, %c0_5] : memref<1x128xf32, #tpu.memory_space<vmem>>, vector<1x128xf32>
    tpu.vector_store %arg2[%c0_4, %c0_5], %7 {strides = array<i32>} : memref<1x128xf32, #tpu.memory_space<vmem>>, vector<1x128xf32>,
    %c0_6 = arith.constant 0 : index
    %c0_7 = arith.constant 0 : index
    %9 = vector.load %arg3[%c0_6, %c0_7] : memref<1x128xf32, #tpu.memory_space<vmem>>, vector<1x128xf32>
    %10 = arith.mulf %3, %3 : vector<8x128xf32>
    %cst_8 = arith.constant dense<0.000000e+00> : vector<128xf32>
    %11 = vector.multi_reduction <add>, %10, %cst_8 [0] : vector<8x128xf32> to vector<128xf32>
    %12 = vector.shape_cast %11 : vector<128xf32> to vector<1x128xf32>
    %13 = arith.addf %9, %12 : vector<1x128xf32>
    %c0_9 = arith.constant 0 : index
    %c0_10 = arith.constant 0 : index
    %14 = vector.load %arg3[%c0_9, %c0_10] : memref<1x128xf32, #tpu.memory_space<vmem>>, vector<1x128xf32>
    tpu.vector_store %arg3[%c0_9, %c0_10], %13 {strides = array<i32>} : memref<1x128xf32, #tpu.memory_space<vmem>>, vector<1x128xf32>,
    return
  }
  func.func @transform_0(%arg0: i32) -> (i32, i32) {
    %c0_i32 = arith.constant 0 : i32
    %c0_i32_0 = arith.constant 0 : i32
    return %arg0, %c0_i32 : i32, i32
  }
  func.func @transform_1(%arg0: i32) -> (i32, i32) {
    %c0_i32 = arith.constant 0 : i32
    %c0_i32_0 = arith.constant 0 : i32
    %c0_i32_1 = arith.constant 0 : i32
    return %c0_i32, %c0_i32_0 : i32, i32
  }
  func.func @transform_2(%arg0: i32) -> (i32, i32) {
    %c0_i32 = arith.constant 0 : i32
    %c0_i32_0 = arith.constant 0 : i32
    %c0_i32_1 = arith.constant 0 : i32
    return %c0_i32, %c0_i32_0 : i32, i32
  }
}

module attributes {stable_mosaic.version = 11 : i64} {
  func.func @_bn_norm_lrelu_kernel(%arg0: i32, %arg1: memref<8x128xf32, #tpu.memory_space<vmem>>, %arg2: memref<1x128xf32, #tpu.memory_space<vmem>>, %arg3: memref<1x128xf32, #tpu.memory_space<vmem>>, %arg4: memref<1x128xf32, #tpu.memory_space<vmem>>, %arg5: memref<1x128xf32, #tpu.memory_space<vmem>>, %arg6: memref<8x128xf32, #tpu.memory_space<vmem>>) attributes {dimension_semantics = [#tpu.dimension_semantics<parallel>], iteration_bounds = array<i64: 1>, scalar_prefetch = 0 : i64, scratch_operands = 0 : i64, tpu.core_type = #tpu.core_type<tc>, window_params = [{transform_indices = @transform_0, window_bounds = array<i64: 8, 128>}, {pipeline_mode = #tpu.pipeline_mode<synchronous>, transform_indices = @transform_1, window_bounds = array<i64: 1, 128>}, {pipeline_mode = #tpu.pipeline_mode<synchronous>, transform_indices = @transform_2, window_bounds = array<i64: 1, 128>}, {pipeline_mode = #tpu.pipeline_mode<synchronous>, transform_indices = @transform_3, window_bounds = array<i64: 1, 128>}, {pipeline_mode = #tpu.pipeline_mode<synchronous>, transform_indices = @transform_4, window_bounds = array<i64: 1, 128>}, {transform_indices = @transform_5, window_bounds = array<i64: 8, 128>}]} {
    %c0 = arith.constant 0 : index
    %c0_0 = arith.constant 0 : index
    %0 = vector.load %arg2[%c0, %c0_0] : memref<1x128xf32, #tpu.memory_space<vmem>>, vector<1x128xf32>
    %cst = arith.constant 1.250000e-01 : f32
    %1 = vector.broadcast %cst : f32 to vector<1x128xf32>
    %2 = arith.mulf %0, %1 : vector<1x128xf32>
    %c0_1 = arith.constant 0 : index
    %c0_2 = arith.constant 0 : index
    %3 = vector.load %arg3[%c0_1, %c0_2] : memref<1x128xf32, #tpu.memory_space<vmem>>, vector<1x128xf32>
    %cst_3 = arith.constant 1.250000e-01 : f32
    %4 = vector.broadcast %cst_3 : f32 to vector<1x128xf32>
    %5 = arith.mulf %3, %4 : vector<1x128xf32>
    %6 = arith.mulf %2, %2 : vector<1x128xf32>
    %7 = arith.subf %5, %6 : vector<1x128xf32>
    %cst_4 = arith.constant 0.000000e+00 : f32
    %8 = vector.broadcast %cst_4 : f32 to vector<1x128xf32>
    %9 = arith.maximumf %7, %8 : vector<1x128xf32>
    %cst_5 = arith.constant 9.99999974E-6 : f32
    %10 = vector.broadcast %cst_5 : f32 to vector<1x128xf32>
    %11 = arith.addf %9, %10 : vector<1x128xf32>
    %12 = math.rsqrt %11 : vector<1x128xf32>
    %c0_6 = arith.constant 0 : index
    %c0_7 = arith.constant 0 : index
    %13 = vector.load %arg4[%c0_6, %c0_7] : memref<1x128xf32, #tpu.memory_space<vmem>>, vector<1x128xf32>
    %14 = arith.mulf %12, %13 : vector<1x128xf32>
    %c0_8 = arith.constant 0 : index
    %c0_9 = arith.constant 0 : index
    %15 = vector.load %arg5[%c0_8, %c0_9] : memref<1x128xf32, #tpu.memory_space<vmem>>, vector<1x128xf32>
    %16 = arith.mulf %2, %14 : vector<1x128xf32>
    %17 = arith.subf %15, %16 : vector<1x128xf32>
    %c0_10 = arith.constant 0 : index
    %c0_11 = arith.constant 0 : index
    %18 = vector.load %arg1[%c0_10, %c0_11] : memref<8x128xf32, #tpu.memory_space<vmem>>, vector<8x128xf32>
    %19 = vector.broadcast %14 : vector<1x128xf32> to vector<8x128xf32>
    %20 = arith.mulf %18, %19 : vector<8x128xf32>
    %21 = vector.broadcast %17 : vector<1x128xf32> to vector<8x128xf32>
    %22 = arith.addf %20, %21 : vector<8x128xf32>
    %cst_12 = arith.constant 0.000000e+00 : f32
    %23 = vector.broadcast %cst_12 : f32 to vector<8x128xf32>
    %24 = arith.cmpf ogt, %22, %23 : vector<8x128xf32>
    %cst_13 = arith.constant 2.000000e-01 : f32
    %25 = vector.broadcast %cst_13 : f32 to vector<8x128xf32>
    %26 = arith.mulf %25, %22 : vector<8x128xf32>
    %27 = arith.select %24, %22, %26 : vector<8x128xi1>, vector<8x128xf32>
    %c0_14 = arith.constant 0 : index
    %c0_15 = arith.constant 0 : index
    %28 = vector.load %arg6[%c0_14, %c0_15] : memref<8x128xf32, #tpu.memory_space<vmem>>, vector<8x128xf32>
    tpu.vector_store %arg6[%c0_14, %c0_15], %27 {strides = array<i32>} : memref<8x128xf32, #tpu.memory_space<vmem>>, vector<8x128xf32>,
    return
  }
  func.func @transform_0(%arg0: i32) -> (i32, i32) {
    %c0_i32 = arith.constant 0 : i32
    %c0_i32_0 = arith.constant 0 : i32
    return %arg0, %c0_i32 : i32, i32
  }
  func.func @transform_1(%arg0: i32) -> (i32, i32) {
    %c0_i32 = arith.constant 0 : i32
    %c0_i32_0 = arith.constant 0 : i32
    %c0_i32_1 = arith.constant 0 : i32
    return %c0_i32, %c0_i32_0 : i32, i32
  }
  func.func @transform_2(%arg0: i32) -> (i32, i32) {
    %c0_i32 = arith.constant 0 : i32
    %c0_i32_0 = arith.constant 0 : i32
    %c0_i32_1 = arith.constant 0 : i32
    return %c0_i32, %c0_i32_0 : i32, i32
  }
  func.func @transform_3(%arg0: i32) -> (i32, i32) {
    %c0_i32 = arith.constant 0 : i32
    %c0_i32_0 = arith.constant 0 : i32
    %c0_i32_1 = arith.constant 0 : i32
    return %c0_i32, %c0_i32_0 : i32, i32
  }
  func.func @transform_4(%arg0: i32) -> (i32, i32) {
    %c0_i32 = arith.constant 0 : i32
    %c0_i32_0 = arith.constant 0 : i32
    %c0_i32_1 = arith.constant 0 : i32
    return %c0_i32, %c0_i32_0 : i32, i32
  }
  func.func @transform_5(%arg0: i32) -> (i32, i32) {
    %c0_i32 = arith.constant 0 : i32
    %c0_i32_0 = arith.constant 0 : i32
    return %arg0, %c0_i32 : i32, i32
  }
}

module attributes {stable_mosaic.version = 11 : i64} {
  func.func @_matmul_bias_kernel(%arg0: i32, %arg1: i32, %arg2: i32, %arg3: memref<8x256xf32, #tpu.memory_space<vmem>>, %arg4: memref<256x128xf32, #tpu.memory_space<vmem>>, %arg5: memref<1x128xf32, #tpu.memory_space<vmem>>, %arg6: memref<8x128xf32, #tpu.memory_space<vmem>>, %arg7: memref<8x128xf32, #tpu.memory_space<vmem>>) attributes {dimension_semantics = [#tpu.dimension_semantics<parallel>, #tpu.dimension_semantics<parallel>, #tpu.dimension_semantics<arbitrary>], iteration_bounds = array<i64: 1, 1, 1>, scalar_prefetch = 0 : i64, scratch_operands = 1 : i64, tpu.core_type = #tpu.core_type<tc>, window_params = [{transform_indices = @transform_0, window_bounds = array<i64: 8, 256>}, {transform_indices = @transform_1, window_bounds = array<i64: 256, 128>}, {transform_indices = @transform_2, window_bounds = array<i64: 1, 128>}, {transform_indices = @transform_3, window_bounds = array<i64: 8, 128>}]} {
    %c0_i32 = arith.constant 0 : i32
    %0 = arith.cmpi eq, %arg2, %c0_i32 : i32
    %1 = arith.extui %0 : i1 to i32
    %c0_i32_0 = arith.constant 0 : i32
    %2 = arith.cmpi ne, %1, %c0_i32_0 : i32
    scf.if %2 {
      %cst_10 = arith.constant 0.000000e+00 : f32
      %12 = vector.broadcast %cst_10 : f32 to vector<8x128xf32>
      %c0_11 = arith.constant 0 : index
      %c0_12 = arith.constant 0 : index
      %13 = vector.load %arg7[%c0_11, %c0_12] : memref<8x128xf32, #tpu.memory_space<vmem>>, vector<8x128xf32>
      tpu.vector_store %arg7[%c0_11, %c0_12], %12 {strides = array<i32>} : memref<8x128xf32, #tpu.memory_space<vmem>>, vector<8x128xf32>,
    } else {
    }
    %c0 = arith.constant 0 : index
    %c0_1 = arith.constant 0 : index
    %3 = vector.load %arg7[%c0, %c0_1] : memref<8x128xf32, #tpu.memory_space<vmem>>, vector<8x128xf32>
    %c0_2 = arith.constant 0 : index
    %c0_3 = arith.constant 0 : index
    %4 = vector.load %arg3[%c0_2, %c0_3] : memref<8x256xf32, #tpu.memory_space<vmem>>, vector<8x256xf32>
    %c0_4 = arith.constant 0 : index
    %c0_5 = arith.constant 0 : index
    %5 = vector.load %arg4[%c0_4, %c0_5] : memref<256x128xf32, #tpu.memory_space<vmem>>, vector<256x128xf32>
    %cst = arith.constant dense<0.000000e+00> : vector<8x128xf32>
    %6 = tpu.matmul %4, %5, %cst {dimension_numbers = #tpu.dot_dimension_numbers<[1], [0], [0], [1], [0, 0, 1, 1], [], []>} : vector<8x256xf32>, vector<256x128xf32>, vector<8x128xf32> -> vector<8x128xf32>
    %7 = arith.addf %3, %6 : vector<8x128xf32>
    %c0_6 = arith.constant 0 : index
    %c0_7 = arith.constant 0 : index
    %8 = vector.load %arg7[%c0_6, %c0_7] : memref<8x128xf32, #tpu.memory_space<vmem>>, vector<8x128xf32>
    tpu.vector_store %arg7[%c0_6, %c0_7], %7 {strides = array<i32>} : memref<8x128xf32, #tpu.memory_space<vmem>>, vector<8x128xf32>,
    %c0_i32_8 = arith.constant 0 : i32
    %9 = arith.cmpi eq, %arg2, %c0_i32_8 : i32
    %10 = arith.extui %9 : i1 to i32
    %c0_i32_9 = arith.constant 0 : i32
    %11 = arith.cmpi ne, %10, %c0_i32_9 : i32
    scf.if %11 {
      %c0_10 = arith.constant 0 : index
      %c0_11 = arith.constant 0 : index
      %12 = vector.load %arg7[%c0_10, %c0_11] : memref<8x128xf32, #tpu.memory_space<vmem>>, vector<8x128xf32>
      %c0_12 = arith.constant 0 : index
      %c0_13 = arith.constant 0 : index
      %13 = vector.load %arg5[%c0_12, %c0_13] : memref<1x128xf32, #tpu.memory_space<vmem>>, vector<1x128xf32>
      %14 = vector.broadcast %13 : vector<1x128xf32> to vector<8x128xf32>
      %15 = arith.addf %12, %14 : vector<8x128xf32>
      %c0_14 = arith.constant 0 : index
      %c0_15 = arith.constant 0 : index
      %16 = vector.load %arg6[%c0_14, %c0_15] : memref<8x128xf32, #tpu.memory_space<vmem>>, vector<8x128xf32>
      tpu.vector_store %arg6[%c0_14, %c0_15], %15 {strides = array<i32>} : memref<8x128xf32, #tpu.memory_space<vmem>>, vector<8x128xf32>,
    } else {
    }
    return
  }
  func.func @transform_0(%arg0: i32, %arg1: i32, %arg2: i32) -> (i32, i32) {
    %c0_i32 = arith.constant 0 : i32
    return %arg0, %arg2 : i32, i32
  }
  func.func @transform_1(%arg0: i32, %arg1: i32, %arg2: i32) -> (i32, i32) {
    %c0_i32 = arith.constant 0 : i32
    return %arg2, %arg1 : i32, i32
  }
  func.func @transform_2(%arg0: i32, %arg1: i32, %arg2: i32) -> (i32, i32) {
    %c0_i32 = arith.constant 0 : i32
    %c0_i32_0 = arith.constant 0 : i32
    return %c0_i32, %arg1 : i32, i32
  }
  func.func @transform_3(%arg0: i32, %arg1: i32, %arg2: i32) -> (i32, i32) {
    %c0_i32 = arith.constant 0 : i32
    return %arg0, %arg1 : i32, i32
  }
}

module attributes {stable_mosaic.version = 11 : i64} {
  func.func @_matmul_bias_kernel(%arg0: i32, %arg1: i32, %arg2: i32, %arg3: memref<24x256xf32, #tpu.memory_space<vmem>>, %arg4: memref<256x128xf32, #tpu.memory_space<vmem>>, %arg5: memref<1x128xf32, #tpu.memory_space<vmem>>, %arg6: memref<24x128xf32, #tpu.memory_space<vmem>>, %arg7: memref<24x128xf32, #tpu.memory_space<vmem>>) attributes {dimension_semantics = [#tpu.dimension_semantics<parallel>, #tpu.dimension_semantics<parallel>, #tpu.dimension_semantics<arbitrary>], iteration_bounds = array<i64: 1, 1, 2>, scalar_prefetch = 0 : i64, scratch_operands = 1 : i64, tpu.core_type = #tpu.core_type<tc>, window_params = [{transform_indices = @transform_0, window_bounds = array<i64: 24, 256>}, {transform_indices = @transform_1, window_bounds = array<i64: 256, 128>}, {transform_indices = @transform_2, window_bounds = array<i64: 1, 128>}, {transform_indices = @transform_3, window_bounds = array<i64: 24, 128>}]} {
    %c0_i32 = arith.constant 0 : i32
    %0 = arith.cmpi eq, %arg2, %c0_i32 : i32
    %1 = arith.extui %0 : i1 to i32
    %c0_i32_0 = arith.constant 0 : i32
    %2 = arith.cmpi ne, %1, %c0_i32_0 : i32
    scf.if %2 {
      %cst_9 = arith.constant 0.000000e+00 : f32
      %12 = vector.broadcast %cst_9 : f32 to vector<24x128xf32>
      %c0_10 = arith.constant 0 : index
      %c0_11 = arith.constant 0 : index
      %13 = vector.load %arg7[%c0_10, %c0_11] : memref<24x128xf32, #tpu.memory_space<vmem>>, vector<24x128xf32>
      tpu.vector_store %arg7[%c0_10, %c0_11], %12 {strides = array<i32>} : memref<24x128xf32, #tpu.memory_space<vmem>>, vector<24x128xf32>,
    } else {
    }
    %c0 = arith.constant 0 : index
    %c0_1 = arith.constant 0 : index
    %3 = vector.load %arg7[%c0, %c0_1] : memref<24x128xf32, #tpu.memory_space<vmem>>, vector<24x128xf32>
    %c0_2 = arith.constant 0 : index
    %c0_3 = arith.constant 0 : index
    %4 = vector.load %arg3[%c0_2, %c0_3] : memref<24x256xf32, #tpu.memory_space<vmem>>, vector<24x256xf32>
    %c0_4 = arith.constant 0 : index
    %c0_5 = arith.constant 0 : index
    %5 = vector.load %arg4[%c0_4, %c0_5] : memref<256x128xf32, #tpu.memory_space<vmem>>, vector<256x128xf32>
    %cst = arith.constant dense<0.000000e+00> : vector<24x128xf32>
    %6 = tpu.matmul %4, %5, %cst {dimension_numbers = #tpu.dot_dimension_numbers<[1], [0], [0], [1], [0, 0, 1, 1], [], []>} : vector<24x256xf32>, vector<256x128xf32>, vector<24x128xf32> -> vector<24x128xf32>
    %7 = arith.addf %3, %6 : vector<24x128xf32>
    %c0_6 = arith.constant 0 : index
    %c0_7 = arith.constant 0 : index
    %8 = vector.load %arg7[%c0_6, %c0_7] : memref<24x128xf32, #tpu.memory_space<vmem>>, vector<24x128xf32>
    tpu.vector_store %arg7[%c0_6, %c0_7], %7 {strides = array<i32>} : memref<24x128xf32, #tpu.memory_space<vmem>>, vector<24x128xf32>,
    %c1_i32 = arith.constant 1 : i32
    %9 = arith.cmpi eq, %arg2, %c1_i32 : i32
    %10 = arith.extui %9 : i1 to i32
    %c0_i32_8 = arith.constant 0 : i32
    %11 = arith.cmpi ne, %10, %c0_i32_8 : i32
    scf.if %11 {
      %c0_9 = arith.constant 0 : index
      %c0_10 = arith.constant 0 : index
      %12 = vector.load %arg7[%c0_9, %c0_10] : memref<24x128xf32, #tpu.memory_space<vmem>>, vector<24x128xf32>
      %c0_11 = arith.constant 0 : index
      %c0_12 = arith.constant 0 : index
      %13 = vector.load %arg5[%c0_11, %c0_12] : memref<1x128xf32, #tpu.memory_space<vmem>>, vector<1x128xf32>
      %14 = vector.broadcast %13 : vector<1x128xf32> to vector<24x128xf32>
      %15 = arith.addf %12, %14 : vector<24x128xf32>
      %c0_13 = arith.constant 0 : index
      %c0_14 = arith.constant 0 : index
      %16 = vector.load %arg6[%c0_13, %c0_14] : memref<24x128xf32, #tpu.memory_space<vmem>>, vector<24x128xf32>
      tpu.vector_store %arg6[%c0_13, %c0_14], %15 {strides = array<i32>} : memref<24x128xf32, #tpu.memory_space<vmem>>, vector<24x128xf32>,
    } else {
    }
    return
  }
  func.func @transform_0(%arg0: i32, %arg1: i32, %arg2: i32) -> (i32, i32) {
    %c0_i32 = arith.constant 0 : i32
    return %arg0, %arg2 : i32, i32
  }
  func.func @transform_1(%arg0: i32, %arg1: i32, %arg2: i32) -> (i32, i32) {
    %c0_i32 = arith.constant 0 : i32
    return %arg2, %arg1 : i32, i32
  }
  func.func @transform_2(%arg0: i32, %arg1: i32, %arg2: i32) -> (i32, i32) {
    %c0_i32 = arith.constant 0 : i32
    %c0_i32_0 = arith.constant 0 : i32
    return %c0_i32, %arg1 : i32, i32
  }
  func.func @transform_3(%arg0: i32, %arg1: i32, %arg2: i32) -> (i32, i32) {
    %c0_i32 = arith.constant 0 : i32
    return %arg0, %arg1 : i32, i32
  }
}

module attributes {stable_mosaic.version = 11 : i64} {
  func.func @_matmul_bias_kernel(%arg0: i32, %arg1: i32, %arg2: i32, %arg3: memref<32x256xf32, #tpu.memory_space<vmem>>, %arg4: memref<256x128xf32, #tpu.memory_space<vmem>>, %arg5: memref<1x128xf32, #tpu.memory_space<vmem>>, %arg6: memref<32x128xf32, #tpu.memory_space<vmem>>, %arg7: memref<32x128xf32, #tpu.memory_space<vmem>>) attributes {dimension_semantics = [#tpu.dimension_semantics<parallel>, #tpu.dimension_semantics<parallel>, #tpu.dimension_semantics<arbitrary>], iteration_bounds = array<i64: 1, 1, 4>, scalar_prefetch = 0 : i64, scratch_operands = 1 : i64, tpu.core_type = #tpu.core_type<tc>, window_params = [{transform_indices = @transform_0, window_bounds = array<i64: 32, 256>}, {transform_indices = @transform_1, window_bounds = array<i64: 256, 128>}, {transform_indices = @transform_2, window_bounds = array<i64: 1, 128>}, {transform_indices = @transform_3, window_bounds = array<i64: 32, 128>}]} {
    %c0_i32 = arith.constant 0 : i32
    %0 = arith.cmpi eq, %arg2, %c0_i32 : i32
    %1 = arith.extui %0 : i1 to i32
    %c0_i32_0 = arith.constant 0 : i32
    %2 = arith.cmpi ne, %1, %c0_i32_0 : i32
    scf.if %2 {
      %cst_9 = arith.constant 0.000000e+00 : f32
      %12 = vector.broadcast %cst_9 : f32 to vector<32x128xf32>
      %c0_10 = arith.constant 0 : index
      %c0_11 = arith.constant 0 : index
      %13 = vector.load %arg7[%c0_10, %c0_11] : memref<32x128xf32, #tpu.memory_space<vmem>>, vector<32x128xf32>
      tpu.vector_store %arg7[%c0_10, %c0_11], %12 {strides = array<i32>} : memref<32x128xf32, #tpu.memory_space<vmem>>, vector<32x128xf32>,
    } else {
    }
    %c0 = arith.constant 0 : index
    %c0_1 = arith.constant 0 : index
    %3 = vector.load %arg7[%c0, %c0_1] : memref<32x128xf32, #tpu.memory_space<vmem>>, vector<32x128xf32>
    %c0_2 = arith.constant 0 : index
    %c0_3 = arith.constant 0 : index
    %4 = vector.load %arg3[%c0_2, %c0_3] : memref<32x256xf32, #tpu.memory_space<vmem>>, vector<32x256xf32>
    %c0_4 = arith.constant 0 : index
    %c0_5 = arith.constant 0 : index
    %5 = vector.load %arg4[%c0_4, %c0_5] : memref<256x128xf32, #tpu.memory_space<vmem>>, vector<256x128xf32>
    %cst = arith.constant dense<0.000000e+00> : vector<32x128xf32>
    %6 = tpu.matmul %4, %5, %cst {dimension_numbers = #tpu.dot_dimension_numbers<[1], [0], [0], [1], [0, 0, 1, 1], [], []>} : vector<32x256xf32>, vector<256x128xf32>, vector<32x128xf32> -> vector<32x128xf32>
    %7 = arith.addf %3, %6 : vector<32x128xf32>
    %c0_6 = arith.constant 0 : index
    %c0_7 = arith.constant 0 : index
    %8 = vector.load %arg7[%c0_6, %c0_7] : memref<32x128xf32, #tpu.memory_space<vmem>>, vector<32x128xf32>
    tpu.vector_store %arg7[%c0_6, %c0_7], %7 {strides = array<i32>} : memref<32x128xf32, #tpu.memory_space<vmem>>, vector<32x128xf32>,
    %c3_i32 = arith.constant 3 : i32
    %9 = arith.cmpi eq, %arg2, %c3_i32 : i32
    %10 = arith.extui %9 : i1 to i32
    %c0_i32_8 = arith.constant 0 : i32
    %11 = arith.cmpi ne, %10, %c0_i32_8 : i32
    scf.if %11 {
      %c0_9 = arith.constant 0 : index
      %c0_10 = arith.constant 0 : index
      %12 = vector.load %arg7[%c0_9, %c0_10] : memref<32x128xf32, #tpu.memory_space<vmem>>, vector<32x128xf32>
      %c0_11 = arith.constant 0 : index
      %c0_12 = arith.constant 0 : index
      %13 = vector.load %arg5[%c0_11, %c0_12] : memref<1x128xf32, #tpu.memory_space<vmem>>, vector<1x128xf32>
      %14 = vector.broadcast %13 : vector<1x128xf32> to vector<32x128xf32>
      %15 = arith.addf %12, %14 : vector<32x128xf32>
      %c0_13 = arith.constant 0 : index
      %c0_14 = arith.constant 0 : index
      %16 = vector.load %arg6[%c0_13, %c0_14] : memref<32x128xf32, #tpu.memory_space<vmem>>, vector<32x128xf32>
      tpu.vector_store %arg6[%c0_13, %c0_14], %15 {strides = array<i32>} : memref<32x128xf32, #tpu.memory_space<vmem>>, vector<32x128xf32>,
    } else {
    }
    return
  }
  func.func @transform_0(%arg0: i32, %arg1: i32, %arg2: i32) -> (i32, i32) {
    %c0_i32 = arith.constant 0 : i32
    return %arg0, %arg2 : i32, i32
  }
  func.func @transform_1(%arg0: i32, %arg1: i32, %arg2: i32) -> (i32, i32) {
    %c0_i32 = arith.constant 0 : i32
    return %arg2, %arg1 : i32, i32
  }
  func.func @transform_2(%arg0: i32, %arg1: i32, %arg2: i32) -> (i32, i32) {
    %c0_i32 = arith.constant 0 : i32
    %c0_i32_0 = arith.constant 0 : i32
    return %c0_i32, %arg1 : i32, i32
  }
  func.func @transform_3(%arg0: i32, %arg1: i32, %arg2: i32) -> (i32, i32) {
    %c0_i32 = arith.constant 0 : i32
    return %arg0, %arg1 : i32, i32
  }
}

</mosaic_0001>

<llo_original>
// kernel: multiscale_discriminator_forward.23
$region0: #{multiscale_discriminator_forward.23}
  #allocation0 [shape = 'u32[]', space=smem, size = 0x4, offset = 0x4, fixed_abs, tag = 'smem constant byte address 0x4 - core index']
  #allocation1 [shape = 'u32[144,128]{1,0:T(1,128)}', space=vmem, size = 0x12000, scoped, tag = 'internal scratch']
  #allocation2 [shape = 'f32[168,128]{1,0:T(8,128)}', space=vmem, size = 0x15000, scoped, tag = 'scratch operand']
  %s0 = inlined_call_operand.vmem [shape: f32[168,128], index: 0, kind: input, shape index: {}]
  %s1 = inlined_call_operand.vmem [shape: f32[128,128], index: 1, kind: input, shape index: {}]
  %s2 = inlined_call_operand.vmem [shape: f32[1,128], index: 2, kind: input, shape index: {}]
  %s3 = inlined_call_operand.vmem [shape: f32[168,128], index: 3, kind: output, shape index: {}]
  %s4 = sld [smem:[#allocation0]]
  $region30: #{multiscale_discriminator_forward.23} parent=0
    _
  %s6 = ssub.s32 1, %s4
  %s7 = scalar_select 0, %s6, %s4
  // Predicated region
  $region2: #{multiscale_discriminator_forward.23} parent=0 // pred_check
    _
  $region3: #{multiscale_discriminator_forward.23} parent=0 // pred_check_branch
    %9 = sbr.rel (0) target = $region5
  $region4: #{multiscale_discriminator_forward.23} parent=0 // pred_region
    _
  $region5: #{multiscale_discriminator_forward.23} parent=0 // pred_fallthru
    _
  // Predicated region
  $region6: #{multiscale_discriminator_forward.23} parent=0 // pred_check
    _
  $region7: #{multiscale_discriminator_forward.23} parent=0 // pred_check_branch
    %11 = sbr.rel (0) target = $region9
  $region8: #{multiscale_discriminator_forward.23} parent=0 // pred_region
    _
  $region9: #{multiscale_discriminator_forward.23} parent=0 // pred_fallthru
    _
  // Predicated region
  $region10: #{multiscale_discriminator_forward.23} parent=0 // pred_check
    _
  $region11: #{multiscale_discriminator_forward.23} parent=0 // pred_check_branch
    %13 = sbr.rel (0) target = $region13
  $region12: #{multiscale_discriminator_forward.23} parent=0 // pred_region
    _
  $region13: #{multiscale_discriminator_forward.23} parent=0 // pred_fallthru
    _
  %p14 = scmp.eq.s32.totalorder 0, 0
  // Predicated region
  $region14: #{multiscale_discriminator_forward.23} parent=0 // pred_check
    %p15 = pneg %p14
  $region15: #{multiscale_discriminator_forward.23} parent=0 // pred_check_branch
    %17 = sbr.rel (%p15) target = $region17
  $region16: #{multiscale_discriminator_forward.23} parent=0 // pred_region
    %18 = vst [vmem:[#allocation2] sm:$0xff] 0.0
    %19 = vst [vmem:[#allocation2 + $0x8] sm:$0xff] 0.0
    %20 = vst [vmem:[#allocation2 + $0x10] sm:$0xff] 0.0
    %21 = vst [vmem:[#allocation2 + $0x18] sm:$0xff] 0.0
    %22 = vst [vmem:[#allocation2 + $0x20] sm:$0xff] 0.0
    %23 = vst [vmem:[#allocation2 + $0x28] sm:$0xff] 0.0
    %24 = vst [vmem:[#allocation2 + $0x30] sm:$0xff] 0.0
    %25 = vst [vmem:[#allocation2 + $0x38] sm:$0xff] 0.0
    %26 = vst [vmem:[#allocation2 + $0x40] sm:$0xff] 0.0
    %27 = vst [vmem:[#allocation2 + $0x48] sm:$0xff] 0.0
    %28 = vst [vmem:[#allocation2 + $0x50] sm:$0xff] 0.0
    %29 = vst [vmem:[#allocation2 + $0x58] sm:$0xff] 0.0
    %30 = vst [vmem:[#allocation2 + $0x60] sm:$0xff] 0.0
    %31 = vst [vmem:[#allocation2 + $0x68] sm:$0xff] 0.0
    %32 = vst [vmem:[#allocation2 + $0x70] sm:$0xff] 0.0
    %33 = vst [vmem:[#allocation2 + $0x78] sm:$0xff] 0.0
    %34 = vst [vmem:[#allocation2 + $0x80] sm:$0xff] 0.0
    %35 = vst [vmem:[#allocation2 + $0x88] sm:$0xff] 0.0
    %36 = vst [vmem:[#allocation2 + $0x90] sm:$0xff] 0.0
    %37 = vst [vmem:[#allocation2 + $0x98] sm:$0xff] 0.0
    %38 = vst [vmem:[#allocation2 + $0xa0] sm:$0xff] 0.0
  $region17: #{multiscale_discriminator_forward.23} parent=0 // pred_fallthru
    _
  %v39 = vld [vmem:[#allocation2] sm:$0xff]
  %v40 = vld [vmem:[#allocation2 + $0x8] sm:$0xff]
  %v41 = vld [vmem:[#allocation2 + $0x10] sm:$0xff]
  %v42 = vld [vmem:[#allocation2 + $0x18] sm:$0xff]
  %v43 = vld [vmem:[#allocation2 + $0x20] sm:$0xff]
  %v44 = vld [vmem:[#allocation2 + $0x28] sm:$0xff]
  %v45 = vld [vmem:[#allocation2 + $0x30] sm:$0xff]
  %v46 = vld [vmem:[#allocation2 + $0x38] sm:$0xff]
  %v47 = vld [vmem:[#allocation2 + $0x40] sm:$0xff]
  %v48 = vld [vmem:[#allocation2 + $0x48] sm:$0xff]
  %v49 = vld [vmem:[#allocation2 + $0x50] sm:$0xff]
  %v50 = vld [vmem:[#allocation2 + $0x58] sm:$0xff]
  %v51 = vld [vmem:[#allocation2 + $0x60] sm:$0xff]
  %v52 = vld [vmem:[#allocation2 + $0x68] sm:$0xff]
  %v53 = vld [vmem:[#allocation2 + $0x70] sm:$0xff]
  %v54 = vld [vmem:[#allocation2 + $0x78] sm:$0xff]
  %v55 = vld [vmem:[#allocation2 + $0x80] sm:$0xff]
  %v56 = vld [vmem:[#allocation2 + $0x88] sm:$0xff]
  %v57 = vld [vmem:[#allocation2 + $0x90] sm:$0xff]
  %v58 = vld [vmem:[#allocation2 + $0x98] sm:$0xff]
  %v59 = vld [vmem:[#allocation2 + $0xa0] sm:$0xff]
  %v60 = vld [vmem:[%s0] sm:$0xff]
  %v61 = vld [vmem:[%s0 + $0x8] sm:$0xff]
  %v62 = vld [vmem:[%s0 + $0x10] sm:$0xff]
  %v63 = vld [vmem:[%s0 + $0x18] sm:$0xff]
  %v64 = vld [vmem:[%s0 + $0x20] sm:$0xff]
  %v65 = vld [vmem:[%s0 + $0x28] sm:$0xff]
  %v66 = vld [vmem:[%s0 + $0x30] sm:$0xff]
  %v67 = vld [vmem:[%s0 + $0x38] sm:$0xff]
  %v68 = vld [vmem:[%s0 + $0x40] sm:$0xff]
  %v69 = vld [vmem:[%s0 + $0x48] sm:$0xff]
  %v70 = vld [vmem:[%s0 + $0x50] sm:$0xff]
  %v71 = vld [vmem:[%s0 + $0x58] sm:$0xff]
  %v72 = vld [vmem:[%s0 + $0x60] sm:$0xff]
  %v73 = vld [vmem:[%s0 + $0x68] sm:$0xff]
  %v74 = vld [vmem:[%s0 + $0x70] sm:$0xff]
  %v75 = vld [vmem:[%s0 + $0x78] sm:$0xff]
  %v76 = vld [vmem:[%s0 + $0x80] sm:$0xff]
  %v77 = vld [vmem:[%s0 + $0x88] sm:$0xff]
  %v78 = vld [vmem:[%s0 + $0x90] sm:$0xff]
  %v79 = vld [vmem:[%s0 + $0x98] sm:$0xff]
  %v80 = vld [vmem:[%s0 + $0xa0] sm:$0xff]
  %v81 = vld [vmem:[%s1] sm:$0xff]
  %v82 = vld [vmem:[%s1 + $0x8] sm:$0xff]
  %v83 = vld [vmem:[%s1 + $0x10] sm:$0xff]
  %v84 = vld [vmem:[%s1 + $0x18] sm:$0xff]
  %v85 = vld [vmem:[%s1 + $0x20] sm:$0xff]
  %v86 = vld [vmem:[%s1 + $0x28] sm:$0xff]
  %v87 = vld [vmem:[%s1 + $0x30] sm:$0xff]
  %v88 = vld [vmem:[%s1 + $0x38] sm:$0xff]
  %v89 = vld [vmem:[%s1 + $0x40] sm:$0xff]
  %v90 = vld [vmem:[%s1 + $0x48] sm:$0xff]
  %v91 = vld [vmem:[%s1 + $0x50] sm:$0xff]
  %v92 = vld [vmem:[%s1 + $0x58] sm:$0xff]
  %v93 = vld [vmem:[%s1 + $0x60] sm:$0xff]
  %v94 = vld [vmem:[%s1 + $0x68] sm:$0xff]
  %v95 = vld [vmem:[%s1 + $0x70] sm:$0xff]
  %v96 = vld [vmem:[%s1 + $0x78] sm:$0xff]
  %97 = vmatprep.subr.mxu0 0.0
  %98 = vmatpush1.msra.mxu0 %v81
  %99 = vmatprep.subr.mxu0 0.0
  %100 = vmatpush1.msra.mxu0 %v82
  %101 = vmatprep.subr.mxu0 0.0
  %102 = vmatpush1.msra.mxu0 %v83
  %103 = vmatprep.subr.mxu0 0.0
  %104 = vmatpush1.msra.mxu0 %v84
  %105 = vmatprep.subr.mxu0 0.0
  %106 = vmatpush1.msra.mxu0 %v85
  %107 = vmatprep.subr.mxu0 0.0
  %108 = vmatpush1.msra.mxu0 %v86
  %109 = vmatprep.subr.mxu0 0.0
  %110 = vmatpush1.msra.mxu0 %v87
  %111 = vmatprep.subr.mxu0 0.0
  %112 = vmatpush1.msra.mxu0 %v88
  %113 = vmatprep.subr.mxu0 0.0
  %114 = vmatpush1.msra.mxu0 %v89
  %115 = vmatprep.subr.mxu0 0.0
  %116 = vmatpush1.msra.mxu0 %v90
  %117 = vmatprep.subr.mxu0 0.0
  %118 = vmatpush1.msra.mxu0 %v91
  %119 = vmatprep.subr.mxu0 0.0
  %120 = vmatpush1.msra.mxu0 %v92
  %121 = vmatprep.subr.mxu0 0.0
  %122 = vmatpush1.msra.mxu0 %v93
  %123 = vmatprep.subr.mxu0 0.0
  %124 = vmatpush1.msra.mxu0 %v94
  %125 = vmatprep.subr.mxu0 0.0
  %126 = vmatpush1.msra.mxu0 %v95
  %127 = vmatprep.subr.mxu0 0.0
  %128 = vmatpush1.msra.mxu0 %v96
  %129 = vmatprep.subr.mxu0 0.0
  %130 = vmatpush1.msra.mxu0 0.0
  %131 = vmatprep.subr.mxu0 0.0
  %132 = vmatpush1.msra.mxu0 0.0
  %133 = vmatprep.subr.mxu0 0.0
  %134 = vmatpush1.msra.mxu0 0.0
  %135 = vmatprep.subr.mxu0 0.0
  %136 = vmatpush1.msra.mxu0 0.0
  %137 = vmatprep.subr.mxu0 0.0
  %138 = vmatpush1.msra.mxu0 0.0
  %139 = vmatprep.subr.mxu0 0.0
  %140 = vmatpush1.msra.mxu0 0.0
  %141 = vmatprep.subr.mxu0 0.0
  %142 = vmatpush1.msra.mxu0 0.0
  %143 = vmatprep.subr.mxu0 0.0
  %144 = vmatpush1.msra.mxu0 0.0
  %145 = vmatprep.subr.mxu0 0.0
  %146 = vmatpush1.msra.mxu0 0.0
  %147 = vmatprep.subr.mxu0 0.0
  %148 = vmatpush1.msra.mxu0 0.0
  %149 = vmatprep.subr.mxu0 0.0
  %150 = vmatpush1.msra.mxu0 0.0
  %151 = vmatprep.subr.mxu0 0.0
  %152 = vmatpush1.msra.mxu0 0.0
  %153 = vmatprep.subr.mxu0 0.0
  %154 = vmatpush1.msra.mxu0 0.0
  %155 = vmatprep.subr.mxu0 0.0
  %156 = vmatpush1.msra.mxu0 0.0
  %157 = vmatprep.subr.mxu0 0.0
  %158 = vmatpush1.msra.mxu0 0.0
  %159 = vmatprep.subr.mxu0 0.0
  %160 = vmatpush1.msra.mxu0 0.0
  %161 = vmatprep.mubr.f32.mxu0 0.0
  %162 = vmatmul.mubr.f32.gmra.mrb[0].mxu0 %v60
  %v163 = vpop.f32.mrb[0].mxu0
  %v164 = vadd.f32 0.0, %v163
  %v165 = vpop.f32.mrb[0].mxu0
  %166 = vmatprep.mubr.f32.mxu0 0.0
  %167 = vmatmul.mubr.f32.gmra.mrb[0].mxu0 %v61
  %v168 = vpop.f32.mrb[0].mxu0
  %v169 = vadd.f32 0.0, %v168
  %v170 = vpop.f32.mrb[0].mxu0
  %171 = vmatprep.mubr.f32.mxu0 0.0
  %172 = vmatmul.mubr.f32.gmra.mrb[0].mxu0 %v62
  %v173 = vpop.f32.mrb[0].mxu0
  %v174 = vadd.f32 0.0, %v173
  %v175 = vpop.f32.mrb[0].mxu0
  %176 = vmatprep.mubr.f32.mxu0 0.0
  %177 = vmatmul.mubr.f32.gmra.mrb[0].mxu0 %v63
  %v178 = vpop.f32.mrb[0].mxu0
  %v179 = vadd.f32 0.0, %v178
  %v180 = vpop.f32.mrb[0].mxu0
  %181 = vmatprep.mubr.f32.mxu0 0.0
  %182 = vmatmul.mubr.f32.gmra.mrb[0].mxu0 %v64
  %v183 = vpop.f32.mrb[0].mxu0
  %v184 = vadd.f32 0.0, %v183
  %v185 = vpop.f32.mrb[0].mxu0
  %186 = vmatprep.mubr.f32.mxu0 0.0
  %187 = vmatmul.mubr.f32.gmra.mrb[0].mxu0 %v65
  %v188 = vpop.f32.mrb[0].mxu0
  %v189 = vadd.f32 0.0, %v188
  %v190 = vpop.f32.mrb[0].mxu0
  %191 = vmatprep.mubr.f32.mxu0 0.0
  %192 = vmatmul.mubr.f32.gmra.mrb[0].mxu0 %v66
  %v193 = vpop.f32.mrb[0].mxu0
  %v194 = vadd.f32 0.0, %v193
  %v195 = vpop.f32.mrb[0].mxu0
  %196 = vmatprep.mubr.f32.mxu0 0.0
  %197 = vmatmul.mubr.f32.gmra.mrb[0].mxu0 %v67
  %v198 = vpop.f32.mrb[0].mxu0
  %v199 = vadd.f32 0.0, %v198
  %v200 = vpop.f32.mrb[0].mxu0
  %201 = vmatprep.mubr.f32.mxu0 0.0
  %202 = vmatmul.mubr.f32.gmra.mrb[0].mxu0 %v68
  %v203 = vpop.f32.mrb[0].mxu0
  %v204 = vadd.f32 0.0, %v203
  %v205 = vpop.f32.mrb[0].mxu0
  %206 = vmatprep.mubr.f32.mxu0 0.0
  %207 = vmatmul.mubr.f32.gmra.mrb[0].mxu0 %v69
  %v208 = vpop.f32.mrb[0].mxu0
  %v209 = vadd.f32 0.0, %v208
  %v210 = vpop.f32.mrb[0].mxu0
  %211 = vmatprep.mubr.f32.mxu0 0.0
  %212 = vmatmul.mubr.f32.gmra.mrb[0].mxu0 %v70
  %v213 = vpop.f32.mrb[0].mxu0
  %v214 = vadd.f32 0.0, %v213
  %v215 = vpop.f32.mrb[0].mxu0
  %216 = vmatprep.mubr.f32.mxu0 0.0
  %217 = vmatmul.mubr.f32.gmra.mrb[0].mxu0 %v71
  %v218 = vpop.f32.mrb[0].mxu0
  %v219 = vadd.f32 0.0, %v218
  %v220 = vpop.f32.mrb[0].mxu0
  %221 = vmatprep.mubr.f32.mxu0 0.0
  %222 = vmatmul.mubr.f32.gmra.mrb[0].mxu0 %v72
  %v223 = vpop.f32.mrb[0].mxu0
  %v224 = vadd.f32 0.0, %v223
  %v225 = vpop.f32.mrb[0].mxu0
  %226 = vmatprep.mubr.f32.mxu0 0.0
  %227 = vmatmul.mubr.f32.gmra.mrb[0].mxu0 %v73
  %v228 = vpop.f32.mrb[0].mxu0
  %v229 = vadd.f32 0.0, %v228
  %v230 = vpop.f32.mrb[0].mxu0
  %231 = vmatprep.mubr.f32.mxu0 0.0
  %232 = vmatmul.mubr.f32.gmra.mrb[0].mxu0 %v74
  %v233 = vpop.f32.mrb[0].mxu0
  %v234 = vadd.f32 0.0, %v233
  %v235 = vpop.f32.mrb[0].mxu0
  %236 = vmatprep.mubr.f32.mxu0 0.0
  %237 = vmatmul.mubr.f32.gmra.mrb[0].mxu0 %v75
  %v238 = vpop.f32.mrb[0].mxu0
  %v239 = vadd.f32 0.0, %v238
  %v240 = vpop.f32.mrb[0].mxu0
  %241 = vmatprep.mubr.f32.mxu0 0.0
  %242 = vmatmul.mubr.f32.gmra.mrb[0].mxu0 %v76
  %v243 = vpop.f32.mrb[0].mxu0
  %v244 = vadd.f32 0.0, %v243
  %v245 = vpop.f32.mrb[0].mxu0
  %246 = vmatprep.mubr.f32.mxu0 0.0
  %247 = vmatmul.mubr.f32.gmra.mrb[0].mxu0 %v77
  %v248 = vpop.f32.mrb[0].mxu0
  %v249 = vadd.f32 0.0, %v248
  %v250 = vpop.f32.mrb[0].mxu0
  %251 = vmatprep.mubr.f32.mxu0 0.0
  %252 = vmatmul.mubr.f32.gmra.mrb[0].mxu0 %v78
  %v253 = vpop.f32.mrb[0].mxu0
  %v254 = vadd.f32 0.0, %v253
  %v255 = vpop.f32.mrb[0].mxu0
  %256 = vmatprep.mubr.f32.mxu0 0.0
  %257 = vmatmul.mubr.f32.gmra.mrb[0].mxu0 %v79
  %v258 = vpop.f32.mrb[0].mxu0
  %v259 = vadd.f32 0.0, %v258
  %v260 = vpop.f32.mrb[0].mxu0
  %261 = vmatprep.mubr.f32.mxu0 0.0
  %262 = vmatmul.mubr.f32.gmra.mrb[0].mxu0 %v80
  %v263 = vpop.f32.mrb[0].mxu0
  %v264 = vadd.f32 0.0, %v263
  %v265 = vpop.f32.mrb[0].mxu0
  %266 = vdwg.mxu0
  %v267 = vadd.f32 %v39, %v164
  %v268 = vadd.f32 %v40, %v169
  %v269 = vadd.f32 %v41, %v174
  %v270 = vadd.f32 %v42, %v179
  %v271 = vadd.f32 %v43, %v184
  %v272 = vadd.f32 %v44, %v189
  %v273 = vadd.f32 %v45, %v194
  %v274 = vadd.f32 %v46, %v199
  %v275 = vadd.f32 %v47, %v204
  %v276 = vadd.f32 %v48, %v209
  %v277 = vadd.f32 %v49, %v214
  %v278 = vadd.f32 %v50, %v219
  %v279 = vadd.f32 %v51, %v224
  %v280 = vadd.f32 %v52, %v229
  %v281 = vadd.f32 %v53, %v234
  %v282 = vadd.f32 %v54, %v239
  %v283 = vadd.f32 %v55, %v244
  %v284 = vadd.f32 %v56, %v249
  %v285 = vadd.f32 %v57, %v254
  %v286 = vadd.f32 %v58, %v259
  %v287 = vadd.f32 %v59, %v264
  %288 = vst [vmem:[#allocation2] sm:$0xff] %v267
  %289 = vst [vmem:[#allocation2 + $0x8] sm:$0xff] %v268
  %290 = vst [vmem:[#allocation2 + $0x10] sm:$0xff] %v269
  %291 = vst [vmem:[#allocation2 + $0x18] sm:$0xff] %v270
  %292 = vst [vmem:[#allocation2 + $0x20] sm:$0xff] %v271
  %293 = vst [vmem:[#allocation2 + $0x28] sm:$0xff] %v272
  %294 = vst [vmem:[#allocation2 + $0x30] sm:$0xff] %v273
  %295 = vst [vmem:[#allocation2 + $0x38] sm:$0xff] %v274
  %296 = vst [vmem:[#allocation2 + $0x40] sm:$0xff] %v275
  %297 = vst [vmem:[#allocation2 + $0x48] sm:$0xff] %v276
  %298 = vst [vmem:[#allocation2 + $0x50] sm:$0xff] %v277
  %299 = vst [vmem:[#allocation2 + $0x58] sm:$0xff] %v278
  %300 = vst [vmem:[#allocation2 + $0x60] sm:$0xff] %v279
  %301 = vst [vmem:[#allocation2 + $0x68] sm:$0xff] %v280
  %302 = vst [vmem:[#allocation2 + $0x70] sm:$0xff] %v281
  %303 = vst [vmem:[#allocation2 + $0x78] sm:$0xff] %v282
  %304 = vst [vmem:[#allocation2 + $0x80] sm:$0xff] %v283
  %305 = vst [vmem:[#allocation2 + $0x88] sm:$0xff] %v284
  %306 = vst [vmem:[#allocation2 + $0x90] sm:$0xff] %v285
  %307 = vst [vmem:[#allocation2 + $0x98] sm:$0xff] %v286
  %308 = vst [vmem:[#allocation2 + $0xa0] sm:$0xff] %v287
  // Predicated region
  $region18: #{multiscale_discriminator_forward.23} parent=0 // pred_check
    %p309 = pneg %p14
  $region19: #{multiscale_discriminator_forward.23} parent=0 // pred_check_branch
    %311 = sbr.rel (%p309) target = $region21
  $region20: #{multiscale_discriminator_forward.23} parent=0 // pred_region
    %v312 = vld [vmem:[#allocation2] sm:$0xff]
    %v313 = vld [vmem:[#allocation2 + $0x8] sm:$0xff]
    %v314 = vld [vmem:[#allocation2 + $0x10] sm:$0xff]
    %v315 = vld [vmem:[#allocation2 + $0x18] sm:$0xff]
    %v316 = vld [vmem:[#allocation2 + $0x20] sm:$0xff]
    %v317 = vld [vmem:[#allocation2 + $0x28] sm:$0xff]
    %v318 = vld [vmem:[#allocation2 + $0x30] sm:$0xff]
    %v319 = vld [vmem:[#allocation2 + $0x38] sm:$0xff]
    %v320 = vld [vmem:[#allocation2 + $0x40] sm:$0xff]
    %v321 = vld [vmem:[#allocation2 + $0x48] sm:$0xff]
    %v322 = vld [vmem:[#allocation2 + $0x50] sm:$0xff]
    %v323 = vld [vmem:[#allocation2 + $0x58] sm:$0xff]
    %v324 = vld [vmem:[#allocation2 + $0x60] sm:$0xff]
    %v325 = vld [vmem:[#allocation2 + $0x68] sm:$0xff]
    %v326 = vld [vmem:[#allocation2 + $0x70] sm:$0xff]
    %v327 = vld [vmem:[#allocation2 + $0x78] sm:$0xff]
    %v328 = vld [vmem:[#allocation2 + $0x80] sm:$0xff]
    %v329 = vld [vmem:[#allocation2 + $0x88] sm:$0xff]
    %v330 = vld [vmem:[#allocation2 + $0x90] sm:$0xff]
    %v331 = vld [vmem:[#allocation2 + $0x98] sm:$0xff]
    %v332 = vld [vmem:[#allocation2 + $0xa0] sm:$0xff]
    %v333 = vld [vmem:[%s2] sm:$0x1]
    %v335 = vlaneseq
    %v336 = vshrl.u32 %v335, 7
    %v337 = vsub.s32 0, %v336
    %v338 = vrot.slane %v333, %v337
    %v340 = vadd.f32 %v312, %v338
    %v341 = vadd.f32 %v313, %v338
    %v342 = vadd.f32 %v314, %v338
    %v343 = vadd.f32 %v315, %v338
    %v344 = vadd.f32 %v316, %v338
    %v345 = vadd.f32 %v317, %v338
    %v346 = vadd.f32 %v318, %v338
    %v347 = vadd.f32 %v319, %v338
    %v348 = vadd.f32 %v320, %v338
    %v349 = vadd.f32 %v321, %v338
    %v350 = vadd.f32 %v322, %v338
    %v351 = vadd.f32 %v323, %v338
    %v352 = vadd.f32 %v324, %v338
    %v353 = vadd.f32 %v325, %v338
    %v354 = vadd.f32 %v326, %v338
    %v355 = vadd.f32 %v327, %v338
    %v356 = vadd.f32 %v328, %v338
    %v357 = vadd.f32 %v329, %v338
    %v358 = vadd.f32 %v330, %v338
    %v359 = vadd.f32 %v331, %v338
    %v360 = vadd.f32 %v332, %v338
    %vm361 = vcmp.gt.f32.partialorder %v340, 0.0
    %vm362 = vcmp.gt.f32.partialorder %v341, 0.0
    %vm363 = vcmp.gt.f32.partialorder %v342, 0.0
    %vm364 = vcmp.gt.f32.partialorder %v343, 0.0
    %vm365 = vcmp.gt.f32.partialorder %v344, 0.0
    %vm366 = vcmp.gt.f32.partialorder %v345, 0.0
    %vm367 = vcmp.gt.f32.partialorder %v346, 0.0
    %vm368 = vcmp.gt.f32.partialorder %v347, 0.0
    %vm369 = vcmp.gt.f32.partialorder %v348, 0.0
    %vm370 = vcmp.gt.f32.partialorder %v349, 0.0
    %vm371 = vcmp.gt.f32.partialorder %v350, 0.0
    %vm372 = vcmp.gt.f32.partialorder %v351, 0.0
    %vm373 = vcmp.gt.f32.partialorder %v352, 0.0
    %vm374 = vcmp.gt.f32.partialorder %v353, 0.0
    %vm375 = vcmp.gt.f32.partialorder %v354, 0.0
    %vm376 = vcmp.gt.f32.partialorder %v355, 0.0
    %vm377 = vcmp.gt.f32.partialorder %v356, 0.0
    %vm378 = vcmp.gt.f32.partialorder %v357, 0.0
    %vm379 = vcmp.gt.f32.partialorder %v358, 0.0
    %vm380 = vcmp.gt.f32.partialorder %v359, 0.0
    %vm381 = vcmp.gt.f32.partialorder %v360, 0.0
    %v382 = vmul.f32 %v340, 0.2
    %v383 = vmul.f32 %v341, 0.2
    %v384 = vmul.f32 %v342, 0.2
    %v385 = vmul.f32 %v343, 0.2
    %v386 = vmul.f32 %v344, 0.2
    %v387 = vmul.f32 %v345, 0.2
    %v388 = vmul.f32 %v346, 0.2
    %v389 = vmul.f32 %v347, 0.2
    %v390 = vmul.f32 %v348, 0.2
    %v391 = vmul.f32 %v349, 0.2
    %v392 = vmul.f32 %v350, 0.2
    %v393 = vmul.f32 %v351, 0.2
    %v394 = vmul.f32 %v352, 0.2
    %v395 = vmul.f32 %v353, 0.2
    %v396 = vmul.f32 %v354, 0.2
    %v397 = vmul.f32 %v355, 0.2
    %v398 = vmul.f32 %v356, 0.2
    %v399 = vmul.f32 %v357, 0.2
    %v400 = vmul.f32 %v358, 0.2
    %v401 = vmul.f32 %v359, 0.2
    %v402 = vmul.f32 %v360, 0.2
    %v403 = vsel %vm361, %v340, %v382
    %v404 = vsel %vm362, %v341, %v383
    %v405 = vsel %vm363, %v342, %v384
    %v406 = vsel %vm364, %v343, %v385
    %v407 = vsel %vm365, %v344, %v386
    %v408 = vsel %vm366, %v345, %v387
    %v409 = vsel %vm367, %v346, %v388
    %v410 = vsel %vm368, %v347, %v389
    %v411 = vsel %vm369, %v348, %v390
    %v412 = vsel %vm370, %v349, %v391
    %v413 = vsel %vm371, %v350, %v392
    %v414 = vsel %vm372, %v351, %v393
    %v415 = vsel %vm373, %v352, %v394
    %v416 = vsel %vm374, %v353, %v395
    %v417 = vsel %vm375, %v354, %v396
    %v418 = vsel %vm376, %v355, %v397
    %v419 = vsel %vm377, %v356, %v398
    %v420 = vsel %vm378, %v357, %v399
    %v421 = vsel %vm379, %v358, %v400
    %v422 = vsel %vm380, %v359, %v401
    %v423 = vsel %vm381, %v360, %v402
    %424 = vst [vmem:[%s3] sm:$0xff] %v403
    %425 = vst [vmem:[%s3 + $0x8] sm:$0xff] %v404
    %426 = vst [vmem:[%s3 + $0x10] sm:$0xff] %v405
    %427 = vst [vmem:[%s3 + $0x18] sm:$0xff] %v406
    %428 = vst [vmem:[%s3 + $0x20] sm:$0xff] %v407
    %429 = vst [vmem:[%s3 + $0x28] sm:$0xff] %v408
    %430 = vst [vmem:[%s3 + $0x30] sm:$0xff] %v409
    %431 = vst [vmem:[%s3 + $0x38] sm:$0xff] %v410
    %432 = vst [vmem:[%s3 + $0x40] sm:$0xff] %v411
    %433 = vst [vmem:[%s3 + $0x48] sm:$0xff] %v412
    %434 = vst [vmem:[%s3 + $0x50] sm:$0xff] %v413
    %435 = vst [vmem:[%s3 + $0x58] sm:$0xff] %v414
    %436 = vst [vmem:[%s3 + $0x60] sm:$0xff] %v415
    %437 = vst [vmem:[%s3 + $0x68] sm:$0xff] %v416
    %438 = vst [vmem:[%s3 + $0x70] sm:$0xff] %v417
    %439 = vst [vmem:[%s3 + $0x78] sm:$0xff] %v418
    %440 = vst [vmem:[%s3 + $0x80] sm:$0xff] %v419
    %441 = vst [vmem:[%s3 + $0x88] sm:$0xff] %v420
    %442 = vst [vmem:[%s3 + $0x90] sm:$0xff] %v421
    %443 = vst [vmem:[%s3 + $0x98] sm:$0xff] %v422
    %444 = vst [vmem:[%s3 + $0xa0] sm:$0xff] %v423
  $region21: #{multiscale_discriminator_forward.23} parent=0 // pred_fallthru
    _
  // Predicated region
  $region22: #{multiscale_discriminator_forward.23} parent=0 // pred_check
    _
  $region23: #{multiscale_discriminator_forward.23} parent=0 // pred_check_branch
    %446 = sbr.rel (0) target = $region25
  $region24: #{multiscale_discriminator_forward.23} parent=0 // pred_region
    _
  $region25: #{multiscale_discriminator_forward.23} parent=0 // pred_fallthru
    _
  // Predicated region
  $region26: #{multiscale_discriminator_forward.23} parent=0 // pred_check
    _
  $region27: #{multiscale_discriminator_forward.23} parent=0 // pred_check_branch
    %448 = sbr.rel (0) target = $region29
  $region28: #{multiscale_discriminator_forward.23} parent=0 // pred_region
    _
  $region29: #{multiscale_discriminator_forward.23} parent=0 // pred_fallthru
    _

// kernel: multiscale_discriminator_forward.25
$region0: #{multiscale_discriminator_forward.25}
  #allocation0 [shape = 'u32[]', space=smem, size = 0x4, offset = 0x4, fixed_abs, tag = 'smem constant byte address 0x4 - core index']
  #allocation1 [shape = 'u32[144,128]{1,0:T(1,128)}', space=vmem, size = 0x12000, scoped, tag = 'internal scratch']
  %s0 = inlined_call_operand.vmem [shape: f32[56,128], index: 0, kind: input, shape index: {}]
  %s1 = inlined_call_operand.vmem [shape: f32[1,128], index: 1, kind: output, shape index: {0}]
  %s2 = inlined_call_operand.vmem [shape: f32[1,128], index: 2, kind: output, shape index: {1}]
  %3 = xla_tuple %s1, %s2
  %s4 = sld [smem:[#allocation0]]
  $region26: #{multiscale_discriminator_forward.25} parent=0
    _
  %s6 = ssub.s32 1, %s4
  %s7 = scalar_select 0, %s6, %s4
  // Predicated region
  $region2: #{multiscale_discriminator_forward.25} parent=0 // pred_check
    _
  $region3: #{multiscale_discriminator_forward.25} parent=0 // pred_check_branch
    %9 = sbr.rel (0) target = $region5
  $region4: #{multiscale_discriminator_forward.25} parent=0 // pred_region
    _
  $region5: #{multiscale_discriminator_forward.25} parent=0 // pred_fallthru
    _
  %p10 = scmp.eq.s32.totalorder 0, 0
  // Predicated region
  $region6: #{multiscale_discriminator_forward.25} parent=0 // pred_check
    %p11 = pneg %p10
  $region7: #{multiscale_discriminator_forward.25} parent=0 // pred_check_branch
    %13 = sbr.rel (%p11) target = $region9
  $region8: #{multiscale_discriminator_forward.25} parent=0 // pred_region
    %14 = vst [vmem:[%s1] sm:$0x1] 0.0
    %15 = vst [vmem:[%s2] sm:$0x1] 0.0
  $region9: #{multiscale_discriminator_forward.25} parent=0 // pred_fallthru
    _
  %v16 = vld [vmem:[%s0] sm:$0xff]
  %v17 = vld [vmem:[%s0 + $0x8] sm:$0xff]
  %v18 = vld [vmem:[%s0 + $0x10] sm:$0xff]
  %v19 = vld [vmem:[%s0 + $0x18] sm:$0xff]
  %v20 = vld [vmem:[%s0 + $0x20] sm:$0xff]
  %v21 = vld [vmem:[%s0 + $0x28] sm:$0xff]
  %v22 = vld [vmem:[%s0 + $0x30] sm:$0xff]
  %v23 = vld [vmem:[%s1] sm:$0x1]
  %v24 = vadd.f32 %v16, %v17
  %v25 = vadd.f32 %v24, %v18
  %v26 = vadd.f32 %v25, %v19
  %v27 = vadd.f32 %v26, %v20
  %v28 = vadd.f32 %v27, %v21
  %v29 = vadd.f32 %v28, %v22
  %v30 = vrot.slane %v29, 4
  %v31 = vadd.f32 %v29, %v30
  %v32 = vrot.slane %v31, 2
  %v33 = vadd.f32 %v31, %v32
  %v34 = vrot.slane %v33, 1
  %v35 = vadd.f32 %v33, %v34
  %v36 = vadd.f32 %v23, %v35
  %37 = vst [vmem:[%s1] sm:$0x1] %v36
  %v38 = vld [vmem:[%s2] sm:$0x1]
  %v39 = vmul.f32 %v16, %v16
  %v40 = vmul.f32 %v17, %v17
  %v41 = vmul.f32 %v18, %v18
  %v42 = vmul.f32 %v19, %v19
  %v43 = vmul.f32 %v20, %v20
  %v44 = vmul.f32 %v21, %v21
  %v45 = vmul.f32 %v22, %v22
  %v46 = vadd.f32 %v39, %v40
  %v47 = vadd.f32 %v46, %v41
  %v48 = vadd.f32 %v47, %v42
  %v49 = vadd.f32 %v48, %v43
  %v50 = vadd.f32 %v49, %v44
  %v51 = vadd.f32 %v50, %v45
  %v52 = vrot.slane %v51, 4
  %v53 = vadd.f32 %v51, %v52
  %v54 = vrot.slane %v53, 2
  %v55 = vadd.f32 %v53, %v54
  %v56 = vrot.slane %v55, 1
  %v57 = vadd.f32 %v55, %v56
  %v58 = vadd.f32 %v38, %v57
  %59 = vst [vmem:[%s2] sm:$0x1] %v58
  // Predicated region
  $region10: #{multiscale_discriminator_forward.25} parent=0 // pred_check
    _
  $region11: #{multiscale_discriminator_forward.25} parent=0 // pred_check_branch
    %61 = sbr.rel (0) target = $region13
  $region12: #{multiscale_discriminator_forward.25} parent=0 // pred_region
    _
  $region13: #{multiscale_discriminator_forward.25} parent=0 // pred_fallthru
    _
  // Predicated region
  $region14: #{multiscale_discriminator_forward.25} parent=0 // pred_check
    _
  $region15: #{multiscale_discriminator_forward.25} parent=0 // pred_check_branch
    %63 = sbr.rel (0) target = $region17
  $region16: #{multiscale_discriminator_forward.25} parent=0 // pred_region
    _
  $region17: #{multiscale_discriminator_forward.25} parent=0 // pred_fallthru
    _
  // Predicated region
  $region18: #{multiscale_discriminator_forward.25} parent=0 // pred_check
    _
  $region19: #{multiscale_discriminator_forward.25} parent=0 // pred_check_branch
    %65 = sbr.rel (0) target = $region21
  $region20: #{multiscale_discriminator_forward.25} parent=0 // pred_region
    _
  $region21: #{multiscale_discriminator_forward.25} parent=0 // pred_fallthru
    _
  // Predicated region
  $region22: #{multiscale_discriminator_forward.25} parent=0 // pred_check
    _
  $region23: #{multiscale_discriminator_forward.25} parent=0 // pred_check_branch
    %67 = sbr.rel (0) target = $region25
  $region24: #{multiscale_discriminator_forward.25} parent=0 // pred_region
    _
  $region25: #{multiscale_discriminator_forward.25} parent=0 // pred_fallthru
    _

// kernel: multiscale_discriminator_forward.24
$region0: #{multiscale_discriminator_forward.24}
  #allocation0 [shape = 'u32[]', space=smem, size = 0x4, offset = 0x4, fixed_abs, tag = 'smem constant byte address 0x4 - core index']
  #allocation1 [shape = 'u32[144,128]{1,0:T(1,128)}', space=vmem, size = 0x12000, scoped, tag = 'internal scratch']
  #allocation2 [shape = 'f32[56,128]{1,0:T(8,128)}', space=vmem, size = 0x7000, scoped, tag = 'scratch operand']
  %s0 = inlined_call_operand.vmem [shape: f32[56,128], index: 0, kind: input, shape index: {}]
  %s1 = inlined_call_operand.vmem [shape: f32[128,128], index: 1, kind: input, shape index: {}]
  %s2 = inlined_call_operand.vmem [shape: f32[1,128], index: 2, kind: input, shape index: {}]
  %s3 = inlined_call_operand.vmem [shape: f32[56,128], index: 3, kind: output, shape index: {}]
  %s4 = sld [smem:[#allocation0]]
  $region30: #{multiscale_discriminator_forward.24} parent=0
    _
  %s6 = ssub.s32 1, %s4
  %s7 = scalar_select 0, %s6, %s4
  // Predicated region
  $region2: #{multiscale_discriminator_forward.24} parent=0 // pred_check
    _
  $region3: #{multiscale_discriminator_forward.24} parent=0 // pred_check_branch
    %9 = sbr.rel (0) target = $region5
  $region4: #{multiscale_discriminator_forward.24} parent=0 // pred_region
    _
  $region5: #{multiscale_discriminator_forward.24} parent=0 // pred_fallthru
    _
  // Predicated region
  $region6: #{multiscale_discriminator_forward.24} parent=0 // pred_check
    _
  $region7: #{multiscale_discriminator_forward.24} parent=0 // pred_check_branch
    %11 = sbr.rel (0) target = $region9
  $region8: #{multiscale_discriminator_forward.24} parent=0 // pred_region
    _
  $region9: #{multiscale_discriminator_forward.24} parent=0 // pred_fallthru
    _
  // Predicated region
  $region10: #{multiscale_discriminator_forward.24} parent=0 // pred_check
    _
  $region11: #{multiscale_discriminator_forward.24} parent=0 // pred_check_branch
    %13 = sbr.rel (0) target = $region13
  $region12: #{multiscale_discriminator_forward.24} parent=0 // pred_region
    _
  $region13: #{multiscale_discriminator_forward.24} parent=0 // pred_fallthru
    _
  %p14 = scmp.eq.s32.totalorder 0, 0
  // Predicated region
  $region14: #{multiscale_discriminator_forward.24} parent=0 // pred_check
    %p15 = pneg %p14
  $region15: #{multiscale_discriminator_forward.24} parent=0 // pred_check_branch
    %17 = sbr.rel (%p15) target = $region17
  $region16: #{multiscale_discriminator_forward.24} parent=0 // pred_region
    %18 = vst [vmem:[#allocation2] sm:$0xff] 0.0
    %19 = vst [vmem:[#allocation2 + $0x8] sm:$0xff] 0.0
    %20 = vst [vmem:[#allocation2 + $0x10] sm:$0xff] 0.0
    %21 = vst [vmem:[#allocation2 + $0x18] sm:$0xff] 0.0
    %22 = vst [vmem:[#allocation2 + $0x20] sm:$0xff] 0.0
    %23 = vst [vmem:[#allocation2 + $0x28] sm:$0xff] 0.0
    %24 = vst [vmem:[#allocation2 + $0x30] sm:$0xff] 0.0
  $region17: #{multiscale_discriminator_forward.24} parent=0 // pred_fallthru
    _
  %v25 = vld [vmem:[#allocation2] sm:$0xff]
  %v26 = vld [vmem:[#allocation2 + $0x8] sm:$0xff]
  %v27 = vld [vmem:[#allocation2 + $0x10] sm:$0xff]
  %v28 = vld [vmem:[#allocation2 + $0x18] sm:$0xff]
  %v29 = vld [vmem:[#allocation2 + $0x20] sm:$0xff]
  %v30 = vld [vmem:[#allocation2 + $0x28] sm:$0xff]
  %v31 = vld [vmem:[#allocation2 + $0x30] sm:$0xff]
  %v32 = vld [vmem:[%s0] sm:$0xff]
  %v33 = vld [vmem:[%s0 + $0x8] sm:$0xff]
  %v34 = vld [vmem:[%s0 + $0x10] sm:$0xff]
  %v35 = vld [vmem:[%s0 + $0x18] sm:$0xff]
  %v36 = vld [vmem:[%s0 + $0x20] sm:$0xff]
  %v37 = vld [vmem:[%s0 + $0x28] sm:$0xff]
  %v38 = vld [vmem:[%s0 + $0x30] sm:$0xff]
  %v39 = vld [vmem:[%s1] sm:$0xff]
  %v40 = vld [vmem:[%s1 + $0x8] sm:$0xff]
  %v41 = vld [vmem:[%s1 + $0x10] sm:$0xff]
  %v42 = vld [vmem:[%s1 + $0x18] sm:$0xff]
  %v43 = vld [vmem:[%s1 + $0x20] sm:$0xff]
  %v44 = vld [vmem:[%s1 + $0x28] sm:$0xff]
  %v45 = vld [vmem:[%s1 + $0x30] sm:$0xff]
  %v46 = vld [vmem:[%s1 + $0x38] sm:$0xff]
  %v47 = vld [vmem:[%s1 + $0x40] sm:$0xff]
  %v48 = vld [vmem:[%s1 + $0x48] sm:$0xff]
  %v49 = vld [vmem:[%s1 + $0x50] sm:$0xff]
  %v50 = vld [vmem:[%s1 + $0x58] sm:$0xff]
  %v51 = vld [vmem:[%s1 + $0x60] sm:$0xff]
  %v52 = vld [vmem:[%s1 + $0x68] sm:$0xff]
  %v53 = vld [vmem:[%s1 + $0x70] sm:$0xff]
  %v54 = vld [vmem:[%s1 + $0x78] sm:$0xff]
  %55 = vmatprep.subr.mxu0 0.0
  %56 = vmatpush1.msra.mxu0 %v39
  %57 = vmatprep.subr.mxu0 0.0
  %58 = vmatpush1.msra.mxu0 %v40
  %59 = vmatprep.subr.mxu0 0.0
  %60 = vmatpush1.msra.mxu0 %v41
  %61 = vmatprep.subr.mxu0 0.0
  %62 = vmatpush1.msra.mxu0 %v42
  %63 = vmatprep.subr.mxu0 0.0
  %64 = vmatpush1.msra.mxu0 %v43
  %65 = vmatprep.subr.mxu0 0.0
  %66 = vmatpush1.msra.mxu0 %v44
  %67 = vmatprep.subr.mxu0 0.0
  %68 = vmatpush1.msra.mxu0 %v45
  %69 = vmatprep.subr.mxu0 0.0
  %70 = vmatpush1.msra.mxu0 %v46
  %71 = vmatprep.subr.mxu0 0.0
  %72 = vmatpush1.msra.mxu0 %v47
  %73 = vmatprep.subr.mxu0 0.0
  %74 = vmatpush1.msra.mxu0 %v48
  %75 = vmatprep.subr.mxu0 0.0
  %76 = vmatpush1.msra.mxu0 %v49
  %77 = vmatprep.subr.mxu0 0.0
  %78 = vmatpush1.msra.mxu0 %v50
  %79 = vmatprep.subr.mxu0 0.0
  %80 = vmatpush1.msra.mxu0 %v51
  %81 = vmatprep.subr.mxu0 0.0
  %82 = vmatpush1.msra.mxu0 %v52
  %83 = vmatprep.subr.mxu0 0.0
  %84 = vmatpush1.msra.mxu0 %v53
  %85 = vmatprep.subr.mxu0 0.0
  %86 = vmatpush1.msra.mxu0 %v54
  %87 = vmatprep.subr.mxu0 0.0
  %88 = vmatpush1.msra.mxu0 0.0
  %89 = vmatprep.subr.mxu0 0.0
  %90 = vmatpush1.msra.mxu0 0.0
  %91 = vmatprep.subr.mxu0 0.0
  %92 = vmatpush1.msra.mxu0 0.0
  %93 = vmatprep.subr.mxu0 0.0
  %94 = vmatpush1.msra.mxu0 0.0
  %95 = vmatprep.subr.mxu0 0.0
  %96 = vmatpush1.msra.mxu0 0.0
  %97 = vmatprep.subr.mxu0 0.0
  %98 = vmatpush1.msra.mxu0 0.0
  %99 = vmatprep.subr.mxu0 0.0
  %100 = vmatpush1.msra.mxu0 0.0
  %101 = vmatprep.subr.mxu0 0.0
  %102 = vmatpush1.msra.mxu0 0.0
  %103 = vmatprep.subr.mxu0 0.0
  %104 = vmatpush1.msra.mxu0 0.0
  %105 = vmatprep.subr.mxu0 0.0
  %106 = vmatpush1.msra.mxu0 0.0
  %107 = vmatprep.subr.mxu0 0.0
  %108 = vmatpush1.msra.mxu0 0.0
  %109 = vmatprep.subr.mxu0 0.0
  %110 = vmatpush1.msra.mxu0 0.0
  %111 = vmatprep.subr.mxu0 0.0
  %112 = vmatpush1.msra.mxu0 0.0
  %113 = vmatprep.subr.mxu0 0.0
  %114 = vmatpush1.msra.mxu0 0.0
  %115 = vmatprep.subr.mxu0 0.0
  %116 = vmatpush1.msra.mxu0 0.0
  %117 = vmatprep.subr.mxu0 0.0
  %118 = vmatpush1.msra.mxu0 0.0
  %119 = vmatprep.mubr.f32.mxu0 0.0
  %120 = vmatmul.mubr.f32.gmra.mrb[0].mxu0 %v32
  %v121 = vpop.f32.mrb[0].mxu0
  %v122 = vadd.f32 0.0, %v121
  %v123 = vpop.f32.mrb[0].mxu0
  %124 = vmatprep.mubr.f32.mxu0 0.0
  %125 = vmatmul.mubr.f32.gmra.mrb[0].mxu0 %v33
  %v126 = vpop.f32.mrb[0].mxu0
  %v127 = vadd.f32 0.0, %v126
  %v128 = vpop.f32.mrb[0].mxu0
  %129 = vmatprep.mubr.f32.mxu0 0.0
  %130 = vmatmul.mubr.f32.gmra.mrb[0].mxu0 %v34
  %v131 = vpop.f32.mrb[0].mxu0
  %v132 = vadd.f32 0.0, %v131
  %v133 = vpop.f32.mrb[0].mxu0
  %134 = vmatprep.mubr.f32.mxu0 0.0
  %135 = vmatmul.mubr.f32.gmra.mrb[0].mxu0 %v35
  %v136 = vpop.f32.mrb[0].mxu0
  %v137 = vadd.f32 0.0, %v136
  %v138 = vpop.f32.mrb[0].mxu0
  %139 = vmatprep.mubr.f32.mxu0 0.0
  %140 = vmatmul.mubr.f32.gmra.mrb[0].mxu0 %v36
  %v141 = vpop.f32.mrb[0].mxu0
  %v142 = vadd.f32 0.0, %v141
  %v143 = vpop.f32.mrb[0].mxu0
  %144 = vmatprep.mubr.f32.mxu0 0.0
  %145 = vmatmul.mubr.f32.gmra.mrb[0].mxu0 %v37
  %v146 = vpop.f32.mrb[0].mxu0
  %v147 = vadd.f32 0.0, %v146
  %v148 = vpop.f32.mrb[0].mxu0
  %149 = vmatprep.mubr.f32.mxu0 0.0
  %150 = vmatmul.mubr.f32.gmra.mrb[0].mxu0 %v38
  %v151 = vpop.f32.mrb[0].mxu0
  %v152 = vadd.f32 0.0, %v151
  %v153 = vpop.f32.mrb[0].mxu0
  %154 = vdwg.mxu0
  %v155 = vadd.f32 %v25, %v122
  %v156 = vadd.f32 %v26, %v127
  %v157 = vadd.f32 %v27, %v132
  %v158 = vadd.f32 %v28, %v137
  %v159 = vadd.f32 %v29, %v142
  %v160 = vadd.f32 %v30, %v147
  %v161 = vadd.f32 %v31, %v152
  %162 = vst [vmem:[#allocation2] sm:$0xff] %v155
  %163 = vst [vmem:[#allocation2 + $0x8] sm:$0xff] %v156
  %164 = vst [vmem:[#allocation2 + $0x10] sm:$0xff] %v157
  %165 = vst [vmem:[#allocation2 + $0x18] sm:$0xff] %v158
  %166 = vst [vmem:[#allocation2 + $0x20] sm:$0xff] %v159
  %167 = vst [vmem:[#allocation2 + $0x28] sm:$0xff] %v160
  %168 = vst [vmem:[#allocation2 + $0x30] sm:$0xff] %v161
  // Predicated region
  $region18: #{multiscale_discriminator_forward.24} parent=0 // pred_check
    %p169 = pneg %p14
  $region19: #{multiscale_discriminator_forward.24} parent=0 // pred_check_branch
    %171 = sbr.rel (%p169) target = $region21
  $region20: #{multiscale_discriminator_forward.24} parent=0 // pred_region
    %v172 = vld [vmem:[#allocation2] sm:$0xff]
    %v173 = vld [vmem:[#allocation2 + $0x8] sm:$0xff]
    %v174 = vld [vmem:[#allocation2 + $0x10] sm:$0xff]
    %v175 = vld [vmem:[#allocation2 + $0x18] sm:$0xff]
    %v176 = vld [vmem:[#allocation2 + $0x20] sm:$0xff]
    %v177 = vld [vmem:[#allocation2 + $0x28] sm:$0xff]
    %v178 = vld [vmem:[#allocation2 + $0x30] sm:$0xff]
    %v179 = vld [vmem:[%s2] sm:$0x1]
    %v181 = vlaneseq
    %v182 = vshrl.u32 %v181, 7
    %v183 = vsub.s32 0, %v182
    %v184 = vrot.slane %v179, %v183
    %v186 = vadd.f32 %v172, %v184
    %v187 = vadd.f32 %v173, %v184
    %v188 = vadd.f32 %v174, %v184
    %v189 = vadd.f32 %v175, %v184
    %v190 = vadd.f32 %v176, %v184
    %v191 = vadd.f32 %v177, %v184
    %v192 = vadd.f32 %v178, %v184
    %193 = vst [vmem:[%s3] sm:$0xff] %v186
    %194 = vst [vmem:[%s3 + $0x8] sm:$0xff] %v187
    %195 = vst [vmem:[%s3 + $0x10] sm:$0xff] %v188
    %196 = vst [vmem:[%s3 + $0x18] sm:$0xff] %v189
    %197 = vst [vmem:[%s3 + $0x20] sm:$0xff] %v190
    %198 = vst [vmem:[%s3 + $0x28] sm:$0xff] %v191
    %199 = vst [vmem:[%s3 + $0x30] sm:$0xff] %v192
  $region21: #{multiscale_discriminator_forward.24} parent=0 // pred_fallthru
    _
  // Predicated region
  $region22: #{multiscale_discriminator_forward.24} parent=0 // pred_check
    _
  $region23: #{multiscale_discriminator_forward.24} parent=0 // pred_check_branch
    %201 = sbr.rel (0) target = $region25
  $region24: #{multiscale_discriminator_forward.24} parent=0 // pred_region
    _
  $region25: #{multiscale_discriminator_forward.24} parent=0 // pred_fallthru
    _
  // Predicated region
  $region26: #{multiscale_discriminator_forward.24} parent=0 // pred_check
    _
  $region27: #{multiscale_discriminator_forward.24} parent=0 // pred_check_branch
    %203 = sbr.rel (0) target = $region29
  $region28: #{multiscale_discriminator_forward.24} parent=0 // pred_region
    _
  $region29: #{multiscale_discriminator_forward.24} parent=0 // pred_fallthru
    _

// kernel: multiscale_discriminator_forward.26
$region0: #{multiscale_discriminator_forward.26}
  #allocation0 [shape = 'u32[]', space=smem, size = 0x4, offset = 0x4, fixed_abs, tag = 'smem constant byte address 0x4 - core index']
  #allocation1 [shape = 'u32[144,128]{1,0:T(1,128)}', space=vmem, size = 0x12000, scoped, tag = 'internal scratch']
  %s0 = inlined_call_operand.vmem [shape: f32[56,128], index: 0, kind: input, shape index: {}]
  %s1 = inlined_call_operand.vmem [shape: f32[1,128], index: 1, kind: input, shape index: {}]
  %s2 = inlined_call_operand.vmem [shape: f32[1,128], index: 2, kind: input, shape index: {}]
  %s3 = inlined_call_operand.vmem [shape: f32[1,128], index: 3, kind: input, shape index: {}]
  %s4 = inlined_call_operand.vmem [shape: f32[1,128], index: 4, kind: input, shape index: {}]
  %s5 = inlined_call_operand.vmem [shape: f32[56,128], index: 5, kind: output, shape index: {}]
  %s6 = sld [smem:[#allocation0]]
  $region30: #{multiscale_discriminator_forward.26} parent=0
    _
  %s8 = ssub.s32 1, %s6
  %s9 = scalar_select 0, %s8, %s6
  // Predicated region
  $region2: #{multiscale_discriminator_forward.26} parent=0 // pred_check
    _
  $region3: #{multiscale_discriminator_forward.26} parent=0 // pred_check_branch
    %11 = sbr.rel (0) target = $region5
  $region4: #{multiscale_discriminator_forward.26} parent=0 // pred_region
    _
  $region5: #{multiscale_discriminator_forward.26} parent=0 // pred_fallthru
    _
  // Predicated region
  $region6: #{multiscale_discriminator_forward.26} parent=0 // pred_check
    _
  $region7: #{multiscale_discriminator_forward.26} parent=0 // pred_check_branch
    %13 = sbr.rel (0) target = $region9
  $region8: #{multiscale_discriminator_forward.26} parent=0 // pred_region
    _
  $region9: #{multiscale_discriminator_forward.26} parent=0 // pred_fallthru
    _
  // Predicated region
  $region10: #{multiscale_discriminator_forward.26} parent=0 // pred_check
    _
  $region11: #{multiscale_discriminator_forward.26} parent=0 // pred_check_branch
    %15 = sbr.rel (0) target = $region13
  $region12: #{multiscale_discriminator_forward.26} parent=0 // pred_region
    _
  $region13: #{multiscale_discriminator_forward.26} parent=0 // pred_fallthru
    _
  // Predicated region
  $region14: #{multiscale_discriminator_forward.26} parent=0 // pred_check
    _
  $region15: #{multiscale_discriminator_forward.26} parent=0 // pred_check_branch
    %17 = sbr.rel (0) target = $region17
  $region16: #{multiscale_discriminator_forward.26} parent=0 // pred_region
    _
  $region17: #{multiscale_discriminator_forward.26} parent=0 // pred_fallthru
    _
  // Predicated region
  $region18: #{multiscale_discriminator_forward.26} parent=0 // pred_check
    _
  $region19: #{multiscale_discriminator_forward.26} parent=0 // pred_check_branch
    %19 = sbr.rel (0) target = $region21
  $region20: #{multiscale_discriminator_forward.26} parent=0 // pred_region
    _
  $region21: #{multiscale_discriminator_forward.26} parent=0 // pred_fallthru
    _
  %v20 = vld [vmem:[%s1] sm:$0x1]
  %v21 = vmul.f32 %v20, 0.02
  %v22 = vld [vmem:[%s2] sm:$0x1]
  %v23 = vmul.f32 %v22, 0.02
  %v24 = vmul.f32 %v21, %v21
  %v25 = vsub.f32 %v23, %v24
  %v26 = vmax.f32 %v25, 0.0
  %v27 = vadd.f32 %v26, 1e-05
  %v28 = vrsqrt.pop %v27
  %v29 = vld [vmem:[%s3] sm:$0x1]
  %v30 = vmul.f32 %v28, %v29
  %v31 = vld [vmem:[%s4] sm:$0x1]
  %v32 = vmul.f32 %v21, %v30
  %v33 = vsub.f32 %v31, %v32
  %v34 = vld [vmem:[%s0] sm:$0xff]
  %v35 = vld [vmem:[%s0 + $0x8] sm:$0xff]
  %v36 = vld [vmem:[%s0 + $0x10] sm:$0xff]
  %v37 = vld [vmem:[%s0 + $0x18] sm:$0xff]
  %v38 = vld [vmem:[%s0 + $0x20] sm:$0xff]
  %v39 = vld [vmem:[%s0 + $0x28] sm:$0xff]
  %v40 = vld [vmem:[%s0 + $0x30] sm:$0xff]
  %v42 = vlaneseq
  %v43 = vshrl.u32 %v42, 7
  %v44 = vsub.s32 0, %v43
  %v45 = vrot.slane %v30, %v44
  %v47 = vmul.f32 %v34, %v45
  %v48 = vmul.f32 %v35, %v45
  %v49 = vmul.f32 %v36, %v45
  %v50 = vmul.f32 %v37, %v45
  %v51 = vmul.f32 %v38, %v45
  %v52 = vmul.f32 %v39, %v45
  %v53 = vmul.f32 %v40, %v45
  %v55 = vlaneseq
  %v56 = vshrl.u32 %v55, 7
  %v57 = vsub.s32 0, %v56
  %v58 = vrot.slane %v33, %v57
  %v60 = vadd.f32 %v47, %v58
  %v61 = vadd.f32 %v48, %v58
  %v62 = vadd.f32 %v49, %v58
  %v63 = vadd.f32 %v50, %v58
  %v64 = vadd.f32 %v51, %v58
  %v65 = vadd.f32 %v52, %v58
  %v66 = vadd.f32 %v53, %v58
  %vm67 = vcmp.gt.f32.partialorder %v60, 0.0
  %vm68 = vcmp.gt.f32.partialorder %v61, 0.0
  %vm69 = vcmp.gt.f32.partialorder %v62, 0.0
  %vm70 = vcmp.gt.f32.partialorder %v63, 0.0
  %vm71 = vcmp.gt.f32.partialorder %v64, 0.0
  %vm72 = vcmp.gt.f32.partialorder %v65, 0.0
  %vm73 = vcmp.gt.f32.partialorder %v66, 0.0
  %v74 = vmul.f32 %v60, 0.2
  %v75 = vmul.f32 %v61, 0.2
  %v76 = vmul.f32 %v62, 0.2
  %v77 = vmul.f32 %v63, 0.2
  %v78 = vmul.f32 %v64, 0.2
  %v79 = vmul.f32 %v65, 0.2
  %v80 = vmul.f32 %v66, 0.2
  %v81 = vsel %vm67, %v60, %v74
  %v82 = vsel %vm68, %v61, %v75
  %v83 = vsel %vm69, %v62, %v76
  %v84 = vsel %vm70, %v63, %v77
  %v85 = vsel %vm71, %v64, %v78
  %v86 = vsel %vm72, %v65, %v79
  %v87 = vsel %vm73, %v66, %v80
  %88 = vst [vmem:[%s5] sm:$0xff] %v81
  %89 = vst [vmem:[%s5 + $0x8] sm:$0xff] %v82
  %90 = vst [vmem:[%s5 + $0x10] sm:$0xff] %v83
  %91 = vst [vmem:[%s5 + $0x18] sm:$0xff] %v84
  %92 = vst [vmem:[%s5 + $0x20] sm:$0xff] %v85
  %93 = vst [vmem:[%s5 + $0x28] sm:$0xff] %v86
  %94 = vst [vmem:[%s5 + $0x30] sm:$0xff] %v87
  // Predicated region
  $region22: #{multiscale_discriminator_forward.26} parent=0 // pred_check
    _
  $region23: #{multiscale_discriminator_forward.26} parent=0 // pred_check_branch
    %96 = sbr.rel (0) target = $region25
  $region24: #{multiscale_discriminator_forward.26} parent=0 // pred_region
    _
  $region25: #{multiscale_discriminator_forward.26} parent=0 // pred_fallthru
    _
  // Predicated region
  $region26: #{multiscale_discriminator_forward.26} parent=0 // pred_check
    _
  $region27: #{multiscale_discriminator_forward.26} parent=0 // pred_check_branch
    %98 = sbr.rel (0) target = $region29
  $region28: #{multiscale_discriminator_forward.26} parent=0 // pred_region
    _
  $region29: #{multiscale_discriminator_forward.26} parent=0 // pred_fallthru
    _

// kernel: multiscale_discriminator_forward.27
$region0: #{multiscale_discriminator_forward.27}
  #allocation0 [shape = 'u32[]', space=smem, size = 0x4, offset = 0x4, fixed_abs, tag = 'smem constant byte address 0x4 - core index']
  #allocation1 [shape = 'u32[144,128]{1,0:T(1,128)}', space=vmem, size = 0x12000, scoped, tag = 'internal scratch']
  #allocation2 [shape = 'f32[24,128]{1,0:T(8,128)}', space=vmem, size = 0x3000, scoped, tag = 'scratch operand']
  %s0 = inlined_call_operand.vmem [shape: f32[24,256], index: 0, kind: input, shape index: {}]
  %s1 = inlined_call_operand.vmem [shape: f32[256,128], index: 1, kind: input, shape index: {}]
  %s2 = inlined_call_operand.vmem [shape: f32[1,128], index: 2, kind: input, shape index: {}]
  %s3 = inlined_call_operand.vmem [shape: f32[24,128], index: 3, kind: output, shape index: {}]
  %s4 = sld [smem:[#allocation0]]
  $region30: #{multiscale_discriminator_forward.27} parent=0
    _
  %s6 = ssub.s32 1, %s4
  %s7 = scalar_select 0, %s6, %s4
  // Predicated region
  $region2: #{multiscale_discriminator_forward.27} parent=0 // pred_check
    _
  $region3: #{multiscale_discriminator_forward.27} parent=0 // pred_check_branch
    %9 = sbr.rel (0) target = $region5
  $region4: #{multiscale_discriminator_forward.27} parent=0 // pred_region
    _
  $region5: #{multiscale_discriminator_forward.27} parent=0 // pred_fallthru
    _
  // Predicated region
  $region6: #{multiscale_discriminator_forward.27} parent=0 // pred_check
    _
  $region7: #{multiscale_discriminator_forward.27} parent=0 // pred_check_branch
    %11 = sbr.rel (0) target = $region9
  $region8: #{multiscale_discriminator_forward.27} parent=0 // pred_region
    _
  $region9: #{multiscale_discriminator_forward.27} parent=0 // pred_fallthru
    _
  // Predicated region
  $region10: #{multiscale_discriminator_forward.27} parent=0 // pred_check
    _
  $region11: #{multiscale_discriminator_forward.27} parent=0 // pred_check_branch
    %13 = sbr.rel (0) target = $region13
  $region12: #{multiscale_discriminator_forward.27} parent=0 // pred_region
    _
  $region13: #{multiscale_discriminator_forward.27} parent=0 // pred_fallthru
    _
  %p14 = scmp.eq.s32.totalorder 0, 0
  // Predicated region
  $region14: #{multiscale_discriminator_forward.27} parent=0 // pred_check
    %p15 = pneg %p14
  $region15: #{multiscale_discriminator_forward.27} parent=0 // pred_check_branch
    %17 = sbr.rel (%p15) target = $region17
  $region16: #{multiscale_discriminator_forward.27} parent=0 // pred_region
    %18 = vst [vmem:[#allocation2] sm:$0xff] 0.0
    %19 = vst [vmem:[#allocation2 + $0x8] sm:$0xff] 0.0
    %20 = vst [vmem:[#allocation2 + $0x10] sm:$0xff] 0.0
  $region17: #{multiscale_discriminator_forward.27} parent=0 // pred_fallthru
    _
  %v21 = vld [vmem:[#allocation2] sm:$0xff]
  %v22 = vld [vmem:[#allocation2 + $0x8] sm:$0xff]
  %v23 = vld [vmem:[#allocation2 + $0x10] sm:$0xff]
  %v24 = vld [vmem:[%s0] sm:$0xff]
  %v25 = vld [vmem:[%s0 + $0x8] sm:$0xff]
  %v26 = vld [vmem:[%s0 + $0x10] sm:$0xff]
  %v27 = vld [vmem:[%s0 + $0x18] sm:$0xff]
  %v28 = vld [vmem:[%s0 + $0x20] sm:$0xff]
  %v29 = vld [vmem:[%s0 + $0x28] sm:$0xff]
  %v30 = vld [vmem:[%s1] sm:$0xff]
  %v31 = vld [vmem:[%s1 + $0x8] sm:$0xff]
  %v32 = vld [vmem:[%s1 + $0x10] sm:$0xff]
  %v33 = vld [vmem:[%s1 + $0x18] sm:$0xff]
  %v34 = vld [vmem:[%s1 + $0x20] sm:$0xff]
  %v35 = vld [vmem:[%s1 + $0x28] sm:$0xff]
  %v36 = vld [vmem:[%s1 + $0x30] sm:$0xff]
  %v37 = vld [vmem:[%s1 + $0x38] sm:$0xff]
  %v38 = vld [vmem:[%s1 + $0x40] sm:$0xff]
  %v39 = vld [vmem:[%s1 + $0x48] sm:$0xff]
  %v40 = vld [vmem:[%s1 + $0x50] sm:$0xff]
  %v41 = vld [vmem:[%s1 + $0x58] sm:$0xff]
  %v42 = vld [vmem:[%s1 + $0x60] sm:$0xff]
  %v43 = vld [vmem:[%s1 + $0x68] sm:$0xff]
  %v44 = vld [vmem:[%s1 + $0x70] sm:$0xff]
  %v45 = vld [vmem:[%s1 + $0x78] sm:$0xff]
  %v46 = vld [vmem:[%s1 + $0x80] sm:$0xff]
  %v47 = vld [vmem:[%s1 + $0x88] sm:$0xff]
  %v48 = vld [vmem:[%s1 + $0x90] sm:$0xff]
  %v49 = vld [vmem:[%s1 + $0x98] sm:$0xff]
  %v50 = vld [vmem:[%s1 + $0xa0] sm:$0xff]
  %v51 = vld [vmem:[%s1 + $0xa8] sm:$0xff]
  %v52 = vld [vmem:[%s1 + $0xb0] sm:$0xff]
  %v53 = vld [vmem:[%s1 + $0xb8] sm:$0xff]
  %v54 = vld [vmem:[%s1 + $0xc0] sm:$0xff]
  %v55 = vld [vmem:[%s1 + $0xc8] sm:$0xff]
  %v56 = vld [vmem:[%s1 + $0xd0] sm:$0xff]
  %v57 = vld [vmem:[%s1 + $0xd8] sm:$0xff]
  %v58 = vld [vmem:[%s1 + $0xe0] sm:$0xff]
  %v59 = vld [vmem:[%s1 + $0xe8] sm:$0xff]
  %v60 = vld [vmem:[%s1 + $0xf0] sm:$0xff]
  %v61 = vld [vmem:[%s1 + $0xf8] sm:$0xff]
  %62 = vmatprep.subr.mxu0 0.0
  %63 = vmatpush1.msra.mxu0 %v30
  %64 = vmatprep.subr.mxu0 0.0
  %65 = vmatpush1.msra.mxu0 %v31
  %66 = vmatprep.subr.mxu0 0.0
  %67 = vmatpush1.msra.mxu0 %v32
  %68 = vmatprep.subr.mxu0 0.0
  %69 = vmatpush1.msra.mxu0 %v33
  %70 = vmatprep.subr.mxu0 0.0
  %71 = vmatpush1.msra.mxu0 %v34
  %72 = vmatprep.subr.mxu0 0.0
  %73 = vmatpush1.msra.mxu0 %v35
  %74 = vmatprep.subr.mxu0 0.0
  %75 = vmatpush1.msra.mxu0 %v36
  %76 = vmatprep.subr.mxu0 0.0
  %77 = vmatpush1.msra.mxu0 %v37
  %78 = vmatprep.subr.mxu0 0.0
  %79 = vmatpush1.msra.mxu0 %v38
  %80 = vmatprep.subr.mxu0 0.0
  %81 = vmatpush1.msra.mxu0 %v39
  %82 = vmatprep.subr.mxu0 0.0
  %83 = vmatpush1.msra.mxu0 %v40
  %84 = vmatprep.subr.mxu0 0.0
  %85 = vmatpush1.msra.mxu0 %v41
  %86 = vmatprep.subr.mxu0 0.0
  %87 = vmatpush1.msra.mxu0 %v42
  %88 = vmatprep.subr.mxu0 0.0
  %89 = vmatpush1.msra.mxu0 %v43
  %90 = vmatprep.subr.mxu0 0.0
  %91 = vmatpush1.msra.mxu0 %v44
  %92 = vmatprep.subr.mxu0 0.0
  %93 = vmatpush1.msra.mxu0 %v45
  %94 = vmatprep.subr.mxu0 0.0
  %95 = vmatpush1.msra.mxu0 %v46
  %96 = vmatprep.subr.mxu0 0.0
  %97 = vmatpush1.msra.mxu0 %v47
  %98 = vmatprep.subr.mxu0 0.0
  %99 = vmatpush1.msra.mxu0 %v48
  %100 = vmatprep.subr.mxu0 0.0
  %101 = vmatpush1.msra.mxu0 %v49
  %102 = vmatprep.subr.mxu0 0.0
  %103 = vmatpush1.msra.mxu0 %v50
  %104 = vmatprep.subr.mxu0 0.0
  %105 = vmatpush1.msra.mxu0 %v51
  %106 = vmatprep.subr.mxu0 0.0
  %107 = vmatpush1.msra.mxu0 %v52
  %108 = vmatprep.subr.mxu0 0.0
  %109 = vmatpush1.msra.mxu0 %v53
  %110 = vmatprep.subr.mxu0 0.0
  %111 = vmatpush1.msra.mxu0 %v54
  %112 = vmatprep.subr.mxu0 0.0
  %113 = vmatpush1.msra.mxu0 %v55
  %114 = vmatprep.subr.mxu0 0.0
  %115 = vmatpush1.msra.mxu0 %v56
  %116 = vmatprep.subr.mxu0 0.0
  %117 = vmatpush1.msra.mxu0 %v57
  %118 = vmatprep.subr.mxu0 0.0
  %119 = vmatpush1.msra.mxu0 %v58
  %120 = vmatprep.subr.mxu0 0.0
  %121 = vmatpush1.msra.mxu0 %v59
  %122 = vmatprep.subr.mxu0 0.0
  %123 = vmatpush1.msra.mxu0 %v60
  %124 = vmatprep.subr.mxu0 0.0
  %125 = vmatpush1.msra.mxu0 %v61
  %126 = vmatprep.mubr.f32.mxu0 %v25
  %127 = vmatmul.mubr.f32.gmra.mrb[0].mxu0 %v24
  %v128 = vpop.f32.mrb[0].mxu0
  %v129 = vadd.f32 0.0, %v128
  %v130 = vpop.f32.mrb[0].mxu0
  %131 = vmatprep.mubr.f32.mxu0 %v27
  %132 = vmatmul.mubr.f32.gmra.mrb[0].mxu0 %v26
  %v133 = vpop.f32.mrb[0].mxu0
  %v134 = vadd.f32 0.0, %v133
  %v135 = vpop.f32.mrb[0].mxu0
  %136 = vmatprep.mubr.f32.mxu0 %v29
  %137 = vmatmul.mubr.f32.gmra.mrb[0].mxu0 %v28
  %v138 = vpop.f32.mrb[0].mxu0
  %v139 = vadd.f32 0.0, %v138
  %v140 = vpop.f32.mrb[0].mxu0
  %141 = vdwg.mxu0
  %v142 = vadd.f32 %v21, %v129
  %v143 = vadd.f32 %v22, %v134
  %v144 = vadd.f32 %v23, %v139
  %145 = vst [vmem:[#allocation2] sm:$0xff] %v142
  %146 = vst [vmem:[#allocation2 + $0x8] sm:$0xff] %v143
  %147 = vst [vmem:[#allocation2 + $0x10] sm:$0xff] %v144
  // Predicated region
  $region18: #{multiscale_discriminator_forward.27} parent=0 // pred_check
    %p148 = pneg %p14
  $region19: #{multiscale_discriminator_forward.27} parent=0 // pred_check_branch
    %150 = sbr.rel (%p148) target = $region21
  $region20: #{multiscale_discriminator_forward.27} parent=0 // pred_region
    %v151 = vld [vmem:[#allocation2] sm:$0xff]
    %v152 = vld [vmem:[#allocation2 + $0x8] sm:$0xff]
    %v153 = vld [vmem:[#allocation2 + $0x10] sm:$0xff]
    %v154 = vld [vmem:[%s2] sm:$0x1]
    %v156 = vlaneseq
    %v157 = vshrl.u32 %v156, 7
    %v158 = vsub.s32 0, %v157
    %v159 = vrot.slane %v154, %v158
    %v161 = vadd.f32 %v151, %v159
    %v162 = vadd.f32 %v152, %v159
    %v163 = vadd.f32 %v153, %v159
    %164 = vst [vmem:[%s3] sm:$0xff] %v161
    %165 = vst [vmem:[%s3 + $0x8] sm:$0xff] %v162
    %166 = vst [vmem:[%s3 + $0x10] sm:$0xff] %v163
  $region21: #{multiscale_discriminator_forward.27} parent=0 // pred_fallthru
    _
  // Predicated region
  $region22: #{multiscale_discriminator_forward.27} parent=0 // pred_check
    _
  $region23: #{multiscale_discriminator_forward.27} parent=0 // pred_check_branch
    %168 = sbr.rel (0) target = $region25
  $region24: #{multiscale_discriminator_forward.27} parent=0 // pred_region
    _
  $region25: #{multiscale_discriminator_forward.27} parent=0 // pred_fallthru
    _
  // Predicated region
  $region26: #{multiscale_discriminator_forward.27} parent=0 // pred_check
    _
  $region27: #{multiscale_discriminator_forward.27} parent=0 // pred_check_branch
    %170 = sbr.rel (0) target = $region29
  $region28: #{multiscale_discriminator_forward.27} parent=0 // pred_region
    _
  $region29: #{multiscale_discriminator_forward.27} parent=0 // pred_fallthru
    _

// kernel: multiscale_discriminator_forward.28
$region0: #{multiscale_discriminator_forward.28}
  #allocation0 [shape = 'u32[]', space=smem, size = 0x4, offset = 0x4, fixed_abs, tag = 'smem constant byte address 0x4 - core index']
  #allocation1 [shape = 'u32[144,128]{1,0:T(1,128)}', space=vmem, size = 0x12000, scoped, tag = 'internal scratch']
  %s0 = inlined_call_operand.vmem [shape: f32[24,128], index: 0, kind: input, shape index: {}]
  %s1 = inlined_call_operand.vmem [shape: f32[1,128], index: 1, kind: output, shape index: {0}]
  %s2 = inlined_call_operand.vmem [shape: f32[1,128], index: 2, kind: output, shape index: {1}]
  %3 = xla_tuple %s1, %s2
  %s4 = sld [smem:[#allocation0]]
  $region26: #{multiscale_discriminator_forward.28} parent=0
    _
  %s6 = ssub.s32 1, %s4
  %s7 = scalar_select 0, %s6, %s4
  // Predicated region
  $region2: #{multiscale_discriminator_forward.28} parent=0 // pred_check
    _
  $region3: #{multiscale_discriminator_forward.28} parent=0 // pred_check_branch
    %9 = sbr.rel (0) target = $region5
  $region4: #{multiscale_discriminator_forward.28} parent=0 // pred_region
    _
  $region5: #{multiscale_discriminator_forward.28} parent=0 // pred_fallthru
    _
  %p10 = scmp.eq.s32.totalorder 0, 0
  // Predicated region
  $region6: #{multiscale_discriminator_forward.28} parent=0 // pred_check
    %p11 = pneg %p10
  $region7: #{multiscale_discriminator_forward.28} parent=0 // pred_check_branch
    %13 = sbr.rel (%p11) target = $region9
  $region8: #{multiscale_discriminator_forward.28} parent=0 // pred_region
    %14 = vst [vmem:[%s1] sm:$0x1] 0.0
    %15 = vst [vmem:[%s2] sm:$0x1] 0.0
  $region9: #{multiscale_discriminator_forward.28} parent=0 // pred_fallthru
    _
  %v16 = vld [vmem:[%s0] sm:$0xff]
  %v17 = vld [vmem:[%s0 + $0x8] sm:$0xff]
  %v18 = vld [vmem:[%s0 + $0x10] sm:$0xff]
  %v19 = vld [vmem:[%s1] sm:$0x1]
  %v20 = vadd.f32 %v16, %v17
  %v21 = vadd.f32 %v20, %v18
  %v22 = vrot.slane %v21, 4
  %v23 = vadd.f32 %v21, %v22
  %v24 = vrot.slane %v23, 2
  %v25 = vadd.f32 %v23, %v24
  %v26 = vrot.slane %v25, 1
  %v27 = vadd.f32 %v25, %v26
  %v28 = vadd.f32 %v19, %v27
  %29 = vst [vmem:[%s1] sm:$0x1] %v28
  %v30 = vld [vmem:[%s2] sm:$0x1]
  %v31 = vmul.f32 %v16, %v16
  %v32 = vmul.f32 %v17, %v17
  %v33 = vmul.f32 %v18, %v18
  %v34 = vadd.f32 %v31, %v32
  %v35 = vadd.f32 %v34, %v33
  %v36 = vrot.slane %v35, 4
  %v37 = vadd.f32 %v35, %v36
  %v38 = vrot.slane %v37, 2
  %v39 = vadd.f32 %v37, %v38
  %v40 = vrot.slane %v39, 1
  %v41 = vadd.f32 %v39, %v40
  %v42 = vadd.f32 %v30, %v41
  %43 = vst [vmem:[%s2] sm:$0x1] %v42
  // Predicated region
  $region10: #{multiscale_discriminator_forward.28} parent=0 // pred_check
    _
  $region11: #{multiscale_discriminator_forward.28} parent=0 // pred_check_branch
    %45 = sbr.rel (0) target = $region13
  $region12: #{multiscale_discriminator_forward.28} parent=0 // pred_region
    _
  $region13: #{multiscale_discriminator_forward.28} parent=0 // pred_fallthru
    _
  // Predicated region
  $region14: #{multiscale_discriminator_forward.28} parent=0 // pred_check
    _
  $region15: #{multiscale_discriminator_forward.28} parent=0 // pred_check_branch
    %47 = sbr.rel (0) target = $region17
  $region16: #{multiscale_discriminator_forward.28} parent=0 // pred_region
    _
  $region17: #{multiscale_discriminator_forward.28} parent=0 // pred_fallthru
    _
  // Predicated region
  $region18: #{multiscale_discriminator_forward.28} parent=0 // pred_check
    _
  $region19: #{multiscale_discriminator_forward.28} parent=0 // pred_check_branch
    %49 = sbr.rel (0) target = $region21
  $region20: #{multiscale_discriminator_forward.28} parent=0 // pred_region
    _
  $region21: #{multiscale_discriminator_forward.28} parent=0 // pred_fallthru
    _
  // Predicated region
  $region22: #{multiscale_discriminator_forward.28} parent=0 // pred_check
    _
  $region23: #{multiscale_discriminator_forward.28} parent=0 // pred_check_branch
    %51 = sbr.rel (0) target = $region25
  $region24: #{multiscale_discriminator_forward.28} parent=0 // pred_region
    _
  $region25: #{multiscale_discriminator_forward.28} parent=0 // pred_fallthru
    _

// kernel: multiscale_discriminator_forward.29
$region0: #{multiscale_discriminator_forward.29}
  #allocation0 [shape = 'u32[]', space=smem, size = 0x4, offset = 0x4, fixed_abs, tag = 'smem constant byte address 0x4 - core index']
  #allocation1 [shape = 'u32[144,128]{1,0:T(1,128)}', space=vmem, size = 0x12000, scoped, tag = 'internal scratch']
  %s0 = inlined_call_operand.vmem [shape: f32[24,128], index: 0, kind: input, shape index: {}]
  %s1 = inlined_call_operand.vmem [shape: f32[1,128], index: 1, kind: input, shape index: {}]
  %s2 = inlined_call_operand.vmem [shape: f32[1,128], index: 2, kind: input, shape index: {}]
  %s3 = inlined_call_operand.vmem [shape: f32[1,128], index: 3, kind: input, shape index: {}]
  %s4 = inlined_call_operand.vmem [shape: f32[1,128], index: 4, kind: input, shape index: {}]
  %s5 = inlined_call_operand.vmem [shape: f32[24,128], index: 5, kind: output, shape index: {}]
  %s6 = sld [smem:[#allocation0]]
  $region30: #{multiscale_discriminator_forward.29} parent=0
    _
  %s8 = ssub.s32 1, %s6
  %s9 = scalar_select 0, %s8, %s6
  // Predicated region
  $region2: #{multiscale_discriminator_forward.29} parent=0 // pred_check
    _
  $region3: #{multiscale_discriminator_forward.29} parent=0 // pred_check_branch
    %11 = sbr.rel (0) target = $region5
  $region4: #{multiscale_discriminator_forward.29} parent=0 // pred_region
    _
  $region5: #{multiscale_discriminator_forward.29} parent=0 // pred_fallthru
    _
  // Predicated region
  $region6: #{multiscale_discriminator_forward.29} parent=0 // pred_check
    _
  $region7: #{multiscale_discriminator_forward.29} parent=0 // pred_check_branch
    %13 = sbr.rel (0) target = $region9
  $region8: #{multiscale_discriminator_forward.29} parent=0 // pred_region
    _
  $region9: #{multiscale_discriminator_forward.29} parent=0 // pred_fallthru
    _
  // Predicated region
  $region10: #{multiscale_discriminator_forward.29} parent=0 // pred_check
    _
  $region11: #{multiscale_discriminator_forward.29} parent=0 // pred_check_branch
    %15 = sbr.rel (0) target = $region13
  $region12: #{multiscale_discriminator_forward.29} parent=0 // pred_region
    _
  $region13: #{multiscale_discriminator_forward.29} parent=0 // pred_fallthru
    _
  // Predicated region
  $region14: #{multiscale_discriminator_forward.29} parent=0 // pred_check
    _
  $region15: #{multiscale_discriminator_forward.29} parent=0 // pred_check_branch
    %17 = sbr.rel (0) target = $region17
  $region16: #{multiscale_discriminator_forward.29} parent=0 // pred_region
    _
  $region17: #{multiscale_discriminator_forward.29} parent=0 // pred_fallthru
    _
  // Predicated region
  $region18: #{multiscale_discriminator_forward.29} parent=0 // pred_check
    _
  $region19: #{multiscale_discriminator_forward.29} parent=0 // pred_check_branch
    %19 = sbr.rel (0) target = $region21
  $region20: #{multiscale_discriminator_forward.29} parent=0 // pred_region
    _
  $region21: #{multiscale_discriminator_forward.29} parent=0 // pred_fallthru
    _
  %v20 = vld [vmem:[%s1] sm:$0x1]
  %v21 = vmul.f32 %v20, 0.055555556
  %v22 = vld [vmem:[%s2] sm:$0x1]
  %v23 = vmul.f32 %v22, 0.055555556
  %v24 = vmul.f32 %v21, %v21
  %v25 = vsub.f32 %v23, %v24
  %v26 = vmax.f32 %v25, 0.0
  %v27 = vadd.f32 %v26, 1e-05
  %v28 = vrsqrt.pop %v27
  %v29 = vld [vmem:[%s3] sm:$0x1]
  %v30 = vmul.f32 %v28, %v29
  %v31 = vld [vmem:[%s4] sm:$0x1]
  %v32 = vmul.f32 %v21, %v30
  %v33 = vsub.f32 %v31, %v32
  %v34 = vld [vmem:[%s0] sm:$0xff]
  %v35 = vld [vmem:[%s0 + $0x8] sm:$0xff]
  %v36 = vld [vmem:[%s0 + $0x10] sm:$0xff]
  %v38 = vlaneseq
  %v39 = vshrl.u32 %v38, 7
  %v40 = vsub.s32 0, %v39
  %v41 = vrot.slane %v30, %v40
  %v43 = vmul.f32 %v34, %v41
  %v44 = vmul.f32 %v35, %v41
  %v45 = vmul.f32 %v36, %v41
  %v47 = vlaneseq
  %v48 = vshrl.u32 %v47, 7
  %v49 = vsub.s32 0, %v48
  %v50 = vrot.slane %v33, %v49
  %v52 = vadd.f32 %v43, %v50
  %v53 = vadd.f32 %v44, %v50
  %v54 = vadd.f32 %v45, %v50
  %vm55 = vcmp.gt.f32.partialorder %v52, 0.0
  %vm56 = vcmp.gt.f32.partialorder %v53, 0.0
  %vm57 = vcmp.gt.f32.partialorder %v54, 0.0
  %v58 = vmul.f32 %v52, 0.2
  %v59 = vmul.f32 %v53, 0.2
  %v60 = vmul.f32 %v54, 0.2
  %v61 = vsel %vm55, %v52, %v58
  %v62 = vsel %vm56, %v53, %v59
  %v63 = vsel %vm57, %v54, %v60
  %64 = vst [vmem:[%s5] sm:$0xff] %v61
  %65 = vst [vmem:[%s5 + $0x8] sm:$0xff] %v62
  %66 = vst [vmem:[%s5 + $0x10] sm:$0xff] %v63
  // Predicated region
  $region22: #{multiscale_discriminator_forward.29} parent=0 // pred_check
    _
  $region23: #{multiscale_discriminator_forward.29} parent=0 // pred_check_branch
    %68 = sbr.rel (0) target = $region25
  $region24: #{multiscale_discriminator_forward.29} parent=0 // pred_region
    _
  $region25: #{multiscale_discriminator_forward.29} parent=0 // pred_fallthru
    _
  // Predicated region
  $region26: #{multiscale_discriminator_forward.29} parent=0 // pred_check
    _
  $region27: #{multiscale_discriminator_forward.29} parent=0 // pred_check_branch
    %70 = sbr.rel (0) target = $region29
  $region28: #{multiscale_discriminator_forward.29} parent=0 // pred_region
    _
  $region29: #{multiscale_discriminator_forward.29} parent=0 // pred_fallthru
    _

// kernel: multiscale_discriminator_forward.31
$region0: #{multiscale_discriminator_forward.31}
  #allocation0 [shape = 'u32[]', space=smem, size = 0x4, offset = 0x4, fixed_abs, tag = 'smem constant byte address 0x4 - core index']
  #allocation1 [shape = 'u32[144,128]{1,0:T(1,128)}', space=vmem, size = 0x12000, scoped, tag = 'internal scratch']
  %s0 = inlined_call_operand.vmem [shape: f32[32,128], index: 0, kind: input, shape index: {}]
  %s1 = inlined_call_operand.vmem [shape: f32[1,128], index: 1, kind: output, shape index: {0}]
  %s2 = inlined_call_operand.vmem [shape: f32[1,128], index: 2, kind: output, shape index: {1}]
  %3 = xla_tuple %s1, %s2
  %s4 = sld [smem:[#allocation0]]
  $region26: #{multiscale_discriminator_forward.31} parent=0
    _
  %s6 = ssub.s32 1, %s4
  %s7 = scalar_select 0, %s6, %s4
  // Predicated region
  $region2: #{multiscale_discriminator_forward.31} parent=0 // pred_check
    _
  $region3: #{multiscale_discriminator_forward.31} parent=0 // pred_check_branch
    %9 = sbr.rel (0) target = $region5
  $region4: #{multiscale_discriminator_forward.31} parent=0 // pred_region
    _
  $region5: #{multiscale_discriminator_forward.31} parent=0 // pred_fallthru
    _
  %p10 = scmp.eq.s32.totalorder 0, 0
  // Predicated region
  $region6: #{multiscale_discriminator_forward.31} parent=0 // pred_check
    %p11 = pneg %p10
  $region7: #{multiscale_discriminator_forward.31} parent=0 // pred_check_branch
    %13 = sbr.rel (%p11) target = $region9
  $region8: #{multiscale_discriminator_forward.31} parent=0 // pred_region
    %14 = vst [vmem:[%s1] sm:$0x1] 0.0
    %15 = vst [vmem:[%s2] sm:$0x1] 0.0
  $region9: #{multiscale_discriminator_forward.31} parent=0 // pred_fallthru
    _
  %v16 = vld [vmem:[%s0] sm:$0xff]
  %v17 = vld [vmem:[%s0 + $0x8] sm:$0xff]
  %v18 = vld [vmem:[%s0 + $0x10] sm:$0xff]
  %v19 = vld [vmem:[%s0 + $0x18] sm:$0xff]
  %v20 = vld [vmem:[%s1] sm:$0x1]
  %v21 = vadd.f32 %v16, %v17
  %v22 = vadd.f32 %v21, %v18
  %v23 = vadd.f32 %v22, %v19
  %v24 = vrot.slane %v23, 4
  %v25 = vadd.f32 %v23, %v24
  %v26 = vrot.slane %v25, 2
  %v27 = vadd.f32 %v25, %v26
  %v28 = vrot.slane %v27, 1
  %v29 = vadd.f32 %v27, %v28
  %v30 = vadd.f32 %v20, %v29
  %31 = vst [vmem:[%s1] sm:$0x1] %v30
  %v32 = vld [vmem:[%s2] sm:$0x1]
  %v33 = vmul.f32 %v16, %v16
  %v34 = vmul.f32 %v17, %v17
  %v35 = vmul.f32 %v18, %v18
  %v36 = vmul.f32 %v19, %v19
  %v37 = vadd.f32 %v33, %v34
  %v38 = vadd.f32 %v37, %v35
  %v39 = vadd.f32 %v38, %v36
  %v40 = vrot.slane %v39, 4
  %v41 = vadd.f32 %v39, %v40
  %v42 = vrot.slane %v41, 2
  %v43 = vadd.f32 %v41, %v42
  %v44 = vrot.slane %v43, 1
  %v45 = vadd.f32 %v43, %v44
  %v46 = vadd.f32 %v32, %v45
  %47 = vst [vmem:[%s2] sm:$0x1] %v46
  // Predicated region
  $region10: #{multiscale_discriminator_forward.31} parent=0 // pred_check
    _
  $region11: #{multiscale_discriminator_forward.31} parent=0 // pred_check_branch
    %49 = sbr.rel (0) target = $region13
  $region12: #{multiscale_discriminator_forward.31} parent=0 // pred_region
    _
  $region13: #{multiscale_discriminator_forward.31} parent=0 // pred_fallthru
    _
  // Predicated region
  $region14: #{multiscale_discriminator_forward.31} parent=0 // pred_check
    _
  $region15: #{multiscale_discriminator_forward.31} parent=0 // pred_check_branch
    %51 = sbr.rel (0) target = $region17
  $region16: #{multiscale_discriminator_forward.31} parent=0 // pred_region
    _
  $region17: #{multiscale_discriminator_forward.31} parent=0 // pred_fallthru
    _
  // Predicated region
  $region18: #{multiscale_discriminator_forward.31} parent=0 // pred_check
    _
  $region19: #{multiscale_discriminator_forward.31} parent=0 // pred_check_branch
    %53 = sbr.rel (0) target = $region21
  $region20: #{multiscale_discriminator_forward.31} parent=0 // pred_region
    _
  $region21: #{multiscale_discriminator_forward.31} parent=0 // pred_fallthru
    _
  // Predicated region
  $region22: #{multiscale_discriminator_forward.31} parent=0 // pred_check
    _
  $region23: #{multiscale_discriminator_forward.31} parent=0 // pred_check_branch
    %55 = sbr.rel (0) target = $region25
  $region24: #{multiscale_discriminator_forward.31} parent=0 // pred_region
    _
  $region25: #{multiscale_discriminator_forward.31} parent=0 // pred_fallthru
    _

// kernel: multiscale_discriminator_forward.30
$region0: #{multiscale_discriminator_forward.30}
  #allocation0 [shape = 'u32[]', space=smem, size = 0x4, offset = 0x4, fixed_abs, tag = 'smem constant byte address 0x4 - core index']
  #allocation1 [shape = 'u32[144,128]{1,0:T(1,128)}', space=vmem, size = 0x12000, scoped, tag = 'internal scratch']
  #allocation2 [shape = 'f32[32,128]{1,0:T(8,128)}', space=vmem, size = 0x4000, scoped, tag = 'scratch operand']
  %s0 = inlined_call_operand.vmem [shape: f32[32,512], index: 0, kind: input, shape index: {}]
  %s1 = inlined_call_operand.vmem [shape: f32[512,128], index: 1, kind: input, shape index: {}]
  %s2 = inlined_call_operand.vmem [shape: f32[1,128], index: 2, kind: input, shape index: {}]
  %s3 = inlined_call_operand.vmem [shape: f32[32,128], index: 3, kind: output, shape index: {}]
  %s4 = sld [smem:[#allocation0]]
  $region76: #{multiscale_discriminator_forward.30} parent=0
    _
  %s6 = ssub.s32 1, %s4
  %s7 = scalar_select 0, %s6, %s4
  $region1: #{multiscale_discriminator_forward.30} parent=0
    #allocation3 [shape = 'u8[65536]{0}', space=vmem, size = 0x10000, scoped, tag = 'input window, operand 0']
    loop: start=0, step=1, limit=4
    $region2: #{multiscale_discriminator_forward.30} parent=1 // loop_pre_header
      _
    $region3: #{multiscale_discriminator_forward.30} parent=1 // loop_header
      %s9 = sphi 0, %s13
      %p10 = scmp.ge.s32.totalorder %s9, 4
      %s16 = sphi 0, %s35
      %s17 = sphi 0, %s31
      %s18 = sphi 0, %s27
      %s19 = sphi 0, %s16
      %s20 = sphi 0, %s17
      %s21 = sphi 0, %s18
      %s22 = sphi 0, %s19
      %s23 = sphi 0, %s20
      %s24 = sphi 0, %s21
      %s40 = sphi 0, %s42
      %s43 = sphi 0, %s40
      %s44 = sphi 0, %s43
      %s60 = sphi 0, %s44
      %s68 = sphi 0, %s70
      %s71 = sphi 0, %s68
      %s72 = sphi 0, %s71
      %s88 = sphi 0, %s72
      %s94 = sphi 0, %s96
      %s97 = sphi 0, %s94
      %s98 = sphi 0, %s97
      %s114 = sphi 0, %s98
      %s122 = sphi 0, %s124
      %s125 = sphi 0, %s122
      %s126 = sphi 0, %s125
      %s142 = sphi 0, %s126
    $region4: #{multiscale_discriminator_forward.30} parent=1 // loop_header_branch
      %12 = sbr.rel (%p10) target = $region8
    $region5: #{multiscale_discriminator_forward.30} parent=1 // loop_body
      %s14 = ssub.s32 %s9, 1
      %s15 = ssub.s32 %s9, 2
      %s25 = sadd.s32 1, %s18
      %p26 = scmp.ge.s32.totalorder %s25, 2
      %s27 = scalar_select %p26, 0, %s25
      %s28 = sadd.s32 1, %s17
      %s29 = scalar_select %p26, %s28, %s17
      %p30 = scmp.ge.s32.totalorder %s29, 1
      %s31 = scalar_select %p30, 0, %s29
      %s32 = sadd.s32 1, %s16
      %s33 = scalar_select %p30, %s32, %s16
      %p34 = scmp.ge.s32.totalorder %s33, 1
      %s35 = scalar_select %p34, 0, %s33
      %s36 = ssub.s32 %s16, %s35
      %s37 = ssub.s32 %s18, %s27
      %s38 = sor.u32 %s36, %s37
      %p39 = scmp.eq.s32.totalorder %s38, 0
      %s41 = sadd.s32 %s40, 1
      %s42 = scalar_select %p39, %s40, %s41
      %p45 = pneg %p39
      %p46 = scmp.eq.s32.totalorder %s9, 1
      %p47 = por %p45, %p46
      %p48 = scmp.ne.s32.totalorder %s40, %s43
      %p49 = scmp.eq.s32.totalorder %s9, 0
      %p50 = por %p48, %p49
      %p51 = scmp.ne.s32.totalorder %s40, %s43
      %p52 = scmp.eq.s32.totalorder %s14, 1
      %p53 = por %p51, %p52
      %p54 = scmp.ne.s32.totalorder %s43, %s44
      %p55 = scmp.eq.s32.totalorder %s14, 0
      %p56 = por %p54, %p55
      %p57 = scmp.ne.s32.totalorder %s43, %s44
      %p58 = scmp.eq.s32.totalorder %s15, 1
      %p59 = por %p57, %p58
      %p61 = scmp.ne.s32.totalorder %s44, %s60
      %p62 = scmp.eq.s32.totalorder %s15, 0
      %p63 = por %p61, %p62
      %s64 = ssub.s32 %s18, %s27
      %s65 = ssub.s32 %s17, %s31
      %s66 = sor.u32 %s64, %s65
      %p67 = scmp.eq.s32.totalorder %s66, 0
      %s69 = sadd.s32 %s68, 1
      %s70 = scalar_select %p67, %s68, %s69
      %p73 = pneg %p67
      %p74 = scmp.eq.s32.totalorder %s9, 1
      %p75 = por %p73, %p74
      %p76 = scmp.ne.s32.totalorder %s68, %s71
      %p77 = scmp.eq.s32.totalorder %s9, 0
      %p78 = por %p76, %p77
      %p79 = scmp.ne.s32.totalorder %s68, %s71
      %p80 = scmp.eq.s32.totalorder %s14, 1
      %p81 = por %p79, %p80
      %p82 = scmp.ne.s32.totalorder %s71, %s72
      %p83 = scmp.eq.s32.totalorder %s14, 0
      %p84 = por %p82, %p83
      %p85 = scmp.ne.s32.totalorder %s71, %s72
      %p86 = scmp.eq.s32.totalorder %s15, 1
      %p87 = por %p85, %p86
      %p89 = scmp.ne.s32.totalorder %s72, %s88
      %p90 = scmp.eq.s32.totalorder %s15, 0
      %p91 = por %p89, %p90
      %s92 = ssub.s32 %s17, %s31
      %p93 = scmp.eq.s32.totalorder %s92, 0
      %s95 = sadd.s32 %s94, 1
      %s96 = scalar_select %p93, %s94, %s95
      %p99 = pneg %p93
      %p100 = scmp.eq.s32.totalorder %s9, 1
      %p101 = por %p99, %p100
      %p102 = scmp.ne.s32.totalorder %s94, %s97
      %p103 = scmp.eq.s32.totalorder %s9, 0
      %p104 = por %p102, %p103
      %p105 = scmp.ne.s32.totalorder %s94, %s97
      %p106 = scmp.eq.s32.totalorder %s14, 1
      %p107 = por %p105, %p106
      %p108 = scmp.ne.s32.totalorder %s97, %s98
      %p109 = scmp.eq.s32.totalorder %s14, 0
      %p110 = por %p108, %p109
      %p111 = scmp.ne.s32.totalorder %s97, %s98
      %p112 = scmp.eq.s32.totalorder %s15, 1
      %p113 = por %p111, %p112
      %p115 = scmp.ne.s32.totalorder %s98, %s114
      %p116 = scmp.eq.s32.totalorder %s15, 0
      %p117 = por %p115, %p116
      %s118 = ssub.s32 %s16, %s35
      %s119 = ssub.s32 %s17, %s31
      %s120 = sor.u32 %s118, %s119
      %p121 = scmp.eq.s32.totalorder %s120, 0
      %s123 = sadd.s32 %s122, 1
      %s124 = scalar_select %p121, %s122, %s123
      %p127 = pneg %p121
      %p128 = scmp.eq.s32.totalorder %s9, 1
      %p129 = por %p127, %p128
      %p130 = scmp.ne.s32.totalorder %s122, %s125
      %p131 = scmp.eq.s32.totalorder %s9, 0
      %p132 = por %p130, %p131
      %p133 = scmp.ne.s32.totalorder %s122, %s125
      %p134 = scmp.eq.s32.totalorder %s14, 1
      %p135 = por %p133, %p134
      %p136 = scmp.ne.s32.totalorder %s125, %s126
      %p137 = scmp.eq.s32.totalorder %s14, 0
      %p138 = por %p136, %p137
      %p139 = scmp.ne.s32.totalorder %s125, %s126
      %p140 = scmp.eq.s32.totalorder %s15, 1
      %p141 = por %p139, %p140
      %p143 = scmp.ne.s32.totalorder %s126, %s142
      %p144 = scmp.eq.s32.totalorder %s15, 0
      %p145 = por %p143, %p144
      %p146 = scmp.le.s32.totalorder 1, %s9
      %p147 = scmp.lt.s32.totalorder %s9, 3
      %p148 = pnand %p146, %p147
      %p149 = pneg %p148
      // Predicated region
      $region9: #{multiscale_discriminator_forward.30} parent=5 // pred_check
        _
      $region10: #{multiscale_discriminator_forward.30} parent=5 // pred_check_branch
        %151 = sbr.rel (%p148) target = $region12
      $region11: #{multiscale_discriminator_forward.30} parent=5 // pred_region
        %s152 = ssub.s32 %s9, 1
        // Predicated region
        $region13: #{multiscale_discriminator_forward.30} parent=11 // pred_check
          %p153 = pneg %p110
        $region14: #{multiscale_discriminator_forward.30} parent=11 // pred_check_branch
          %155 = sbr.rel (%p153) target = $region16
        $region15: #{multiscale_discriminator_forward.30} parent=11 // pred_region
          %p156 = scmp.lt.s32.totalorder %s20, 0
          %s157 = scalar_select %p156, %s20, 0
          %s158 = scalar_lea.vmem %s2, %s157
        $region16: #{multiscale_discriminator_forward.30} parent=11 // pred_fallthru
          _
      $region12: #{multiscale_discriminator_forward.30} parent=5 // pred_fallthru
        _
      %p159 = scmp.lt.s32.totalorder %s9, 2
      // Predicated region
      $region17: #{multiscale_discriminator_forward.30} parent=5 // pred_check
        %p160 = pneg %p159
      $region18: #{multiscale_discriminator_forward.30} parent=5 // pred_check_branch
        %162 = sbr.rel (%p160) target = $region20
      $region19: #{multiscale_discriminator_forward.30} parent=5 // pred_region
        // Predicated region
        $region21: #{multiscale_discriminator_forward.30} parent=19 // pred_check
          %p163 = pneg %p50
        $region22: #{multiscale_discriminator_forward.30} parent=19 // pred_check_branch
          %165 = sbr.rel (%p163) target = $region24
        $region23: #{multiscale_discriminator_forward.30} parent=19 // pred_region
          %s166 = sand.u32 %s40, 1
          %s167 = sand.u32 %s40, 1
          %s168 = smul.addr %s167, 64
          %s169 = scalar_lea.vmem [#allocation3], %s168
          %s170 = smul.u32 4, %s16
          %s171 = smul.u32 2, %s18
          %s172 = smul.addr %s170, 4
          %s173 = sadd.s32 %s171, %s172
          %s174 = smul.addr %s173, 8
          %s175 = scalar_lea.vmem %s0, %s174
          // Predicated region
          $region25: #{multiscale_discriminator_forward.30} parent=23 // pred_check
            _
          $region26: #{multiscale_discriminator_forward.30} parent=23 // pred_check_branch
            %177 = sbr.rel (0) target = $region28
          $region27: #{multiscale_discriminator_forward.30} parent=23 // pred_region
            // Predicated region
            $region29: #{multiscale_discriminator_forward.30} parent=27 // pred_check
              _
            $region30: #{multiscale_discriminator_forward.30} parent=27 // pred_check_branch
              %179 = sbr.rel (0) target = $region32
            $region31: #{multiscale_discriminator_forward.30} parent=27 // pred_region
              loop: start=0, step=1, limit=1
              $region33: #{multiscale_discriminator_forward.30} parent=31 // loop_pre_header
                _
              $region34: #{multiscale_discriminator_forward.30} parent=31 // loop_header
                %s181 = sphi 0, %s185
                %p182 = scmp.ge.s32.totalorder %s181, 1
                %s186 = sphi %s175, %s175
                %s187 = sphi %s169, %s169
              $region35: #{multiscale_discriminator_forward.30} parent=31 // loop_header_branch
                %184 = sbr.rel (%p182) target = $region39
              $region36: #{multiscale_discriminator_forward.30} parent=31 // loop_body
                %v188 = vld [vmem:[%s186] sm:$0xff]
                %189 = vst [vmem:[%s187] sm:$0xff] %v188
                %v190 = vld [vmem:[%s186 + $0x8] sm:$0xff]
                %191 = vst [vmem:[%s187 + $0x8] sm:$0xff] %v190
                %v192 = vld [vmem:[%s186 + $0x20] sm:$0xff]
                %193 = vst [vmem:[%s187 + $0x10] sm:$0xff] %v192
                %v194 = vld [vmem:[%s186 + $0x28] sm:$0xff]
                %195 = vst [vmem:[%s187 + $0x18] sm:$0xff] %v194
                %v196 = vld [vmem:[%s186 + $0x40] sm:$0xff]
                %197 = vst [vmem:[%s187 + $0x20] sm:$0xff] %v196
                %v198 = vld [vmem:[%s186 + $0x48] sm:$0xff]
                %199 = vst [vmem:[%s187 + $0x28] sm:$0xff] %v198
                %v200 = vld [vmem:[%s186 + $0x60] sm:$0xff]
                %201 = vst [vmem:[%s187 + $0x30] sm:$0xff] %v200
                %v202 = vld [vmem:[%s186 + $0x68] sm:$0xff]
                %203 = vst [vmem:[%s187 + $0x38] sm:$0xff] %v202
              $region37: #{multiscale_discriminator_forward.30} parent=31 // loop_footer
                %s185 = sadd.s32 1, %s181
              $region38: #{multiscale_discriminator_forward.30} parent=31 // loop_footer_branch
                %180 = sbr.rel target = $region34
              $region39: #{multiscale_discriminator_forward.30} parent=31 // loop_exit
                _
            $region32: #{multiscale_discriminator_forward.30} parent=27 // pred_fallthru
              _
            // Predicated region
            $region40: #{multiscale_discriminator_forward.30} parent=27 // pred_check
              _
            $region41: #{multiscale_discriminator_forward.30} parent=27 // pred_check_branch
              %205 = sbr.rel target = $region43
            $region42: #{multiscale_discriminator_forward.30} parent=27 // pred_region
              _
            $region43: #{multiscale_discriminator_forward.30} parent=27 // pred_fallthru
              _
          $region28: #{multiscale_discriminator_forward.30} parent=23 // pred_fallthru
            _
          %206 = vnop
        $region24: #{multiscale_discriminator_forward.30} parent=19 // pred_fallthru
          _
        // Predicated region
        $region44: #{multiscale_discriminator_forward.30} parent=19 // pred_check
          %p207 = pneg %p78
        $region45: #{multiscale_discriminator_forward.30} parent=19 // pred_check_branch
          %209 = sbr.rel (%p207) target = $region47
        $region46: #{multiscale_discriminator_forward.30} parent=19 // pred_region
          %s210 = smul.u32 32, %s18
          %p211 = scmp.lt.s32.totalorder %s210, 63
          %s212 = scalar_select %p211, %s210, 63
          %p213 = scmp.lt.s32.totalorder %s17, 0
          %s214 = scalar_select %p213, %s17, 0
          %s215 = sadd.s32 %s214, %s212
          %s216 = smul.addr %s215, 8
          %s217 = scalar_lea.vmem %s1, %s216
          %s218 = smul.u32 32, %s18
        $region47: #{multiscale_discriminator_forward.30} parent=19 // pred_fallthru
          _
      $region20: #{multiscale_discriminator_forward.30} parent=5 // pred_fallthru
        _
      %p219 = scmp.le.s32.totalorder 1, %s9
      %p220 = scmp.lt.s32.totalorder %s9, 3
      %p221 = pnand %p219, %p220
      %p222 = pneg %p221
      // Predicated region
      $region48: #{multiscale_discriminator_forward.30} parent=5 // pred_check
        _
      $region49: #{multiscale_discriminator_forward.30} parent=5 // pred_check_branch
        %224 = sbr.rel (%p221) target = $region51
      $region50: #{multiscale_discriminator_forward.30} parent=5 // pred_region
        %s225 = ssub.s32 %s9, 1
        %s226 = sand.u32 %s43, 1
        %s227 = sand.u32 %s43, 1
        %s228 = smul.addr %s227, 64
        %s229 = scalar_lea.vmem [#allocation3], %s228
        // Predicated region
        $region52: #{multiscale_discriminator_forward.30} parent=50 // pred_check
          %p230 = pneg %p56
        $region53: #{multiscale_discriminator_forward.30} parent=50 // pred_check_branch
          %232 = sbr.rel (%p230) target = $region55
        $region54: #{multiscale_discriminator_forward.30} parent=50 // pred_region
          _
        $region55: #{multiscale_discriminator_forward.30} parent=50 // pred_fallthru
          _
        %s233 = sand.u32 %s43, 1
        %s234 = sand.u32 %s43, 1
        %s235 = smul.addr %s234, 64
        %s236 = scalar_lea.vmem [#allocation3], %s235
        %p237 = pneg %p56
        %p238 = pneg %p53
        %s239 = smul.u32 32, %s21
        %p240 = scmp.lt.s32.totalorder %s239, 63
        %s241 = scalar_select %p240, %s239, 63
        %p242 = scmp.lt.s32.totalorder %s20, 0
        %s243 = scalar_select %p242, %s20, 0
        %s244 = sadd.s32 %s243, %s241
        %s245 = smul.addr %s244, 8
        %s246 = scalar_lea.vmem %s1, %s245
        %p247 = pneg %p84
        %p248 = pneg %p81
        %p249 = scmp.lt.s32.totalorder %s20, 0
        %s250 = scalar_select %p249, %s20, 0
        %s251 = scalar_lea.vmem %s2, %s250
        %p252 = pneg %p110
        %p253 = pneg %p107
        %p254 = pneg %p138
        %p255 = pneg %p135
        %s256 = smul.u32 4, %s19
        %p257 = scmp.lt.s32.totalorder %s256, 3
        %s258 = scalar_select %p257, %s256, 3
        %p259 = scmp.lt.s32.totalorder %s20, 0
        %s260 = scalar_select %p259, %s20, 0
        %s261 = sadd.s32 %s260, %s258
        %s262 = smul.addr %s261, 8
        %s263 = scalar_lea.vmem %s3, %s262
        %s264 = smul.u32 4, %s19
        %s265 = smul.u32 2, %s21
        %s266 = smul.u32 32, %s21
        %p267 = scmp.lt.s32.totalorder %s266, 63
        %s268 = scalar_select %p267, %s266, 63
        %p269 = scmp.lt.s32.totalorder %s20, 0
        %s270 = scalar_select %p269, %s20, 0
        %s271 = sadd.s32 %s270, %s268
        %s272 = smul.addr %s271, 8
        %s273 = scalar_lea.vmem %s1, %s272
        %s274 = smul.u32 32, %s21
        %p275 = scmp.lt.s32.totalorder %s20, 0
        %s276 = scalar_select %p275, %s20, 0
        %s277 = scalar_lea.vmem %s2, %s276
        %s278 = smul.u32 4, %s19
        %p279 = scmp.lt.s32.totalorder %s278, 3
        %s280 = scalar_select %p279, %s278, 3
        %p281 = scmp.lt.s32.totalorder %s20, 0
        %s282 = scalar_select %p281, %s20, 0
        %s283 = sadd.s32 %s282, %s280
        %s284 = smul.addr %s283, 8
        %s285 = scalar_lea.vmem %s3, %s284
        %s286 = smul.u32 4, %s19
        %p287 = scmp.eq.s32.totalorder %s21, 0
        // Predicated region
        $region56: #{multiscale_discriminator_forward.30} parent=50 // pred_check
          %p288 = pneg %p287
        $region57: #{multiscale_discriminator_forward.30} parent=50 // pred_check_branch
          %290 = sbr.rel (%p288) target = $region59
        $region58: #{multiscale_discriminator_forward.30} parent=50 // pred_region
          %291 = vst [vmem:[#allocation2] sm:$0xff] 0.0
          %292 = vst [vmem:[#allocation2 + $0x8] sm:$0xff] 0.0
          %293 = vst [vmem:[#allocation2 + $0x10] sm:$0xff] 0.0
          %294 = vst [vmem:[#allocation2 + $0x18] sm:$0xff] 0.0
        $region59: #{multiscale_discriminator_forward.30} parent=50 // pred_fallthru
          _
        %v295 = vld [vmem:[#allocation2] sm:$0xff]
        %v296 = vld [vmem:[#allocation2 + $0x8] sm:$0xff]
        %v297 = vld [vmem:[#allocation2 + $0x10] sm:$0xff]
        %v298 = vld [vmem:[#allocation2 + $0x18] sm:$0xff]
        %v299 = vld [vmem:[%s229] sm:$0xff]
        %v300 = vld [vmem:[%s229 + $0x8] sm:$0xff]
        %v301 = vld [vmem:[%s229 + $0x10] sm:$0xff]
        %v302 = vld [vmem:[%s229 + $0x18] sm:$0xff]
        %v303 = vld [vmem:[%s229 + $0x20] sm:$0xff]
        %v304 = vld [vmem:[%s229 + $0x28] sm:$0xff]
        %v305 = vld [vmem:[%s229 + $0x30] sm:$0xff]
        %v306 = vld [vmem:[%s229 + $0x38] sm:$0xff]
        %v307 = vld [vmem:[%s273] sm:$0xff]
        %v308 = vld [vmem:[%s273 + $0x8] sm:$0xff]
        %v309 = vld [vmem:[%s273 + $0x10] sm:$0xff]
        %v310 = vld [vmem:[%s273 + $0x18] sm:$0xff]
        %v311 = vld [vmem:[%s273 + $0x20] sm:$0xff]
        %v312 = vld [vmem:[%s273 + $0x28] sm:$0xff]
        %v313 = vld [vmem:[%s273 + $0x30] sm:$0xff]
        %v314 = vld [vmem:[%s273 + $0x38] sm:$0xff]
        %v315 = vld [vmem:[%s273 + $0x40] sm:$0xff]
        %v316 = vld [vmem:[%s273 + $0x48] sm:$0xff]
        %v317 = vld [vmem:[%s273 + $0x50] sm:$0xff]
        %v318 = vld [vmem:[%s273 + $0x58] sm:$0xff]
        %v319 = vld [vmem:[%s273 + $0x60] sm:$0xff]
        %v320 = vld [vmem:[%s273 + $0x68] sm:$0xff]
        %v321 = vld [vmem:[%s273 + $0x70] sm:$0xff]
        %v322 = vld [vmem:[%s273 + $0x78] sm:$0xff]
        %v323 = vld [vmem:[%s273 + $0x80] sm:$0xff]
        %v324 = vld [vmem:[%s273 + $0x88] sm:$0xff]
        %v325 = vld [vmem:[%s273 + $0x90] sm:$0xff]
        %v326 = vld [vmem:[%s273 + $0x98] sm:$0xff]
        %v327 = vld [vmem:[%s273 + $0xa0] sm:$0xff]
        %v328 = vld [vmem:[%s273 + $0xa8] sm:$0xff]
        %v329 = vld [vmem:[%s273 + $0xb0] sm:$0xff]
        %v330 = vld [vmem:[%s273 + $0xb8] sm:$0xff]
        %v331 = vld [vmem:[%s273 + $0xc0] sm:$0xff]
        %v332 = vld [vmem:[%s273 + $0xc8] sm:$0xff]
        %v333 = vld [vmem:[%s273 + $0xd0] sm:$0xff]
        %v334 = vld [vmem:[%s273 + $0xd8] sm:$0xff]
        %v335 = vld [vmem:[%s273 + $0xe0] sm:$0xff]
        %v336 = vld [vmem:[%s273 + $0xe8] sm:$0xff]
        %v337 = vld [vmem:[%s273 + $0xf0] sm:$0xff]
        %v338 = vld [vmem:[%s273 + $0xf8] sm:$0xff]
        %339 = vmatprep.subr.mxu0 0.0
        %340 = vmatpush1.msra.mxu0 %v307
        %341 = vmatprep.subr.mxu0 0.0
        %342 = vmatpush1.msra.mxu0 %v308
        %343 = vmatprep.subr.mxu0 0.0
        %344 = vmatpush1.msra.mxu0 %v309
        %345 = vmatprep.subr.mxu0 0.0
        %346 = vmatpush1.msra.mxu0 %v310
        %347 = vmatprep.subr.mxu0 0.0
        %348 = vmatpush1.msra.mxu0 %v311
        %349 = vmatprep.subr.mxu0 0.0
        %350 = vmatpush1.msra.mxu0 %v312
        %351 = vmatprep.subr.mxu0 0.0
        %352 = vmatpush1.msra.mxu0 %v313
        %353 = vmatprep.subr.mxu0 0.0
        %354 = vmatpush1.msra.mxu0 %v314
        %355 = vmatprep.subr.mxu0 0.0
        %356 = vmatpush1.msra.mxu0 %v315
        %357 = vmatprep.subr.mxu0 0.0
        %358 = vmatpush1.msra.mxu0 %v316
        %359 = vmatprep.subr.mxu0 0.0
        %360 = vmatpush1.msra.mxu0 %v317
        %361 = vmatprep.subr.mxu0 0.0
        %362 = vmatpush1.msra.mxu0 %v318
        %363 = vmatprep.subr.mxu0 0.0
        %364 = vmatpush1.msra.mxu0 %v319
        %365 = vmatprep.subr.mxu0 0.0
        %366 = vmatpush1.msra.mxu0 %v320
        %367 = vmatprep.subr.mxu0 0.0
        %368 = vmatpush1.msra.mxu0 %v321
        %369 = vmatprep.subr.mxu0 0.0
        %370 = vmatpush1.msra.mxu0 %v322
        %371 = vmatprep.subr.mxu0 0.0
        %372 = vmatpush1.msra.mxu0 %v323
        %373 = vmatprep.subr.mxu0 0.0
        %374 = vmatpush1.msra.mxu0 %v324
        %375 = vmatprep.subr.mxu0 0.0
        %376 = vmatpush1.msra.mxu0 %v325
        %377 = vmatprep.subr.mxu0 0.0
        %378 = vmatpush1.msra.mxu0 %v326
        %379 = vmatprep.subr.mxu0 0.0
        %380 = vmatpush1.msra.mxu0 %v327
        %381 = vmatprep.subr.mxu0 0.0
        %382 = vmatpush1.msra.mxu0 %v328
        %383 = vmatprep.subr.mxu0 0.0
        %384 = vmatpush1.msra.mxu0 %v329
        %385 = vmatprep.subr.mxu0 0.0
        %386 = vmatpush1.msra.mxu0 %v330
        %387 = vmatprep.subr.mxu0 0.0
        %388 = vmatpush1.msra.mxu0 %v331
        %389 = vmatprep.subr.mxu0 0.0
        %390 = vmatpush1.msra.mxu0 %v332
        %391 = vmatprep.subr.mxu0 0.0
        %392 = vmatpush1.msra.mxu0 %v333
        %393 = vmatprep.subr.mxu0 0.0
        %394 = vmatpush1.msra.mxu0 %v334
        %395 = vmatprep.subr.mxu0 0.0
        %396 = vmatpush1.msra.mxu0 %v335
        %397 = vmatprep.subr.mxu0 0.0
        %398 = vmatpush1.msra.mxu0 %v336
        %399 = vmatprep.subr.mxu0 0.0
        %400 = vmatpush1.msra.mxu0 %v337
        %401 = vmatprep.subr.mxu0 0.0
        %402 = vmatpush1.msra.mxu0 %v338
        %403 = vmatprep.mubr.f32.mxu0 %v300
        %404 = vmatmul.mubr.f32.gmra.mrb[0].mxu0 %v299
        %v405 = vpop.f32.mrb[0].mxu0
        %v406 = vadd.f32 0.0, %v405
        %v407 = vpop.f32.mrb[0].mxu0
        %408 = vmatprep.mubr.f32.mxu0 %v302
        %409 = vmatmul.mubr.f32.gmra.mrb[0].mxu0 %v301
        %v410 = vpop.f32.mrb[0].mxu0
        %v411 = vadd.f32 0.0, %v410
        %v412 = vpop.f32.mrb[0].mxu0
        %413 = vmatprep.mubr.f32.mxu0 %v304
        %414 = vmatmul.mubr.f32.gmra.mrb[0].mxu0 %v303
        %v415 = vpop.f32.mrb[0].mxu0
        %v416 = vadd.f32 0.0, %v415
        %v417 = vpop.f32.mrb[0].mxu0
        %418 = vmatprep.mubr.f32.mxu0 %v306
        %419 = vmatmul.mubr.f32.gmra.mrb[0].mxu0 %v305
        %v420 = vpop.f32.mrb[0].mxu0
        %v421 = vadd.f32 0.0, %v420
        %v422 = vpop.f32.mrb[0].mxu0
        %423 = vdwg.mxu0
        %v424 = vadd.f32 %v295, %v406
        %v425 = vadd.f32 %v296, %v411
        %v426 = vadd.f32 %v297, %v416
        %v427 = vadd.f32 %v298, %v421
        %428 = vst [vmem:[#allocation2] sm:$0xff] %v424
        %429 = vst [vmem:[#allocation2 + $0x8] sm:$0xff] %v425
        %430 = vst [vmem:[#allocation2 + $0x10] sm:$0xff] %v426
        %431 = vst [vmem:[#allocation2 + $0x18] sm:$0xff] %v427
        %p432 = scmp.eq.s32.totalorder %s21, 1
        // Predicated region
        $region60: #{multiscale_discriminator_forward.30} parent=50 // pred_check
          %p433 = pneg %p432
        $region61: #{multiscale_discriminator_forward.30} parent=50 // pred_check_branch
          %435 = sbr.rel (%p433) target = $region63
        $region62: #{multiscale_discriminator_forward.30} parent=50 // pred_region
          %v436 = vld [vmem:[#allocation2] sm:$0xff]
          %v437 = vld [vmem:[#allocation2 + $0x8] sm:$0xff]
          %v438 = vld [vmem:[#allocation2 + $0x10] sm:$0xff]
          %v439 = vld [vmem:[#allocation2 + $0x18] sm:$0xff]
          %v440 = vld [vmem:[%s277] sm:$0x1]
          %v442 = vlaneseq
          %v443 = vshrl.u32 %v442, 7
          %v444 = vsub.s32 0, %v443
          %v445 = vrot.slane %v440, %v444
          %v447 = vadd.f32 %v436, %v445
          %v448 = vadd.f32 %v437, %v445
          %v449 = vadd.f32 %v438, %v445
          %v450 = vadd.f32 %v439, %v445
          %451 = vst [vmem:[%s285] sm:$0xff] %v447
          %452 = vst [vmem:[%s285 + $0x8] sm:$0xff] %v448
          %453 = vst [vmem:[%s285 + $0x10] sm:$0xff] %v449
          %454 = vst [vmem:[%s285 + $0x18] sm:$0xff] %v450
        $region63: #{multiscale_discriminator_forward.30} parent=50 // pred_fallthru
          _
        %s455 = smul.u32 4, %s19
        %p456 = scmp.lt.s32.totalorder %s455, 3
        %s457 = scalar_select %p456, %s455, 3
        %p458 = scmp.lt.s32.totalorder %s20, 0
        %s459 = scalar_select %p458, %s20, 0
        %s460 = sadd.s32 %s459, %s457
        %s461 = smul.addr %s460, 8
        %s462 = scalar_lea.vmem %s3, %s461
        // Predicated region
        $region64: #{multiscale_discriminator_forward.30} parent=50 // pred_check
          %p463 = pneg %p135
        $region65: #{multiscale_discriminator_forward.30} parent=50 // pred_check_branch
          %465 = sbr.rel (%p463) target = $region67
        $region66: #{multiscale_discriminator_forward.30} parent=50 // pred_region
          %s466 = smul.u32 4, %s19
        $region67: #{multiscale_discriminator_forward.30} parent=50 // pred_fallthru
          _
        // Predicated region
        $region68: #{multiscale_discriminator_forward.30} parent=50 // pred_check
          %p467 = pneg %p135
        $region69: #{multiscale_discriminator_forward.30} parent=50 // pred_check_branch
          %469 = sbr.rel (%p467) target = $region71
        $region70: #{multiscale_discriminator_forward.30} parent=50 // pred_region
          %s470 = smul.u32 4, %s19
          %p471 = scmp.lt.s32.totalorder %s470, 3
          %s472 = scalar_select %p471, %s470, 3
          %p473 = scmp.lt.s32.totalorder %s20, 0
          %s474 = scalar_select %p473, %s20, 0
          %s475 = sadd.s32 %s474, %s472
          %s476 = smul.addr %s475, 8
          %s477 = scalar_lea.vmem %s3, %s476
        $region71: #{multiscale_discriminator_forward.30} parent=50 // pred_fallthru
          _
      $region51: #{multiscale_discriminator_forward.30} parent=5 // pred_fallthru
        _
      %p478 = scmp.le.s32.totalorder 2, %s9
      // Predicated region
      $region72: #{multiscale_discriminator_forward.30} parent=5 // pred_check
        %p479 = pneg %p478
      $region73: #{multiscale_discriminator_forward.30} parent=5 // pred_check_branch
        %481 = sbr.rel (%p479) target = $region75
      $region74: #{multiscale_discriminator_forward.30} parent=5 // pred_region
        %s482 = ssub.s32 %s9, 2
      $region75: #{multiscale_discriminator_forward.30} parent=5 // pred_fallthru
        _
    $region6: #{multiscale_discriminator_forward.30} parent=1 // loop_footer
      %s13 = sadd.s32 1, %s9
    $region7: #{multiscale_discriminator_forward.30} parent=1 // loop_footer_branch
      %8 = sbr.rel target = $region3
    $region8: #{multiscale_discriminator_forward.30} parent=1 // loop_exit
      _

// kernel: multiscale_discriminator_forward.32
$region0: #{multiscale_discriminator_forward.32}
  #allocation0 [shape = 'u32[]', space=smem, size = 0x4, offset = 0x4, fixed_abs, tag = 'smem constant byte address 0x4 - core index']
  #allocation1 [shape = 'u32[144,128]{1,0:T(1,128)}', space=vmem, size = 0x12000, scoped, tag = 'internal scratch']
  %s0 = inlined_call_operand.vmem [shape: f32[32,128], index: 0, kind: input, shape index: {}]
  %s1 = inlined_call_operand.vmem [shape: f32[1,128], index: 1, kind: input, shape index: {}]
  %s2 = inlined_call_operand.vmem [shape: f32[1,128], index: 2, kind: input, shape index: {}]
  %s3 = inlined_call_operand.vmem [shape: f32[1,128], index: 3, kind: input, shape index: {}]
  %s4 = inlined_call_operand.vmem [shape: f32[1,128], index: 4, kind: input, shape index: {}]
  %s5 = inlined_call_operand.vmem [shape: f32[32,128], index: 5, kind: output, shape index: {}]
  %s6 = sld [smem:[#allocation0]]
  $region30: #{multiscale_discriminator_forward.32} parent=0
    _
  %s8 = ssub.s32 1, %s6
  %s9 = scalar_select 0, %s8, %s6
  // Predicated region
  $region2: #{multiscale_discriminator_forward.32} parent=0 // pred_check
    _
  $region3: #{multiscale_discriminator_forward.32} parent=0 // pred_check_branch
    %11 = sbr.rel (0) target = $region5
  $region4: #{multiscale_discriminator_forward.32} parent=0 // pred_region
    _
  $region5: #{multiscale_discriminator_forward.32} parent=0 // pred_fallthru
    _
  // Predicated region
  $region6: #{multiscale_discriminator_forward.32} parent=0 // pred_check
    _
  $region7: #{multiscale_discriminator_forward.32} parent=0 // pred_check_branch
    %13 = sbr.rel (0) target = $region9
  $region8: #{multiscale_discriminator_forward.32} parent=0 // pred_region
    _
  $region9: #{multiscale_discriminator_forward.32} parent=0 // pred_fallthru
    _
  // Predicated region
  $region10: #{multiscale_discriminator_forward.32} parent=0 // pred_check
    _
  $region11: #{multiscale_discriminator_forward.32} parent=0 // pred_check_branch
    %15 = sbr.rel (0) target = $region13
  $region12: #{multiscale_discriminator_forward.32} parent=0 // pred_region
    _
  $region13: #{multiscale_discriminator_forward.32} parent=0 // pred_fallthru
    _
  // Predicated region
  $region14: #{multiscale_discriminator_forward.32} parent=0 // pred_check
    _
  $region15: #{multiscale_discriminator_forward.32} parent=0 // pred_check_branch
    %17 = sbr.rel (0) target = $region17
  $region16: #{multiscale_discriminator_forward.32} parent=0 // pred_region
    _
  $region17: #{multiscale_discriminator_forward.32} parent=0 // pred_fallthru
    _
  // Predicated region
  $region18: #{multiscale_discriminator_forward.32} parent=0 // pred_check
    _
  $region19: #{multiscale_discriminator_forward.32} parent=0 // pred_check_branch
    %19 = sbr.rel (0) target = $region21
  $region20: #{multiscale_discriminator_forward.32} parent=0 // pred_region
    _
  $region21: #{multiscale_discriminator_forward.32} parent=0 // pred_fallthru
    _
  %v20 = vld [vmem:[%s1] sm:$0x1]
  %v21 = vmul.f32 %v20, 0.03125
  %v22 = vld [vmem:[%s2] sm:$0x1]
  %v23 = vmul.f32 %v22, 0.03125
  %v24 = vmul.f32 %v21, %v21
  %v25 = vsub.f32 %v23, %v24
  %v26 = vmax.f32 %v25, 0.0
  %v27 = vadd.f32 %v26, 1e-05
  %v28 = vrsqrt.pop %v27
  %v29 = vld [vmem:[%s3] sm:$0x1]
  %v30 = vmul.f32 %v28, %v29
  %v31 = vld [vmem:[%s4] sm:$0x1]
  %v32 = vmul.f32 %v21, %v30
  %v33 = vsub.f32 %v31, %v32
  %v34 = vld [vmem:[%s0] sm:$0xff]
  %v35 = vld [vmem:[%s0 + $0x8] sm:$0xff]
  %v36 = vld [vmem:[%s0 + $0x10] sm:$0xff]
  %v37 = vld [vmem:[%s0 + $0x18] sm:$0xff]
  %v39 = vlaneseq
  %v40 = vshrl.u32 %v39, 7
  %v41 = vsub.s32 0, %v40
  %v42 = vrot.slane %v30, %v41
  %v44 = vmul.f32 %v34, %v42
  %v45 = vmul.f32 %v35, %v42
  %v46 = vmul.f32 %v36, %v42
  %v47 = vmul.f32 %v37, %v42
  %v49 = vlaneseq
  %v50 = vshrl.u32 %v49, 7
  %v51 = vsub.s32 0, %v50
  %v52 = vrot.slane %v33, %v51
  %v54 = vadd.f32 %v44, %v52
  %v55 = vadd.f32 %v45, %v52
  %v56 = vadd.f32 %v46, %v52
  %v57 = vadd.f32 %v47, %v52
  %vm58 = vcmp.gt.f32.partialorder %v54, 0.0
  %vm59 = vcmp.gt.f32.partialorder %v55, 0.0
  %vm60 = vcmp.gt.f32.partialorder %v56, 0.0
  %vm61 = vcmp.gt.f32.partialorder %v57, 0.0
  %v62 = vmul.f32 %v54, 0.2
  %v63 = vmul.f32 %v55, 0.2
  %v64 = vmul.f32 %v56, 0.2
  %v65 = vmul.f32 %v57, 0.2
  %v66 = vsel %vm58, %v54, %v62
  %v67 = vsel %vm59, %v55, %v63
  %v68 = vsel %vm60, %v56, %v64
  %v69 = vsel %vm61, %v57, %v65
  %70 = vst [vmem:[%s5] sm:$0xff] %v66
  %71 = vst [vmem:[%s5 + $0x8] sm:$0xff] %v67
  %72 = vst [vmem:[%s5 + $0x10] sm:$0xff] %v68
  %73 = vst [vmem:[%s5 + $0x18] sm:$0xff] %v69
  // Predicated region
  $region22: #{multiscale_discriminator_forward.32} parent=0 // pred_check
    _
  $region23: #{multiscale_discriminator_forward.32} parent=0 // pred_check_branch
    %75 = sbr.rel (0) target = $region25
  $region24: #{multiscale_discriminator_forward.32} parent=0 // pred_region
    _
  $region25: #{multiscale_discriminator_forward.32} parent=0 // pred_fallthru
    _
  // Predicated region
  $region26: #{multiscale_discriminator_forward.32} parent=0 // pred_check
    _
  $region27: #{multiscale_discriminator_forward.32} parent=0 // pred_check_branch
    %77 = sbr.rel (0) target = $region29
  $region28: #{multiscale_discriminator_forward.32} parent=0 // pred_region
    _
  $region29: #{multiscale_discriminator_forward.32} parent=0 // pred_fallthru
    _

// kernel: multiscale_discriminator_forward.33
$region0: #{multiscale_discriminator_forward.33}
  #allocation0 [shape = 'u32[]', space=smem, size = 0x4, offset = 0x4, fixed_abs, tag = 'smem constant byte address 0x4 - core index']
  #allocation1 [shape = 'u32[144,128]{1,0:T(1,128)}', space=vmem, size = 0x12000, scoped, tag = 'internal scratch']
  #allocation2 [shape = 'f32[56,128]{1,0:T(8,128)}', space=vmem, size = 0x7000, scoped, tag = 'scratch operand']
  %s0 = inlined_call_operand.vmem [shape: f32[56,1024], index: 0, kind: input, shape index: {}]
  %s1 = inlined_call_operand.vmem [shape: f32[1024,128], index: 1, kind: input, shape index: {}]
  %s2 = inlined_call_operand.vmem [shape: f32[1,128], index: 2, kind: input, shape index: {}]
  %s3 = inlined_call_operand.vmem [shape: f32[56,128], index: 3, kind: output, shape index: {}]
  %s4 = sld [smem:[#allocation0]]
  $region76: #{multiscale_discriminator_forward.33} parent=0
    _
  %s6 = ssub.s32 1, %s4
  %s7 = scalar_select 0, %s6, %s4
  $region1: #{multiscale_discriminator_forward.33} parent=0
    #allocation3 [shape = 'u8[114688]{0}', space=vmem, size = 0x1c000, scoped, tag = 'input window, operand 0']
    loop: start=0, step=1, limit=6
    $region2: #{multiscale_discriminator_forward.33} parent=1 // loop_pre_header
      _
    $region3: #{multiscale_discriminator_forward.33} parent=1 // loop_header
      %s9 = sphi 0, %s13
      %p10 = scmp.ge.s32.totalorder %s9, 6
      %s16 = sphi 0, %s35
      %s17 = sphi 0, %s31
      %s18 = sphi 0, %s27
      %s19 = sphi 0, %s16
      %s20 = sphi 0, %s17
      %s21 = sphi 0, %s18
      %s22 = sphi 0, %s19
      %s23 = sphi 0, %s20
      %s24 = sphi 0, %s21
      %s40 = sphi 0, %s42
      %s43 = sphi 0, %s40
      %s44 = sphi 0, %s43
      %s60 = sphi 0, %s44
      %s68 = sphi 0, %s70
      %s71 = sphi 0, %s68
      %s72 = sphi 0, %s71
      %s88 = sphi 0, %s72
      %s94 = sphi 0, %s96
      %s97 = sphi 0, %s94
      %s98 = sphi 0, %s97
      %s114 = sphi 0, %s98
      %s122 = sphi 0, %s124
      %s125 = sphi 0, %s122
      %s126 = sphi 0, %s125
      %s142 = sphi 0, %s126
    $region4: #{multiscale_discriminator_forward.33} parent=1 // loop_header_branch
      %12 = sbr.rel (%p10) target = $region8
    $region5: #{multiscale_discriminator_forward.33} parent=1 // loop_body
      %s14 = ssub.s32 %s9, 1
      %s15 = ssub.s32 %s9, 2
      %s25 = sadd.s32 1, %s18
      %p26 = scmp.ge.s32.totalorder %s25, 4
      %s27 = scalar_select %p26, 0, %s25
      %s28 = sadd.s32 1, %s17
      %s29 = scalar_select %p26, %s28, %s17
      %p30 = scmp.ge.s32.totalorder %s29, 1
      %s31 = scalar_select %p30, 0, %s29
      %s32 = sadd.s32 1, %s16
      %s33 = scalar_select %p30, %s32, %s16
      %p34 = scmp.ge.s32.totalorder %s33, 1
      %s35 = scalar_select %p34, 0, %s33
      %s36 = ssub.s32 %s16, %s35
      %s37 = ssub.s32 %s18, %s27
      %s38 = sor.u32 %s36, %s37
      %p39 = scmp.eq.s32.totalorder %s38, 0
      %s41 = sadd.s32 %s40, 1
      %s42 = scalar_select %p39, %s40, %s41
      %p45 = pneg %p39
      %p46 = scmp.eq.s32.totalorder %s9, 3
      %p47 = por %p45, %p46
      %p48 = scmp.ne.s32.totalorder %s40, %s43
      %p49 = scmp.eq.s32.totalorder %s9, 0
      %p50 = por %p48, %p49
      %p51 = scmp.ne.s32.totalorder %s40, %s43
      %p52 = scmp.eq.s32.totalorder %s14, 3
      %p53 = por %p51, %p52
      %p54 = scmp.ne.s32.totalorder %s43, %s44
      %p55 = scmp.eq.s32.totalorder %s14, 0
      %p56 = por %p54, %p55
      %p57 = scmp.ne.s32.totalorder %s43, %s44
      %p58 = scmp.eq.s32.totalorder %s15, 3
      %p59 = por %p57, %p58
      %p61 = scmp.ne.s32.totalorder %s44, %s60
      %p62 = scmp.eq.s32.totalorder %s15, 0
      %p63 = por %p61, %p62
      %s64 = ssub.s32 %s18, %s27
      %s65 = ssub.s32 %s17, %s31
      %s66 = sor.u32 %s64, %s65
      %p67 = scmp.eq.s32.totalorder %s66, 0
      %s69 = sadd.s32 %s68, 1
      %s70 = scalar_select %p67, %s68, %s69
      %p73 = pneg %p67
      %p74 = scmp.eq.s32.totalorder %s9, 3
      %p75 = por %p73, %p74
      %p76 = scmp.ne.s32.totalorder %s68, %s71
      %p77 = scmp.eq.s32.totalorder %s9, 0
      %p78 = por %p76, %p77
      %p79 = scmp.ne.s32.totalorder %s68, %s71
      %p80 = scmp.eq.s32.totalorder %s14, 3
      %p81 = por %p79, %p80
      %p82 = scmp.ne.s32.totalorder %s71, %s72
      %p83 = scmp.eq.s32.totalorder %s14, 0
      %p84 = por %p82, %p83
      %p85 = scmp.ne.s32.totalorder %s71, %s72
      %p86 = scmp.eq.s32.totalorder %s15, 3
      %p87 = por %p85, %p86
      %p89 = scmp.ne.s32.totalorder %s72, %s88
      %p90 = scmp.eq.s32.totalorder %s15, 0
      %p91 = por %p89, %p90
      %s92 = ssub.s32 %s17, %s31
      %p93 = scmp.eq.s32.totalorder %s92, 0
      %s95 = sadd.s32 %s94, 1
      %s96 = scalar_select %p93, %s94, %s95
      %p99 = pneg %p93
      %p100 = scmp.eq.s32.totalorder %s9, 3
      %p101 = por %p99, %p100
      %p102 = scmp.ne.s32.totalorder %s94, %s97
      %p103 = scmp.eq.s32.totalorder %s9, 0
      %p104 = por %p102, %p103
      %p105 = scmp.ne.s32.totalorder %s94, %s97
      %p106 = scmp.eq.s32.totalorder %s14, 3
      %p107 = por %p105, %p106
      %p108 = scmp.ne.s32.totalorder %s97, %s98
      %p109 = scmp.eq.s32.totalorder %s14, 0
      %p110 = por %p108, %p109
      %p111 = scmp.ne.s32.totalorder %s97, %s98
      %p112 = scmp.eq.s32.totalorder %s15, 3
      %p113 = por %p111, %p112
      %p115 = scmp.ne.s32.totalorder %s98, %s114
      %p116 = scmp.eq.s32.totalorder %s15, 0
      %p117 = por %p115, %p116
      %s118 = ssub.s32 %s16, %s35
      %s119 = ssub.s32 %s17, %s31
      %s120 = sor.u32 %s118, %s119
      %p121 = scmp.eq.s32.totalorder %s120, 0
      %s123 = sadd.s32 %s122, 1
      %s124 = scalar_select %p121, %s122, %s123
      %p127 = pneg %p121
      %p128 = scmp.eq.s32.totalorder %s9, 3
      %p129 = por %p127, %p128
      %p130 = scmp.ne.s32.totalorder %s122, %s125
      %p131 = scmp.eq.s32.totalorder %s9, 0
      %p132 = por %p130, %p131
      %p133 = scmp.ne.s32.totalorder %s122, %s125
      %p134 = scmp.eq.s32.totalorder %s14, 3
      %p135 = por %p133, %p134
      %p136 = scmp.ne.s32.totalorder %s125, %s126
      %p137 = scmp.eq.s32.totalorder %s14, 0
      %p138 = por %p136, %p137
      %p139 = scmp.ne.s32.totalorder %s125, %s126
      %p140 = scmp.eq.s32.totalorder %s15, 3
      %p141 = por %p139, %p140
      %p143 = scmp.ne.s32.totalorder %s126, %s142
      %p144 = scmp.eq.s32.totalorder %s15, 0
      %p145 = por %p143, %p144
      %p146 = scmp.le.s32.totalorder 1, %s9
      %p147 = scmp.lt.s32.totalorder %s9, 5
      %p148 = pnand %p146, %p147
      %p149 = pneg %p148
      // Predicated region
      $region9: #{multiscale_discriminator_forward.33} parent=5 // pred_check
        _
      $region10: #{multiscale_discriminator_forward.33} parent=5 // pred_check_branch
        %151 = sbr.rel (%p148) target = $region12
      $region11: #{multiscale_discriminator_forward.33} parent=5 // pred_region
        %s152 = ssub.s32 %s9, 1
        // Predicated region
        $region13: #{multiscale_discriminator_forward.33} parent=11 // pred_check
          %p153 = pneg %p110
        $region14: #{multiscale_discriminator_forward.33} parent=11 // pred_check_branch
          %155 = sbr.rel (%p153) target = $region16
        $region15: #{multiscale_discriminator_forward.33} parent=11 // pred_region
          %p156 = scmp.lt.s32.totalorder %s20, 0
          %s157 = scalar_select %p156, %s20, 0
          %s158 = scalar_lea.vmem %s2, %s157
        $region16: #{multiscale_discriminator_forward.33} parent=11 // pred_fallthru
          _
      $region12: #{multiscale_discriminator_forward.33} parent=5 // pred_fallthru
        _
      %p159 = scmp.lt.s32.totalorder %s9, 4
      // Predicated region
      $region17: #{multiscale_discriminator_forward.33} parent=5 // pred_check
        %p160 = pneg %p159
      $region18: #{multiscale_discriminator_forward.33} parent=5 // pred_check_branch
        %162 = sbr.rel (%p160) target = $region20
      $region19: #{multiscale_discriminator_forward.33} parent=5 // pred_region
        // Predicated region
        $region21: #{multiscale_discriminator_forward.33} parent=19 // pred_check
          %p163 = pneg %p50
        $region22: #{multiscale_discriminator_forward.33} parent=19 // pred_check_branch
          %165 = sbr.rel (%p163) target = $region24
        $region23: #{multiscale_discriminator_forward.33} parent=19 // pred_region
          %s166 = sand.u32 %s40, 1
          %s167 = sand.u32 %s40, 1
          %s168 = smul.addr %s167, 112
          %s169 = scalar_lea.vmem [#allocation3], %s168
          %s170 = smul.u32 7, %s16
          %s171 = smul.u32 2, %s18
          %s172 = smul.addr %s170, 8
          %s173 = sadd.s32 %s171, %s172
          %s174 = smul.addr %s173, 8
          %s175 = scalar_lea.vmem %s0, %s174
          // Predicated region
          $region25: #{multiscale_discriminator_forward.33} parent=23 // pred_check
            _
          $region26: #{multiscale_discriminator_forward.33} parent=23 // pred_check_branch
            %177 = sbr.rel (0) target = $region28
          $region27: #{multiscale_discriminator_forward.33} parent=23 // pred_region
            // Predicated region
            $region29: #{multiscale_discriminator_forward.33} parent=27 // pred_check
              _
            $region30: #{multiscale_discriminator_forward.33} parent=27 // pred_check_branch
              %179 = sbr.rel (0) target = $region32
            $region31: #{multiscale_discriminator_forward.33} parent=27 // pred_region
              loop: start=0, step=1, limit=1
              $region33: #{multiscale_discriminator_forward.33} parent=31 // loop_pre_header
                _
              $region34: #{multiscale_discriminator_forward.33} parent=31 // loop_header
                %s181 = sphi 0, %s185
                %p182 = scmp.ge.s32.totalorder %s181, 1
                %s186 = sphi %s175, %s175
                %s187 = sphi %s169, %s169
              $region35: #{multiscale_discriminator_forward.33} parent=31 // loop_header_branch
                %184 = sbr.rel (%p182) target = $region39
              $region36: #{multiscale_discriminator_forward.33} parent=31 // loop_body
                %v188 = vld [vmem:[%s186] sm:$0xff]
                %189 = vst [vmem:[%s187] sm:$0xff] %v188
                %v190 = vld [vmem:[%s186 + $0x8] sm:$0xff]
                %191 = vst [vmem:[%s187 + $0x8] sm:$0xff] %v190
                %v192 = vld [vmem:[%s186 + $0x40] sm:$0xff]
                %193 = vst [vmem:[%s187 + $0x10] sm:$0xff] %v192
                %v194 = vld [vmem:[%s186 + $0x48] sm:$0xff]
                %195 = vst [vmem:[%s187 + $0x18] sm:$0xff] %v194
                %v196 = vld [vmem:[%s186 + $0x80] sm:$0xff]
                %197 = vst [vmem:[%s187 + $0x20] sm:$0xff] %v196
                %v198 = vld [vmem:[%s186 + $0x88] sm:$0xff]
                %199 = vst [vmem:[%s187 + $0x28] sm:$0xff] %v198
                %v200 = vld [vmem:[%s186 + $0xc0] sm:$0xff]
                %201 = vst [vmem:[%s187 + $0x30] sm:$0xff] %v200
                %v202 = vld [vmem:[%s186 + $0xc8] sm:$0xff]
                %203 = vst [vmem:[%s187 + $0x38] sm:$0xff] %v202
                %v204 = vld [vmem:[%s186 + $0x100] sm:$0xff]
                %205 = vst [vmem:[%s187 + $0x40] sm:$0xff] %v204
                %v206 = vld [vmem:[%s186 + $0x108] sm:$0xff]
                %207 = vst [vmem:[%s187 + $0x48] sm:$0xff] %v206
                %v208 = vld [vmem:[%s186 + $0x140] sm:$0xff]
                %209 = vst [vmem:[%s187 + $0x50] sm:$0xff] %v208
                %v210 = vld [vmem:[%s186 + $0x148] sm:$0xff]
                %211 = vst [vmem:[%s187 + $0x58] sm:$0xff] %v210
                %v212 = vld [vmem:[%s186 + $0x180] sm:$0xff]
                %213 = vst [vmem:[%s187 + $0x60] sm:$0xff] %v212
                %v214 = vld [vmem:[%s186 + $0x188] sm:$0xff]
                %215 = vst [vmem:[%s187 + $0x68] sm:$0xff] %v214
              $region37: #{multiscale_discriminator_forward.33} parent=31 // loop_footer
                %s185 = sadd.s32 1, %s181
              $region38: #{multiscale_discriminator_forward.33} parent=31 // loop_footer_branch
                %180 = sbr.rel target = $region34
              $region39: #{multiscale_discriminator_forward.33} parent=31 // loop_exit
                _
            $region32: #{multiscale_discriminator_forward.33} parent=27 // pred_fallthru
              _
            // Predicated region
            $region40: #{multiscale_discriminator_forward.33} parent=27 // pred_check
              _
            $region41: #{multiscale_discriminator_forward.33} parent=27 // pred_check_branch
              %217 = sbr.rel target = $region43
            $region42: #{multiscale_discriminator_forward.33} parent=27 // pred_region
              _
            $region43: #{multiscale_discriminator_forward.33} parent=27 // pred_fallthru
              _
          $region28: #{multiscale_discriminator_forward.33} parent=23 // pred_fallthru
            _
          %218 = vnop
        $region24: #{multiscale_discriminator_forward.33} parent=19 // pred_fallthru
          _
        // Predicated region
        $region44: #{multiscale_discriminator_forward.33} parent=19 // pred_check
          %p219 = pneg %p78
        $region45: #{multiscale_discriminator_forward.33} parent=19 // pred_check_branch
          %221 = sbr.rel (%p219) target = $region47
        $region46: #{multiscale_discriminator_forward.33} parent=19 // pred_region
          %s222 = smul.u32 32, %s18
          %p223 = scmp.lt.s32.totalorder %s222, 127
          %s224 = scalar_select %p223, %s222, 127
          %p225 = scmp.lt.s32.totalorder %s17, 0
          %s226 = scalar_select %p225, %s17, 0
          %s227 = sadd.s32 %s226, %s224
          %s228 = smul.addr %s227, 8
          %s229 = scalar_lea.vmem %s1, %s228
          %s230 = smul.u32 32, %s18
        $region47: #{multiscale_discriminator_forward.33} parent=19 // pred_fallthru
          _
      $region20: #{multiscale_discriminator_forward.33} parent=5 // pred_fallthru
        _
      %p231 = scmp.le.s32.totalorder 1, %s9
      %p232 = scmp.lt.s32.totalorder %s9, 5
      %p233 = pnand %p231, %p232
      %p234 = pneg %p233
      // Predicated region
      $region48: #{multiscale_discriminator_forward.33} parent=5 // pred_check
        _
      $region49: #{multiscale_discriminator_forward.33} parent=5 // pred_check_branch
        %236 = sbr.rel (%p233) target = $region51
      $region50: #{multiscale_discriminator_forward.33} parent=5 // pred_region
        %s237 = ssub.s32 %s9, 1
        %s238 = sand.u32 %s43, 1
        %s239 = sand.u32 %s43, 1
        %s240 = smul.addr %s239, 112
        %s241 = scalar_lea.vmem [#allocation3], %s240
        // Predicated region
        $region52: #{multiscale_discriminator_forward.33} parent=50 // pred_check
          %p242 = pneg %p56
        $region53: #{multiscale_discriminator_forward.33} parent=50 // pred_check_branch
          %244 = sbr.rel (%p242) target = $region55
        $region54: #{multiscale_discriminator_forward.33} parent=50 // pred_region
          _
        $region55: #{multiscale_discriminator_forward.33} parent=50 // pred_fallthru
          _
        %s245 = sand.u32 %s43, 1
        %s246 = sand.u32 %s43, 1
        %s247 = smul.addr %s246, 112
        %s248 = scalar_lea.vmem [#allocation3], %s247
        %p249 = pneg %p56
        %p250 = pneg %p53
        %s251 = smul.u32 32, %s21
        %p252 = scmp.lt.s32.totalorder %s251, 127
        %s253 = scalar_select %p252, %s251, 127
        %p254 = scmp.lt.s32.totalorder %s20, 0
        %s255 = scalar_select %p254, %s20, 0
        %s256 = sadd.s32 %s255, %s253
        %s257 = smul.addr %s256, 8
        %s258 = scalar_lea.vmem %s1, %s257
        %p259 = pneg %p84
        %p260 = pneg %p81
        %p261 = scmp.lt.s32.totalorder %s20, 0
        %s262 = scalar_select %p261, %s20, 0
        %s263 = scalar_lea.vmem %s2, %s262
        %p264 = pneg %p110
        %p265 = pneg %p107
        %p266 = pneg %p138
        %p267 = pneg %p135
        %s268 = smul.u32 7, %s19
        %p269 = scmp.lt.s32.totalorder %s268, 6
        %s270 = scalar_select %p269, %s268, 6
        %p271 = scmp.lt.s32.totalorder %s20, 0
        %s272 = scalar_select %p271, %s20, 0
        %s273 = sadd.s32 %s272, %s270
        %s274 = smul.addr %s273, 8
        %s275 = scalar_lea.vmem %s3, %s274
        %s276 = smul.u32 7, %s19
        %s277 = smul.u32 2, %s21
        %s278 = smul.u32 32, %s21
        %p279 = scmp.lt.s32.totalorder %s278, 127
        %s280 = scalar_select %p279, %s278, 127
        %p281 = scmp.lt.s32.totalorder %s20, 0
        %s282 = scalar_select %p281, %s20, 0
        %s283 = sadd.s32 %s282, %s280
        %s284 = smul.addr %s283, 8
        %s285 = scalar_lea.vmem %s1, %s284
        %s286 = smul.u32 32, %s21
        %p287 = scmp.lt.s32.totalorder %s20, 0
        %s288 = scalar_select %p287, %s20, 0
        %s289 = scalar_lea.vmem %s2, %s288
        %s290 = smul.u32 7, %s19
        %p291 = scmp.lt.s32.totalorder %s290, 6
        %s292 = scalar_select %p291, %s290, 6
        %p293 = scmp.lt.s32.totalorder %s20, 0
        %s294 = scalar_select %p293, %s20, 0
        %s295 = sadd.s32 %s294, %s292
        %s296 = smul.addr %s295, 8
        %s297 = scalar_lea.vmem %s3, %s296
        %s298 = smul.u32 7, %s19
        %p299 = scmp.eq.s32.totalorder %s21, 0
        // Predicated region
        $region56: #{multiscale_discriminator_forward.33} parent=50 // pred_check
          %p300 = pneg %p299
        $region57: #{multiscale_discriminator_forward.33} parent=50 // pred_check_branch
          %302 = sbr.rel (%p300) target = $region59
        $region58: #{multiscale_discriminator_forward.33} parent=50 // pred_region
          %303 = vst [vmem:[#allocation2] sm:$0xff] 0.0
          %304 = vst [vmem:[#allocation2 + $0x8] sm:$0xff] 0.0
          %305 = vst [vmem:[#allocation2 + $0x10] sm:$0xff] 0.0
          %306 = vst [vmem:[#allocation2 + $0x18] sm:$0xff] 0.0
          %307 = vst [vmem:[#allocation2 + $0x20] sm:$0xff] 0.0
          %308 = vst [vmem:[#allocation2 + $0x28] sm:$0xff] 0.0
          %309 = vst [vmem:[#allocation2 + $0x30] sm:$0xff] 0.0
        $region59: #{multiscale_discriminator_forward.33} parent=50 // pred_fallthru
          _
        %v310 = vld [vmem:[#allocation2] sm:$0xff]
        %v311 = vld [vmem:[#allocation2 + $0x8] sm:$0xff]
        %v312 = vld [vmem:[#allocation2 + $0x10] sm:$0xff]
        %v313 = vld [vmem:[#allocation2 + $0x18] sm:$0xff]
        %v314 = vld [vmem:[#allocation2 + $0x20] sm:$0xff]
        %v315 = vld [vmem:[#allocation2 + $0x28] sm:$0xff]
        %v316 = vld [vmem:[#allocation2 + $0x30] sm:$0xff]
        %v317 = vld [vmem:[%s241] sm:$0xff]
        %v318 = vld [vmem:[%s241 + $0x8] sm:$0xff]
        %v319 = vld [vmem:[%s241 + $0x10] sm:$0xff]
        %v320 = vld [vmem:[%s241 + $0x18] sm:$0xff]
        %v321 = vld [vmem:[%s241 + $0x20] sm:$0xff]
        %v322 = vld [vmem:[%s241 + $0x28] sm:$0xff]
        %v323 = vld [vmem:[%s241 + $0x30] sm:$0xff]
        %v324 = vld [vmem:[%s241 + $0x38] sm:$0xff]
        %v325 = vld [vmem:[%s241 + $0x40] sm:$0xff]
        %v326 = vld [vmem:[%s241 + $0x48] sm:$0xff]
        %v327 = vld [vmem:[%s241 + $0x50] sm:$0xff]
        %v328 = vld [vmem:[%s241 + $0x58] sm:$0xff]
        %v329 = vld [vmem:[%s241 + $0x60] sm:$0xff]
        %v330 = vld [vmem:[%s241 + $0x68] sm:$0xff]
        %v331 = vld [vmem:[%s285] sm:$0xff]
        %v332 = vld [vmem:[%s285 + $0x8] sm:$0xff]
        %v333 = vld [vmem:[%s285 + $0x10] sm:$0xff]
        %v334 = vld [vmem:[%s285 + $0x18] sm:$0xff]
        %v335 = vld [vmem:[%s285 + $0x20] sm:$0xff]
        %v336 = vld [vmem:[%s285 + $0x28] sm:$0xff]
        %v337 = vld [vmem:[%s285 + $0x30] sm:$0xff]
        %v338 = vld [vmem:[%s285 + $0x38] sm:$0xff]
        %v339 = vld [vmem:[%s285 + $0x40] sm:$0xff]
        %v340 = vld [vmem:[%s285 + $0x48] sm:$0xff]
        %v341 = vld [vmem:[%s285 + $0x50] sm:$0xff]
        %v342 = vld [vmem:[%s285 + $0x58] sm:$0xff]
        %v343 = vld [vmem:[%s285 + $0x60] sm:$0xff]
        %v344 = vld [vmem:[%s285 + $0x68] sm:$0xff]
        %v345 = vld [vmem:[%s285 + $0x70] sm:$0xff]
        %v346 = vld [vmem:[%s285 + $0x78] sm:$0xff]
        %v347 = vld [vmem:[%s285 + $0x80] sm:$0xff]
        %v348 = vld [vmem:[%s285 + $0x88] sm:$0xff]
        %v349 = vld [vmem:[%s285 + $0x90] sm:$0xff]
        %v350 = vld [vmem:[%s285 + $0x98] sm:$0xff]
        %v351 = vld [vmem:[%s285 + $0xa0] sm:$0xff]
        %v352 = vld [vmem:[%s285 + $0xa8] sm:$0xff]
        %v353 = vld [vmem:[%s285 + $0xb0] sm:$0xff]
        %v354 = vld [vmem:[%s285 + $0xb8] sm:$0xff]
        %v355 = vld [vmem:[%s285 + $0xc0] sm:$0xff]
        %v356 = vld [vmem:[%s285 + $0xc8] sm:$0xff]
        %v357 = vld [vmem:[%s285 + $0xd0] sm:$0xff]
        %v358 = vld [vmem:[%s285 + $0xd8] sm:$0xff]
        %v359 = vld [vmem:[%s285 + $0xe0] sm:$0xff]
        %v360 = vld [vmem:[%s285 + $0xe8] sm:$0xff]
        %v361 = vld [vmem:[%s285 + $0xf0] sm:$0xff]
        %v362 = vld [vmem:[%s285 + $0xf8] sm:$0xff]
        %363 = vmatprep.subr.mxu0 0.0
        %364 = vmatpush1.msra.mxu0 %v331
        %365 = vmatprep.subr.mxu0 0.0
        %366 = vmatpush1.msra.mxu0 %v332
        %367 = vmatprep.subr.mxu0 0.0
        %368 = vmatpush1.msra.mxu0 %v333
        %369 = vmatprep.subr.mxu0 0.0
        %370 = vmatpush1.msra.mxu0 %v334
        %371 = vmatprep.subr.mxu0 0.0
        %372 = vmatpush1.msra.mxu0 %v335
        %373 = vmatprep.subr.mxu0 0.0
        %374 = vmatpush1.msra.mxu0 %v336
        %375 = vmatprep.subr.mxu0 0.0
        %376 = vmatpush1.msra.mxu0 %v337
        %377 = vmatprep.subr.mxu0 0.0
        %378 = vmatpush1.msra.mxu0 %v338
        %379 = vmatprep.subr.mxu0 0.0
        %380 = vmatpush1.msra.mxu0 %v339
        %381 = vmatprep.subr.mxu0 0.0
        %382 = vmatpush1.msra.mxu0 %v340
        %383 = vmatprep.subr.mxu0 0.0
        %384 = vmatpush1.msra.mxu0 %v341
        %385 = vmatprep.subr.mxu0 0.0
        %386 = vmatpush1.msra.mxu0 %v342
        %387 = vmatprep.subr.mxu0 0.0
        %388 = vmatpush1.msra.mxu0 %v343
        %389 = vmatprep.subr.mxu0 0.0
        %390 = vmatpush1.msra.mxu0 %v344
        %391 = vmatprep.subr.mxu0 0.0
        %392 = vmatpush1.msra.mxu0 %v345
        %393 = vmatprep.subr.mxu0 0.0
        %394 = vmatpush1.msra.mxu0 %v346
        %395 = vmatprep.subr.mxu0 0.0
        %396 = vmatpush1.msra.mxu0 %v347
        %397 = vmatprep.subr.mxu0 0.0
        %398 = vmatpush1.msra.mxu0 %v348
        %399 = vmatprep.subr.mxu0 0.0
        %400 = vmatpush1.msra.mxu0 %v349
        %401 = vmatprep.subr.mxu0 0.0
        %402 = vmatpush1.msra.mxu0 %v350
        %403 = vmatprep.subr.mxu0 0.0
        %404 = vmatpush1.msra.mxu0 %v351
        %405 = vmatprep.subr.mxu0 0.0
        %406 = vmatpush1.msra.mxu0 %v352
        %407 = vmatprep.subr.mxu0 0.0
        %408 = vmatpush1.msra.mxu0 %v353
        %409 = vmatprep.subr.mxu0 0.0
        %410 = vmatpush1.msra.mxu0 %v354
        %411 = vmatprep.subr.mxu0 0.0
        %412 = vmatpush1.msra.mxu0 %v355
        %413 = vmatprep.subr.mxu0 0.0
        %414 = vmatpush1.msra.mxu0 %v356
        %415 = vmatprep.subr.mxu0 0.0
        %416 = vmatpush1.msra.mxu0 %v357
        %417 = vmatprep.subr.mxu0 0.0
        %418 = vmatpush1.msra.mxu0 %v358
        %419 = vmatprep.subr.mxu0 0.0
        %420 = vmatpush1.msra.mxu0 %v359
        %421 = vmatprep.subr.mxu0 0.0
        %422 = vmatpush1.msra.mxu0 %v360
        %423 = vmatprep.subr.mxu0 0.0
        %424 = vmatpush1.msra.mxu0 %v361
        %425 = vmatprep.subr.mxu0 0.0
        %426 = vmatpush1.msra.mxu0 %v362
        %427 = vmatprep.mubr.f32.mxu0 %v318
        %428 = vmatmul.mubr.f32.gmra.mrb[0].mxu0 %v317
        %v429 = vpop.f32.mrb[0].mxu0
        %v430 = vadd.f32 0.0, %v429
        %v431 = vpop.f32.mrb[0].mxu0
        %432 = vmatprep.mubr.f32.mxu0 %v320
        %433 = vmatmul.mubr.f32.gmra.mrb[0].mxu0 %v319
        %v434 = vpop.f32.mrb[0].mxu0
        %v435 = vadd.f32 0.0, %v434
        %v436 = vpop.f32.mrb[0].mxu0
        %437 = vmatprep.mubr.f32.mxu0 %v322
        %438 = vmatmul.mubr.f32.gmra.mrb[0].mxu0 %v321
        %v439 = vpop.f32.mrb[0].mxu0
        %v440 = vadd.f32 0.0, %v439
        %v441 = vpop.f32.mrb[0].mxu0
        %442 = vmatprep.mubr.f32.mxu0 %v324
        %443 = vmatmul.mubr.f32.gmra.mrb[0].mxu0 %v323
        %v444 = vpop.f32.mrb[0].mxu0
        %v445 = vadd.f32 0.0, %v444
        %v446 = vpop.f32.mrb[0].mxu0
        %447 = vmatprep.mubr.f32.mxu0 %v326
        %448 = vmatmul.mubr.f32.gmra.mrb[0].mxu0 %v325
        %v449 = vpop.f32.mrb[0].mxu0
        %v450 = vadd.f32 0.0, %v449
        %v451 = vpop.f32.mrb[0].mxu0
        %452 = vmatprep.mubr.f32.mxu0 %v328
        %453 = vmatmul.mubr.f32.gmra.mrb[0].mxu0 %v327
        %v454 = vpop.f32.mrb[0].mxu0
        %v455 = vadd.f32 0.0, %v454
        %v456 = vpop.f32.mrb[0].mxu0
        %457 = vmatprep.mubr.f32.mxu0 %v330
        %458 = vmatmul.mubr.f32.gmra.mrb[0].mxu0 %v329
        %v459 = vpop.f32.mrb[0].mxu0
        %v460 = vadd.f32 0.0, %v459
        %v461 = vpop.f32.mrb[0].mxu0
        %462 = vdwg.mxu0
        %v463 = vadd.f32 %v310, %v430
        %v464 = vadd.f32 %v311, %v435
        %v465 = vadd.f32 %v312, %v440
        %v466 = vadd.f32 %v313, %v445
        %v467 = vadd.f32 %v314, %v450
        %v468 = vadd.f32 %v315, %v455
        %v469 = vadd.f32 %v316, %v460
        %470 = vst [vmem:[#allocation2] sm:$0xff] %v463
        %471 = vst [vmem:[#allocation2 + $0x8] sm:$0xff] %v464
        %472 = vst [vmem:[#allocation2 + $0x10] sm:$0xff] %v465
        %473 = vst [vmem:[#allocation2 + $0x18] sm:$0xff] %v466
        %474 = vst [vmem:[#allocation2 + $0x20] sm:$0xff] %v467
        %475 = vst [vmem:[#allocation2 + $0x28] sm:$0xff] %v468
        %476 = vst [vmem:[#allocation2 + $0x30] sm:$0xff] %v469
        %p477 = scmp.eq.s32.totalorder %s21, 3
        // Predicated region
        $region60: #{multiscale_discriminator_forward.33} parent=50 // pred_check
          %p478 = pneg %p477
        $region61: #{multiscale_discriminator_forward.33} parent=50 // pred_check_branch
          %480 = sbr.rel (%p478) target = $region63
        $region62: #{multiscale_discriminator_forward.33} parent=50 // pred_region
          %v481 = vld [vmem:[#allocation2] sm:$0xff]
          %v482 = vld [vmem:[#allocation2 + $0x8] sm:$0xff]
          %v483 = vld [vmem:[#allocation2 + $0x10] sm:$0xff]
          %v484 = vld [vmem:[#allocation2 + $0x18] sm:$0xff]
          %v485 = vld [vmem:[#allocation2 + $0x20] sm:$0xff]
          %v486 = vld [vmem:[#allocation2 + $0x28] sm:$0xff]
          %v487 = vld [vmem:[#allocation2 + $0x30] sm:$0xff]
          %v488 = vld [vmem:[%s289] sm:$0x1]
          %v490 = vlaneseq
          %v491 = vshrl.u32 %v490, 7
          %v492 = vsub.s32 0, %v491
          %v493 = vrot.slane %v488, %v492
          %v495 = vadd.f32 %v481, %v493
          %v496 = vadd.f32 %v482, %v493
          %v497 = vadd.f32 %v483, %v493
          %v498 = vadd.f32 %v484, %v493
          %v499 = vadd.f32 %v485, %v493
          %v500 = vadd.f32 %v486, %v493
          %v501 = vadd.f32 %v487, %v493
          %502 = vst [vmem:[%s297] sm:$0xff] %v495
          %503 = vst [vmem:[%s297 + $0x8] sm:$0xff] %v496
          %504 = vst [vmem:[%s297 + $0x10] sm:$0xff] %v497
          %505 = vst [vmem:[%s297 + $0x18] sm:$0xff] %v498
          %506 = vst [vmem:[%s297 + $0x20] sm:$0xff] %v499
          %507 = vst [vmem:[%s297 + $0x28] sm:$0xff] %v500
          %508 = vst [vmem:[%s297 + $0x30] sm:$0xff] %v501
        $region63: #{multiscale_discriminator_forward.33} parent=50 // pred_fallthru
          _
        %s509 = smul.u32 7, %s19
        %p510 = scmp.lt.s32.totalorder %s509, 6
        %s511 = scalar_select %p510, %s509, 6
        %p512 = scmp.lt.s32.totalorder %s20, 0
        %s513 = scalar_select %p512, %s20, 0
        %s514 = sadd.s32 %s513, %s511
        %s515 = smul.addr %s514, 8
        %s516 = scalar_lea.vmem %s3, %s515
        // Predicated region
        $region64: #{multiscale_discriminator_forward.33} parent=50 // pred_check
          %p517 = pneg %p135
        $region65: #{multiscale_discriminator_forward.33} parent=50 // pred_check_branch
          %519 = sbr.rel (%p517) target = $region67
        $region66: #{multiscale_discriminator_forward.33} parent=50 // pred_region
          %s520 = smul.u32 7, %s19
        $region67: #{multiscale_discriminator_forward.33} parent=50 // pred_fallthru
          _
        // Predicated region
        $region68: #{multiscale_discriminator_forward.33} parent=50 // pred_check
          %p521 = pneg %p135
        $region69: #{multiscale_discriminator_forward.33} parent=50 // pred_check_branch
          %523 = sbr.rel (%p521) target = $region71
        $region70: #{multiscale_discriminator_forward.33} parent=50 // pred_region
          %s524 = smul.u32 7, %s19
          %p525 = scmp.lt.s32.totalorder %s524, 6
          %s526 = scalar_select %p525, %s524, 6
          %p527 = scmp.lt.s32.totalorder %s20, 0
          %s528 = scalar_select %p527, %s20, 0
          %s529 = sadd.s32 %s528, %s526
          %s530 = smul.addr %s529, 8
          %s531 = scalar_lea.vmem %s3, %s530
        $region71: #{multiscale_discriminator_forward.33} parent=50 // pred_fallthru
          _
      $region51: #{multiscale_discriminator_forward.33} parent=5 // pred_fallthru
        _
      %p532 = scmp.le.s32.totalorder 2, %s9
      // Predicated region
      $region72: #{multiscale_discriminator_forward.33} parent=5 // pred_check
        %p533 = pneg %p532
      $region73: #{multiscale_discriminator_forward.33} parent=5 // pred_check_branch
        %535 = sbr.rel (%p533) target = $region75
      $region74: #{multiscale_discriminator_forward.33} parent=5 // pred_region
        %s536 = ssub.s32 %s9, 2
      $region75: #{multiscale_discriminator_forward.33} parent=5 // pred_fallthru
        _
    $region6: #{multiscale_discriminator_forward.33} parent=1 // loop_footer
      %s13 = sadd.s32 1, %s9
    $region7: #{multiscale_discriminator_forward.33} parent=1 // loop_footer_branch
      %8 = sbr.rel target = $region3
    $region8: #{multiscale_discriminator_forward.33} parent=1 // loop_exit
      _

// kernel: multiscale_discriminator_forward.34
$region0: #{multiscale_discriminator_forward.34}
  #allocation0 [shape = 'u32[]', space=smem, size = 0x4, offset = 0x4, fixed_abs, tag = 'smem constant byte address 0x4 - core index']
  #allocation1 [shape = 'u32[144,128]{1,0:T(1,128)}', space=vmem, size = 0x12000, scoped, tag = 'internal scratch']
  %s0 = inlined_call_operand.vmem [shape: f32[8,256], index: 0, kind: input, shape index: {}]
  %s1 = inlined_call_operand.vmem [shape: f32[8,256], index: 1, kind: input, shape index: {}]
  %s2 = inlined_call_operand.vmem [shape: f32[8,256], index: 2, kind: input, shape index: {}]
  %s3 = inlined_call_operand.vmem [shape: f32[8,256], index: 3, kind: input, shape index: {}]
  %s4 = inlined_call_operand.vmem [shape: f32[8,256], index: 4, kind: input, shape index: {}]
  %s5 = inlined_call_operand.vmem [shape: f32[8,256], index: 5, kind: input, shape index: {}]
  %s6 = inlined_call_operand.vmem [shape: f32[8,256], index: 6, kind: input, shape index: {}]
  %s7 = inlined_call_operand.vmem [shape: f32[8,256], index: 7, kind: input, shape index: {}]
  %s8 = inlined_call_operand.vmem [shape: f32[8,256], index: 8, kind: input, shape index: {}]
  %s9 = inlined_call_operand.vmem [shape: f32[1,256], index: 9, kind: input, shape index: {}]
  %s10 = inlined_call_operand.vmem [shape: f32[8,256], index: 10, kind: output, shape index: {}]
  %s11 = sld [smem:[#allocation0]]
  $region50: #{multiscale_discriminator_forward.34} parent=0
    _
  %s13 = ssub.s32 1, %s11
  %s14 = scalar_select 0, %s13, %s11
  // Predicated region
  $region2: #{multiscale_discriminator_forward.34} parent=0 // pred_check
    _
  $region3: #{multiscale_discriminator_forward.34} parent=0 // pred_check_branch
    %16 = sbr.rel (0) target = $region5
  $region4: #{multiscale_discriminator_forward.34} parent=0 // pred_region
    _
  $region5: #{multiscale_discriminator_forward.34} parent=0 // pred_fallthru
    _
  // Predicated region
  $region6: #{multiscale_discriminator_forward.34} parent=0 // pred_check
    _
  $region7: #{multiscale_discriminator_forward.34} parent=0 // pred_check_branch
    %18 = sbr.rel (0) target = $region9
  $region8: #{multiscale_discriminator_forward.34} parent=0 // pred_region
    _
  $region9: #{multiscale_discriminator_forward.34} parent=0 // pred_fallthru
    _
  // Predicated region
  $region10: #{multiscale_discriminator_forward.34} parent=0 // pred_check
    _
  $region11: #{multiscale_discriminator_forward.34} parent=0 // pred_check_branch
    %20 = sbr.rel (0) target = $region13
  $region12: #{multiscale_discriminator_forward.34} parent=0 // pred_region
    _
  $region13: #{multiscale_discriminator_forward.34} parent=0 // pred_fallthru
    _
  // Predicated region
  $region14: #{multiscale_discriminator_forward.34} parent=0 // pred_check
    _
  $region15: #{multiscale_discriminator_forward.34} parent=0 // pred_check_branch
    %22 = sbr.rel (0) target = $region17
  $region16: #{multiscale_discriminator_forward.34} parent=0 // pred_region
    _
  $region17: #{multiscale_discriminator_forward.34} parent=0 // pred_fallthru
    _
  // Predicated region
  $region18: #{multiscale_discriminator_forward.34} parent=0 // pred_check
    _
  $region19: #{multiscale_discriminator_forward.34} parent=0 // pred_check_branch
    %24 = sbr.rel (0) target = $region21
  $region20: #{multiscale_discriminator_forward.34} parent=0 // pred_region
    _
  $region21: #{multiscale_discriminator_forward.34} parent=0 // pred_fallthru
    _
  // Predicated region
  $region22: #{multiscale_discriminator_forward.34} parent=0 // pred_check
    _
  $region23: #{multiscale_discriminator_forward.34} parent=0 // pred_check_branch
    %26 = sbr.rel (0) target = $region25
  $region24: #{multiscale_discriminator_forward.34} parent=0 // pred_region
    _
  $region25: #{multiscale_discriminator_forward.34} parent=0 // pred_fallthru
    _
  // Predicated region
  $region26: #{multiscale_discriminator_forward.34} parent=0 // pred_check
    _
  $region27: #{multiscale_discriminator_forward.34} parent=0 // pred_check_branch
    %28 = sbr.rel (0) target = $region29
  $region28: #{multiscale_discriminator_forward.34} parent=0 // pred_region
    _
  $region29: #{multiscale_discriminator_forward.34} parent=0 // pred_fallthru
    _
  // Predicated region
  $region30: #{multiscale_discriminator_forward.34} parent=0 // pred_check
    _
  $region31: #{multiscale_discriminator_forward.34} parent=0 // pred_check_branch
    %30 = sbr.rel (0) target = $region33
  $region32: #{multiscale_discriminator_forward.34} parent=0 // pred_region
    _
  $region33: #{multiscale_discriminator_forward.34} parent=0 // pred_fallthru
    _
  // Predicated region
  $region34: #{multiscale_discriminator_forward.34} parent=0 // pred_check
    _
  $region35: #{multiscale_discriminator_forward.34} parent=0 // pred_check_branch
    %32 = sbr.rel (0) target = $region37
  $region36: #{multiscale_discriminator_forward.34} parent=0 // pred_region
    _
  $region37: #{multiscale_discriminator_forward.34} parent=0 // pred_fallthru
    _
  // Predicated region
  $region38: #{multiscale_discriminator_forward.34} parent=0 // pred_check
    _
  $region39: #{multiscale_discriminator_forward.34} parent=0 // pred_check_branch
    %34 = sbr.rel (0) target = $region41
  $region40: #{multiscale_discriminator_forward.34} parent=0 // pred_region
    _
  $region41: #{multiscale_discriminator_forward.34} parent=0 // pred_fallthru
    _
  %v35 = vld [vmem:[%s0] sm:$0xff]
  %v36 = vld [vmem:[%s0 + $0x8] sm:$0xff]
  %v37 = vld [vmem:[%s1] sm:$0xff]
  %v38 = vld [vmem:[%s1 + $0x8] sm:$0xff]
  %v39 = vadd.f32 %v35, %v37
  %v40 = vadd.f32 %v36, %v38
  %v41 = vld [vmem:[%s2] sm:$0xff]
  %v42 = vld [vmem:[%s2 + $0x8] sm:$0xff]
  %v43 = vadd.f32 %v39, %v41
  %v44 = vadd.f32 %v40, %v42
  %v45 = vld [vmem:[%s3] sm:$0xff]
  %v46 = vld [vmem:[%s3 + $0x8] sm:$0xff]
  %v47 = vadd.f32 %v43, %v45
  %v48 = vadd.f32 %v44, %v46
  %v49 = vld [vmem:[%s4] sm:$0xff]
  %v50 = vld [vmem:[%s4 + $0x8] sm:$0xff]
  %v51 = vadd.f32 %v47, %v49
  %v52 = vadd.f32 %v48, %v50
  %v53 = vld [vmem:[%s5] sm:$0xff]
  %v54 = vld [vmem:[%s5 + $0x8] sm:$0xff]
  %v55 = vadd.f32 %v51, %v53
  %v56 = vadd.f32 %v52, %v54
  %v57 = vld [vmem:[%s6] sm:$0xff]
  %v58 = vld [vmem:[%s6 + $0x8] sm:$0xff]
  %v59 = vadd.f32 %v55, %v57
  %v60 = vadd.f32 %v56, %v58
  %v61 = vld [vmem:[%s7] sm:$0xff]
  %v62 = vld [vmem:[%s7 + $0x8] sm:$0xff]
  %v63 = vadd.f32 %v59, %v61
  %v64 = vadd.f32 %v60, %v62
  %v65 = vld [vmem:[%s8] sm:$0xff]
  %v66 = vld [vmem:[%s8 + $0x8] sm:$0xff]
  %v67 = vadd.f32 %v63, %v65
  %v68 = vadd.f32 %v64, %v66
  %v69 = vld [vmem:[%s9] sm:$0x3]
  %v71 = vlaneseq
  %v72 = vshrl.u32 %v71, 7
  %v73 = vsub.s32 0, %v72
  %v74 = vrot.slane %v69, %v73
  %v75 = vlaneseq
  %v76 = vshrl.u32 %v75, 7
  %v77 = vsub.s32 1, %v76
  %v78 = vrot.slane %v69, %v77
  %v81 = vmul.f32 %v67, %v74
  %v82 = vmul.f32 %v68, %v78
  %83 = vst [vmem:[%s10] sm:$0xff] %v81
  %84 = vst [vmem:[%s10 + $0x8] sm:$0xff] %v82
  // Predicated region
  $region42: #{multiscale_discriminator_forward.34} parent=0 // pred_check
    _
  $region43: #{multiscale_discriminator_forward.34} parent=0 // pred_check_branch
    %86 = sbr.rel (0) target = $region45
  $region44: #{multiscale_discriminator_forward.34} parent=0 // pred_region
    _
  $region45: #{multiscale_discriminator_forward.34} parent=0 // pred_fallthru
    _
  // Predicated region
  $region46: #{multiscale_discriminator_forward.34} parent=0 // pred_check
    _
  $region47: #{multiscale_discriminator_forward.34} parent=0 // pred_check_branch
    %88 = sbr.rel (0) target = $region49
  $region48: #{multiscale_discriminator_forward.34} parent=0 // pred_region
    _
  $region49: #{multiscale_discriminator_forward.34} parent=0 // pred_fallthru
    _

// kernel: multiscale_discriminator_forward.35
$region0: #{multiscale_discriminator_forward.35}
  #allocation0 [shape = 'u32[]', space=smem, size = 0x4, offset = 0x4, fixed_abs, tag = 'smem constant byte address 0x4 - core index']
  #allocation1 [shape = 'u32[144,128]{1,0:T(1,128)}', space=vmem, size = 0x12000, scoped, tag = 'internal scratch']
  #allocation2 [shape = 'f32[56,128]{1,0:T(8,128)}', space=vmem, size = 0x7000, scoped, tag = 'scratch operand']
  %s0 = inlined_call_operand.vmem [shape: f32[56,128], index: 0, kind: input, shape index: {}]
  %s1 = inlined_call_operand.vmem [shape: f32[128,128], index: 1, kind: input, shape index: {}]
  %s2 = inlined_call_operand.vmem [shape: f32[1,128], index: 2, kind: input, shape index: {}]
  %s3 = inlined_call_operand.vmem [shape: f32[56,128], index: 3, kind: output, shape index: {}]
  %s4 = sld [smem:[#allocation0]]
  $region30: #{multiscale_discriminator_forward.35} parent=0
    _
  %s6 = ssub.s32 1, %s4
  %s7 = scalar_select 0, %s6, %s4
  // Predicated region
  $region2: #{multiscale_discriminator_forward.35} parent=0 // pred_check
    _
  $region3: #{multiscale_discriminator_forward.35} parent=0 // pred_check_branch
    %9 = sbr.rel (0) target = $region5
  $region4: #{multiscale_discriminator_forward.35} parent=0 // pred_region
    _
  $region5: #{multiscale_discriminator_forward.35} parent=0 // pred_fallthru
    _
  // Predicated region
  $region6: #{multiscale_discriminator_forward.35} parent=0 // pred_check
    _
  $region7: #{multiscale_discriminator_forward.35} parent=0 // pred_check_branch
    %11 = sbr.rel (0) target = $region9
  $region8: #{multiscale_discriminator_forward.35} parent=0 // pred_region
    _
  $region9: #{multiscale_discriminator_forward.35} parent=0 // pred_fallthru
    _
  // Predicated region
  $region10: #{multiscale_discriminator_forward.35} parent=0 // pred_check
    _
  $region11: #{multiscale_discriminator_forward.35} parent=0 // pred_check_branch
    %13 = sbr.rel (0) target = $region13
  $region12: #{multiscale_discriminator_forward.35} parent=0 // pred_region
    _
  $region13: #{multiscale_discriminator_forward.35} parent=0 // pred_fallthru
    _
  %p14 = scmp.eq.s32.totalorder 0, 0
  // Predicated region
  $region14: #{multiscale_discriminator_forward.35} parent=0 // pred_check
    %p15 = pneg %p14
  $region15: #{multiscale_discriminator_forward.35} parent=0 // pred_check_branch
    %17 = sbr.rel (%p15) target = $region17
  $region16: #{multiscale_discriminator_forward.35} parent=0 // pred_region
    %18 = vst [vmem:[#allocation2] sm:$0xff] 0.0
    %19 = vst [vmem:[#allocation2 + $0x8] sm:$0xff] 0.0
    %20 = vst [vmem:[#allocation2 + $0x10] sm:$0xff] 0.0
    %21 = vst [vmem:[#allocation2 + $0x18] sm:$0xff] 0.0
    %22 = vst [vmem:[#allocation2 + $0x20] sm:$0xff] 0.0
    %23 = vst [vmem:[#allocation2 + $0x28] sm:$0xff] 0.0
    %24 = vst [vmem:[#allocation2 + $0x30] sm:$0xff] 0.0
  $region17: #{multiscale_discriminator_forward.35} parent=0 // pred_fallthru
    _
  %v25 = vld [vmem:[#allocation2] sm:$0xff]
  %v26 = vld [vmem:[#allocation2 + $0x8] sm:$0xff]
  %v27 = vld [vmem:[#allocation2 + $0x10] sm:$0xff]
  %v28 = vld [vmem:[#allocation2 + $0x18] sm:$0xff]
  %v29 = vld [vmem:[#allocation2 + $0x20] sm:$0xff]
  %v30 = vld [vmem:[#allocation2 + $0x28] sm:$0xff]
  %v31 = vld [vmem:[#allocation2 + $0x30] sm:$0xff]
  %v32 = vld [vmem:[%s0] sm:$0xff]
  %v33 = vld [vmem:[%s0 + $0x8] sm:$0xff]
  %v34 = vld [vmem:[%s0 + $0x10] sm:$0xff]
  %v35 = vld [vmem:[%s0 + $0x18] sm:$0xff]
  %v36 = vld [vmem:[%s0 + $0x20] sm:$0xff]
  %v37 = vld [vmem:[%s0 + $0x28] sm:$0xff]
  %v38 = vld [vmem:[%s0 + $0x30] sm:$0xff]
  %v39 = vld [vmem:[%s1] sm:$0xff]
  %v40 = vld [vmem:[%s1 + $0x8] sm:$0xff]
  %v41 = vld [vmem:[%s1 + $0x10] sm:$0xff]
  %v42 = vld [vmem:[%s1 + $0x18] sm:$0xff]
  %v43 = vld [vmem:[%s1 + $0x20] sm:$0xff]
  %v44 = vld [vmem:[%s1 + $0x28] sm:$0xff]
  %v45 = vld [vmem:[%s1 + $0x30] sm:$0xff]
  %v46 = vld [vmem:[%s1 + $0x38] sm:$0xff]
  %v47 = vld [vmem:[%s1 + $0x40] sm:$0xff]
  %v48 = vld [vmem:[%s1 + $0x48] sm:$0xff]
  %v49 = vld [vmem:[%s1 + $0x50] sm:$0xff]
  %v50 = vld [vmem:[%s1 + $0x58] sm:$0xff]
  %v51 = vld [vmem:[%s1 + $0x60] sm:$0xff]
  %v52 = vld [vmem:[%s1 + $0x68] sm:$0xff]
  %v53 = vld [vmem:[%s1 + $0x70] sm:$0xff]
  %v54 = vld [vmem:[%s1 + $0x78] sm:$0xff]
  %55 = vmatprep.subr.mxu0 0.0
  %56 = vmatpush1.msra.mxu0 %v39
  %57 = vmatprep.subr.mxu0 0.0
  %58 = vmatpush1.msra.mxu0 %v40
  %59 = vmatprep.subr.mxu0 0.0
  %60 = vmatpush1.msra.mxu0 %v41
  %61 = vmatprep.subr.mxu0 0.0
  %62 = vmatpush1.msra.mxu0 %v42
  %63 = vmatprep.subr.mxu0 0.0
  %64 = vmatpush1.msra.mxu0 %v43
  %65 = vmatprep.subr.mxu0 0.0
  %66 = vmatpush1.msra.mxu0 %v44
  %67 = vmatprep.subr.mxu0 0.0
  %68 = vmatpush1.msra.mxu0 %v45
  %69 = vmatprep.subr.mxu0 0.0
  %70 = vmatpush1.msra.mxu0 %v46
  %71 = vmatprep.subr.mxu0 0.0
  %72 = vmatpush1.msra.mxu0 %v47
  %73 = vmatprep.subr.mxu0 0.0
  %74 = vmatpush1.msra.mxu0 %v48
  %75 = vmatprep.subr.mxu0 0.0
  %76 = vmatpush1.msra.mxu0 %v49
  %77 = vmatprep.subr.mxu0 0.0
  %78 = vmatpush1.msra.mxu0 %v50
  %79 = vmatprep.subr.mxu0 0.0
  %80 = vmatpush1.msra.mxu0 %v51
  %81 = vmatprep.subr.mxu0 0.0
  %82 = vmatpush1.msra.mxu0 %v52
  %83 = vmatprep.subr.mxu0 0.0
  %84 = vmatpush1.msra.mxu0 %v53
  %85 = vmatprep.subr.mxu0 0.0
  %86 = vmatpush1.msra.mxu0 %v54
  %87 = vmatprep.subr.mxu0 0.0
  %88 = vmatpush1.msra.mxu0 0.0
  %89 = vmatprep.subr.mxu0 0.0
  %90 = vmatpush1.msra.mxu0 0.0
  %91 = vmatprep.subr.mxu0 0.0
  %92 = vmatpush1.msra.mxu0 0.0
  %93 = vmatprep.subr.mxu0 0.0
  %94 = vmatpush1.msra.mxu0 0.0
  %95 = vmatprep.subr.mxu0 0.0
  %96 = vmatpush1.msra.mxu0 0.0
  %97 = vmatprep.subr.mxu0 0.0
  %98 = vmatpush1.msra.mxu0 0.0
  %99 = vmatprep.subr.mxu0 0.0
  %100 = vmatpush1.msra.mxu0 0.0
  %101 = vmatprep.subr.mxu0 0.0
  %102 = vmatpush1.msra.mxu0 0.0
  %103 = vmatprep.subr.mxu0 0.0
  %104 = vmatpush1.msra.mxu0 0.0
  %105 = vmatprep.subr.mxu0 0.0
  %106 = vmatpush1.msra.mxu0 0.0
  %107 = vmatprep.subr.mxu0 0.0
  %108 = vmatpush1.msra.mxu0 0.0
  %109 = vmatprep.subr.mxu0 0.0
  %110 = vmatpush1.msra.mxu0 0.0
  %111 = vmatprep.subr.mxu0 0.0
  %112 = vmatpush1.msra.mxu0 0.0
  %113 = vmatprep.subr.mxu0 0.0
  %114 = vmatpush1.msra.mxu0 0.0
  %115 = vmatprep.subr.mxu0 0.0
  %116 = vmatpush1.msra.mxu0 0.0
  %117 = vmatprep.subr.mxu0 0.0
  %118 = vmatpush1.msra.mxu0 0.0
  %119 = vmatprep.mubr.f32.mxu0 0.0
  %120 = vmatmul.mubr.f32.gmra.mrb[0].mxu0 %v32
  %v121 = vpop.f32.mrb[0].mxu0
  %v122 = vadd.f32 0.0, %v121
  %v123 = vpop.f32.mrb[0].mxu0
  %124 = vmatprep.mubr.f32.mxu0 0.0
  %125 = vmatmul.mubr.f32.gmra.mrb[0].mxu0 %v33
  %v126 = vpop.f32.mrb[0].mxu0
  %v127 = vadd.f32 0.0, %v126
  %v128 = vpop.f32.mrb[0].mxu0
  %129 = vmatprep.mubr.f32.mxu0 0.0
  %130 = vmatmul.mubr.f32.gmra.mrb[0].mxu0 %v34
  %v131 = vpop.f32.mrb[0].mxu0
  %v132 = vadd.f32 0.0, %v131
  %v133 = vpop.f32.mrb[0].mxu0
  %134 = vmatprep.mubr.f32.mxu0 0.0
  %135 = vmatmul.mubr.f32.gmra.mrb[0].mxu0 %v35
  %v136 = vpop.f32.mrb[0].mxu0
  %v137 = vadd.f32 0.0, %v136
  %v138 = vpop.f32.mrb[0].mxu0
  %139 = vmatprep.mubr.f32.mxu0 0.0
  %140 = vmatmul.mubr.f32.gmra.mrb[0].mxu0 %v36
  %v141 = vpop.f32.mrb[0].mxu0
  %v142 = vadd.f32 0.0, %v141
  %v143 = vpop.f32.mrb[0].mxu0
  %144 = vmatprep.mubr.f32.mxu0 0.0
  %145 = vmatmul.mubr.f32.gmra.mrb[0].mxu0 %v37
  %v146 = vpop.f32.mrb[0].mxu0
  %v147 = vadd.f32 0.0, %v146
  %v148 = vpop.f32.mrb[0].mxu0
  %149 = vmatprep.mubr.f32.mxu0 0.0
  %150 = vmatmul.mubr.f32.gmra.mrb[0].mxu0 %v38
  %v151 = vpop.f32.mrb[0].mxu0
  %v152 = vadd.f32 0.0, %v151
  %v153 = vpop.f32.mrb[0].mxu0
  %154 = vdwg.mxu0
  %v155 = vadd.f32 %v25, %v122
  %v156 = vadd.f32 %v26, %v127
  %v157 = vadd.f32 %v27, %v132
  %v158 = vadd.f32 %v28, %v137
  %v159 = vadd.f32 %v29, %v142
  %v160 = vadd.f32 %v30, %v147
  %v161 = vadd.f32 %v31, %v152
  %162 = vst [vmem:[#allocation2] sm:$0xff] %v155
  %163 = vst [vmem:[#allocation2 + $0x8] sm:$0xff] %v156
  %164 = vst [vmem:[#allocation2 + $0x10] sm:$0xff] %v157
  %165 = vst [vmem:[#allocation2 + $0x18] sm:$0xff] %v158
  %166 = vst [vmem:[#allocation2 + $0x20] sm:$0xff] %v159
  %167 = vst [vmem:[#allocation2 + $0x28] sm:$0xff] %v160
  %168 = vst [vmem:[#allocation2 + $0x30] sm:$0xff] %v161
  // Predicated region
  $region18: #{multiscale_discriminator_forward.35} parent=0 // pred_check
    %p169 = pneg %p14
  $region19: #{multiscale_discriminator_forward.35} parent=0 // pred_check_branch
    %171 = sbr.rel (%p169) target = $region21
  $region20: #{multiscale_discriminator_forward.35} parent=0 // pred_region
    %v172 = vld [vmem:[#allocation2] sm:$0xff]
    %v173 = vld [vmem:[#allocation2 + $0x8] sm:$0xff]
    %v174 = vld [vmem:[#allocation2 + $0x10] sm:$0xff]
    %v175 = vld [vmem:[#allocation2 + $0x18] sm:$0xff]
    %v176 = vld [vmem:[#allocation2 + $0x20] sm:$0xff]
    %v177 = vld [vmem:[#allocation2 + $0x28] sm:$0xff]
    %v178 = vld [vmem:[#allocation2 + $0x30] sm:$0xff]
    %v179 = vld [vmem:[%s2] sm:$0x1]
    %v181 = vlaneseq
    %v182 = vshrl.u32 %v181, 7
    %v183 = vsub.s32 0, %v182
    %v184 = vrot.slane %v179, %v183
    %v186 = vadd.f32 %v172, %v184
    %v187 = vadd.f32 %v173, %v184
    %v188 = vadd.f32 %v174, %v184
    %v189 = vadd.f32 %v175, %v184
    %v190 = vadd.f32 %v176, %v184
    %v191 = vadd.f32 %v177, %v184
    %v192 = vadd.f32 %v178, %v184
    %vm193 = vcmp.gt.f32.partialorder %v186, 0.0
    %vm194 = vcmp.gt.f32.partialorder %v187, 0.0
    %vm195 = vcmp.gt.f32.partialorder %v188, 0.0
    %vm196 = vcmp.gt.f32.partialorder %v189, 0.0
    %vm197 = vcmp.gt.f32.partialorder %v190, 0.0
    %vm198 = vcmp.gt.f32.partialorder %v191, 0.0
    %vm199 = vcmp.gt.f32.partialorder %v192, 0.0
    %v200 = vmul.f32 %v186, 0.2
    %v201 = vmul.f32 %v187, 0.2
    %v202 = vmul.f32 %v188, 0.2
    %v203 = vmul.f32 %v189, 0.2
    %v204 = vmul.f32 %v190, 0.2
    %v205 = vmul.f32 %v191, 0.2
    %v206 = vmul.f32 %v192, 0.2
    %v207 = vsel %vm193, %v186, %v200
    %v208 = vsel %vm194, %v187, %v201
    %v209 = vsel %vm195, %v188, %v202
    %v210 = vsel %vm196, %v189, %v203
    %v211 = vsel %vm197, %v190, %v204
    %v212 = vsel %vm198, %v191, %v205
    %v213 = vsel %vm199, %v192, %v206
    %214 = vst [vmem:[%s3] sm:$0xff] %v207
    %215 = vst [vmem:[%s3 + $0x8] sm:$0xff] %v208
    %216 = vst [vmem:[%s3 + $0x10] sm:$0xff] %v209
    %217 = vst [vmem:[%s3 + $0x18] sm:$0xff] %v210
    %218 = vst [vmem:[%s3 + $0x20] sm:$0xff] %v211
    %219 = vst [vmem:[%s3 + $0x28] sm:$0xff] %v212
    %220 = vst [vmem:[%s3 + $0x30] sm:$0xff] %v213
  $region21: #{multiscale_discriminator_forward.35} parent=0 // pred_fallthru
    _
  // Predicated region
  $region22: #{multiscale_discriminator_forward.35} parent=0 // pred_check
    _
  $region23: #{multiscale_discriminator_forward.35} parent=0 // pred_check_branch
    %222 = sbr.rel (0) target = $region25
  $region24: #{multiscale_discriminator_forward.35} parent=0 // pred_region
    _
  $region25: #{multiscale_discriminator_forward.35} parent=0 // pred_fallthru
    _
  // Predicated region
  $region26: #{multiscale_discriminator_forward.35} parent=0 // pred_check
    _
  $region27: #{multiscale_discriminator_forward.35} parent=0 // pred_check_branch
    %224 = sbr.rel (0) target = $region29
  $region28: #{multiscale_discriminator_forward.35} parent=0 // pred_region
    _
  $region29: #{multiscale_discriminator_forward.35} parent=0 // pred_fallthru
    _

// kernel: multiscale_discriminator_forward.36
$region0: #{multiscale_discriminator_forward.36}
  #allocation0 [shape = 'u32[]', space=smem, size = 0x4, offset = 0x4, fixed_abs, tag = 'smem constant byte address 0x4 - core index']
  #allocation1 [shape = 'u32[144,128]{1,0:T(1,128)}', space=vmem, size = 0x12000, scoped, tag = 'internal scratch']
  #allocation2 [shape = 'f32[24,128]{1,0:T(8,128)}', space=vmem, size = 0x3000, scoped, tag = 'scratch operand']
  %s0 = inlined_call_operand.vmem [shape: f32[24,128], index: 0, kind: input, shape index: {}]
  %s1 = inlined_call_operand.vmem [shape: f32[128,128], index: 1, kind: input, shape index: {}]
  %s2 = inlined_call_operand.vmem [shape: f32[1,128], index: 2, kind: input, shape index: {}]
  %s3 = inlined_call_operand.vmem [shape: f32[24,128], index: 3, kind: output, shape index: {}]
  %s4 = sld [smem:[#allocation0]]
  $region30: #{multiscale_discriminator_forward.36} parent=0
    _
  %s6 = ssub.s32 1, %s4
  %s7 = scalar_select 0, %s6, %s4
  // Predicated region
  $region2: #{multiscale_discriminator_forward.36} parent=0 // pred_check
    _
  $region3: #{multiscale_discriminator_forward.36} parent=0 // pred_check_branch
    %9 = sbr.rel (0) target = $region5
  $region4: #{multiscale_discriminator_forward.36} parent=0 // pred_region
    _
  $region5: #{multiscale_discriminator_forward.36} parent=0 // pred_fallthru
    _
  // Predicated region
  $region6: #{multiscale_discriminator_forward.36} parent=0 // pred_check
    _
  $region7: #{multiscale_discriminator_forward.36} parent=0 // pred_check_branch
    %11 = sbr.rel (0) target = $region9
  $region8: #{multiscale_discriminator_forward.36} parent=0 // pred_region
    _
  $region9: #{multiscale_discriminator_forward.36} parent=0 // pred_fallthru
    _
  // Predicated region
  $region10: #{multiscale_discriminator_forward.36} parent=0 // pred_check
    _
  $region11: #{multiscale_discriminator_forward.36} parent=0 // pred_check_branch
    %13 = sbr.rel (0) target = $region13
  $region12: #{multiscale_discriminator_forward.36} parent=0 // pred_region
    _
  $region13: #{multiscale_discriminator_forward.36} parent=0 // pred_fallthru
    _
  %p14 = scmp.eq.s32.totalorder 0, 0
  // Predicated region
  $region14: #{multiscale_discriminator_forward.36} parent=0 // pred_check
    %p15 = pneg %p14
  $region15: #{multiscale_discriminator_forward.36} parent=0 // pred_check_branch
    %17 = sbr.rel (%p15) target = $region17
  $region16: #{multiscale_discriminator_forward.36} parent=0 // pred_region
    %18 = vst [vmem:[#allocation2] sm:$0xff] 0.0
    %19 = vst [vmem:[#allocation2 + $0x8] sm:$0xff] 0.0
    %20 = vst [vmem:[#allocation2 + $0x10] sm:$0xff] 0.0
  $region17: #{multiscale_discriminator_forward.36} parent=0 // pred_fallthru
    _
  %v21 = vld [vmem:[#allocation2] sm:$0xff]
  %v22 = vld [vmem:[#allocation2 + $0x8] sm:$0xff]
  %v23 = vld [vmem:[#allocation2 + $0x10] sm:$0xff]
  %v24 = vld [vmem:[%s0] sm:$0xff]
  %v25 = vld [vmem:[%s0 + $0x8] sm:$0xff]
  %v26 = vld [vmem:[%s0 + $0x10] sm:$0xff]
  %v27 = vld [vmem:[%s1] sm:$0xff]
  %v28 = vld [vmem:[%s1 + $0x8] sm:$0xff]
  %v29 = vld [vmem:[%s1 + $0x10] sm:$0xff]
  %v30 = vld [vmem:[%s1 + $0x18] sm:$0xff]
  %v31 = vld [vmem:[%s1 + $0x20] sm:$0xff]
  %v32 = vld [vmem:[%s1 + $0x28] sm:$0xff]
  %v33 = vld [vmem:[%s1 + $0x30] sm:$0xff]
  %v34 = vld [vmem:[%s1 + $0x38] sm:$0xff]
  %v35 = vld [vmem:[%s1 + $0x40] sm:$0xff]
  %v36 = vld [vmem:[%s1 + $0x48] sm:$0xff]
  %v37 = vld [vmem:[%s1 + $0x50] sm:$0xff]
  %v38 = vld [vmem:[%s1 + $0x58] sm:$0xff]
  %v39 = vld [vmem:[%s1 + $0x60] sm:$0xff]
  %v40 = vld [vmem:[%s1 + $0x68] sm:$0xff]
  %v41 = vld [vmem:[%s1 + $0x70] sm:$0xff]
  %v42 = vld [vmem:[%s1 + $0x78] sm:$0xff]
  %43 = vmatprep.subr.mxu0 0.0
  %44 = vmatpush1.msra.mxu0 %v27
  %45 = vmatprep.subr.mxu0 0.0
  %46 = vmatpush1.msra.mxu0 %v28
  %47 = vmatprep.subr.mxu0 0.0
  %48 = vmatpush1.msra.mxu0 %v29
  %49 = vmatprep.subr.mxu0 0.0
  %50 = vmatpush1.msra.mxu0 %v30
  %51 = vmatprep.subr.mxu0 0.0
  %52 = vmatpush1.msra.mxu0 %v31
  %53 = vmatprep.subr.mxu0 0.0
  %54 = vmatpush1.msra.mxu0 %v32
  %55 = vmatprep.subr.mxu0 0.0
  %56 = vmatpush1.msra.mxu0 %v33
  %57 = vmatprep.subr.mxu0 0.0
  %58 = vmatpush1.msra.mxu0 %v34
  %59 = vmatprep.subr.mxu0 0.0
  %60 = vmatpush1.msra.mxu0 %v35
  %61 = vmatprep.subr.mxu0 0.0
  %62 = vmatpush1.msra.mxu0 %v36
  %63 = vmatprep.subr.mxu0 0.0
  %64 = vmatpush1.msra.mxu0 %v37
  %65 = vmatprep.subr.mxu0 0.0
  %66 = vmatpush1.msra.mxu0 %v38
  %67 = vmatprep.subr.mxu0 0.0
  %68 = vmatpush1.msra.mxu0 %v39
  %69 = vmatprep.subr.mxu0 0.0
  %70 = vmatpush1.msra.mxu0 %v40
  %71 = vmatprep.subr.mxu0 0.0
  %72 = vmatpush1.msra.mxu0 %v41
  %73 = vmatprep.subr.mxu0 0.0
  %74 = vmatpush1.msra.mxu0 %v42
  %75 = vmatprep.subr.mxu0 0.0
  %76 = vmatpush1.msra.mxu0 0.0
  %77 = vmatprep.subr.mxu0 0.0
  %78 = vmatpush1.msra.mxu0 0.0
  %79 = vmatprep.subr.mxu0 0.0
  %80 = vmatpush1.msra.mxu0 0.0
  %81 = vmatprep.subr.mxu0 0.0
  %82 = vmatpush1.msra.mxu0 0.0
  %83 = vmatprep.subr.mxu0 0.0
  %84 = vmatpush1.msra.mxu0 0.0
  %85 = vmatprep.subr.mxu0 0.0
  %86 = vmatpush1.msra.mxu0 0.0
  %87 = vmatprep.subr.mxu0 0.0
  %88 = vmatpush1.msra.mxu0 0.0
  %89 = vmatprep.subr.mxu0 0.0
  %90 = vmatpush1.msra.mxu0 0.0
  %91 = vmatprep.subr.mxu0 0.0
  %92 = vmatpush1.msra.mxu0 0.0
  %93 = vmatprep.subr.mxu0 0.0
  %94 = vmatpush1.msra.mxu0 0.0
  %95 = vmatprep.subr.mxu0 0.0
  %96 = vmatpush1.msra.mxu0 0.0
  %97 = vmatprep.subr.mxu0 0.0
  %98 = vmatpush1.msra.mxu0 0.0
  %99 = vmatprep.subr.mxu0 0.0
  %100 = vmatpush1.msra.mxu0 0.0
  %101 = vmatprep.subr.mxu0 0.0
  %102 = vmatpush1.msra.mxu0 0.0
  %103 = vmatprep.subr.mxu0 0.0
  %104 = vmatpush1.msra.mxu0 0.0
  %105 = vmatprep.subr.mxu0 0.0
  %106 = vmatpush1.msra.mxu0 0.0
  %107 = vmatprep.mubr.f32.mxu0 0.0
  %108 = vmatmul.mubr.f32.gmra.mrb[0].mxu0 %v24
  %v109 = vpop.f32.mrb[0].mxu0
  %v110 = vadd.f32 0.0, %v109
  %v111 = vpop.f32.mrb[0].mxu0
  %112 = vmatprep.mubr.f32.mxu0 0.0
  %113 = vmatmul.mubr.f32.gmra.mrb[0].mxu0 %v25
  %v114 = vpop.f32.mrb[0].mxu0
  %v115 = vadd.f32 0.0, %v114
  %v116 = vpop.f32.mrb[0].mxu0
  %117 = vmatprep.mubr.f32.mxu0 0.0
  %118 = vmatmul.mubr.f32.gmra.mrb[0].mxu0 %v26
  %v119 = vpop.f32.mrb[0].mxu0
  %v120 = vadd.f32 0.0, %v119
  %v121 = vpop.f32.mrb[0].mxu0
  %122 = vdwg.mxu0
  %v123 = vadd.f32 %v21, %v110
  %v124 = vadd.f32 %v22, %v115
  %v125 = vadd.f32 %v23, %v120
  %126 = vst [vmem:[#allocation2] sm:$0xff] %v123
  %127 = vst [vmem:[#allocation2 + $0x8] sm:$0xff] %v124
  %128 = vst [vmem:[#allocation2 + $0x10] sm:$0xff] %v125
  // Predicated region
  $region18: #{multiscale_discriminator_forward.36} parent=0 // pred_check
    %p129 = pneg %p14
  $region19: #{multiscale_discriminator_forward.36} parent=0 // pred_check_branch
    %131 = sbr.rel (%p129) target = $region21
  $region20: #{multiscale_discriminator_forward.36} parent=0 // pred_region
    %v132 = vld [vmem:[#allocation2] sm:$0xff]
    %v133 = vld [vmem:[#allocation2 + $0x8] sm:$0xff]
    %v134 = vld [vmem:[#allocation2 + $0x10] sm:$0xff]
    %v135 = vld [vmem:[%s2] sm:$0x1]
    %v137 = vlaneseq
    %v138 = vshrl.u32 %v137, 7
    %v139 = vsub.s32 0, %v138
    %v140 = vrot.slane %v135, %v139
    %v142 = vadd.f32 %v132, %v140
    %v143 = vadd.f32 %v133, %v140
    %v144 = vadd.f32 %v134, %v140
    %145 = vst [vmem:[%s3] sm:$0xff] %v142
    %146 = vst [vmem:[%s3 + $0x8] sm:$0xff] %v143
    %147 = vst [vmem:[%s3 + $0x10] sm:$0xff] %v144
  $region21: #{multiscale_discriminator_forward.36} parent=0 // pred_fallthru
    _
  // Predicated region
  $region22: #{multiscale_discriminator_forward.36} parent=0 // pred_check
    _
  $region23: #{multiscale_discriminator_forward.36} parent=0 // pred_check_branch
    %149 = sbr.rel (0) target = $region25
  $region24: #{multiscale_discriminator_forward.36} parent=0 // pred_region
    _
  $region25: #{multiscale_discriminator_forward.36} parent=0 // pred_fallthru
    _
  // Predicated region
  $region26: #{multiscale_discriminator_forward.36} parent=0 // pred_check
    _
  $region27: #{multiscale_discriminator_forward.36} parent=0 // pred_check_branch
    %151 = sbr.rel (0) target = $region29
  $region28: #{multiscale_discriminator_forward.36} parent=0 // pred_region
    _
  $region29: #{multiscale_discriminator_forward.36} parent=0 // pred_fallthru
    _

// kernel: multiscale_discriminator_forward.40
$region0: #{multiscale_discriminator_forward.40}
  #allocation0 [shape = 'u32[]', space=smem, size = 0x4, offset = 0x4, fixed_abs, tag = 'smem constant byte address 0x4 - core index']
  #allocation1 [shape = 'u32[144,128]{1,0:T(1,128)}', space=vmem, size = 0x12000, scoped, tag = 'internal scratch']
  %s0 = inlined_call_operand.vmem [shape: f32[8,128], index: 0, kind: input, shape index: {}]
  %s1 = inlined_call_operand.vmem [shape: f32[1,128], index: 1, kind: output, shape index: {0}]
  %s2 = inlined_call_operand.vmem [shape: f32[1,128], index: 2, kind: output, shape index: {1}]
  %3 = xla_tuple %s1, %s2
  %s4 = sld [smem:[#allocation0]]
  $region26: #{multiscale_discriminator_forward.40} parent=0
    _
  %s6 = ssub.s32 1, %s4
  %s7 = scalar_select 0, %s6, %s4
  // Predicated region
  $region2: #{multiscale_discriminator_forward.40} parent=0 // pred_check
    _
  $region3: #{multiscale_discriminator_forward.40} parent=0 // pred_check_branch
    %9 = sbr.rel (0) target = $region5
  $region4: #{multiscale_discriminator_forward.40} parent=0 // pred_region
    _
  $region5: #{multiscale_discriminator_forward.40} parent=0 // pred_fallthru
    _
  %p10 = scmp.eq.s32.totalorder 0, 0
  // Predicated region
  $region6: #{multiscale_discriminator_forward.40} parent=0 // pred_check
    %p11 = pneg %p10
  $region7: #{multiscale_discriminator_forward.40} parent=0 // pred_check_branch
    %13 = sbr.rel (%p11) target = $region9
  $region8: #{multiscale_discriminator_forward.40} parent=0 // pred_region
    %14 = vst [vmem:[%s1] sm:$0x1] 0.0
    %15 = vst [vmem:[%s2] sm:$0x1] 0.0
  $region9: #{multiscale_discriminator_forward.40} parent=0 // pred_fallthru
    _
  %v16 = vld [vmem:[%s0] sm:$0xff]
  %v17 = vld [vmem:[%s1] sm:$0x1]
  %v18 = vrot.slane %v16, 4
  %v19 = vadd.f32 %v16, %v18
  %v20 = vrot.slane %v19, 2
  %v21 = vadd.f32 %v19, %v20
  %v22 = vrot.slane %v21, 1
  %v23 = vadd.f32 %v21, %v22
  %v24 = vadd.f32 %v17, %v23
  %25 = vst [vmem:[%s1] sm:$0x1] %v24
  %v26 = vld [vmem:[%s2] sm:$0x1]
  %v27 = vmul.f32 %v16, %v16
  %v28 = vrot.slane %v27, 4
  %v29 = vadd.f32 %v27, %v28
  %v30 = vrot.slane %v29, 2
  %v31 = vadd.f32 %v29, %v30
  %v32 = vrot.slane %v31, 1
  %v33 = vadd.f32 %v31, %v32
  %v34 = vadd.f32 %v26, %v33
  %35 = vst [vmem:[%s2] sm:$0x1] %v34
  // Predicated region
  $region10: #{multiscale_discriminator_forward.40} parent=0 // pred_check
    _
  $region11: #{multiscale_discriminator_forward.40} parent=0 // pred_check_branch
    %37 = sbr.rel (0) target = $region13
  $region12: #{multiscale_discriminator_forward.40} parent=0 // pred_region
    _
  $region13: #{multiscale_discriminator_forward.40} parent=0 // pred_fallthru
    _
  // Predicated region
  $region14: #{multiscale_discriminator_forward.40} parent=0 // pred_check
    _
  $region15: #{multiscale_discriminator_forward.40} parent=0 // pred_check_branch
    %39 = sbr.rel (0) target = $region17
  $region16: #{multiscale_discriminator_forward.40} parent=0 // pred_region
    _
  $region17: #{multiscale_discriminator_forward.40} parent=0 // pred_fallthru
    _
  // Predicated region
  $region18: #{multiscale_discriminator_forward.40} parent=0 // pred_check
    _
  $region19: #{multiscale_discriminator_forward.40} parent=0 // pred_check_branch
    %41 = sbr.rel (0) target = $region21
  $region20: #{multiscale_discriminator_forward.40} parent=0 // pred_region
    _
  $region21: #{multiscale_discriminator_forward.40} parent=0 // pred_fallthru
    _
  // Predicated region
  $region22: #{multiscale_discriminator_forward.40} parent=0 // pred_check
    _
  $region23: #{multiscale_discriminator_forward.40} parent=0 // pred_check_branch
    %43 = sbr.rel (0) target = $region25
  $region24: #{multiscale_discriminator_forward.40} parent=0 // pred_region
    _
  $region25: #{multiscale_discriminator_forward.40} parent=0 // pred_fallthru
    _

// kernel: multiscale_discriminator_forward.41
$region0: #{multiscale_discriminator_forward.41}
  #allocation0 [shape = 'u32[]', space=smem, size = 0x4, offset = 0x4, fixed_abs, tag = 'smem constant byte address 0x4 - core index']
  #allocation1 [shape = 'u32[144,128]{1,0:T(1,128)}', space=vmem, size = 0x12000, scoped, tag = 'internal scratch']
  %s0 = inlined_call_operand.vmem [shape: f32[8,128], index: 0, kind: input, shape index: {}]
  %s1 = inlined_call_operand.vmem [shape: f32[1,128], index: 1, kind: input, shape index: {}]
  %s2 = inlined_call_operand.vmem [shape: f32[1,128], index: 2, kind: input, shape index: {}]
  %s3 = inlined_call_operand.vmem [shape: f32[1,128], index: 3, kind: input, shape index: {}]
  %s4 = inlined_call_operand.vmem [shape: f32[1,128], index: 4, kind: input, shape index: {}]
  %s5 = inlined_call_operand.vmem [shape: f32[8,128], index: 5, kind: output, shape index: {}]
  %s6 = sld [smem:[#allocation0]]
  $region30: #{multiscale_discriminator_forward.41} parent=0
    _
  %s8 = ssub.s32 1, %s6
  %s9 = scalar_select 0, %s8, %s6
  // Predicated region
  $region2: #{multiscale_discriminator_forward.41} parent=0 // pred_check
    _
  $region3: #{multiscale_discriminator_forward.41} parent=0 // pred_check_branch
    %11 = sbr.rel (0) target = $region5
  $region4: #{multiscale_discriminator_forward.41} parent=0 // pred_region
    _
  $region5: #{multiscale_discriminator_forward.41} parent=0 // pred_fallthru
    _
  // Predicated region
  $region6: #{multiscale_discriminator_forward.41} parent=0 // pred_check
    _
  $region7: #{multiscale_discriminator_forward.41} parent=0 // pred_check_branch
    %13 = sbr.rel (0) target = $region9
  $region8: #{multiscale_discriminator_forward.41} parent=0 // pred_region
    _
  $region9: #{multiscale_discriminator_forward.41} parent=0 // pred_fallthru
    _
  // Predicated region
  $region10: #{multiscale_discriminator_forward.41} parent=0 // pred_check
    _
  $region11: #{multiscale_discriminator_forward.41} parent=0 // pred_check_branch
    %15 = sbr.rel (0) target = $region13
  $region12: #{multiscale_discriminator_forward.41} parent=0 // pred_region
    _
  $region13: #{multiscale_discriminator_forward.41} parent=0 // pred_fallthru
    _
  // Predicated region
  $region14: #{multiscale_discriminator_forward.41} parent=0 // pred_check
    _
  $region15: #{multiscale_discriminator_forward.41} parent=0 // pred_check_branch
    %17 = sbr.rel (0) target = $region17
  $region16: #{multiscale_discriminator_forward.41} parent=0 // pred_region
    _
  $region17: #{multiscale_discriminator_forward.41} parent=0 // pred_fallthru
    _
  // Predicated region
  $region18: #{multiscale_discriminator_forward.41} parent=0 // pred_check
    _
  $region19: #{multiscale_discriminator_forward.41} parent=0 // pred_check_branch
    %19 = sbr.rel (0) target = $region21
  $region20: #{multiscale_discriminator_forward.41} parent=0 // pred_region
    _
  $region21: #{multiscale_discriminator_forward.41} parent=0 // pred_fallthru
    _
  %v20 = vld [vmem:[%s1] sm:$0x1]
  %v21 = vmul.f32 %v20, 0.125
  %v22 = vld [vmem:[%s2] sm:$0x1]
  %v23 = vmul.f32 %v22, 0.125
  %v24 = vmul.f32 %v21, %v21
  %v25 = vsub.f32 %v23, %v24
  %v26 = vmax.f32 %v25, 0.0
  %v27 = vadd.f32 %v26, 1e-05
  %v28 = vrsqrt.pop %v27
  %v29 = vld [vmem:[%s3] sm:$0x1]
  %v30 = vmul.f32 %v28, %v29
  %v31 = vld [vmem:[%s4] sm:$0x1]
  %v32 = vmul.f32 %v21, %v30
  %v33 = vsub.f32 %v31, %v32
  %v34 = vld [vmem:[%s0] sm:$0xff]
  %v36 = vlaneseq
  %v37 = vshrl.u32 %v36, 7
  %v38 = vsub.s32 0, %v37
  %v39 = vrot.slane %v30, %v38
  %v41 = vmul.f32 %v34, %v39
  %v43 = vlaneseq
  %v44 = vshrl.u32 %v43, 7
  %v45 = vsub.s32 0, %v44
  %v46 = vrot.slane %v33, %v45
  %v48 = vadd.f32 %v41, %v46
  %vm49 = vcmp.gt.f32.partialorder %v48, 0.0
  %v50 = vmul.f32 %v48, 0.2
  %v51 = vsel %vm49, %v48, %v50
  %52 = vst [vmem:[%s5] sm:$0xff] %v51
  // Predicated region
  $region22: #{multiscale_discriminator_forward.41} parent=0 // pred_check
    _
  $region23: #{multiscale_discriminator_forward.41} parent=0 // pred_check_branch
    %54 = sbr.rel (0) target = $region25
  $region24: #{multiscale_discriminator_forward.41} parent=0 // pred_region
    _
  $region25: #{multiscale_discriminator_forward.41} parent=0 // pred_fallthru
    _
  // Predicated region
  $region26: #{multiscale_discriminator_forward.41} parent=0 // pred_check
    _
  $region27: #{multiscale_discriminator_forward.41} parent=0 // pred_check_branch
    %56 = sbr.rel (0) target = $region29
  $region28: #{multiscale_discriminator_forward.41} parent=0 // pred_region
    _
  $region29: #{multiscale_discriminator_forward.41} parent=0 // pred_fallthru
    _

// kernel: multiscale_discriminator_forward.39
$region0: #{multiscale_discriminator_forward.39}
  #allocation0 [shape = 'u32[]', space=smem, size = 0x4, offset = 0x4, fixed_abs, tag = 'smem constant byte address 0x4 - core index']
  #allocation1 [shape = 'u32[144,128]{1,0:T(1,128)}', space=vmem, size = 0x12000, scoped, tag = 'internal scratch']
  #allocation2 [shape = 'f32[8,128]{1,0:T(8,128)}', space=vmem, size = 0x1000, scoped, tag = 'scratch operand']
  %s0 = inlined_call_operand.vmem [shape: f32[8,256], index: 0, kind: input, shape index: {}]
  %s1 = inlined_call_operand.vmem [shape: f32[256,128], index: 1, kind: input, shape index: {}]
  %s2 = inlined_call_operand.vmem [shape: f32[1,128], index: 2, kind: input, shape index: {}]
  %s3 = inlined_call_operand.vmem [shape: f32[8,128], index: 3, kind: output, shape index: {}]
  %s4 = sld [smem:[#allocation0]]
  $region30: #{multiscale_discriminator_forward.39} parent=0
    _
  %s6 = ssub.s32 1, %s4
  %s7 = scalar_select 0, %s6, %s4
  // Predicated region
  $region2: #{multiscale_discriminator_forward.39} parent=0 // pred_check
    _
  $region3: #{multiscale_discriminator_forward.39} parent=0 // pred_check_branch
    %9 = sbr.rel (0) target = $region5
  $region4: #{multiscale_discriminator_forward.39} parent=0 // pred_region
    _
  $region5: #{multiscale_discriminator_forward.39} parent=0 // pred_fallthru
    _
  // Predicated region
  $region6: #{multiscale_discriminator_forward.39} parent=0 // pred_check
    _
  $region7: #{multiscale_discriminator_forward.39} parent=0 // pred_check_branch
    %11 = sbr.rel (0) target = $region9
  $region8: #{multiscale_discriminator_forward.39} parent=0 // pred_region
    _
  $region9: #{multiscale_discriminator_forward.39} parent=0 // pred_fallthru
    _
  // Predicated region
  $region10: #{multiscale_discriminator_forward.39} parent=0 // pred_check
    _
  $region11: #{multiscale_discriminator_forward.39} parent=0 // pred_check_branch
    %13 = sbr.rel (0) target = $region13
  $region12: #{multiscale_discriminator_forward.39} parent=0 // pred_region
    _
  $region13: #{multiscale_discriminator_forward.39} parent=0 // pred_fallthru
    _
  %p14 = scmp.eq.s32.totalorder 0, 0
  // Predicated region
  $region14: #{multiscale_discriminator_forward.39} parent=0 // pred_check
    %p15 = pneg %p14
  $region15: #{multiscale_discriminator_forward.39} parent=0 // pred_check_branch
    %17 = sbr.rel (%p15) target = $region17
  $region16: #{multiscale_discriminator_forward.39} parent=0 // pred_region
    %18 = vst [vmem:[#allocation2] sm:$0xff] 0.0
  $region17: #{multiscale_discriminator_forward.39} parent=0 // pred_fallthru
    _
  %v19 = vld [vmem:[#allocation2] sm:$0xff]
  %v20 = vld [vmem:[%s0] sm:$0xff]
  %v21 = vld [vmem:[%s0 + $0x8] sm:$0xff]
  %v22 = vld [vmem:[%s1] sm:$0xff]
  %v23 = vld [vmem:[%s1 + $0x8] sm:$0xff]
  %v24 = vld [vmem:[%s1 + $0x10] sm:$0xff]
  %v25 = vld [vmem:[%s1 + $0x18] sm:$0xff]
  %v26 = vld [vmem:[%s1 + $0x20] sm:$0xff]
  %v27 = vld [vmem:[%s1 + $0x28] sm:$0xff]
  %v28 = vld [vmem:[%s1 + $0x30] sm:$0xff]
  %v29 = vld [vmem:[%s1 + $0x38] sm:$0xff]
  %v30 = vld [vmem:[%s1 + $0x40] sm:$0xff]
  %v31 = vld [vmem:[%s1 + $0x48] sm:$0xff]
  %v32 = vld [vmem:[%s1 + $0x50] sm:$0xff]
  %v33 = vld [vmem:[%s1 + $0x58] sm:$0xff]
  %v34 = vld [vmem:[%s1 + $0x60] sm:$0xff]
  %v35 = vld [vmem:[%s1 + $0x68] sm:$0xff]
  %v36 = vld [vmem:[%s1 + $0x70] sm:$0xff]
  %v37 = vld [vmem:[%s1 + $0x78] sm:$0xff]
  %v38 = vld [vmem:[%s1 + $0x80] sm:$0xff]
  %v39 = vld [vmem:[%s1 + $0x88] sm:$0xff]
  %v40 = vld [vmem:[%s1 + $0x90] sm:$0xff]
  %v41 = vld [vmem:[%s1 + $0x98] sm:$0xff]
  %v42 = vld [vmem:[%s1 + $0xa0] sm:$0xff]
  %v43 = vld [vmem:[%s1 + $0xa8] sm:$0xff]
  %v44 = vld [vmem:[%s1 + $0xb0] sm:$0xff]
  %v45 = vld [vmem:[%s1 + $0xb8] sm:$0xff]
  %v46 = vld [vmem:[%s1 + $0xc0] sm:$0xff]
  %v47 = vld [vmem:[%s1 + $0xc8] sm:$0xff]
  %v48 = vld [vmem:[%s1 + $0xd0] sm:$0xff]
  %v49 = vld [vmem:[%s1 + $0xd8] sm:$0xff]
  %v50 = vld [vmem:[%s1 + $0xe0] sm:$0xff]
  %v51 = vld [vmem:[%s1 + $0xe8] sm:$0xff]
  %v52 = vld [vmem:[%s1 + $0xf0] sm:$0xff]
  %v53 = vld [vmem:[%s1 + $0xf8] sm:$0xff]
  %54 = vmatprep.subr.mxu0 0.0
  %55 = vmatpush1.msra.mxu0 %v22
  %56 = vmatprep.subr.mxu0 0.0
  %57 = vmatpush1.msra.mxu0 %v23
  %58 = vmatprep.subr.mxu0 0.0
  %59 = vmatpush1.msra.mxu0 %v24
  %60 = vmatprep.subr.mxu0 0.0
  %61 = vmatpush1.msra.mxu0 %v25
  %62 = vmatprep.subr.mxu0 0.0
  %63 = vmatpush1.msra.mxu0 %v26
  %64 = vmatprep.subr.mxu0 0.0
  %65 = vmatpush1.msra.mxu0 %v27
  %66 = vmatprep.subr.mxu0 0.0
  %67 = vmatpush1.msra.mxu0 %v28
  %68 = vmatprep.subr.mxu0 0.0
  %69 = vmatpush1.msra.mxu0 %v29
  %70 = vmatprep.subr.mxu0 0.0
  %71 = vmatpush1.msra.mxu0 %v30
  %72 = vmatprep.subr.mxu0 0.0
  %73 = vmatpush1.msra.mxu0 %v31
  %74 = vmatprep.subr.mxu0 0.0
  %75 = vmatpush1.msra.mxu0 %v32
  %76 = vmatprep.subr.mxu0 0.0
  %77 = vmatpush1.msra.mxu0 %v33
  %78 = vmatprep.subr.mxu0 0.0
  %79 = vmatpush1.msra.mxu0 %v34
  %80 = vmatprep.subr.mxu0 0.0
  %81 = vmatpush1.msra.mxu0 %v35
  %82 = vmatprep.subr.mxu0 0.0
  %83 = vmatpush1.msra.mxu0 %v36
  %84 = vmatprep.subr.mxu0 0.0
  %85 = vmatpush1.msra.mxu0 %v37
  %86 = vmatprep.subr.mxu0 0.0
  %87 = vmatpush1.msra.mxu0 %v38
  %88 = vmatprep.subr.mxu0 0.0
  %89 = vmatpush1.msra.mxu0 %v39
  %90 = vmatprep.subr.mxu0 0.0
  %91 = vmatpush1.msra.mxu0 %v40
  %92 = vmatprep.subr.mxu0 0.0
  %93 = vmatpush1.msra.mxu0 %v41
  %94 = vmatprep.subr.mxu0 0.0
  %95 = vmatpush1.msra.mxu0 %v42
  %96 = vmatprep.subr.mxu0 0.0
  %97 = vmatpush1.msra.mxu0 %v43
  %98 = vmatprep.subr.mxu0 0.0
  %99 = vmatpush1.msra.mxu0 %v44
  %100 = vmatprep.subr.mxu0 0.0
  %101 = vmatpush1.msra.mxu0 %v45
  %102 = vmatprep.subr.mxu0 0.0
  %103 = vmatpush1.msra.mxu0 %v46
  %104 = vmatprep.subr.mxu0 0.0
  %105 = vmatpush1.msra.mxu0 %v47
  %106 = vmatprep.subr.mxu0 0.0
  %107 = vmatpush1.msra.mxu0 %v48
  %108 = vmatprep.subr.mxu0 0.0
  %109 = vmatpush1.msra.mxu0 %v49
  %110 = vmatprep.subr.mxu0 0.0
  %111 = vmatpush1.msra.mxu0 %v50
  %112 = vmatprep.subr.mxu0 0.0
  %113 = vmatpush1.msra.mxu0 %v51
  %114 = vmatprep.subr.mxu0 0.0
  %115 = vmatpush1.msra.mxu0 %v52
  %116 = vmatprep.subr.mxu0 0.0
  %117 = vmatpush1.msra.mxu0 %v53
  %118 = vmatprep.mubr.f32.mxu0 %v21
  %119 = vmatmul.mubr.f32.gmra.mrb[0].mxu0 %v20
  %v120 = vpop.f32.mrb[0].mxu0
  %v121 = vadd.f32 0.0, %v120
  %v122 = vpop.f32.mrb[0].mxu0
  %123 = vdwg.mxu0
  %v124 = vadd.f32 %v19, %v121
  %125 = vst [vmem:[#allocation2] sm:$0xff] %v124
  // Predicated region
  $region18: #{multiscale_discriminator_forward.39} parent=0 // pred_check
    %p126 = pneg %p14
  $region19: #{multiscale_discriminator_forward.39} parent=0 // pred_check_branch
    %128 = sbr.rel (%p126) target = $region21
  $region20: #{multiscale_discriminator_forward.39} parent=0 // pred_region
    %v129 = vld [vmem:[#allocation2] sm:$0xff]
    %v130 = vld [vmem:[%s2] sm:$0x1]
    %v132 = vlaneseq
    %v133 = vshrl.u32 %v132, 7
    %v134 = vsub.s32 0, %v133
    %v135 = vrot.slane %v130, %v134
    %v137 = vadd.f32 %v129, %v135
    %138 = vst [vmem:[%s3] sm:$0xff] %v137
  $region21: #{multiscale_discriminator_forward.39} parent=0 // pred_fallthru
    _
  // Predicated region
  $region22: #{multiscale_discriminator_forward.39} parent=0 // pred_check
    _
  $region23: #{multiscale_discriminator_forward.39} parent=0 // pred_check_branch
    %140 = sbr.rel (0) target = $region25
  $region24: #{multiscale_discriminator_forward.39} parent=0 // pred_region
    _
  $region25: #{multiscale_discriminator_forward.39} parent=0 // pred_fallthru
    _
  // Predicated region
  $region26: #{multiscale_discriminator_forward.39} parent=0 // pred_check
    _
  $region27: #{multiscale_discriminator_forward.39} parent=0 // pred_check_branch
    %142 = sbr.rel (0) target = $region29
  $region28: #{multiscale_discriminator_forward.39} parent=0 // pred_region
    _
  $region29: #{multiscale_discriminator_forward.39} parent=0 // pred_fallthru
    _

// kernel: multiscale_discriminator_forward.42
$region0: #{multiscale_discriminator_forward.42}
  #allocation0 [shape = 'u32[]', space=smem, size = 0x4, offset = 0x4, fixed_abs, tag = 'smem constant byte address 0x4 - core index']
  #allocation1 [shape = 'u32[144,128]{1,0:T(1,128)}', space=vmem, size = 0x12000, scoped, tag = 'internal scratch']
  #allocation2 [shape = 'f32[24,128]{1,0:T(8,128)}', space=vmem, size = 0x3000, scoped, tag = 'scratch operand']
  %s0 = inlined_call_operand.vmem [shape: f32[24,512], index: 0, kind: input, shape index: {}]
  %s1 = inlined_call_operand.vmem [shape: f32[512,128], index: 1, kind: input, shape index: {}]
  %s2 = inlined_call_operand.vmem [shape: f32[1,128], index: 2, kind: input, shape index: {}]
  %s3 = inlined_call_operand.vmem [shape: f32[24,128], index: 3, kind: output, shape index: {}]
  %s4 = sld [smem:[#allocation0]]
  $region76: #{multiscale_discriminator_forward.42} parent=0
    _
  %s6 = ssub.s32 1, %s4
  %s7 = scalar_select 0, %s6, %s4
  $region1: #{multiscale_discriminator_forward.42} parent=0
    #allocation3 [shape = 'u8[49152]{0}', space=vmem, size = 0xc000, scoped, tag = 'input window, operand 0']
    loop: start=0, step=1, limit=4
    $region2: #{multiscale_discriminator_forward.42} parent=1 // loop_pre_header
      _
    $region3: #{multiscale_discriminator_forward.42} parent=1 // loop_header
      %s9 = sphi 0, %s13
      %p10 = scmp.ge.s32.totalorder %s9, 4
      %s16 = sphi 0, %s35
      %s17 = sphi 0, %s31
      %s18 = sphi 0, %s27
      %s19 = sphi 0, %s16
      %s20 = sphi 0, %s17
      %s21 = sphi 0, %s18
      %s22 = sphi 0, %s19
      %s23 = sphi 0, %s20
      %s24 = sphi 0, %s21
      %s40 = sphi 0, %s42
      %s43 = sphi 0, %s40
      %s44 = sphi 0, %s43
      %s60 = sphi 0, %s44
      %s68 = sphi 0, %s70
      %s71 = sphi 0, %s68
      %s72 = sphi 0, %s71
      %s88 = sphi 0, %s72
      %s94 = sphi 0, %s96
      %s97 = sphi 0, %s94
      %s98 = sphi 0, %s97
      %s114 = sphi 0, %s98
      %s122 = sphi 0, %s124
      %s125 = sphi 0, %s122
      %s126 = sphi 0, %s125
      %s142 = sphi 0, %s126
    $region4: #{multiscale_discriminator_forward.42} parent=1 // loop_header_branch
      %12 = sbr.rel (%p10) target = $region8
    $region5: #{multiscale_discriminator_forward.42} parent=1 // loop_body
      %s14 = ssub.s32 %s9, 1
      %s15 = ssub.s32 %s9, 2
      %s25 = sadd.s32 1, %s18
      %p26 = scmp.ge.s32.totalorder %s25, 2
      %s27 = scalar_select %p26, 0, %s25
      %s28 = sadd.s32 1, %s17
      %s29 = scalar_select %p26, %s28, %s17
      %p30 = scmp.ge.s32.totalorder %s29, 1
      %s31 = scalar_select %p30, 0, %s29
      %s32 = sadd.s32 1, %s16
      %s33 = scalar_select %p30, %s32, %s16
      %p34 = scmp.ge.s32.totalorder %s33, 1
      %s35 = scalar_select %p34, 0, %s33
      %s36 = ssub.s32 %s16, %s35
      %s37 = ssub.s32 %s18, %s27
      %s38 = sor.u32 %s36, %s37
      %p39 = scmp.eq.s32.totalorder %s38, 0
      %s41 = sadd.s32 %s40, 1
      %s42 = scalar_select %p39, %s40, %s41
      %p45 = pneg %p39
      %p46 = scmp.eq.s32.totalorder %s9, 1
      %p47 = por %p45, %p46
      %p48 = scmp.ne.s32.totalorder %s40, %s43
      %p49 = scmp.eq.s32.totalorder %s9, 0
      %p50 = por %p48, %p49
      %p51 = scmp.ne.s32.totalorder %s40, %s43
      %p52 = scmp.eq.s32.totalorder %s14, 1
      %p53 = por %p51, %p52
      %p54 = scmp.ne.s32.totalorder %s43, %s44
      %p55 = scmp.eq.s32.totalorder %s14, 0
      %p56 = por %p54, %p55
      %p57 = scmp.ne.s32.totalorder %s43, %s44
      %p58 = scmp.eq.s32.totalorder %s15, 1
      %p59 = por %p57, %p58
      %p61 = scmp.ne.s32.totalorder %s44, %s60
      %p62 = scmp.eq.s32.totalorder %s15, 0
      %p63 = por %p61, %p62
      %s64 = ssub.s32 %s18, %s27
      %s65 = ssub.s32 %s17, %s31
      %s66 = sor.u32 %s64, %s65
      %p67 = scmp.eq.s32.totalorder %s66, 0
      %s69 = sadd.s32 %s68, 1
      %s70 = scalar_select %p67, %s68, %s69
      %p73 = pneg %p67
      %p74 = scmp.eq.s32.totalorder %s9, 1
      %p75 = por %p73, %p74
      %p76 = scmp.ne.s32.totalorder %s68, %s71
      %p77 = scmp.eq.s32.totalorder %s9, 0
      %p78 = por %p76, %p77
      %p79 = scmp.ne.s32.totalorder %s68, %s71
      %p80 = scmp.eq.s32.totalorder %s14, 1
      %p81 = por %p79, %p80
      %p82 = scmp.ne.s32.totalorder %s71, %s72
      %p83 = scmp.eq.s32.totalorder %s14, 0
      %p84 = por %p82, %p83
      %p85 = scmp.ne.s32.totalorder %s71, %s72
      %p86 = scmp.eq.s32.totalorder %s15, 1
      %p87 = por %p85, %p86
      %p89 = scmp.ne.s32.totalorder %s72, %s88
      %p90 = scmp.eq.s32.totalorder %s15, 0
      %p91 = por %p89, %p90
      %s92 = ssub.s32 %s17, %s31
      %p93 = scmp.eq.s32.totalorder %s92, 0
      %s95 = sadd.s32 %s94, 1
      %s96 = scalar_select %p93, %s94, %s95
      %p99 = pneg %p93
      %p100 = scmp.eq.s32.totalorder %s9, 1
      %p101 = por %p99, %p100
      %p102 = scmp.ne.s32.totalorder %s94, %s97
      %p103 = scmp.eq.s32.totalorder %s9, 0
      %p104 = por %p102, %p103
      %p105 = scmp.ne.s32.totalorder %s94, %s97
      %p106 = scmp.eq.s32.totalorder %s14, 1
      %p107 = por %p105, %p106
      %p108 = scmp.ne.s32.totalorder %s97, %s98
      %p109 = scmp.eq.s32.totalorder %s14, 0
      %p110 = por %p108, %p109
      %p111 = scmp.ne.s32.totalorder %s97, %s98
      %p112 = scmp.eq.s32.totalorder %s15, 1
      %p113 = por %p111, %p112
      %p115 = scmp.ne.s32.totalorder %s98, %s114
      %p116 = scmp.eq.s32.totalorder %s15, 0
      %p117 = por %p115, %p116
      %s118 = ssub.s32 %s16, %s35
      %s119 = ssub.s32 %s17, %s31
      %s120 = sor.u32 %s118, %s119
      %p121 = scmp.eq.s32.totalorder %s120, 0
      %s123 = sadd.s32 %s122, 1
      %s124 = scalar_select %p121, %s122, %s123
      %p127 = pneg %p121
      %p128 = scmp.eq.s32.totalorder %s9, 1
      %p129 = por %p127, %p128
      %p130 = scmp.ne.s32.totalorder %s122, %s125
      %p131 = scmp.eq.s32.totalorder %s9, 0
      %p132 = por %p130, %p131
      %p133 = scmp.ne.s32.totalorder %s122, %s125
      %p134 = scmp.eq.s32.totalorder %s14, 1
      %p135 = por %p133, %p134
      %p136 = scmp.ne.s32.totalorder %s125, %s126
      %p137 = scmp.eq.s32.totalorder %s14, 0
      %p138 = por %p136, %p137
      %p139 = scmp.ne.s32.totalorder %s125, %s126
      %p140 = scmp.eq.s32.totalorder %s15, 1
      %p141 = por %p139, %p140
      %p143 = scmp.ne.s32.totalorder %s126, %s142
      %p144 = scmp.eq.s32.totalorder %s15, 0
      %p145 = por %p143, %p144
      %p146 = scmp.le.s32.totalorder 1, %s9
      %p147 = scmp.lt.s32.totalorder %s9, 3
      %p148 = pnand %p146, %p147
      %p149 = pneg %p148
      // Predicated region
      $region9: #{multiscale_discriminator_forward.42} parent=5 // pred_check
        _
      $region10: #{multiscale_discriminator_forward.42} parent=5 // pred_check_branch
        %151 = sbr.rel (%p148) target = $region12
      $region11: #{multiscale_discriminator_forward.42} parent=5 // pred_region
        %s152 = ssub.s32 %s9, 1
        // Predicated region
        $region13: #{multiscale_discriminator_forward.42} parent=11 // pred_check
          %p153 = pneg %p110
        $region14: #{multiscale_discriminator_forward.42} parent=11 // pred_check_branch
          %155 = sbr.rel (%p153) target = $region16
        $region15: #{multiscale_discriminator_forward.42} parent=11 // pred_region
          %p156 = scmp.lt.s32.totalorder %s20, 0
          %s157 = scalar_select %p156, %s20, 0
          %s158 = scalar_lea.vmem %s2, %s157
        $region16: #{multiscale_discriminator_forward.42} parent=11 // pred_fallthru
          _
      $region12: #{multiscale_discriminator_forward.42} parent=5 // pred_fallthru
        _
      %p159 = scmp.lt.s32.totalorder %s9, 2
      // Predicated region
      $region17: #{multiscale_discriminator_forward.42} parent=5 // pred_check
        %p160 = pneg %p159
      $region18: #{multiscale_discriminator_forward.42} parent=5 // pred_check_branch
        %162 = sbr.rel (%p160) target = $region20
      $region19: #{multiscale_discriminator_forward.42} parent=5 // pred_region
        // Predicated region
        $region21: #{multiscale_discriminator_forward.42} parent=19 // pred_check
          %p163 = pneg %p50
        $region22: #{multiscale_discriminator_forward.42} parent=19 // pred_check_branch
          %165 = sbr.rel (%p163) target = $region24
        $region23: #{multiscale_discriminator_forward.42} parent=19 // pred_region
          %s166 = sand.u32 %s40, 1
          %s167 = sand.u32 %s40, 1
          %s168 = smul.addr %s167, 48
          %s169 = scalar_lea.vmem [#allocation3], %s168
          %s170 = smul.u32 3, %s16
          %s171 = smul.u32 2, %s18
          %s172 = smul.addr %s170, 4
          %s173 = sadd.s32 %s171, %s172
          %s174 = smul.addr %s173, 8
          %s175 = scalar_lea.vmem %s0, %s174
          // Predicated region
          $region25: #{multiscale_discriminator_forward.42} parent=23 // pred_check
            _
          $region26: #{multiscale_discriminator_forward.42} parent=23 // pred_check_branch
            %177 = sbr.rel (0) target = $region28
          $region27: #{multiscale_discriminator_forward.42} parent=23 // pred_region
            // Predicated region
            $region29: #{multiscale_discriminator_forward.42} parent=27 // pred_check
              _
            $region30: #{multiscale_discriminator_forward.42} parent=27 // pred_check_branch
              %179 = sbr.rel (0) target = $region32
            $region31: #{multiscale_discriminator_forward.42} parent=27 // pred_region
              loop: start=0, step=1, limit=1
              $region33: #{multiscale_discriminator_forward.42} parent=31 // loop_pre_header
                _
              $region34: #{multiscale_discriminator_forward.42} parent=31 // loop_header
                %s181 = sphi 0, %s185
                %p182 = scmp.ge.s32.totalorder %s181, 1
                %s186 = sphi %s175, %s175
                %s187 = sphi %s169, %s169
              $region35: #{multiscale_discriminator_forward.42} parent=31 // loop_header_branch
                %184 = sbr.rel (%p182) target = $region39
              $region36: #{multiscale_discriminator_forward.42} parent=31 // loop_body
                %v188 = vld [vmem:[%s186] sm:$0xff]
                %189 = vst [vmem:[%s187] sm:$0xff] %v188
                %v190 = vld [vmem:[%s186 + $0x8] sm:$0xff]
                %191 = vst [vmem:[%s187 + $0x8] sm:$0xff] %v190
                %v192 = vld [vmem:[%s186 + $0x20] sm:$0xff]
                %193 = vst [vmem:[%s187 + $0x10] sm:$0xff] %v192
                %v194 = vld [vmem:[%s186 + $0x28] sm:$0xff]
                %195 = vst [vmem:[%s187 + $0x18] sm:$0xff] %v194
                %v196 = vld [vmem:[%s186 + $0x40] sm:$0xff]
                %197 = vst [vmem:[%s187 + $0x20] sm:$0xff] %v196
                %v198 = vld [vmem:[%s186 + $0x48] sm:$0xff]
                %199 = vst [vmem:[%s187 + $0x28] sm:$0xff] %v198
              $region37: #{multiscale_discriminator_forward.42} parent=31 // loop_footer
                %s185 = sadd.s32 1, %s181
              $region38: #{multiscale_discriminator_forward.42} parent=31 // loop_footer_branch
                %180 = sbr.rel target = $region34
              $region39: #{multiscale_discriminator_forward.42} parent=31 // loop_exit
                _
            $region32: #{multiscale_discriminator_forward.42} parent=27 // pred_fallthru
              _
            // Predicated region
            $region40: #{multiscale_discriminator_forward.42} parent=27 // pred_check
              _
            $region41: #{multiscale_discriminator_forward.42} parent=27 // pred_check_branch
              %201 = sbr.rel target = $region43
            $region42: #{multiscale_discriminator_forward.42} parent=27 // pred_region
              _
            $region43: #{multiscale_discriminator_forward.42} parent=27 // pred_fallthru
              _
          $region28: #{multiscale_discriminator_forward.42} parent=23 // pred_fallthru
            _
          %202 = vnop
        $region24: #{multiscale_discriminator_forward.42} parent=19 // pred_fallthru
          _
        // Predicated region
        $region44: #{multiscale_discriminator_forward.42} parent=19 // pred_check
          %p203 = pneg %p78
        $region45: #{multiscale_discriminator_forward.42} parent=19 // pred_check_branch
          %205 = sbr.rel (%p203) target = $region47
        $region46: #{multiscale_discriminator_forward.42} parent=19 // pred_region
          %s206 = smul.u32 32, %s18
          %p207 = scmp.lt.s32.totalorder %s206, 63
          %s208 = scalar_select %p207, %s206, 63
          %p209 = scmp.lt.s32.totalorder %s17, 0
          %s210 = scalar_select %p209, %s17, 0
          %s211 = sadd.s32 %s210, %s208
          %s212 = smul.addr %s211, 8
          %s213 = scalar_lea.vmem %s1, %s212
          %s214 = smul.u32 32, %s18
        $region47: #{multiscale_discriminator_forward.42} parent=19 // pred_fallthru
          _
      $region20: #{multiscale_discriminator_forward.42} parent=5 // pred_fallthru
        _
      %p215 = scmp.le.s32.totalorder 1, %s9
      %p216 = scmp.lt.s32.totalorder %s9, 3
      %p217 = pnand %p215, %p216
      %p218 = pneg %p217
      // Predicated region
      $region48: #{multiscale_discriminator_forward.42} parent=5 // pred_check
        _
      $region49: #{multiscale_discriminator_forward.42} parent=5 // pred_check_branch
        %220 = sbr.rel (%p217) target = $region51
      $region50: #{multiscale_discriminator_forward.42} parent=5 // pred_region
        %s221 = ssub.s32 %s9, 1
        %s222 = sand.u32 %s43, 1
        %s223 = sand.u32 %s43, 1
        %s224 = smul.addr %s223, 48
        %s225 = scalar_lea.vmem [#allocation3], %s224
        // Predicated region
        $region52: #{multiscale_discriminator_forward.42} parent=50 // pred_check
          %p226 = pneg %p56
        $region53: #{multiscale_discriminator_forward.42} parent=50 // pred_check_branch
          %228 = sbr.rel (%p226) target = $region55
        $region54: #{multiscale_discriminator_forward.42} parent=50 // pred_region
          _
        $region55: #{multiscale_discriminator_forward.42} parent=50 // pred_fallthru
          _
        %s229 = sand.u32 %s43, 1
        %s230 = sand.u32 %s43, 1
        %s231 = smul.addr %s230, 48
        %s232 = scalar_lea.vmem [#allocation3], %s231
        %p233 = pneg %p56
        %p234 = pneg %p53
        %s235 = smul.u32 32, %s21
        %p236 = scmp.lt.s32.totalorder %s235, 63
        %s237 = scalar_select %p236, %s235, 63
        %p238 = scmp.lt.s32.totalorder %s20, 0
        %s239 = scalar_select %p238, %s20, 0
        %s240 = sadd.s32 %s239, %s237
        %s241 = smul.addr %s240, 8
        %s242 = scalar_lea.vmem %s1, %s241
        %p243 = pneg %p84
        %p244 = pneg %p81
        %p245 = scmp.lt.s32.totalorder %s20, 0
        %s246 = scalar_select %p245, %s20, 0
        %s247 = scalar_lea.vmem %s2, %s246
        %p248 = pneg %p110
        %p249 = pneg %p107
        %p250 = pneg %p138
        %p251 = pneg %p135
        %s252 = smul.u32 3, %s19
        %p253 = scmp.lt.s32.totalorder %s252, 2
        %s254 = scalar_select %p253, %s252, 2
        %p255 = scmp.lt.s32.totalorder %s20, 0
        %s256 = scalar_select %p255, %s20, 0
        %s257 = sadd.s32 %s256, %s254
        %s258 = smul.addr %s257, 8
        %s259 = scalar_lea.vmem %s3, %s258
        %s260 = smul.u32 3, %s19
        %s261 = smul.u32 2, %s21
        %s262 = smul.u32 32, %s21
        %p263 = scmp.lt.s32.totalorder %s262, 63
        %s264 = scalar_select %p263, %s262, 63
        %p265 = scmp.lt.s32.totalorder %s20, 0
        %s266 = scalar_select %p265, %s20, 0
        %s267 = sadd.s32 %s266, %s264
        %s268 = smul.addr %s267, 8
        %s269 = scalar_lea.vmem %s1, %s268
        %s270 = smul.u32 32, %s21
        %p271 = scmp.lt.s32.totalorder %s20, 0
        %s272 = scalar_select %p271, %s20, 0
        %s273 = scalar_lea.vmem %s2, %s272
        %s274 = smul.u32 3, %s19
        %p275 = scmp.lt.s32.totalorder %s274, 2
        %s276 = scalar_select %p275, %s274, 2
        %p277 = scmp.lt.s32.totalorder %s20, 0
        %s278 = scalar_select %p277, %s20, 0
        %s279 = sadd.s32 %s278, %s276
        %s280 = smul.addr %s279, 8
        %s281 = scalar_lea.vmem %s3, %s280
        %s282 = smul.u32 3, %s19
        %p283 = scmp.eq.s32.totalorder %s21, 0
        // Predicated region
        $region56: #{multiscale_discriminator_forward.42} parent=50 // pred_check
          %p284 = pneg %p283
        $region57: #{multiscale_discriminator_forward.42} parent=50 // pred_check_branch
          %286 = sbr.rel (%p284) target = $region59
        $region58: #{multiscale_discriminator_forward.42} parent=50 // pred_region
          %287 = vst [vmem:[#allocation2] sm:$0xff] 0.0
          %288 = vst [vmem:[#allocation2 + $0x8] sm:$0xff] 0.0
          %289 = vst [vmem:[#allocation2 + $0x10] sm:$0xff] 0.0
        $region59: #{multiscale_discriminator_forward.42} parent=50 // pred_fallthru
          _
        %v290 = vld [vmem:[#allocation2] sm:$0xff]
        %v291 = vld [vmem:[#allocation2 + $0x8] sm:$0xff]
        %v292 = vld [vmem:[#allocation2 + $0x10] sm:$0xff]
        %v293 = vld [vmem:[%s225] sm:$0xff]
        %v294 = vld [vmem:[%s225 + $0x8] sm:$0xff]
        %v295 = vld [vmem:[%s225 + $0x10] sm:$0xff]
        %v296 = vld [vmem:[%s225 + $0x18] sm:$0xff]
        %v297 = vld [vmem:[%s225 + $0x20] sm:$0xff]
        %v298 = vld [vmem:[%s225 + $0x28] sm:$0xff]
        %v299 = vld [vmem:[%s269] sm:$0xff]
        %v300 = vld [vmem:[%s269 + $0x8] sm:$0xff]
        %v301 = vld [vmem:[%s269 + $0x10] sm:$0xff]
        %v302 = vld [vmem:[%s269 + $0x18] sm:$0xff]
        %v303 = vld [vmem:[%s269 + $0x20] sm:$0xff]
        %v304 = vld [vmem:[%s269 + $0x28] sm:$0xff]
        %v305 = vld [vmem:[%s269 + $0x30] sm:$0xff]
        %v306 = vld [vmem:[%s269 + $0x38] sm:$0xff]
        %v307 = vld [vmem:[%s269 + $0x40] sm:$0xff]
        %v308 = vld [vmem:[%s269 + $0x48] sm:$0xff]
        %v309 = vld [vmem:[%s269 + $0x50] sm:$0xff]
        %v310 = vld [vmem:[%s269 + $0x58] sm:$0xff]
        %v311 = vld [vmem:[%s269 + $0x60] sm:$0xff]
        %v312 = vld [vmem:[%s269 + $0x68] sm:$0xff]
        %v313 = vld [vmem:[%s269 + $0x70] sm:$0xff]
        %v314 = vld [vmem:[%s269 + $0x78] sm:$0xff]
        %v315 = vld [vmem:[%s269 + $0x80] sm:$0xff]
        %v316 = vld [vmem:[%s269 + $0x88] sm:$0xff]
        %v317 = vld [vmem:[%s269 + $0x90] sm:$0xff]
        %v318 = vld [vmem:[%s269 + $0x98] sm:$0xff]
        %v319 = vld [vmem:[%s269 + $0xa0] sm:$0xff]
        %v320 = vld [vmem:[%s269 + $0xa8] sm:$0xff]
        %v321 = vld [vmem:[%s269 + $0xb0] sm:$0xff]
        %v322 = vld [vmem:[%s269 + $0xb8] sm:$0xff]
        %v323 = vld [vmem:[%s269 + $0xc0] sm:$0xff]
        %v324 = vld [vmem:[%s269 + $0xc8] sm:$0xff]
        %v325 = vld [vmem:[%s269 + $0xd0] sm:$0xff]
        %v326 = vld [vmem:[%s269 + $0xd8] sm:$0xff]
        %v327 = vld [vmem:[%s269 + $0xe0] sm:$0xff]
        %v328 = vld [vmem:[%s269 + $0xe8] sm:$0xff]
        %v329 = vld [vmem:[%s269 + $0xf0] sm:$0xff]
        %v330 = vld [vmem:[%s269 + $0xf8] sm:$0xff]
        %331 = vmatprep.subr.mxu0 0.0
        %332 = vmatpush1.msra.mxu0 %v299
        %333 = vmatprep.subr.mxu0 0.0
        %334 = vmatpush1.msra.mxu0 %v300
        %335 = vmatprep.subr.mxu0 0.0
        %336 = vmatpush1.msra.mxu0 %v301
        %337 = vmatprep.subr.mxu0 0.0
        %338 = vmatpush1.msra.mxu0 %v302
        %339 = vmatprep.subr.mxu0 0.0
        %340 = vmatpush1.msra.mxu0 %v303
        %341 = vmatprep.subr.mxu0 0.0
        %342 = vmatpush1.msra.mxu0 %v304
        %343 = vmatprep.subr.mxu0 0.0
        %344 = vmatpush1.msra.mxu0 %v305
        %345 = vmatprep.subr.mxu0 0.0
        %346 = vmatpush1.msra.mxu0 %v306
        %347 = vmatprep.subr.mxu0 0.0
        %348 = vmatpush1.msra.mxu0 %v307
        %349 = vmatprep.subr.mxu0 0.0
        %350 = vmatpush1.msra.mxu0 %v308
        %351 = vmatprep.subr.mxu0 0.0
        %352 = vmatpush1.msra.mxu0 %v309
        %353 = vmatprep.subr.mxu0 0.0
        %354 = vmatpush1.msra.mxu0 %v310
        %355 = vmatprep.subr.mxu0 0.0
        %356 = vmatpush1.msra.mxu0 %v311
        %357 = vmatprep.subr.mxu0 0.0
        %358 = vmatpush1.msra.mxu0 %v312
        %359 = vmatprep.subr.mxu0 0.0
        %360 = vmatpush1.msra.mxu0 %v313
        %361 = vmatprep.subr.mxu0 0.0
        %362 = vmatpush1.msra.mxu0 %v314
        %363 = vmatprep.subr.mxu0 0.0
        %364 = vmatpush1.msra.mxu0 %v315
        %365 = vmatprep.subr.mxu0 0.0
        %366 = vmatpush1.msra.mxu0 %v316
        %367 = vmatprep.subr.mxu0 0.0
        %368 = vmatpush1.msra.mxu0 %v317
        %369 = vmatprep.subr.mxu0 0.0
        %370 = vmatpush1.msra.mxu0 %v318
        %371 = vmatprep.subr.mxu0 0.0
        %372 = vmatpush1.msra.mxu0 %v319
        %373 = vmatprep.subr.mxu0 0.0
        %374 = vmatpush1.msra.mxu0 %v320
        %375 = vmatprep.subr.mxu0 0.0
        %376 = vmatpush1.msra.mxu0 %v321
        %377 = vmatprep.subr.mxu0 0.0
        %378 = vmatpush1.msra.mxu0 %v322
        %379 = vmatprep.subr.mxu0 0.0
        %380 = vmatpush1.msra.mxu0 %v323
        %381 = vmatprep.subr.mxu0 0.0
        %382 = vmatpush1.msra.mxu0 %v324
        %383 = vmatprep.subr.mxu0 0.0
        %384 = vmatpush1.msra.mxu0 %v325
        %385 = vmatprep.subr.mxu0 0.0
        %386 = vmatpush1.msra.mxu0 %v326
        %387 = vmatprep.subr.mxu0 0.0
        %388 = vmatpush1.msra.mxu0 %v327
        %389 = vmatprep.subr.mxu0 0.0
        %390 = vmatpush1.msra.mxu0 %v328
        %391 = vmatprep.subr.mxu0 0.0
        %392 = vmatpush1.msra.mxu0 %v329
        %393 = vmatprep.subr.mxu0 0.0
        %394 = vmatpush1.msra.mxu0 %v330
        %395 = vmatprep.mubr.f32.mxu0 %v294
        %396 = vmatmul.mubr.f32.gmra.mrb[0].mxu0 %v293
        %v397 = vpop.f32.mrb[0].mxu0
        %v398 = vadd.f32 0.0, %v397
        %v399 = vpop.f32.mrb[0].mxu0
        %400 = vmatprep.mubr.f32.mxu0 %v296
        %401 = vmatmul.mubr.f32.gmra.mrb[0].mxu0 %v295
        %v402 = vpop.f32.mrb[0].mxu0
        %v403 = vadd.f32 0.0, %v402
        %v404 = vpop.f32.mrb[0].mxu0
        %405 = vmatprep.mubr.f32.mxu0 %v298
        %406 = vmatmul.mubr.f32.gmra.mrb[0].mxu0 %v297
        %v407 = vpop.f32.mrb[0].mxu0
        %v408 = vadd.f32 0.0, %v407
        %v409 = vpop.f32.mrb[0].mxu0
        %410 = vdwg.mxu0
        %v411 = vadd.f32 %v290, %v398
        %v412 = vadd.f32 %v291, %v403
        %v413 = vadd.f32 %v292, %v408
        %414 = vst [vmem:[#allocation2] sm:$0xff] %v411
        %415 = vst [vmem:[#allocation2 + $0x8] sm:$0xff] %v412
        %416 = vst [vmem:[#allocation2 + $0x10] sm:$0xff] %v413
        %p417 = scmp.eq.s32.totalorder %s21, 1
        // Predicated region
        $region60: #{multiscale_discriminator_forward.42} parent=50 // pred_check
          %p418 = pneg %p417
        $region61: #{multiscale_discriminator_forward.42} parent=50 // pred_check_branch
          %420 = sbr.rel (%p418) target = $region63
        $region62: #{multiscale_discriminator_forward.42} parent=50 // pred_region
          %v421 = vld [vmem:[#allocation2] sm:$0xff]
          %v422 = vld [vmem:[#allocation2 + $0x8] sm:$0xff]
          %v423 = vld [vmem:[#allocation2 + $0x10] sm:$0xff]
          %v424 = vld [vmem:[%s273] sm:$0x1]
          %v426 = vlaneseq
          %v427 = vshrl.u32 %v426, 7
          %v428 = vsub.s32 0, %v427
          %v429 = vrot.slane %v424, %v428
          %v431 = vadd.f32 %v421, %v429
          %v432 = vadd.f32 %v422, %v429
          %v433 = vadd.f32 %v423, %v429
          %434 = vst [vmem:[%s281] sm:$0xff] %v431
          %435 = vst [vmem:[%s281 + $0x8] sm:$0xff] %v432
          %436 = vst [vmem:[%s281 + $0x10] sm:$0xff] %v433
        $region63: #{multiscale_discriminator_forward.42} parent=50 // pred_fallthru
          _
        %s437 = smul.u32 3, %s19
        %p438 = scmp.lt.s32.totalorder %s437, 2
        %s439 = scalar_select %p438, %s437, 2
        %p440 = scmp.lt.s32.totalorder %s20, 0
        %s441 = scalar_select %p440, %s20, 0
        %s442 = sadd.s32 %s441, %s439
        %s443 = smul.addr %s442, 8
        %s444 = scalar_lea.vmem %s3, %s443
        // Predicated region
        $region64: #{multiscale_discriminator_forward.42} parent=50 // pred_check
          %p445 = pneg %p135
        $region65: #{multiscale_discriminator_forward.42} parent=50 // pred_check_branch
          %447 = sbr.rel (%p445) target = $region67
        $region66: #{multiscale_discriminator_forward.42} parent=50 // pred_region
          %s448 = smul.u32 3, %s19
        $region67: #{multiscale_discriminator_forward.42} parent=50 // pred_fallthru
          _
        // Predicated region
        $region68: #{multiscale_discriminator_forward.42} parent=50 // pred_check
          %p449 = pneg %p135
        $region69: #{multiscale_discriminator_forward.42} parent=50 // pred_check_branch
          %451 = sbr.rel (%p449) target = $region71
        $region70: #{multiscale_discriminator_forward.42} parent=50 // pred_region
          %s452 = smul.u32 3, %s19
          %p453 = scmp.lt.s32.totalorder %s452, 2
          %s454 = scalar_select %p453, %s452, 2
          %p455 = scmp.lt.s32.totalorder %s20, 0
          %s456 = scalar_select %p455, %s20, 0
          %s457 = sadd.s32 %s456, %s454
          %s458 = smul.addr %s457, 8
          %s459 = scalar_lea.vmem %s3, %s458
        $region71: #{multiscale_discriminator_forward.42} parent=50 // pred_fallthru
          _
      $region51: #{multiscale_discriminator_forward.42} parent=5 // pred_fallthru
        _
      %p460 = scmp.le.s32.totalorder 2, %s9
      // Predicated region
      $region72: #{multiscale_discriminator_forward.42} parent=5 // pred_check
        %p461 = pneg %p460
      $region73: #{multiscale_discriminator_forward.42} parent=5 // pred_check_branch
        %463 = sbr.rel (%p461) target = $region75
      $region74: #{multiscale_discriminator_forward.42} parent=5 // pred_region
        %s464 = ssub.s32 %s9, 2
      $region75: #{multiscale_discriminator_forward.42} parent=5 // pred_fallthru
        _
    $region6: #{multiscale_discriminator_forward.42} parent=1 // loop_footer
      %s13 = sadd.s32 1, %s9
    $region7: #{multiscale_discriminator_forward.42} parent=1 // loop_footer_branch
      %8 = sbr.rel target = $region3
    $region8: #{multiscale_discriminator_forward.42} parent=1 // loop_exit
      _

// kernel: multiscale_discriminator_forward.45
$region0: #{multiscale_discriminator_forward.45}
  #allocation0 [shape = 'u32[]', space=smem, size = 0x4, offset = 0x4, fixed_abs, tag = 'smem constant byte address 0x4 - core index']
  #allocation1 [shape = 'u32[144,128]{1,0:T(1,128)}', space=vmem, size = 0x12000, scoped, tag = 'internal scratch']
  #allocation2 [shape = 'f32[32,128]{1,0:T(8,128)}', space=vmem, size = 0x4000, scoped, tag = 'scratch operand']
  %s0 = inlined_call_operand.vmem [shape: f32[32,1024], index: 0, kind: input, shape index: {}]
  %s1 = inlined_call_operand.vmem [shape: f32[1024,128], index: 1, kind: input, shape index: {}]
  %s2 = inlined_call_operand.vmem [shape: f32[1,128], index: 2, kind: input, shape index: {}]
  %s3 = inlined_call_operand.vmem [shape: f32[32,128], index: 3, kind: output, shape index: {}]
  %s4 = sld [smem:[#allocation0]]
  $region76: #{multiscale_discriminator_forward.45} parent=0
    _
  %s6 = ssub.s32 1, %s4
  %s7 = scalar_select 0, %s6, %s4
  $region1: #{multiscale_discriminator_forward.45} parent=0
    #allocation3 [shape = 'u8[65536]{0}', space=vmem, size = 0x10000, scoped, tag = 'input window, operand 0']
    loop: start=0, step=1, limit=6
    $region2: #{multiscale_discriminator_forward.45} parent=1 // loop_pre_header
      _
    $region3: #{multiscale_discriminator_forward.45} parent=1 // loop_header
      %s9 = sphi 0, %s13
      %p10 = scmp.ge.s32.totalorder %s9, 6
      %s16 = sphi 0, %s35
      %s17 = sphi 0, %s31
      %s18 = sphi 0, %s27
      %s19 = sphi 0, %s16
      %s20 = sphi 0, %s17
      %s21 = sphi 0, %s18
      %s22 = sphi 0, %s19
      %s23 = sphi 0, %s20
      %s24 = sphi 0, %s21
      %s40 = sphi 0, %s42
      %s43 = sphi 0, %s40
      %s44 = sphi 0, %s43
      %s60 = sphi 0, %s44
      %s68 = sphi 0, %s70
      %s71 = sphi 0, %s68
      %s72 = sphi 0, %s71
      %s88 = sphi 0, %s72
      %s94 = sphi 0, %s96
      %s97 = sphi 0, %s94
      %s98 = sphi 0, %s97
      %s114 = sphi 0, %s98
      %s122 = sphi 0, %s124
      %s125 = sphi 0, %s122
      %s126 = sphi 0, %s125
      %s142 = sphi 0, %s126
    $region4: #{multiscale_discriminator_forward.45} parent=1 // loop_header_branch
      %12 = sbr.rel (%p10) target = $region8
    $region5: #{multiscale_discriminator_forward.45} parent=1 // loop_body
      %s14 = ssub.s32 %s9, 1
      %s15 = ssub.s32 %s9, 2
      %s25 = sadd.s32 1, %s18
      %p26 = scmp.ge.s32.totalorder %s25, 4
      %s27 = scalar_select %p26, 0, %s25
      %s28 = sadd.s32 1, %s17
      %s29 = scalar_select %p26, %s28, %s17
      %p30 = scmp.ge.s32.totalorder %s29, 1
      %s31 = scalar_select %p30, 0, %s29
      %s32 = sadd.s32 1, %s16
      %s33 = scalar_select %p30, %s32, %s16
      %p34 = scmp.ge.s32.totalorder %s33, 1
      %s35 = scalar_select %p34, 0, %s33
      %s36 = ssub.s32 %s16, %s35
      %s37 = ssub.s32 %s18, %s27
      %s38 = sor.u32 %s36, %s37
      %p39 = scmp.eq.s32.totalorder %s38, 0
      %s41 = sadd.s32 %s40, 1
      %s42 = scalar_select %p39, %s40, %s41
      %p45 = pneg %p39
      %p46 = scmp.eq.s32.totalorder %s9, 3
      %p47 = por %p45, %p46
      %p48 = scmp.ne.s32.totalorder %s40, %s43
      %p49 = scmp.eq.s32.totalorder %s9, 0
      %p50 = por %p48, %p49
      %p51 = scmp.ne.s32.totalorder %s40, %s43
      %p52 = scmp.eq.s32.totalorder %s14, 3
      %p53 = por %p51, %p52
      %p54 = scmp.ne.s32.totalorder %s43, %s44
      %p55 = scmp.eq.s32.totalorder %s14, 0
      %p56 = por %p54, %p55
      %p57 = scmp.ne.s32.totalorder %s43, %s44
      %p58 = scmp.eq.s32.totalorder %s15, 3
      %p59 = por %p57, %p58
      %p61 = scmp.ne.s32.totalorder %s44, %s60
      %p62 = scmp.eq.s32.totalorder %s15, 0
      %p63 = por %p61, %p62
      %s64 = ssub.s32 %s18, %s27
      %s65 = ssub.s32 %s17, %s31
      %s66 = sor.u32 %s64, %s65
      %p67 = scmp.eq.s32.totalorder %s66, 0
      %s69 = sadd.s32 %s68, 1
      %s70 = scalar_select %p67, %s68, %s69
      %p73 = pneg %p67
      %p74 = scmp.eq.s32.totalorder %s9, 3
      %p75 = por %p73, %p74
      %p76 = scmp.ne.s32.totalorder %s68, %s71
      %p77 = scmp.eq.s32.totalorder %s9, 0
      %p78 = por %p76, %p77
      %p79 = scmp.ne.s32.totalorder %s68, %s71
      %p80 = scmp.eq.s32.totalorder %s14, 3
      %p81 = por %p79, %p80
      %p82 = scmp.ne.s32.totalorder %s71, %s72
      %p83 = scmp.eq.s32.totalorder %s14, 0
      %p84 = por %p82, %p83
      %p85 = scmp.ne.s32.totalorder %s71, %s72
      %p86 = scmp.eq.s32.totalorder %s15, 3
      %p87 = por %p85, %p86
      %p89 = scmp.ne.s32.totalorder %s72, %s88
      %p90 = scmp.eq.s32.totalorder %s15, 0
      %p91 = por %p89, %p90
      %s92 = ssub.s32 %s17, %s31
      %p93 = scmp.eq.s32.totalorder %s92, 0
      %s95 = sadd.s32 %s94, 1
      %s96 = scalar_select %p93, %s94, %s95
      %p99 = pneg %p93
      %p100 = scmp.eq.s32.totalorder %s9, 3
      %p101 = por %p99, %p100
      %p102 = scmp.ne.s32.totalorder %s94, %s97
      %p103 = scmp.eq.s32.totalorder %s9, 0
      %p104 = por %p102, %p103
      %p105 = scmp.ne.s32.totalorder %s94, %s97
      %p106 = scmp.eq.s32.totalorder %s14, 3
      %p107 = por %p105, %p106
      %p108 = scmp.ne.s32.totalorder %s97, %s98
      %p109 = scmp.eq.s32.totalorder %s14, 0
      %p110 = por %p108, %p109
      %p111 = scmp.ne.s32.totalorder %s97, %s98
      %p112 = scmp.eq.s32.totalorder %s15, 3
      %p113 = por %p111, %p112
      %p115 = scmp.ne.s32.totalorder %s98, %s114
      %p116 = scmp.eq.s32.totalorder %s15, 0
      %p117 = por %p115, %p116
      %s118 = ssub.s32 %s16, %s35
      %s119 = ssub.s32 %s17, %s31
      %s120 = sor.u32 %s118, %s119
      %p121 = scmp.eq.s32.totalorder %s120, 0
      %s123 = sadd.s32 %s122, 1
      %s124 = scalar_select %p121, %s122, %s123
      %p127 = pneg %p121
      %p128 = scmp.eq.s32.totalorder %s9, 3
      %p129 = por %p127, %p128
      %p130 = scmp.ne.s32.totalorder %s122, %s125
      %p131 = scmp.eq.s32.totalorder %s9, 0
      %p132 = por %p130, %p131
      %p133 = scmp.ne.s32.totalorder %s122, %s125
      %p134 = scmp.eq.s32.totalorder %s14, 3
      %p135 = por %p133, %p134
      %p136 = scmp.ne.s32.totalorder %s125, %s126
      %p137 = scmp.eq.s32.totalorder %s14, 0
      %p138 = por %p136, %p137
      %p139 = scmp.ne.s32.totalorder %s125, %s126
      %p140 = scmp.eq.s32.totalorder %s15, 3
      %p141 = por %p139, %p140
      %p143 = scmp.ne.s32.totalorder %s126, %s142
      %p144 = scmp.eq.s32.totalorder %s15, 0
      %p145 = por %p143, %p144
      %p146 = scmp.le.s32.totalorder 1, %s9
      %p147 = scmp.lt.s32.totalorder %s9, 5
      %p148 = pnand %p146, %p147
      %p149 = pneg %p148
      // Predicated region
      $region9: #{multiscale_discriminator_forward.45} parent=5 // pred_check
        _
      $region10: #{multiscale_discriminator_forward.45} parent=5 // pred_check_branch
        %151 = sbr.rel (%p148) target = $region12
      $region11: #{multiscale_discriminator_forward.45} parent=5 // pred_region
        %s152 = ssub.s32 %s9, 1
        // Predicated region
        $region13: #{multiscale_discriminator_forward.45} parent=11 // pred_check
          %p153 = pneg %p110
        $region14: #{multiscale_discriminator_forward.45} parent=11 // pred_check_branch
          %155 = sbr.rel (%p153) target = $region16
        $region15: #{multiscale_discriminator_forward.45} parent=11 // pred_region
          %p156 = scmp.lt.s32.totalorder %s20, 0
          %s157 = scalar_select %p156, %s20, 0
          %s158 = scalar_lea.vmem %s2, %s157
        $region16: #{multiscale_discriminator_forward.45} parent=11 // pred_fallthru
          _
      $region12: #{multiscale_discriminator_forward.45} parent=5 // pred_fallthru
        _
      %p159 = scmp.lt.s32.totalorder %s9, 4
      // Predicated region
      $region17: #{multiscale_discriminator_forward.45} parent=5 // pred_check
        %p160 = pneg %p159
      $region18: #{multiscale_discriminator_forward.45} parent=5 // pred_check_branch
        %162 = sbr.rel (%p160) target = $region20
      $region19: #{multiscale_discriminator_forward.45} parent=5 // pred_region
        // Predicated region
        $region21: #{multiscale_discriminator_forward.45} parent=19 // pred_check
          %p163 = pneg %p50
        $region22: #{multiscale_discriminator_forward.45} parent=19 // pred_check_branch
          %165 = sbr.rel (%p163) target = $region24
        $region23: #{multiscale_discriminator_forward.45} parent=19 // pred_region
          %s166 = sand.u32 %s40, 1
          %s167 = sand.u32 %s40, 1
          %s168 = smul.addr %s167, 64
          %s169 = scalar_lea.vmem [#allocation3], %s168
          %s170 = smul.u32 4, %s16
          %s171 = smul.u32 2, %s18
          %s172 = smul.addr %s170, 8
          %s173 = sadd.s32 %s171, %s172
          %s174 = smul.addr %s173, 8
          %s175 = scalar_lea.vmem %s0, %s174
          // Predicated region
          $region25: #{multiscale_discriminator_forward.45} parent=23 // pred_check
            _
          $region26: #{multiscale_discriminator_forward.45} parent=23 // pred_check_branch
            %177 = sbr.rel (0) target = $region28
          $region27: #{multiscale_discriminator_forward.45} parent=23 // pred_region
            // Predicated region
            $region29: #{multiscale_discriminator_forward.45} parent=27 // pred_check
              _
            $region30: #{multiscale_discriminator_forward.45} parent=27 // pred_check_branch
              %179 = sbr.rel (0) target = $region32
            $region31: #{multiscale_discriminator_forward.45} parent=27 // pred_region
              loop: start=0, step=1, limit=1
              $region33: #{multiscale_discriminator_forward.45} parent=31 // loop_pre_header
                _
              $region34: #{multiscale_discriminator_forward.45} parent=31 // loop_header
                %s181 = sphi 0, %s185
                %p182 = scmp.ge.s32.totalorder %s181, 1
                %s186 = sphi %s175, %s175
                %s187 = sphi %s169, %s169
              $region35: #{multiscale_discriminator_forward.45} parent=31 // loop_header_branch
                %184 = sbr.rel (%p182) target = $region39
              $region36: #{multiscale_discriminator_forward.45} parent=31 // loop_body
                %v188 = vld [vmem:[%s186] sm:$0xff]
                %189 = vst [vmem:[%s187] sm:$0xff] %v188
                %v190 = vld [vmem:[%s186 + $0x8] sm:$0xff]
                %191 = vst [vmem:[%s187 + $0x8] sm:$0xff] %v190
                %v192 = vld [vmem:[%s186 + $0x40] sm:$0xff]
                %193 = vst [vmem:[%s187 + $0x10] sm:$0xff] %v192
                %v194 = vld [vmem:[%s186 + $0x48] sm:$0xff]
                %195 = vst [vmem:[%s187 + $0x18] sm:$0xff] %v194
                %v196 = vld [vmem:[%s186 + $0x80] sm:$0xff]
                %197 = vst [vmem:[%s187 + $0x20] sm:$0xff] %v196
                %v198 = vld [vmem:[%s186 + $0x88] sm:$0xff]
                %199 = vst [vmem:[%s187 + $0x28] sm:$0xff] %v198
                %v200 = vld [vmem:[%s186 + $0xc0] sm:$0xff]
                %201 = vst [vmem:[%s187 + $0x30] sm:$0xff] %v200
                %v202 = vld [vmem:[%s186 + $0xc8] sm:$0xff]
                %203 = vst [vmem:[%s187 + $0x38] sm:$0xff] %v202
              $region37: #{multiscale_discriminator_forward.45} parent=31 // loop_footer
                %s185 = sadd.s32 1, %s181
              $region38: #{multiscale_discriminator_forward.45} parent=31 // loop_footer_branch
                %180 = sbr.rel target = $region34
              $region39: #{multiscale_discriminator_forward.45} parent=31 // loop_exit
                _
            $region32: #{multiscale_discriminator_forward.45} parent=27 // pred_fallthru
              _
            // Predicated region
            $region40: #{multiscale_discriminator_forward.45} parent=27 // pred_check
              _
            $region41: #{multiscale_discriminator_forward.45} parent=27 // pred_check_branch
              %205 = sbr.rel target = $region43
            $region42: #{multiscale_discriminator_forward.45} parent=27 // pred_region
              _
            $region43: #{multiscale_discriminator_forward.45} parent=27 // pred_fallthru
              _
          $region28: #{multiscale_discriminator_forward.45} parent=23 // pred_fallthru
            _
          %206 = vnop
        $region24: #{multiscale_discriminator_forward.45} parent=19 // pred_fallthru
          _
        // Predicated region
        $region44: #{multiscale_discriminator_forward.45} parent=19 // pred_check
          %p207 = pneg %p78
        $region45: #{multiscale_discriminator_forward.45} parent=19 // pred_check_branch
          %209 = sbr.rel (%p207) target = $region47
        $region46: #{multiscale_discriminator_forward.45} parent=19 // pred_region
          %s210 = smul.u32 32, %s18
          %p211 = scmp.lt.s32.totalorder %s210, 127
          %s212 = scalar_select %p211, %s210, 127
          %p213 = scmp.lt.s32.totalorder %s17, 0
          %s214 = scalar_select %p213, %s17, 0
          %s215 = sadd.s32 %s214, %s212
          %s216 = smul.addr %s215, 8
          %s217 = scalar_lea.vmem %s1, %s216
          %s218 = smul.u32 32, %s18
        $region47: #{multiscale_discriminator_forward.45} parent=19 // pred_fallthru
          _
      $region20: #{multiscale_discriminator_forward.45} parent=5 // pred_fallthru
        _
      %p219 = scmp.le.s32.totalorder 1, %s9
      %p220 = scmp.lt.s32.totalorder %s9, 5
      %p221 = pnand %p219, %p220
      %p222 = pneg %p221
      // Predicated region
      $region48: #{multiscale_discriminator_forward.45} parent=5 // pred_check
        _
      $region49: #{multiscale_discriminator_forward.45} parent=5 // pred_check_branch
        %224 = sbr.rel (%p221) target = $region51
      $region50: #{multiscale_discriminator_forward.45} parent=5 // pred_region
        %s225 = ssub.s32 %s9, 1
        %s226 = sand.u32 %s43, 1
        %s227 = sand.u32 %s43, 1
        %s228 = smul.addr %s227, 64
        %s229 = scalar_lea.vmem [#allocation3], %s228
        // Predicated region
        $region52: #{multiscale_discriminator_forward.45} parent=50 // pred_check
          %p230 = pneg %p56
        $region53: #{multiscale_discriminator_forward.45} parent=50 // pred_check_branch
          %232 = sbr.rel (%p230) target = $region55
        $region54: #{multiscale_discriminator_forward.45} parent=50 // pred_region
          _
        $region55: #{multiscale_discriminator_forward.45} parent=50 // pred_fallthru
          _
        %s233 = sand.u32 %s43, 1
        %s234 = sand.u32 %s43, 1
        %s235 = smul.addr %s234, 64
        %s236 = scalar_lea.vmem [#allocation3], %s235
        %p237 = pneg %p56
        %p238 = pneg %p53
        %s239 = smul.u32 32, %s21
        %p240 = scmp.lt.s32.totalorder %s239, 127
        %s241 = scalar_select %p240, %s239, 127
        %p242 = scmp.lt.s32.totalorder %s20, 0
        %s243 = scalar_select %p242, %s20, 0
        %s244 = sadd.s32 %s243, %s241
        %s245 = smul.addr %s244, 8
        %s246 = scalar_lea.vmem %s1, %s245
        %p247 = pneg %p84
        %p248 = pneg %p81
        %p249 = scmp.lt.s32.totalorder %s20, 0
        %s250 = scalar_select %p249, %s20, 0
        %s251 = scalar_lea.vmem %s2, %s250
        %p252 = pneg %p110
        %p253 = pneg %p107
        %p254 = pneg %p138
        %p255 = pneg %p135
        %s256 = smul.u32 4, %s19
        %p257 = scmp.lt.s32.totalorder %s256, 3
        %s258 = scalar_select %p257, %s256, 3
        %p259 = scmp.lt.s32.totalorder %s20, 0
        %s260 = scalar_select %p259, %s20, 0
        %s261 = sadd.s32 %s260, %s258
        %s262 = smul.addr %s261, 8
        %s263 = scalar_lea.vmem %s3, %s262
        %s264 = smul.u32 4, %s19
        %s265 = smul.u32 2, %s21
        %s266 = smul.u32 32, %s21
        %p267 = scmp.lt.s32.totalorder %s266, 127
        %s268 = scalar_select %p267, %s266, 127
        %p269 = scmp.lt.s32.totalorder %s20, 0
        %s270 = scalar_select %p269, %s20, 0
        %s271 = sadd.s32 %s270, %s268
        %s272 = smul.addr %s271, 8
        %s273 = scalar_lea.vmem %s1, %s272
        %s274 = smul.u32 32, %s21
        %p275 = scmp.lt.s32.totalorder %s20, 0
        %s276 = scalar_select %p275, %s20, 0
        %s277 = scalar_lea.vmem %s2, %s276
        %s278 = smul.u32 4, %s19
        %p279 = scmp.lt.s32.totalorder %s278, 3
        %s280 = scalar_select %p279, %s278, 3
        %p281 = scmp.lt.s32.totalorder %s20, 0
        %s282 = scalar_select %p281, %s20, 0
        %s283 = sadd.s32 %s282, %s280
        %s284 = smul.addr %s283, 8
        %s285 = scalar_lea.vmem %s3, %s284
        %s286 = smul.u32 4, %s19
        %p287 = scmp.eq.s32.totalorder %s21, 0
        // Predicated region
        $region56: #{multiscale_discriminator_forward.45} parent=50 // pred_check
          %p288 = pneg %p287
        $region57: #{multiscale_discriminator_forward.45} parent=50 // pred_check_branch
          %290 = sbr.rel (%p288) target = $region59
        $region58: #{multiscale_discriminator_forward.45} parent=50 // pred_region
          %291 = vst [vmem:[#allocation2] sm:$0xff] 0.0
          %292 = vst [vmem:[#allocation2 + $0x8] sm:$0xff] 0.0
          %293 = vst [vmem:[#allocation2 + $0x10] sm:$0xff] 0.0
          %294 = vst [vmem:[#allocation2 + $0x18] sm:$0xff] 0.0
        $region59: #{multiscale_discriminator_forward.45} parent=50 // pred_fallthru
          _
        %v295 = vld [vmem:[#allocation2] sm:$0xff]
        %v296 = vld [vmem:[#allocation2 + $0x8] sm:$0xff]
        %v297 = vld [vmem:[#allocation2 + $0x10] sm:$0xff]
        %v298 = vld [vmem:[#allocation2 + $0x18] sm:$0xff]
        %v299 = vld [vmem:[%s229] sm:$0xff]
        %v300 = vld [vmem:[%s229 + $0x8] sm:$0xff]
        %v301 = vld [vmem:[%s229 + $0x10] sm:$0xff]
        %v302 = vld [vmem:[%s229 + $0x18] sm:$0xff]
        %v303 = vld [vmem:[%s229 + $0x20] sm:$0xff]
        %v304 = vld [vmem:[%s229 + $0x28] sm:$0xff]
        %v305 = vld [vmem:[%s229 + $0x30] sm:$0xff]
        %v306 = vld [vmem:[%s229 + $0x38] sm:$0xff]
        %v307 = vld [vmem:[%s273] sm:$0xff]
        %v308 = vld [vmem:[%s273 + $0x8] sm:$0xff]
        %v309 = vld [vmem:[%s273 + $0x10] sm:$0xff]
        %v310 = vld [vmem:[%s273 + $0x18] sm:$0xff]
        %v311 = vld [vmem:[%s273 + $0x20] sm:$0xff]
        %v312 = vld [vmem:[%s273 + $0x28] sm:$0xff]
        %v313 = vld [vmem:[%s273 + $0x30] sm:$0xff]
        %v314 = vld [vmem:[%s273 + $0x38] sm:$0xff]
        %v315 = vld [vmem:[%s273 + $0x40] sm:$0xff]
        %v316 = vld [vmem:[%s273 + $0x48] sm:$0xff]
        %v317 = vld [vmem:[%s273 + $0x50] sm:$0xff]
        %v318 = vld [vmem:[%s273 + $0x58] sm:$0xff]
        %v319 = vld [vmem:[%s273 + $0x60] sm:$0xff]
        %v320 = vld [vmem:[%s273 + $0x68] sm:$0xff]
        %v321 = vld [vmem:[%s273 + $0x70] sm:$0xff]
        %v322 = vld [vmem:[%s273 + $0x78] sm:$0xff]
        %v323 = vld [vmem:[%s273 + $0x80] sm:$0xff]
        %v324 = vld [vmem:[%s273 + $0x88] sm:$0xff]
        %v325 = vld [vmem:[%s273 + $0x90] sm:$0xff]
        %v326 = vld [vmem:[%s273 + $0x98] sm:$0xff]
        %v327 = vld [vmem:[%s273 + $0xa0] sm:$0xff]
        %v328 = vld [vmem:[%s273 + $0xa8] sm:$0xff]
        %v329 = vld [vmem:[%s273 + $0xb0] sm:$0xff]
        %v330 = vld [vmem:[%s273 + $0xb8] sm:$0xff]
        %v331 = vld [vmem:[%s273 + $0xc0] sm:$0xff]
        %v332 = vld [vmem:[%s273 + $0xc8] sm:$0xff]
        %v333 = vld [vmem:[%s273 + $0xd0] sm:$0xff]
        %v334 = vld [vmem:[%s273 + $0xd8] sm:$0xff]
        %v335 = vld [vmem:[%s273 + $0xe0] sm:$0xff]
        %v336 = vld [vmem:[%s273 + $0xe8] sm:$0xff]
        %v337 = vld [vmem:[%s273 + $0xf0] sm:$0xff]
        %v338 = vld [vmem:[%s273 + $0xf8] sm:$0xff]
        %339 = vmatprep.subr.mxu0 0.0
        %340 = vmatpush1.msra.mxu0 %v307
        %341 = vmatprep.subr.mxu0 0.0
        %342 = vmatpush1.msra.mxu0 %v308
        %343 = vmatprep.subr.mxu0 0.0
        %344 = vmatpush1.msra.mxu0 %v309
        %345 = vmatprep.subr.mxu0 0.0
        %346 = vmatpush1.msra.mxu0 %v310
        %347 = vmatprep.subr.mxu0 0.0
        %348 = vmatpush1.msra.mxu0 %v311
        %349 = vmatprep.subr.mxu0 0.0
        %350 = vmatpush1.msra.mxu0 %v312
        %351 = vmatprep.subr.mxu0 0.0
        %352 = vmatpush1.msra.mxu0 %v313
        %353 = vmatprep.subr.mxu0 0.0
        %354 = vmatpush1.msra.mxu0 %v314
        %355 = vmatprep.subr.mxu0 0.0
        %356 = vmatpush1.msra.mxu0 %v315
        %357 = vmatprep.subr.mxu0 0.0
        %358 = vmatpush1.msra.mxu0 %v316
        %359 = vmatprep.subr.mxu0 0.0
        %360 = vmatpush1.msra.mxu0 %v317
        %361 = vmatprep.subr.mxu0 0.0
        %362 = vmatpush1.msra.mxu0 %v318
        %363 = vmatprep.subr.mxu0 0.0
        %364 = vmatpush1.msra.mxu0 %v319
        %365 = vmatprep.subr.mxu0 0.0
        %366 = vmatpush1.msra.mxu0 %v320
        %367 = vmatprep.subr.mxu0 0.0
        %368 = vmatpush1.msra.mxu0 %v321
        %369 = vmatprep.subr.mxu0 0.0
        %370 = vmatpush1.msra.mxu0 %v322
        %371 = vmatprep.subr.mxu0 0.0
        %372 = vmatpush1.msra.mxu0 %v323
        %373 = vmatprep.subr.mxu0 0.0
        %374 = vmatpush1.msra.mxu0 %v324
        %375 = vmatprep.subr.mxu0 0.0
        %376 = vmatpush1.msra.mxu0 %v325
        %377 = vmatprep.subr.mxu0 0.0
        %378 = vmatpush1.msra.mxu0 %v326
        %379 = vmatprep.subr.mxu0 0.0
        %380 = vmatpush1.msra.mxu0 %v327
        %381 = vmatprep.subr.mxu0 0.0
        %382 = vmatpush1.msra.mxu0 %v328
        %383 = vmatprep.subr.mxu0 0.0
        %384 = vmatpush1.msra.mxu0 %v329
        %385 = vmatprep.subr.mxu0 0.0
        %386 = vmatpush1.msra.mxu0 %v330
        %387 = vmatprep.subr.mxu0 0.0
        %388 = vmatpush1.msra.mxu0 %v331
        %389 = vmatprep.subr.mxu0 0.0
        %390 = vmatpush1.msra.mxu0 %v332
        %391 = vmatprep.subr.mxu0 0.0
        %392 = vmatpush1.msra.mxu0 %v333
        %393 = vmatprep.subr.mxu0 0.0
        %394 = vmatpush1.msra.mxu0 %v334
        %395 = vmatprep.subr.mxu0 0.0
        %396 = vmatpush1.msra.mxu0 %v335
        %397 = vmatprep.subr.mxu0 0.0
        %398 = vmatpush1.msra.mxu0 %v336
        %399 = vmatprep.subr.mxu0 0.0
        %400 = vmatpush1.msra.mxu0 %v337
        %401 = vmatprep.subr.mxu0 0.0
        %402 = vmatpush1.msra.mxu0 %v338
        %403 = vmatprep.mubr.f32.mxu0 %v300
        %404 = vmatmul.mubr.f32.gmra.mrb[0].mxu0 %v299
        %v405 = vpop.f32.mrb[0].mxu0
        %v406 = vadd.f32 0.0, %v405
        %v407 = vpop.f32.mrb[0].mxu0
        %408 = vmatprep.mubr.f32.mxu0 %v302
        %409 = vmatmul.mubr.f32.gmra.mrb[0].mxu0 %v301
        %v410 = vpop.f32.mrb[0].mxu0
        %v411 = vadd.f32 0.0, %v410
        %v412 = vpop.f32.mrb[0].mxu0
        %413 = vmatprep.mubr.f32.mxu0 %v304
        %414 = vmatmul.mubr.f32.gmra.mrb[0].mxu0 %v303
        %v415 = vpop.f32.mrb[0].mxu0
        %v416 = vadd.f32 0.0, %v415
        %v417 = vpop.f32.mrb[0].mxu0
        %418 = vmatprep.mubr.f32.mxu0 %v306
        %419 = vmatmul.mubr.f32.gmra.mrb[0].mxu0 %v305
        %v420 = vpop.f32.mrb[0].mxu0
        %v421 = vadd.f32 0.0, %v420
        %v422 = vpop.f32.mrb[0].mxu0
        %423 = vdwg.mxu0
        %v424 = vadd.f32 %v295, %v406
        %v425 = vadd.f32 %v296, %v411
        %v426 = vadd.f32 %v297, %v416
        %v427 = vadd.f32 %v298, %v421
        %428 = vst [vmem:[#allocation2] sm:$0xff] %v424
        %429 = vst [vmem:[#allocation2 + $0x8] sm:$0xff] %v425
        %430 = vst [vmem:[#allocation2 + $0x10] sm:$0xff] %v426
        %431 = vst [vmem:[#allocation2 + $0x18] sm:$0xff] %v427
        %p432 = scmp.eq.s32.totalorder %s21, 3
        // Predicated region
        $region60: #{multiscale_discriminator_forward.45} parent=50 // pred_check
          %p433 = pneg %p432
        $region61: #{multiscale_discriminator_forward.45} parent=50 // pred_check_branch
          %435 = sbr.rel (%p433) target = $region63
        $region62: #{multiscale_discriminator_forward.45} parent=50 // pred_region
          %v436 = vld [vmem:[#allocation2] sm:$0xff]
          %v437 = vld [vmem:[#allocation2 + $0x8] sm:$0xff]
          %v438 = vld [vmem:[#allocation2 + $0x10] sm:$0xff]
          %v439 = vld [vmem:[#allocation2 + $0x18] sm:$0xff]
          %v440 = vld [vmem:[%s277] sm:$0x1]
          %v442 = vlaneseq
          %v443 = vshrl.u32 %v442, 7
          %v444 = vsub.s32 0, %v443
          %v445 = vrot.slane %v440, %v444
          %v447 = vadd.f32 %v436, %v445
          %v448 = vadd.f32 %v437, %v445
          %v449 = vadd.f32 %v438, %v445
          %v450 = vadd.f32 %v439, %v445
          %451 = vst [vmem:[%s285] sm:$0xff] %v447
          %452 = vst [vmem:[%s285 + $0x8] sm:$0xff] %v448
          %453 = vst [vmem:[%s285 + $0x10] sm:$0xff] %v449
          %454 = vst [vmem:[%s285 + $0x18] sm:$0xff] %v450
        $region63: #{multiscale_discriminator_forward.45} parent=50 // pred_fallthru
          _
        %s455 = smul.u32 4, %s19
        %p456 = scmp.lt.s32.totalorder %s455, 3
        %s457 = scalar_select %p456, %s455, 3
        %p458 = scmp.lt.s32.totalorder %s20, 0
        %s459 = scalar_select %p458, %s20, 0
        %s460 = sadd.s32 %s459, %s457
        %s461 = smul.addr %s460, 8
        %s462 = scalar_lea.vmem %s3, %s461
        // Predicated region
        $region64: #{multiscale_discriminator_forward.45} parent=50 // pred_check
          %p463 = pneg %p135
        $region65: #{multiscale_discriminator_forward.45} parent=50 // pred_check_branch
          %465 = sbr.rel (%p463) target = $region67
        $region66: #{multiscale_discriminator_forward.45} parent=50 // pred_region
          %s466 = smul.u32 4, %s19
        $region67: #{multiscale_discriminator_forward.45} parent=50 // pred_fallthru
          _
        // Predicated region
        $region68: #{multiscale_discriminator_forward.45} parent=50 // pred_check
          %p467 = pneg %p135
        $region69: #{multiscale_discriminator_forward.45} parent=50 // pred_check_branch
          %469 = sbr.rel (%p467) target = $region71
        $region70: #{multiscale_discriminator_forward.45} parent=50 // pred_region
          %s470 = smul.u32 4, %s19
          %p471 = scmp.lt.s32.totalorder %s470, 3
          %s472 = scalar_select %p471, %s470, 3
          %p473 = scmp.lt.s32.totalorder %s20, 0
          %s474 = scalar_select %p473, %s20, 0
          %s475 = sadd.s32 %s474, %s472
          %s476 = smul.addr %s475, 8
          %s477 = scalar_lea.vmem %s3, %s476
        $region71: #{multiscale_discriminator_forward.45} parent=50 // pred_fallthru
          _
      $region51: #{multiscale_discriminator_forward.45} parent=5 // pred_fallthru
        _
      %p478 = scmp.le.s32.totalorder 2, %s9
      // Predicated region
      $region72: #{multiscale_discriminator_forward.45} parent=5 // pred_check
        %p479 = pneg %p478
      $region73: #{multiscale_discriminator_forward.45} parent=5 // pred_check_branch
        %481 = sbr.rel (%p479) target = $region75
      $region74: #{multiscale_discriminator_forward.45} parent=5 // pred_region
        %s482 = ssub.s32 %s9, 2
      $region75: #{multiscale_discriminator_forward.45} parent=5 // pred_fallthru
        _
    $region6: #{multiscale_discriminator_forward.45} parent=1 // loop_footer
      %s13 = sadd.s32 1, %s9
    $region7: #{multiscale_discriminator_forward.45} parent=1 // loop_footer_branch
      %8 = sbr.rel target = $region3
    $region8: #{multiscale_discriminator_forward.45} parent=1 // loop_exit
      _

</llo_original>
